<compile_context>
chip_gen: v7x
topology: tpu7x:2x2x1
jax: 0.10.0
libtpu: 0.0.40
codegen_flags: <defaults>
</compile_context>

<pallas_src>
import functools

import jax
import jax.numpy as jnp
from jax.experimental import pallas as pl
from jax.experimental.pallas import tpu as pltpu

_VMEM_LIMIT_BYTES = 48 * 1024 * 1024   # < v7x 64 MiB physical, > default scoped limits
_TILE_BUDGET = 16 * 1024 * 1024        # per-call buffer budget used to pick the M tile


def _round_up(x, m):
    return ((x + m - 1) // m) * m


def _choose_tm(m, k, cpad):
    """Largest M-tile whose (double-buffered) working set fits the budget."""
    cap = _round_up(min(m, 2048), 8)
    tm = 8
    for cand in (2048, 1024, 512, 256, 128, 64, 32, 16, 8):
        need = (2 * cand * k * 2          # P tile, bf16, double-buffered
                + 2 * k * cpad * 2        # W (resident, conservatively x2)
                + 2 * cand * cpad * 4     # output tile, f32 worst case, x2
                + 4 * 8 * cpad * 4)       # bias / stats slabs
        if need <= _TILE_BUDGET:
            tm = cand
            break
    return min(tm, cap)


# ----------------------------------------------------------------------------
# Pallas kernels
# ----------------------------------------------------------------------------
def _conv_bias_act_kernel(p_ref, w_ref, b_ref, o_ref, *, apply_lrelu):
    """im2col matmul (bf16 x bf16 -> f32 acc) + bias (+ optional LeakyReLU 0.2)."""
    acc = jnp.dot(p_ref[...], w_ref[...], preferred_element_type=jnp.float32)
    acc = acc + b_ref[...]                       # (TM, Cpad) + (1, Cpad), f32
    if apply_lrelu:
        acc = jnp.where(acc >= 0.0, acc, 0.2 * acc)
    o_ref[...] = acc.astype(o_ref.dtype)


def _conv_stats_kernel(p_ref, w_ref, o_ref, s_ref, *, m_real, tm):
    """im2col matmul + per-tile column sum / sum-of-squares (f32) for fused BN stats."""
    acc = jnp.dot(p_ref[...], w_ref[...], preferred_element_type=jnp.float32)
    o_ref[...] = acc.astype(o_ref.dtype)

    cpad = acc.shape[1]
    row = pl.program_id(0) * tm + jax.lax.broadcasted_iota(jnp.int32, acc.shape, 0)
    a = jnp.where(row < m_real, acc, 0.0)                      # mask padded rows
    colsum = jnp.sum(a, axis=0, keepdims=True)                 # (1, Cpad)
    colsq = jnp.sum(a * a, axis=0, keepdims=True)              # (1, Cpad)
    ridx = jax.lax.broadcasted_iota(jnp.int32, (8, cpad), 0)
    s_ref[...] = jnp.where(ridx == 0, colsum, jnp.where(ridx == 1, colsq, 0.0))


def _bn_lrelu_kernel(x_ref, s_ref, t_ref, o_ref):
    """Per-channel affine (folded batch-norm) + LeakyReLU 0.2, f32 math."""
    y = x_ref[...].astype(jnp.float32) * s_ref[...] + t_ref[...]
    o_ref[...] = jnp.where(y >= 0.0, y, 0.2 * y).astype(o_ref.dtype)


# ----------------------------------------------------------------------------
# Glue: im2col + pallas_call wrappers
# ----------------------------------------------------------------------------
def _im2col(x_nhwc, kh, kw, stride, pad):
    N, H, W, C = x_nhwc.shape
    xp = jnp.pad(x_nhwc, ((0, 0), (pad, pad), (pad, pad), (0, 0)))
    Ho = (H + 2 * pad - kh) // stride + 1
    Wo = (W + 2 * pad - kw) // stride + 1
    cols = []
    for i in range(kh):
        for j in range(kw):
            cols.append(
                xp[:, i:i + stride * (Ho - 1) + 1:stride,
                      j:j + stride * (Wo - 1) + 1:stride, :])      # [N,Ho,Wo,C]
    patches = jnp.stack(cols, axis=-2)                             # [N,Ho,Wo,16,C]
    return patches.reshape(N * Ho * Wo, kh * kw * C), Ho, Wo


def _prep_patches(x_nhwc, stride):
    patches, Ho, Wo = _im2col(x_nhwc, 4, 4, stride, 2)
    M, K = patches.shape
    cpad = None  # filled by caller
    return patches, M, K, Ho, Wo


def pallas_conv_bias_act(x_nhwc, w, b, *, stride, apply_lrelu, out_dtype):
    """Conv2d(k=4, pad=2) + bias (+LeakyReLU) as one tiled MXU kernel."""
    N = x_nhwc.shape[0]
    patches, M, K, Ho, Wo = _prep_patches(x_nhwc, stride)
    Cpad = w.shape[1]
    tm = _choose_tm(M, K, Cpad)
    m_pad = _round_up(M, tm)
    if m_pad != M:
        patches = jnp.pad(patches, ((0, m_pad - M), (0, 0)))
    gm = m_pad // tm

    out = pl.pallas_call(
        functools.partial(_conv_bias_act_kernel, apply_lrelu=apply_lrelu),
        out_shape=jax.ShapeDtypeStruct((m_pad, Cpad), out_dtype),
        grid=(gm,),
        in_specs=[
            pl.BlockSpec((tm, K), lambda i: (i, 0)),
            pl.BlockSpec((K, Cpad), lambda i: (0, 0)),
            pl.BlockSpec((1, Cpad), lambda i: (0, 0)),
        ],
        out_specs=pl.BlockSpec((tm, Cpad), lambda i: (i, 0)),
        compiler_params=pltpu.CompilerParams(
            dimension_semantics=("parallel",),
            vmem_limit_bytes=_VMEM_LIMIT_BYTES),
    )(patches, w, b.reshape(1, Cpad))
    return out[:M].reshape(N, Ho, Wo, Cpad)


def pallas_conv_bn_lrelu(x_nhwc, p, *, stride, eps=1e-5):
    """Conv2d (no bias) + BatchNorm (training-mode batch stats) + LeakyReLU(0.2).

    Pass 1 (Pallas): tiled conv matmul, also emits per-tile column sum / sumsq.
    Tiny JAX step: fold stats + gamma/beta into per-channel scale/shift.
    Pass 2 (Pallas): tiled scale/shift + LeakyReLU apply.
    """
    N = x_nhwc.shape[0]
    patches, M, K, Ho, Wo = _prep_patches(x_nhwc, stride)
    Cpad = p["w"].shape[1]
    tm = _choose_tm(M, K, Cpad)
    m_pad = _round_up(M, tm)
    if m_pad != M:
        patches = jnp.pad(patches, ((0, m_pad - M), (0, 0)))
    gm = m_pad // tm

    cparams = pltpu.CompilerParams(
        dimension_semantics=("parallel",),
        vmem_limit_bytes=_VMEM_LIMIT_BYTES)

    conv_out, stats = pl.pallas_call(
        functools.partial(_conv_stats_kernel, m_real=M, tm=tm),
        out_shape=(jax.ShapeDtypeStruct((m_pad, Cpad), jnp.bfloat16),
                   jax.ShapeDtypeStruct((gm * 8, Cpad), jnp.float32)),
        grid=(gm,),
        in_specs=[
            pl.BlockSpec((tm, K), lambda i: (i, 0)),
            pl.BlockSpec((K, Cpad), lambda i: (0, 0)),
        ],
        out_specs=(pl.BlockSpec((tm, Cpad), lambda i: (i, 0)),
                   pl.BlockSpec((8, Cpad), lambda i: (i, 0))),
        compiler_params=cparams,
    )(patches, p["w"])

    # Fold batch stats (biased variance, training-mode BN) + gamma/beta -> scale/shift.
    stats = stats.reshape(gm, 8, Cpad)
    s1 = jnp.sum(stats[:, 0, :], axis=0)
    s2 = jnp.sum(stats[:, 1, :], axis=0)
    mean = s1 / M
    var = jnp.maximum(s2 / M - mean * mean, 0.0)
    scale = p["gamma"] / jnp.sqrt(var + eps)
    shift = p["beta"] - mean * scale

    act = pl.pallas_call(
        _bn_lrelu_kernel,
        out_shape=jax.ShapeDtypeStruct((m_pad, Cpad), jnp.bfloat16),
        grid=(gm,),
        in_specs=[
            pl.BlockSpec((tm, Cpad), lambda i: (i, 0)),
            pl.BlockSpec((1, Cpad), lambda i: (0, 0)),
            pl.BlockSpec((1, Cpad), lambda i: (0, 0)),
        ],
        out_specs=pl.BlockSpec((tm, Cpad), lambda i: (i, 0)),
        compiler_params=cparams,
    )(conv_out, scale.reshape(1, Cpad), shift.reshape(1, Cpad))
    return act[:M].reshape(N, Ho, Wo, Cpad)


# ----------------------------------------------------------------------------
# Parameter construction (deterministic; mirrors the PyTorch __init__ shapes,
# zero-padded to lane-dense / K-aligned layouts)
# ----------------------------------------------------------------------------
def _make_conv_params(key, cin, cout, cin_pad, cout_pad, has_bias, has_bn):
    kw_, kb = jax.random.split(key)
    w = 0.02 * jax.random.normal(kw_, (cout, cin, 4, 4), jnp.float32)      # torch layout
    w = jnp.transpose(w, (2, 3, 1, 0))                                     # (kh,kw,cin,cout)
    w = jnp.pad(w, ((0, 0), (0, 0), (0, cin_pad - cin), (0, cout_pad - cout)))
    w_flat = w.reshape(4 * 4 * cin_pad, cout_pad).astype(jnp.bfloat16)     # K-major rows
    b = jnp.zeros((cout_pad,), jnp.float32)
    if has_bias:
        b = b.at[:cout].set(0.02 * jax.random.normal(kb, (cout,), jnp.float32))
    p = {"w": w_flat, "b": b}
    if has_bn:
        p["gamma"] = jnp.zeros((cout_pad,), jnp.float32).at[:cout].set(1.0)  # BN default
        p["beta"] = jnp.zeros((cout_pad,), jnp.float32)
    return p


def init_params(key, input_nc, ndf):
    # (name, cin, cout, has_bias, has_bn)  -- use_bias=False because norm is BatchNorm2d
    cfg = [
        ("c1", input_nc, ndf,     True,  False),   # scale1
        ("c2", ndf,      ndf * 2, False, True),
        ("c3", ndf * 2,  ndf * 4, False, True),
        ("c4", ndf * 4,  ndf * 4, False, True),    # scale1_output
        ("c5", ndf * 4,  1,       True,  False),
        ("c6", ndf * 4,  ndf * 8, False, True),    # scale2
        ("c7", ndf * 8,  ndf * 8, False, True),
        ("c8", ndf * 8,  ndf * 8, False, True),
        ("c9", ndf * 8,  1,       True,  False),
    ]
    params = {}
    keys = jax.random.split(key, len(cfg))
    for k, (name, cin, cout, hb, hbn) in zip(keys, cfg):
        # network input channels padded to 8 (=> K multiple of 128);
        # intermediate activations carry 128-padded channels.
        cin_pad = _round_up(cin, 8) if name == "c1" else _round_up(cin, 128)
        cout_pad = _round_up(cout, 128)
        params[name] = _make_conv_params(k, cin, cout, cin_pad, cout_pad, hb, hbn)
    return params


# ----------------------------------------------------------------------------
# Forward pass (matches MultiDiscriminator.forward; BN uses batch statistics,
# i.e. a freshly-constructed PyTorch module in train mode, not eval running stats)
# ----------------------------------------------------------------------------
@jax.jit
def multi_discriminator_forward(params, x_nchw):
    x = jnp.transpose(x_nchw, (0, 2, 3, 1)).astype(jnp.float32)   # NCHW -> NHWC
    cin = x.shape[-1]
    cin_pad = _round_up(cin, 8)
    if cin_pad != cin:
        x = jnp.pad(x, ((0, 0), (0, 0), (0, 0), (0, cin_pad - cin)))
    x = x.astype(jnp.bfloat16)

    # scale1: conv(s2)+LReLU, [conv(s2)+BN+LReLU] x2
    h = pallas_conv_bias_act(x, params["c1"]["w"], params["c1"]["b"],
                             stride=2, apply_lrelu=True, out_dtype=jnp.bfloat16)
    h = pallas_conv_bn_lrelu(h, params["c2"], stride=2)
    scale1 = pallas_conv_bn_lrelu(h, params["c3"], stride=2)

    # scale1_output: conv(s1)+BN+LReLU, conv(s1) -> 1 channel
    o1 = pallas_conv_bn_lrelu(scale1, params["c4"], stride=1)
    o1 = pallas_conv_bias_act(o1, params["c5"]["w"], params["c5"]["b"],
                              stride=1, apply_lrelu=False, out_dtype=jnp.float32)
    o1 = o1[..., :1]

    # scale2: conv(s2)+BN+LReLU, conv(s2)+BN+LReLU, conv(s1)+BN+LReLU, conv(s1) -> 1 ch
    o2 = pallas_conv_bn_lrelu(scale1, params["c6"], stride=2)
    o2 = pallas_conv_bn_lrelu(o2, params["c7"], stride=2)
    o2 = pallas_conv_bn_lrelu(o2, params["c8"], stride=1)
    o2 = pallas_conv_bias_act(o2, params["c9"]["w"], params["c9"]["b"],
                              stride=1, apply_lrelu=False, out_dtype=jnp.float32)
    o2 = o2[..., :1]

    # back to NCHW like the PyTorch module
    return jnp.transpose(o1, (0, 3, 1, 2)), jnp.transpose(o2, (0, 3, 1, 2))


# ----------------------------------------------------------------------------
if __name__ == "__main__":
    key = jax.random.PRNGKey(0)
    k_param, k_x = jax.random.split(key)

    input_nc, ndf = 3, 8                       # small synthetic config
    params = init_params(k_param, input_nc, ndf)

    x = jax.random.normal(k_x, (2, input_nc, 16, 16), jnp.float32)  # NCHW input

    out1, out2 = multi_discriminator_forward(params, x)
    jax.block_until_ready((out1, out2))

    # sanity: shapes implied by k=4, pad=2 convs on 16x16 input
    assert out1.shape == (2, 1, 5, 5), out1.shape
    assert out2.shape == (2, 1, 4, 4), out2.shape
    assert jnp.all(jnp.isfinite(out1)) and jnp.all(jnp.isfinite(out2))

    print("KERNEL_OK")
</pallas_src>

<mosaic_0001>
module attributes {stable_mosaic.version = 11 : i64} {
  func.func @_conv_bias_act_kernel(%arg0: i32, %arg1: memref<168x128xbf16, #tpu.memory_space<vmem>>, %arg2: memref<128x128xbf16, #tpu.memory_space<vmem>>, %arg3: memref<1x128xf32, #tpu.memory_space<vmem>>, %arg4: memref<168x128xbf16, #tpu.memory_space<vmem>>) attributes {dimension_semantics = [#tpu.dimension_semantics<parallel>], iteration_bounds = array<i64: 1>, scalar_prefetch = 0 : i64, scratch_operands = 0 : i64, tpu.core_type = #tpu.core_type<tc>, window_params = [{transform_indices = @transform_0, window_bounds = array<i64: 168, 128>}, {pipeline_mode = #tpu.pipeline_mode<synchronous>, transform_indices = @transform_1, window_bounds = array<i64: 128, 128>}, {pipeline_mode = #tpu.pipeline_mode<synchronous>, transform_indices = @transform_2, window_bounds = array<i64: 1, 128>}, {transform_indices = @transform_3, window_bounds = array<i64: 168, 128>}]} {
    %c0 = arith.constant 0 : index
    %c0_0 = arith.constant 0 : index
    %0 = vector.load %arg1[%c0, %c0_0] : memref<168x128xbf16, #tpu.memory_space<vmem>>, vector<168x128xbf16>
    %c0_1 = arith.constant 0 : index
    %c0_2 = arith.constant 0 : index
    %1 = vector.load %arg2[%c0_1, %c0_2] : memref<128x128xbf16, #tpu.memory_space<vmem>>, vector<128x128xbf16>
    %cst = arith.constant dense<0.000000e+00> : vector<168x128xf32>
    %2 = tpu.matmul %0, %1, %cst {dimension_numbers = #tpu.dot_dimension_numbers<[1], [0], [0], [1], [0, 0, 1, 1], [], []>} : vector<168x128xbf16>, vector<128x128xbf16>, vector<168x128xf32> -> vector<168x128xf32>
    %c0_3 = arith.constant 0 : index
    %c0_4 = arith.constant 0 : index
    %3 = vector.load %arg3[%c0_3, %c0_4] : memref<1x128xf32, #tpu.memory_space<vmem>>, vector<1x128xf32>
    %4 = vector.broadcast %3 : vector<1x128xf32> to vector<168x128xf32>
    %5 = arith.addf %2, %4 : vector<168x128xf32>
    %cst_5 = arith.constant 0.000000e+00 : f32
    %6 = vector.broadcast %cst_5 : f32 to vector<168x128xf32>
    %7 = arith.cmpf oge, %5, %6 : vector<168x128xf32>
    %cst_6 = arith.constant 2.000000e-01 : f32
    %8 = vector.broadcast %cst_6 : f32 to vector<168x128xf32>
    %9 = arith.mulf %8, %5 : vector<168x128xf32>
    %10 = arith.select %7, %5, %9 : vector<168x128xi1>, vector<168x128xf32>
    %11 = arith.truncf %10 : vector<168x128xf32> to vector<168x128xbf16>
    %c0_7 = arith.constant 0 : index
    %c0_8 = arith.constant 0 : index
    %12 = vector.load %arg4[%c0_7, %c0_8] : memref<168x128xbf16, #tpu.memory_space<vmem>>, vector<168x128xbf16>
    tpu.vector_store %arg4[%c0_7, %c0_8], %11 {strides = array<i32>} : memref<168x128xbf16, #tpu.memory_space<vmem>>, vector<168x128xbf16>,
    return
  }
  func.func @transform_0(%arg0: i32) -> (i32, i32) {
    %c0_i32 = arith.constant 0 : i32
    %c0_i32_0 = arith.constant 0 : i32
    return %arg0, %c0_i32 : i32, i32
  }
  func.func @transform_1(%arg0: i32) -> (i32, i32) {
    %c0_i32 = arith.constant 0 : i32
    %c0_i32_0 = arith.constant 0 : i32
    %c0_i32_1 = arith.constant 0 : i32
    return %c0_i32, %c0_i32_0 : i32, i32
  }
  func.func @transform_2(%arg0: i32) -> (i32, i32) {
    %c0_i32 = arith.constant 0 : i32
    %c0_i32_0 = arith.constant 0 : i32
    %c0_i32_1 = arith.constant 0 : i32
    return %c0_i32, %c0_i32_0 : i32, i32
  }
  func.func @transform_3(%arg0: i32) -> (i32, i32) {
    %c0_i32 = arith.constant 0 : i32
    %c0_i32_0 = arith.constant 0 : i32
    return %arg0, %c0_i32 : i32, i32
  }
}

module attributes {stable_mosaic.version = 11 : i64} {
  func.func @_conv_stats_kernel(%arg0: i32, %arg1: memref<56x2048xbf16, #tpu.memory_space<vmem>>, %arg2: memref<2048x128xbf16, #tpu.memory_space<vmem>>, %arg3: memref<56x128xbf16, #tpu.memory_space<vmem>>, %arg4: memref<8x128xf32, #tpu.memory_space<vmem>>) attributes {dimension_semantics = [#tpu.dimension_semantics<parallel>], iteration_bounds = array<i64: 1>, scalar_prefetch = 0 : i64, scratch_operands = 0 : i64, tpu.core_type = #tpu.core_type<tc>, window_params = [{transform_indices = @transform_0, window_bounds = array<i64: 56, 2048>}, {pipeline_mode = #tpu.pipeline_mode<synchronous>, transform_indices = @transform_1, window_bounds = array<i64: 2048, 128>}, {transform_indices = @transform_2, window_bounds = array<i64: 56, 128>}, {transform_indices = @transform_3, window_bounds = array<i64: 8, 128>}]} {
    %c0 = arith.constant 0 : index
    %c0_0 = arith.constant 0 : index
    %0 = vector.load %arg1[%c0, %c0_0] : memref<56x2048xbf16, #tpu.memory_space<vmem>>, vector<56x2048xbf16>
    %c0_1 = arith.constant 0 : index
    %c0_2 = arith.constant 0 : index
    %1 = vector.load %arg2[%c0_1, %c0_2] : memref<2048x128xbf16, #tpu.memory_space<vmem>>, vector<2048x128xbf16>
    %cst = arith.constant dense<0.000000e+00> : vector<56x128xf32>
    %2 = tpu.matmul %0, %1, %cst {dimension_numbers = #tpu.dot_dimension_numbers<[1], [0], [0], [1], [0, 0, 1, 1], [], []>} : vector<56x2048xbf16>, vector<2048x128xbf16>, vector<56x128xf32> -> vector<56x128xf32>
    %3 = arith.truncf %2 : vector<56x128xf32> to vector<56x128xbf16>
    %c0_3 = arith.constant 0 : index
    %c0_4 = arith.constant 0 : index
    %4 = vector.load %arg3[%c0_3, %c0_4] : memref<56x128xbf16, #tpu.memory_space<vmem>>, vector<56x128xbf16>
    tpu.vector_store %arg3[%c0_3, %c0_4], %3 {strides = array<i32>} : memref<56x128xbf16, #tpu.memory_space<vmem>>, vector<56x128xbf16>,
    %c56_i32 = arith.constant 56 : i32
    %5 = arith.muli %arg0, %c56_i32 : i32
    %6 = tpu.iota {dimensions = array<i32: 0>} : vector<56x128xi32>
    %7 = vector.broadcast %5 : i32 to vector<56x128xi32>
    %8 = arith.addi %7, %6 : vector<56x128xi32>
    %c50_i32 = arith.constant 50 : i32
    %9 = vector.broadcast %c50_i32 : i32 to vector<56x128xi32>
    %10 = arith.cmpi slt, %8, %9 : vector<56x128xi32>
    %cst_5 = arith.constant 0.000000e+00 : f32
    %11 = vector.broadcast %cst_5 : f32 to vector<56x128xf32>
    %12 = arith.select %10, %2, %11 : vector<56x128xi1>, vector<56x128xf32>
    %cst_6 = arith.constant dense<0.000000e+00> : vector<128xf32>
    %13 = vector.multi_reduction <add>, %12, %cst_6 [0] : vector<56x128xf32> to vector<128xf32>
    %14 = vector.shape_cast %13 : vector<128xf32> to vector<1x128xf32>
    %15 = arith.mulf %12, %12 : vector<56x128xf32>
    %cst_7 = arith.constant dense<0.000000e+00> : vector<128xf32>
    %16 = vector.multi_reduction <add>, %15, %cst_7 [0] : vector<56x128xf32> to vector<128xf32>
    %17 = vector.shape_cast %16 : vector<128xf32> to vector<1x128xf32>
    %18 = tpu.iota {dimensions = array<i32: 0>} : vector<8x128xi32>
    %c0_i32 = arith.constant 0 : i32
    %19 = vector.broadcast %c0_i32 : i32 to vector<8x128xi32>
    %20 = arith.cmpi eq, %18, %19 : vector<8x128xi32>
    %c1_i32 = arith.constant 1 : i32
    %21 = vector.broadcast %c1_i32 : i32 to vector<8x128xi32>
    %22 = arith.cmpi eq, %18, %21 : vector<8x128xi32>
    %cst_8 = arith.constant 0.000000e+00 : f32
    %23 = vector.shape_cast %17 : vector<1x128xf32> to vector<1x128xf32>
    %24 = vector.broadcast %23 : vector<1x128xf32> to vector<8x128xf32>
    %25 = vector.broadcast %cst_8 : f32 to vector<8x128xf32>
    %26 = arith.select %22, %24, %25 : vector<8x128xi1>, vector<8x128xf32>
    %27 = vector.shape_cast %14 : vector<1x128xf32> to vector<1x128xf32>
    %28 = vector.broadcast %27 : vector<1x128xf32> to vector<8x128xf32>
    %29 = arith.select %20, %28, %26 : vector<8x128xi1>, vector<8x128xf32>
    %c0_9 = arith.constant 0 : index
    %c0_10 = arith.constant 0 : index
    %30 = vector.load %arg4[%c0_9, %c0_10] : memref<8x128xf32, #tpu.memory_space<vmem>>, vector<8x128xf32>
    tpu.vector_store %arg4[%c0_9, %c0_10], %29 {strides = array<i32>} : memref<8x128xf32, #tpu.memory_space<vmem>>, vector<8x128xf32>,
    return
  }
  func.func @transform_0(%arg0: i32) -> (i32, i32) {
    %c0_i32 = arith.constant 0 : i32
    %c0_i32_0 = arith.constant 0 : i32
    return %arg0, %c0_i32 : i32, i32
  }
  func.func @transform_1(%arg0: i32) -> (i32, i32) {
    %c0_i32 = arith.constant 0 : i32
    %c0_i32_0 = arith.constant 0 : i32
    %c0_i32_1 = arith.constant 0 : i32
    return %c0_i32, %c0_i32_0 : i32, i32
  }
  func.func @transform_2(%arg0: i32) -> (i32, i32) {
    %c0_i32 = arith.constant 0 : i32
    %c0_i32_0 = arith.constant 0 : i32
    return %arg0, %c0_i32 : i32, i32
  }
  func.func @transform_3(%arg0: i32) -> (i32, i32) {
    %c0_i32 = arith.constant 0 : i32
    %c0_i32_0 = arith.constant 0 : i32
    return %arg0, %c0_i32 : i32, i32
  }
}

module attributes {stable_mosaic.version = 11 : i64} {
  func.func @_bn_lrelu_kernel(%arg0: i32, %arg1: memref<56x128xbf16, #tpu.memory_space<vmem>>, %arg2: memref<1x128xf32, #tpu.memory_space<vmem>>, %arg3: memref<1x128xf32, #tpu.memory_space<vmem>>, %arg4: memref<56x128xbf16, #tpu.memory_space<vmem>>) attributes {dimension_semantics = [#tpu.dimension_semantics<parallel>], iteration_bounds = array<i64: 1>, scalar_prefetch = 0 : i64, scratch_operands = 0 : i64, tpu.core_type = #tpu.core_type<tc>, window_params = [{transform_indices = @transform_0, window_bounds = array<i64: 56, 128>}, {pipeline_mode = #tpu.pipeline_mode<synchronous>, transform_indices = @transform_1, window_bounds = array<i64: 1, 128>}, {pipeline_mode = #tpu.pipeline_mode<synchronous>, transform_indices = @transform_2, window_bounds = array<i64: 1, 128>}, {transform_indices = @transform_3, window_bounds = array<i64: 56, 128>}]} {
    %c0 = arith.constant 0 : index
    %c0_0 = arith.constant 0 : index
    %0 = vector.load %arg1[%c0, %c0_0] : memref<56x128xbf16, #tpu.memory_space<vmem>>, vector<56x128xbf16>
    %1 = arith.extf %0 : vector<56x128xbf16> to vector<56x128xf32>
    %c0_1 = arith.constant 0 : index
    %c0_2 = arith.constant 0 : index
    %2 = vector.load %arg2[%c0_1, %c0_2] : memref<1x128xf32, #tpu.memory_space<vmem>>, vector<1x128xf32>
    %3 = vector.broadcast %2 : vector<1x128xf32> to vector<56x128xf32>
    %4 = arith.mulf %1, %3 : vector<56x128xf32>
    %c0_3 = arith.constant 0 : index
    %c0_4 = arith.constant 0 : index
    %5 = vector.load %arg3[%c0_3, %c0_4] : memref<1x128xf32, #tpu.memory_space<vmem>>, vector<1x128xf32>
    %6 = vector.broadcast %5 : vector<1x128xf32> to vector<56x128xf32>
    %7 = arith.addf %4, %6 : vector<56x128xf32>
    %cst = arith.constant 0.000000e+00 : f32
    %8 = vector.broadcast %cst : f32 to vector<56x128xf32>
    %9 = arith.cmpf oge, %7, %8 : vector<56x128xf32>
    %cst_5 = arith.constant 2.000000e-01 : f32
    %10 = vector.broadcast %cst_5 : f32 to vector<56x128xf32>
    %11 = arith.mulf %10, %7 : vector<56x128xf32>
    %12 = arith.select %9, %7, %11 : vector<56x128xi1>, vector<56x128xf32>
    %13 = arith.truncf %12 : vector<56x128xf32> to vector<56x128xbf16>
    %c0_6 = arith.constant 0 : index
    %c0_7 = arith.constant 0 : index
    %14 = vector.load %arg4[%c0_6, %c0_7] : memref<56x128xbf16, #tpu.memory_space<vmem>>, vector<56x128xbf16>
    tpu.vector_store %arg4[%c0_6, %c0_7], %13 {strides = array<i32>} : memref<56x128xbf16, #tpu.memory_space<vmem>>, vector<56x128xbf16>,
    return
  }
  func.func @transform_0(%arg0: i32) -> (i32, i32) {
    %c0_i32 = arith.constant 0 : i32
    %c0_i32_0 = arith.constant 0 : i32
    return %arg0, %c0_i32 : i32, i32
  }
  func.func @transform_1(%arg0: i32) -> (i32, i32) {
    %c0_i32 = arith.constant 0 : i32
    %c0_i32_0 = arith.constant 0 : i32
    %c0_i32_1 = arith.constant 0 : i32
    return %c0_i32, %c0_i32_0 : i32, i32
  }
  func.func @transform_2(%arg0: i32) -> (i32, i32) {
    %c0_i32 = arith.constant 0 : i32
    %c0_i32_0 = arith.constant 0 : i32
    %c0_i32_1 = arith.constant 0 : i32
    return %c0_i32, %c0_i32_0 : i32, i32
  }
  func.func @transform_3(%arg0: i32) -> (i32, i32) {
    %c0_i32 = arith.constant 0 : i32
    %c0_i32_0 = arith.constant 0 : i32
    return %arg0, %c0_i32 : i32, i32
  }
}

module attributes {stable_mosaic.version = 11 : i64} {
  func.func @_bn_lrelu_kernel(%arg0: i32, %arg1: memref<24x128xbf16, #tpu.memory_space<vmem>>, %arg2: memref<1x128xf32, #tpu.memory_space<vmem>>, %arg3: memref<1x128xf32, #tpu.memory_space<vmem>>, %arg4: memref<24x128xbf16, #tpu.memory_space<vmem>>) attributes {dimension_semantics = [#tpu.dimension_semantics<parallel>], iteration_bounds = array<i64: 1>, scalar_prefetch = 0 : i64, scratch_operands = 0 : i64, tpu.core_type = #tpu.core_type<tc>, window_params = [{transform_indices = @transform_0, window_bounds = array<i64: 24, 128>}, {pipeline_mode = #tpu.pipeline_mode<synchronous>, transform_indices = @transform_1, window_bounds = array<i64: 1, 128>}, {pipeline_mode = #tpu.pipeline_mode<synchronous>, transform_indices = @transform_2, window_bounds = array<i64: 1, 128>}, {transform_indices = @transform_3, window_bounds = array<i64: 24, 128>}]} {
    %c0 = arith.constant 0 : index
    %c0_0 = arith.constant 0 : index
    %0 = vector.load %arg1[%c0, %c0_0] : memref<24x128xbf16, #tpu.memory_space<vmem>>, vector<24x128xbf16>
    %1 = arith.extf %0 : vector<24x128xbf16> to vector<24x128xf32>
    %c0_1 = arith.constant 0 : index
    %c0_2 = arith.constant 0 : index
    %2 = vector.load %arg2[%c0_1, %c0_2] : memref<1x128xf32, #tpu.memory_space<vmem>>, vector<1x128xf32>
    %3 = vector.broadcast %2 : vector<1x128xf32> to vector<24x128xf32>
    %4 = arith.mulf %1, %3 : vector<24x128xf32>
    %c0_3 = arith.constant 0 : index
    %c0_4 = arith.constant 0 : index
    %5 = vector.load %arg3[%c0_3, %c0_4] : memref<1x128xf32, #tpu.memory_space<vmem>>, vector<1x128xf32>
    %6 = vector.broadcast %5 : vector<1x128xf32> to vector<24x128xf32>
    %7 = arith.addf %4, %6 : vector<24x128xf32>
    %cst = arith.constant 0.000000e+00 : f32
    %8 = vector.broadcast %cst : f32 to vector<24x128xf32>
    %9 = arith.cmpf oge, %7, %8 : vector<24x128xf32>
    %cst_5 = arith.constant 2.000000e-01 : f32
    %10 = vector.broadcast %cst_5 : f32 to vector<24x128xf32>
    %11 = arith.mulf %10, %7 : vector<24x128xf32>
    %12 = arith.select %9, %7, %11 : vector<24x128xi1>, vector<24x128xf32>
    %13 = arith.truncf %12 : vector<24x128xf32> to vector<24x128xbf16>
    %c0_6 = arith.constant 0 : index
    %c0_7 = arith.constant 0 : index
    %14 = vector.load %arg4[%c0_6, %c0_7] : memref<24x128xbf16, #tpu.memory_space<vmem>>, vector<24x128xbf16>
    tpu.vector_store %arg4[%c0_6, %c0_7], %13 {strides = array<i32>} : memref<24x128xbf16, #tpu.memory_space<vmem>>, vector<24x128xbf16>,
    return
  }
  func.func @transform_0(%arg0: i32) -> (i32, i32) {
    %c0_i32 = arith.constant 0 : i32
    %c0_i32_0 = arith.constant 0 : i32
    return %arg0, %c0_i32 : i32, i32
  }
  func.func @transform_1(%arg0: i32) -> (i32, i32) {
    %c0_i32 = arith.constant 0 : i32
    %c0_i32_0 = arith.constant 0 : i32
    %c0_i32_1 = arith.constant 0 : i32
    return %c0_i32, %c0_i32_0 : i32, i32
  }
  func.func @transform_2(%arg0: i32) -> (i32, i32) {
    %c0_i32 = arith.constant 0 : i32
    %c0_i32_0 = arith.constant 0 : i32
    %c0_i32_1 = arith.constant 0 : i32
    return %c0_i32, %c0_i32_0 : i32, i32
  }
  func.func @transform_3(%arg0: i32) -> (i32, i32) {
    %c0_i32 = arith.constant 0 : i32
    %c0_i32_0 = arith.constant 0 : i32
    return %arg0, %c0_i32 : i32, i32
  }
}

module attributes {stable_mosaic.version = 11 : i64} {
  func.func @_conv_stats_kernel(%arg0: i32, %arg1: memref<24x2048xbf16, #tpu.memory_space<vmem>>, %arg2: memref<2048x128xbf16, #tpu.memory_space<vmem>>, %arg3: memref<24x128xbf16, #tpu.memory_space<vmem>>, %arg4: memref<8x128xf32, #tpu.memory_space<vmem>>) attributes {dimension_semantics = [#tpu.dimension_semantics<parallel>], iteration_bounds = array<i64: 1>, scalar_prefetch = 0 : i64, scratch_operands = 0 : i64, tpu.core_type = #tpu.core_type<tc>, window_params = [{transform_indices = @transform_0, window_bounds = array<i64: 24, 2048>}, {pipeline_mode = #tpu.pipeline_mode<synchronous>, transform_indices = @transform_1, window_bounds = array<i64: 2048, 128>}, {transform_indices = @transform_2, window_bounds = array<i64: 24, 128>}, {transform_indices = @transform_3, window_bounds = array<i64: 8, 128>}]} {
    %c0 = arith.constant 0 : index
    %c0_0 = arith.constant 0 : index
    %0 = vector.load %arg1[%c0, %c0_0] : memref<24x2048xbf16, #tpu.memory_space<vmem>>, vector<24x2048xbf16>
    %c0_1 = arith.constant 0 : index
    %c0_2 = arith.constant 0 : index
    %1 = vector.load %arg2[%c0_1, %c0_2] : memref<2048x128xbf16, #tpu.memory_space<vmem>>, vector<2048x128xbf16>
    %cst = arith.constant dense<0.000000e+00> : vector<24x128xf32>
    %2 = tpu.matmul %0, %1, %cst {dimension_numbers = #tpu.dot_dimension_numbers<[1], [0], [0], [1], [0, 0, 1, 1], [], []>} : vector<24x2048xbf16>, vector<2048x128xbf16>, vector<24x128xf32> -> vector<24x128xf32>
    %3 = arith.truncf %2 : vector<24x128xf32> to vector<24x128xbf16>
    %c0_3 = arith.constant 0 : index
    %c0_4 = arith.constant 0 : index
    %4 = vector.load %arg3[%c0_3, %c0_4] : memref<24x128xbf16, #tpu.memory_space<vmem>>, vector<24x128xbf16>
    tpu.vector_store %arg3[%c0_3, %c0_4], %3 {strides = array<i32>} : memref<24x128xbf16, #tpu.memory_space<vmem>>, vector<24x128xbf16>,
    %c24_i32 = arith.constant 24 : i32
    %5 = arith.muli %arg0, %c24_i32 : i32
    %6 = tpu.iota {dimensions = array<i32: 0>} : vector<24x128xi32>
    %7 = vector.broadcast %5 : i32 to vector<24x128xi32>
    %8 = arith.addi %7, %6 : vector<24x128xi32>
    %c18_i32 = arith.constant 18 : i32
    %9 = vector.broadcast %c18_i32 : i32 to vector<24x128xi32>
    %10 = arith.cmpi slt, %8, %9 : vector<24x128xi32>
    %cst_5 = arith.constant 0.000000e+00 : f32
    %11 = vector.broadcast %cst_5 : f32 to vector<24x128xf32>
    %12 = arith.select %10, %2, %11 : vector<24x128xi1>, vector<24x128xf32>
    %cst_6 = arith.constant dense<0.000000e+00> : vector<128xf32>
    %13 = vector.multi_reduction <add>, %12, %cst_6 [0] : vector<24x128xf32> to vector<128xf32>
    %14 = vector.shape_cast %13 : vector<128xf32> to vector<1x128xf32>
    %15 = arith.mulf %12, %12 : vector<24x128xf32>
    %cst_7 = arith.constant dense<0.000000e+00> : vector<128xf32>
    %16 = vector.multi_reduction <add>, %15, %cst_7 [0] : vector<24x128xf32> to vector<128xf32>
    %17 = vector.shape_cast %16 : vector<128xf32> to vector<1x128xf32>
    %18 = tpu.iota {dimensions = array<i32: 0>} : vector<8x128xi32>
    %c0_i32 = arith.constant 0 : i32
    %19 = vector.broadcast %c0_i32 : i32 to vector<8x128xi32>
    %20 = arith.cmpi eq, %18, %19 : vector<8x128xi32>
    %c1_i32 = arith.constant 1 : i32
    %21 = vector.broadcast %c1_i32 : i32 to vector<8x128xi32>
    %22 = arith.cmpi eq, %18, %21 : vector<8x128xi32>
    %cst_8 = arith.constant 0.000000e+00 : f32
    %23 = vector.shape_cast %17 : vector<1x128xf32> to vector<1x128xf32>
    %24 = vector.broadcast %23 : vector<1x128xf32> to vector<8x128xf32>
    %25 = vector.broadcast %cst_8 : f32 to vector<8x128xf32>
    %26 = arith.select %22, %24, %25 : vector<8x128xi1>, vector<8x128xf32>
    %27 = vector.shape_cast %14 : vector<1x128xf32> to vector<1x128xf32>
    %28 = vector.broadcast %27 : vector<1x128xf32> to vector<8x128xf32>
    %29 = arith.select %20, %28, %26 : vector<8x128xi1>, vector<8x128xf32>
    %c0_9 = arith.constant 0 : index
    %c0_10 = arith.constant 0 : index
    %30 = vector.load %arg4[%c0_9, %c0_10] : memref<8x128xf32, #tpu.memory_space<vmem>>, vector<8x128xf32>
    tpu.vector_store %arg4[%c0_9, %c0_10], %29 {strides = array<i32>} : memref<8x128xf32, #tpu.memory_space<vmem>>, vector<8x128xf32>,
    return
  }
  func.func @transform_0(%arg0: i32) -> (i32, i32) {
    %c0_i32 = arith.constant 0 : i32
    %c0_i32_0 = arith.constant 0 : i32
    return %arg0, %c0_i32 : i32, i32
  }
  func.func @transform_1(%arg0: i32) -> (i32, i32) {
    %c0_i32 = arith.constant 0 : i32
    %c0_i32_0 = arith.constant 0 : i32
    %c0_i32_1 = arith.constant 0 : i32
    return %c0_i32, %c0_i32_0 : i32, i32
  }
  func.func @transform_2(%arg0: i32) -> (i32, i32) {
    %c0_i32 = arith.constant 0 : i32
    %c0_i32_0 = arith.constant 0 : i32
    return %arg0, %c0_i32 : i32, i32
  }
  func.func @transform_3(%arg0: i32) -> (i32, i32) {
    %c0_i32 = arith.constant 0 : i32
    %c0_i32_0 = arith.constant 0 : i32
    return %arg0, %c0_i32 : i32, i32
  }
}

module attributes {stable_mosaic.version = 11 : i64} {
  func.func @_conv_stats_kernel(%arg0: i32, %arg1: memref<8x2048xbf16, #tpu.memory_space<vmem>>, %arg2: memref<2048x128xbf16, #tpu.memory_space<vmem>>, %arg3: memref<8x128xbf16, #tpu.memory_space<vmem>>, %arg4: memref<8x128xf32, #tpu.memory_space<vmem>>) attributes {dimension_semantics = [#tpu.dimension_semantics<parallel>], iteration_bounds = array<i64: 1>, scalar_prefetch = 0 : i64, scratch_operands = 0 : i64, tpu.core_type = #tpu.core_type<tc>, window_params = [{transform_indices = @transform_0, window_bounds = array<i64: 8, 2048>}, {pipeline_mode = #tpu.pipeline_mode<synchronous>, transform_indices = @transform_1, window_bounds = array<i64: 2048, 128>}, {transform_indices = @transform_2, window_bounds = array<i64: 8, 128>}, {transform_indices = @transform_3, window_bounds = array<i64: 8, 128>}]} {
    %c0 = arith.constant 0 : index
    %c0_0 = arith.constant 0 : index
    %0 = vector.load %arg1[%c0, %c0_0] : memref<8x2048xbf16, #tpu.memory_space<vmem>>, vector<8x2048xbf16>
    %c0_1 = arith.constant 0 : index
    %c0_2 = arith.constant 0 : index
    %1 = vector.load %arg2[%c0_1, %c0_2] : memref<2048x128xbf16, #tpu.memory_space<vmem>>, vector<2048x128xbf16>
    %cst = arith.constant dense<0.000000e+00> : vector<8x128xf32>
    %2 = tpu.matmul %0, %1, %cst {dimension_numbers = #tpu.dot_dimension_numbers<[1], [0], [0], [1], [0, 0, 1, 1], [], []>} : vector<8x2048xbf16>, vector<2048x128xbf16>, vector<8x128xf32> -> vector<8x128xf32>
    %3 = arith.truncf %2 : vector<8x128xf32> to vector<8x128xbf16>
    %c0_3 = arith.constant 0 : index
    %c0_4 = arith.constant 0 : index
    %4 = vector.load %arg3[%c0_3, %c0_4] : memref<8x128xbf16, #tpu.memory_space<vmem>>, vector<8x128xbf16>
    tpu.vector_store %arg3[%c0_3, %c0_4], %3 {strides = array<i32>} : memref<8x128xbf16, #tpu.memory_space<vmem>>, vector<8x128xbf16>,
    %c8_i32 = arith.constant 8 : i32
    %5 = arith.muli %arg0, %c8_i32 : i32
    %6 = tpu.iota {dimensions = array<i32: 0>} : vector<8x128xi32>
    %7 = vector.broadcast %5 : i32 to vector<8x128xi32>
    %8 = arith.addi %7, %6 : vector<8x128xi32>
    %c8_i32_5 = arith.constant 8 : i32
    %9 = vector.broadcast %c8_i32_5 : i32 to vector<8x128xi32>
    %10 = arith.cmpi slt, %8, %9 : vector<8x128xi32>
    %cst_6 = arith.constant 0.000000e+00 : f32
    %11 = vector.broadcast %cst_6 : f32 to vector<8x128xf32>
    %12 = arith.select %10, %2, %11 : vector<8x128xi1>, vector<8x128xf32>
    %cst_7 = arith.constant dense<0.000000e+00> : vector<128xf32>
    %13 = vector.multi_reduction <add>, %12, %cst_7 [0] : vector<8x128xf32> to vector<128xf32>
    %14 = vector.shape_cast %13 : vector<128xf32> to vector<1x128xf32>
    %15 = arith.mulf %12, %12 : vector<8x128xf32>
    %cst_8 = arith.constant dense<0.000000e+00> : vector<128xf32>
    %16 = vector.multi_reduction <add>, %15, %cst_8 [0] : vector<8x128xf32> to vector<128xf32>
    %17 = vector.shape_cast %16 : vector<128xf32> to vector<1x128xf32>
    %18 = tpu.iota {dimensions = array<i32: 0>} : vector<8x128xi32>
    %c0_i32 = arith.constant 0 : i32
    %19 = vector.broadcast %c0_i32 : i32 to vector<8x128xi32>
    %20 = arith.cmpi eq, %18, %19 : vector<8x128xi32>
    %c1_i32 = arith.constant 1 : i32
    %21 = vector.broadcast %c1_i32 : i32 to vector<8x128xi32>
    %22 = arith.cmpi eq, %18, %21 : vector<8x128xi32>
    %cst_9 = arith.constant 0.000000e+00 : f32
    %23 = vector.shape_cast %17 : vector<1x128xf32> to vector<1x128xf32>
    %24 = vector.broadcast %23 : vector<1x128xf32> to vector<8x128xf32>
    %25 = vector.broadcast %cst_9 : f32 to vector<8x128xf32>
    %26 = arith.select %22, %24, %25 : vector<8x128xi1>, vector<8x128xf32>
    %27 = vector.shape_cast %14 : vector<1x128xf32> to vector<1x128xf32>
    %28 = vector.broadcast %27 : vector<1x128xf32> to vector<8x128xf32>
    %29 = arith.select %20, %28, %26 : vector<8x128xi1>, vector<8x128xf32>
    %c0_10 = arith.constant 0 : index
    %c0_11 = arith.constant 0 : index
    %30 = vector.load %arg4[%c0_10, %c0_11] : memref<8x128xf32, #tpu.memory_space<vmem>>, vector<8x128xf32>
    tpu.vector_store %arg4[%c0_10, %c0_11], %29 {strides = array<i32>} : memref<8x128xf32, #tpu.memory_space<vmem>>, vector<8x128xf32>,
    return
  }
  func.func @transform_0(%arg0: i32) -> (i32, i32) {
    %c0_i32 = arith.constant 0 : i32
    %c0_i32_0 = arith.constant 0 : i32
    return %arg0, %c0_i32 : i32, i32
  }
  func.func @transform_1(%arg0: i32) -> (i32, i32) {
    %c0_i32 = arith.constant 0 : i32
    %c0_i32_0 = arith.constant 0 : i32
    %c0_i32_1 = arith.constant 0 : i32
    return %c0_i32, %c0_i32_0 : i32, i32
  }
  func.func @transform_2(%arg0: i32) -> (i32, i32) {
    %c0_i32 = arith.constant 0 : i32
    %c0_i32_0 = arith.constant 0 : i32
    return %arg0, %c0_i32 : i32, i32
  }
  func.func @transform_3(%arg0: i32) -> (i32, i32) {
    %c0_i32 = arith.constant 0 : i32
    %c0_i32_0 = arith.constant 0 : i32
    return %arg0, %c0_i32 : i32, i32
  }
}

module attributes {stable_mosaic.version = 11 : i64} {
  func.func @_bn_lrelu_kernel(%arg0: i32, %arg1: memref<8x128xbf16, #tpu.memory_space<vmem>>, %arg2: memref<1x128xf32, #tpu.memory_space<vmem>>, %arg3: memref<1x128xf32, #tpu.memory_space<vmem>>, %arg4: memref<8x128xbf16, #tpu.memory_space<vmem>>) attributes {dimension_semantics = [#tpu.dimension_semantics<parallel>], iteration_bounds = array<i64: 1>, scalar_prefetch = 0 : i64, scratch_operands = 0 : i64, tpu.core_type = #tpu.core_type<tc>, window_params = [{transform_indices = @transform_0, window_bounds = array<i64: 8, 128>}, {pipeline_mode = #tpu.pipeline_mode<synchronous>, transform_indices = @transform_1, window_bounds = array<i64: 1, 128>}, {pipeline_mode = #tpu.pipeline_mode<synchronous>, transform_indices = @transform_2, window_bounds = array<i64: 1, 128>}, {transform_indices = @transform_3, window_bounds = array<i64: 8, 128>}]} {
    %c0 = arith.constant 0 : index
    %c0_0 = arith.constant 0 : index
    %0 = vector.load %arg1[%c0, %c0_0] : memref<8x128xbf16, #tpu.memory_space<vmem>>, vector<8x128xbf16>
    %1 = arith.extf %0 : vector<8x128xbf16> to vector<8x128xf32>
    %c0_1 = arith.constant 0 : index
    %c0_2 = arith.constant 0 : index
    %2 = vector.load %arg2[%c0_1, %c0_2] : memref<1x128xf32, #tpu.memory_space<vmem>>, vector<1x128xf32>
    %3 = vector.broadcast %2 : vector<1x128xf32> to vector<8x128xf32>
    %4 = arith.mulf %1, %3 : vector<8x128xf32>
    %c0_3 = arith.constant 0 : index
    %c0_4 = arith.constant 0 : index
    %5 = vector.load %arg3[%c0_3, %c0_4] : memref<1x128xf32, #tpu.memory_space<vmem>>, vector<1x128xf32>
    %6 = vector.broadcast %5 : vector<1x128xf32> to vector<8x128xf32>
    %7 = arith.addf %4, %6 : vector<8x128xf32>
    %cst = arith.constant 0.000000e+00 : f32
    %8 = vector.broadcast %cst : f32 to vector<8x128xf32>
    %9 = arith.cmpf oge, %7, %8 : vector<8x128xf32>
    %cst_5 = arith.constant 2.000000e-01 : f32
    %10 = vector.broadcast %cst_5 : f32 to vector<8x128xf32>
    %11 = arith.mulf %10, %7 : vector<8x128xf32>
    %12 = arith.select %9, %7, %11 : vector<8x128xi1>, vector<8x128xf32>
    %13 = arith.truncf %12 : vector<8x128xf32> to vector<8x128xbf16>
    %c0_6 = arith.constant 0 : index
    %c0_7 = arith.constant 0 : index
    %14 = vector.load %arg4[%c0_6, %c0_7] : memref<8x128xbf16, #tpu.memory_space<vmem>>, vector<8x128xbf16>
    tpu.vector_store %arg4[%c0_6, %c0_7], %13 {strides = array<i32>} : memref<8x128xbf16, #tpu.memory_space<vmem>>, vector<8x128xbf16>,
    return
  }
  func.func @transform_0(%arg0: i32) -> (i32, i32) {
    %c0_i32 = arith.constant 0 : i32
    %c0_i32_0 = arith.constant 0 : i32
    return %arg0, %c0_i32 : i32, i32
  }
  func.func @transform_1(%arg0: i32) -> (i32, i32) {
    %c0_i32 = arith.constant 0 : i32
    %c0_i32_0 = arith.constant 0 : i32
    %c0_i32_1 = arith.constant 0 : i32
    return %c0_i32, %c0_i32_0 : i32, i32
  }
  func.func @transform_2(%arg0: i32) -> (i32, i32) {
    %c0_i32 = arith.constant 0 : i32
    %c0_i32_0 = arith.constant 0 : i32
    %c0_i32_1 = arith.constant 0 : i32
    return %c0_i32, %c0_i32_0 : i32, i32
  }
  func.func @transform_3(%arg0: i32) -> (i32, i32) {
    %c0_i32 = arith.constant 0 : i32
    %c0_i32_0 = arith.constant 0 : i32
    return %arg0, %c0_i32 : i32, i32
  }
}

module attributes {stable_mosaic.version = 11 : i64} {
  func.func @_conv_bias_act_kernel(%arg0: i32, %arg1: memref<32x2048xbf16, #tpu.memory_space<vmem>>, %arg2: memref<2048x128xbf16, #tpu.memory_space<vmem>>, %arg3: memref<1x128xf32, #tpu.memory_space<vmem>>, %arg4: memref<32x128xf32, #tpu.memory_space<vmem>>) attributes {dimension_semantics = [#tpu.dimension_semantics<parallel>], iteration_bounds = array<i64: 1>, scalar_prefetch = 0 : i64, scratch_operands = 0 : i64, tpu.core_type = #tpu.core_type<tc>, window_params = [{transform_indices = @transform_0, window_bounds = array<i64: 32, 2048>}, {pipeline_mode = #tpu.pipeline_mode<synchronous>, transform_indices = @transform_1, window_bounds = array<i64: 2048, 128>}, {pipeline_mode = #tpu.pipeline_mode<synchronous>, transform_indices = @transform_2, window_bounds = array<i64: 1, 128>}, {transform_indices = @transform_3, window_bounds = array<i64: 32, 128>}]} {
    %c0 = arith.constant 0 : index
    %c0_0 = arith.constant 0 : index
    %0 = vector.load %arg1[%c0, %c0_0] : memref<32x2048xbf16, #tpu.memory_space<vmem>>, vector<32x2048xbf16>
    %c0_1 = arith.constant 0 : index
    %c0_2 = arith.constant 0 : index
    %1 = vector.load %arg2[%c0_1, %c0_2] : memref<2048x128xbf16, #tpu.memory_space<vmem>>, vector<2048x128xbf16>
    %cst = arith.constant dense<0.000000e+00> : vector<32x128xf32>
    %2 = tpu.matmul %0, %1, %cst {dimension_numbers = #tpu.dot_dimension_numbers<[1], [0], [0], [1], [0, 0, 1, 1], [], []>} : vector<32x2048xbf16>, vector<2048x128xbf16>, vector<32x128xf32> -> vector<32x128xf32>
    %c0_3 = arith.constant 0 : index
    %c0_4 = arith.constant 0 : index
    %3 = vector.load %arg3[%c0_3, %c0_4] : memref<1x128xf32, #tpu.memory_space<vmem>>, vector<1x128xf32>
    %4 = vector.broadcast %3 : vector<1x128xf32> to vector<32x128xf32>
    %5 = arith.addf %2, %4 : vector<32x128xf32>
    %c0_5 = arith.constant 0 : index
    %c0_6 = arith.constant 0 : index
    %6 = vector.load %arg4[%c0_5, %c0_6] : memref<32x128xf32, #tpu.memory_space<vmem>>, vector<32x128xf32>
    tpu.vector_store %arg4[%c0_5, %c0_6], %5 {strides = array<i32>} : memref<32x128xf32, #tpu.memory_space<vmem>>, vector<32x128xf32>,
    return
  }
  func.func @transform_0(%arg0: i32) -> (i32, i32) {
    %c0_i32 = arith.constant 0 : i32
    %c0_i32_0 = arith.constant 0 : i32
    return %arg0, %c0_i32 : i32, i32
  }
  func.func @transform_1(%arg0: i32) -> (i32, i32) {
    %c0_i32 = arith.constant 0 : i32
    %c0_i32_0 = arith.constant 0 : i32
    %c0_i32_1 = arith.constant 0 : i32
    return %c0_i32, %c0_i32_0 : i32, i32
  }
  func.func @transform_2(%arg0: i32) -> (i32, i32) {
    %c0_i32 = arith.constant 0 : i32
    %c0_i32_0 = arith.constant 0 : i32
    %c0_i32_1 = arith.constant 0 : i32
    return %c0_i32, %c0_i32_0 : i32, i32
  }
  func.func @transform_3(%arg0: i32) -> (i32, i32) {
    %c0_i32 = arith.constant 0 : i32
    %c0_i32_0 = arith.constant 0 : i32
    return %arg0, %c0_i32 : i32, i32
  }
}

module attributes {stable_mosaic.version = 11 : i64} {
  func.func @_conv_stats_kernel(%arg0: i32, %arg1: memref<32x2048xbf16, #tpu.memory_space<vmem>>, %arg2: memref<2048x128xbf16, #tpu.memory_space<vmem>>, %arg3: memref<32x128xbf16, #tpu.memory_space<vmem>>, %arg4: memref<8x128xf32, #tpu.memory_space<vmem>>) attributes {dimension_semantics = [#tpu.dimension_semantics<parallel>], iteration_bounds = array<i64: 1>, scalar_prefetch = 0 : i64, scratch_operands = 0 : i64, tpu.core_type = #tpu.core_type<tc>, window_params = [{transform_indices = @transform_0, window_bounds = array<i64: 32, 2048>}, {pipeline_mode = #tpu.pipeline_mode<synchronous>, transform_indices = @transform_1, window_bounds = array<i64: 2048, 128>}, {transform_indices = @transform_2, window_bounds = array<i64: 32, 128>}, {transform_indices = @transform_3, window_bounds = array<i64: 8, 128>}]} {
    %c0 = arith.constant 0 : index
    %c0_0 = arith.constant 0 : index
    %0 = vector.load %arg1[%c0, %c0_0] : memref<32x2048xbf16, #tpu.memory_space<vmem>>, vector<32x2048xbf16>
    %c0_1 = arith.constant 0 : index
    %c0_2 = arith.constant 0 : index
    %1 = vector.load %arg2[%c0_1, %c0_2] : memref<2048x128xbf16, #tpu.memory_space<vmem>>, vector<2048x128xbf16>
    %cst = arith.constant dense<0.000000e+00> : vector<32x128xf32>
    %2 = tpu.matmul %0, %1, %cst {dimension_numbers = #tpu.dot_dimension_numbers<[1], [0], [0], [1], [0, 0, 1, 1], [], []>} : vector<32x2048xbf16>, vector<2048x128xbf16>, vector<32x128xf32> -> vector<32x128xf32>
    %3 = arith.truncf %2 : vector<32x128xf32> to vector<32x128xbf16>
    %c0_3 = arith.constant 0 : index
    %c0_4 = arith.constant 0 : index
    %4 = vector.load %arg3[%c0_3, %c0_4] : memref<32x128xbf16, #tpu.memory_space<vmem>>, vector<32x128xbf16>
    tpu.vector_store %arg3[%c0_3, %c0_4], %3 {strides = array<i32>} : memref<32x128xbf16, #tpu.memory_space<vmem>>, vector<32x128xbf16>,
    %c32_i32 = arith.constant 32 : i32
    %5 = arith.muli %arg0, %c32_i32 : i32
    %6 = tpu.iota {dimensions = array<i32: 0>} : vector<32x128xi32>
    %7 = vector.broadcast %5 : i32 to vector<32x128xi32>
    %8 = arith.addi %7, %6 : vector<32x128xi32>
    %c32_i32_5 = arith.constant 32 : i32
    %9 = vector.broadcast %c32_i32_5 : i32 to vector<32x128xi32>
    %10 = arith.cmpi slt, %8, %9 : vector<32x128xi32>
    %cst_6 = arith.constant 0.000000e+00 : f32
    %11 = vector.broadcast %cst_6 : f32 to vector<32x128xf32>
    %12 = arith.select %10, %2, %11 : vector<32x128xi1>, vector<32x128xf32>
    %cst_7 = arith.constant dense<0.000000e+00> : vector<128xf32>
    %13 = vector.multi_reduction <add>, %12, %cst_7 [0] : vector<32x128xf32> to vector<128xf32>
    %14 = vector.shape_cast %13 : vector<128xf32> to vector<1x128xf32>
    %15 = arith.mulf %12, %12 : vector<32x128xf32>
    %cst_8 = arith.constant dense<0.000000e+00> : vector<128xf32>
    %16 = vector.multi_reduction <add>, %15, %cst_8 [0] : vector<32x128xf32> to vector<128xf32>
    %17 = vector.shape_cast %16 : vector<128xf32> to vector<1x128xf32>
    %18 = tpu.iota {dimensions = array<i32: 0>} : vector<8x128xi32>
    %c0_i32 = arith.constant 0 : i32
    %19 = vector.broadcast %c0_i32 : i32 to vector<8x128xi32>
    %20 = arith.cmpi eq, %18, %19 : vector<8x128xi32>
    %c1_i32 = arith.constant 1 : i32
    %21 = vector.broadcast %c1_i32 : i32 to vector<8x128xi32>
    %22 = arith.cmpi eq, %18, %21 : vector<8x128xi32>
    %cst_9 = arith.constant 0.000000e+00 : f32
    %23 = vector.shape_cast %17 : vector<1x128xf32> to vector<1x128xf32>
    %24 = vector.broadcast %23 : vector<1x128xf32> to vector<8x128xf32>
    %25 = vector.broadcast %cst_9 : f32 to vector<8x128xf32>
    %26 = arith.select %22, %24, %25 : vector<8x128xi1>, vector<8x128xf32>
    %27 = vector.shape_cast %14 : vector<1x128xf32> to vector<1x128xf32>
    %28 = vector.broadcast %27 : vector<1x128xf32> to vector<8x128xf32>
    %29 = arith.select %20, %28, %26 : vector<8x128xi1>, vector<8x128xf32>
    %c0_10 = arith.constant 0 : index
    %c0_11 = arith.constant 0 : index
    %30 = vector.load %arg4[%c0_10, %c0_11] : memref<8x128xf32, #tpu.memory_space<vmem>>, vector<8x128xf32>
    tpu.vector_store %arg4[%c0_10, %c0_11], %29 {strides = array<i32>} : memref<8x128xf32, #tpu.memory_space<vmem>>, vector<8x128xf32>,
    return
  }
  func.func @transform_0(%arg0: i32) -> (i32, i32) {
    %c0_i32 = arith.constant 0 : i32
    %c0_i32_0 = arith.constant 0 : i32
    return %arg0, %c0_i32 : i32, i32
  }
  func.func @transform_1(%arg0: i32) -> (i32, i32) {
    %c0_i32 = arith.constant 0 : i32
    %c0_i32_0 = arith.constant 0 : i32
    %c0_i32_1 = arith.constant 0 : i32
    return %c0_i32, %c0_i32_0 : i32, i32
  }
  func.func @transform_2(%arg0: i32) -> (i32, i32) {
    %c0_i32 = arith.constant 0 : i32
    %c0_i32_0 = arith.constant 0 : i32
    return %arg0, %c0_i32 : i32, i32
  }
  func.func @transform_3(%arg0: i32) -> (i32, i32) {
    %c0_i32 = arith.constant 0 : i32
    %c0_i32_0 = arith.constant 0 : i32
    return %arg0, %c0_i32 : i32, i32
  }
}

module attributes {stable_mosaic.version = 11 : i64} {
  func.func @_bn_lrelu_kernel(%arg0: i32, %arg1: memref<32x128xbf16, #tpu.memory_space<vmem>>, %arg2: memref<1x128xf32, #tpu.memory_space<vmem>>, %arg3: memref<1x128xf32, #tpu.memory_space<vmem>>, %arg4: memref<32x128xbf16, #tpu.memory_space<vmem>>) attributes {dimension_semantics = [#tpu.dimension_semantics<parallel>], iteration_bounds = array<i64: 1>, scalar_prefetch = 0 : i64, scratch_operands = 0 : i64, tpu.core_type = #tpu.core_type<tc>, window_params = [{transform_indices = @transform_0, window_bounds = array<i64: 32, 128>}, {pipeline_mode = #tpu.pipeline_mode<synchronous>, transform_indices = @transform_1, window_bounds = array<i64: 1, 128>}, {pipeline_mode = #tpu.pipeline_mode<synchronous>, transform_indices = @transform_2, window_bounds = array<i64: 1, 128>}, {transform_indices = @transform_3, window_bounds = array<i64: 32, 128>}]} {
    %c0 = arith.constant 0 : index
    %c0_0 = arith.constant 0 : index
    %0 = vector.load %arg1[%c0, %c0_0] : memref<32x128xbf16, #tpu.memory_space<vmem>>, vector<32x128xbf16>
    %1 = arith.extf %0 : vector<32x128xbf16> to vector<32x128xf32>
    %c0_1 = arith.constant 0 : index
    %c0_2 = arith.constant 0 : index
    %2 = vector.load %arg2[%c0_1, %c0_2] : memref<1x128xf32, #tpu.memory_space<vmem>>, vector<1x128xf32>
    %3 = vector.broadcast %2 : vector<1x128xf32> to vector<32x128xf32>
    %4 = arith.mulf %1, %3 : vector<32x128xf32>
    %c0_3 = arith.constant 0 : index
    %c0_4 = arith.constant 0 : index
    %5 = vector.load %arg3[%c0_3, %c0_4] : memref<1x128xf32, #tpu.memory_space<vmem>>, vector<1x128xf32>
    %6 = vector.broadcast %5 : vector<1x128xf32> to vector<32x128xf32>
    %7 = arith.addf %4, %6 : vector<32x128xf32>
    %cst = arith.constant 0.000000e+00 : f32
    %8 = vector.broadcast %cst : f32 to vector<32x128xf32>
    %9 = arith.cmpf oge, %7, %8 : vector<32x128xf32>
    %cst_5 = arith.constant 2.000000e-01 : f32
    %10 = vector.broadcast %cst_5 : f32 to vector<32x128xf32>
    %11 = arith.mulf %10, %7 : vector<32x128xf32>
    %12 = arith.select %9, %7, %11 : vector<32x128xi1>, vector<32x128xf32>
    %13 = arith.truncf %12 : vector<32x128xf32> to vector<32x128xbf16>
    %c0_6 = arith.constant 0 : index
    %c0_7 = arith.constant 0 : index
    %14 = vector.load %arg4[%c0_6, %c0_7] : memref<32x128xbf16, #tpu.memory_space<vmem>>, vector<32x128xbf16>
    tpu.vector_store %arg4[%c0_6, %c0_7], %13 {strides = array<i32>} : memref<32x128xbf16, #tpu.memory_space<vmem>>, vector<32x128xbf16>,
    return
  }
  func.func @transform_0(%arg0: i32) -> (i32, i32) {
    %c0_i32 = arith.constant 0 : i32
    %c0_i32_0 = arith.constant 0 : i32
    return %arg0, %c0_i32 : i32, i32
  }
  func.func @transform_1(%arg0: i32) -> (i32, i32) {
    %c0_i32 = arith.constant 0 : i32
    %c0_i32_0 = arith.constant 0 : i32
    %c0_i32_1 = arith.constant 0 : i32
    return %c0_i32, %c0_i32_0 : i32, i32
  }
  func.func @transform_2(%arg0: i32) -> (i32, i32) {
    %c0_i32 = arith.constant 0 : i32
    %c0_i32_0 = arith.constant 0 : i32
    %c0_i32_1 = arith.constant 0 : i32
    return %c0_i32, %c0_i32_0 : i32, i32
  }
  func.func @transform_3(%arg0: i32) -> (i32, i32) {
    %c0_i32 = arith.constant 0 : i32
    %c0_i32_0 = arith.constant 0 : i32
    return %arg0, %c0_i32 : i32, i32
  }
}

module attributes {stable_mosaic.version = 11 : i64} {
  func.func @_conv_bias_act_kernel(%arg0: i32, %arg1: memref<56x2048xbf16, #tpu.memory_space<vmem>>, %arg2: memref<2048x128xbf16, #tpu.memory_space<vmem>>, %arg3: memref<1x128xf32, #tpu.memory_space<vmem>>, %arg4: memref<56x128xf32, #tpu.memory_space<vmem>>) attributes {dimension_semantics = [#tpu.dimension_semantics<parallel>], iteration_bounds = array<i64: 1>, scalar_prefetch = 0 : i64, scratch_operands = 0 : i64, tpu.core_type = #tpu.core_type<tc>, window_params = [{transform_indices = @transform_0, window_bounds = array<i64: 56, 2048>}, {pipeline_mode = #tpu.pipeline_mode<synchronous>, transform_indices = @transform_1, window_bounds = array<i64: 2048, 128>}, {pipeline_mode = #tpu.pipeline_mode<synchronous>, transform_indices = @transform_2, window_bounds = array<i64: 1, 128>}, {transform_indices = @transform_3, window_bounds = array<i64: 56, 128>}]} {
    %c0 = arith.constant 0 : index
    %c0_0 = arith.constant 0 : index
    %0 = vector.load %arg1[%c0, %c0_0] : memref<56x2048xbf16, #tpu.memory_space<vmem>>, vector<56x2048xbf16>
    %c0_1 = arith.constant 0 : index
    %c0_2 = arith.constant 0 : index
    %1 = vector.load %arg2[%c0_1, %c0_2] : memref<2048x128xbf16, #tpu.memory_space<vmem>>, vector<2048x128xbf16>
    %cst = arith.constant dense<0.000000e+00> : vector<56x128xf32>
    %2 = tpu.matmul %0, %1, %cst {dimension_numbers = #tpu.dot_dimension_numbers<[1], [0], [0], [1], [0, 0, 1, 1], [], []>} : vector<56x2048xbf16>, vector<2048x128xbf16>, vector<56x128xf32> -> vector<56x128xf32>
    %c0_3 = arith.constant 0 : index
    %c0_4 = arith.constant 0 : index
    %3 = vector.load %arg3[%c0_3, %c0_4] : memref<1x128xf32, #tpu.memory_space<vmem>>, vector<1x128xf32>
    %4 = vector.broadcast %3 : vector<1x128xf32> to vector<56x128xf32>
    %5 = arith.addf %2, %4 : vector<56x128xf32>
    %c0_5 = arith.constant 0 : index
    %c0_6 = arith.constant 0 : index
    %6 = vector.load %arg4[%c0_5, %c0_6] : memref<56x128xf32, #tpu.memory_space<vmem>>, vector<56x128xf32>
    tpu.vector_store %arg4[%c0_5, %c0_6], %5 {strides = array<i32>} : memref<56x128xf32, #tpu.memory_space<vmem>>, vector<56x128xf32>,
    return
  }
  func.func @transform_0(%arg0: i32) -> (i32, i32) {
    %c0_i32 = arith.constant 0 : i32
    %c0_i32_0 = arith.constant 0 : i32
    return %arg0, %c0_i32 : i32, i32
  }
  func.func @transform_1(%arg0: i32) -> (i32, i32) {
    %c0_i32 = arith.constant 0 : i32
    %c0_i32_0 = arith.constant 0 : i32
    %c0_i32_1 = arith.constant 0 : i32
    return %c0_i32, %c0_i32_0 : i32, i32
  }
  func.func @transform_2(%arg0: i32) -> (i32, i32) {
    %c0_i32 = arith.constant 0 : i32
    %c0_i32_0 = arith.constant 0 : i32
    %c0_i32_1 = arith.constant 0 : i32
    return %c0_i32, %c0_i32_0 : i32, i32
  }
  func.func @transform_3(%arg0: i32) -> (i32, i32) {
    %c0_i32 = arith.constant 0 : i32
    %c0_i32_0 = arith.constant 0 : i32
    return %arg0, %c0_i32 : i32, i32
  }
}

</mosaic_0001>

<llo_original>
// kernel: multi_discriminator_forward.15
$region0: #{multi_discriminator_forward.15}
  #allocation0 [shape = 'u32[]', space=smem, size = 0x4, offset = 0x4, fixed_abs, tag = 'smem constant byte address 0x4 - core index']
  #allocation1 [shape = 'u32[144,128]{1,0:T(1,128)}', space=vmem, size = 0x12000, scoped, tag = 'internal scratch']
  %s0 = inlined_call_operand.vmem [shape: bf16[168,128], index: 0, kind: input, shape index: {}]
  %s1 = inlined_call_operand.vmem [shape: bf16[128,128], index: 1, kind: input, shape index: {}]
  %s2 = inlined_call_operand.vmem [shape: f32[1,128], index: 2, kind: input, shape index: {}]
  %s3 = inlined_call_operand.vmem [shape: bf16[168,128], index: 3, kind: output, shape index: {}]
  %s4 = sld [smem:[#allocation0]]
  $region22: #{multi_discriminator_forward.15} parent=0
    _
  %s6 = ssub.s32 1, %s4
  %s7 = scalar_select 0, %s6, %s4
  // Predicated region
  $region2: #{multi_discriminator_forward.15} parent=0 // pred_check
    _
  $region3: #{multi_discriminator_forward.15} parent=0 // pred_check_branch
    %9 = sbr.rel (0) target = $region5
  $region4: #{multi_discriminator_forward.15} parent=0 // pred_region
    _
  $region5: #{multi_discriminator_forward.15} parent=0 // pred_fallthru
    _
  // Predicated region
  $region6: #{multi_discriminator_forward.15} parent=0 // pred_check
    _
  $region7: #{multi_discriminator_forward.15} parent=0 // pred_check_branch
    %11 = sbr.rel (0) target = $region9
  $region8: #{multi_discriminator_forward.15} parent=0 // pred_region
    _
  $region9: #{multi_discriminator_forward.15} parent=0 // pred_fallthru
    _
  // Predicated region
  $region10: #{multi_discriminator_forward.15} parent=0 // pred_check
    _
  $region11: #{multi_discriminator_forward.15} parent=0 // pred_check_branch
    %13 = sbr.rel (0) target = $region13
  $region12: #{multi_discriminator_forward.15} parent=0 // pred_region
    _
  $region13: #{multi_discriminator_forward.15} parent=0 // pred_fallthru
    _
  %v15 = vld [vmem:[%s0] sm:$0xf]
  %v16 = vld [vmem:[%s0 + $0x4] sm:$0xf]
  %v17 = vld [vmem:[%s0 + $0x8] sm:$0xf]
  %v18 = vld [vmem:[%s0 + $0xc] sm:$0xf]
  %v19 = vld [vmem:[%s0 + $0x10] sm:$0xf]
  %v20 = vld [vmem:[%s0 + $0x14] sm:$0xf]
  %v21 = vld [vmem:[%s0 + $0x18] sm:$0xf]
  %v22 = vld [vmem:[%s0 + $0x1c] sm:$0xf]
  %v23 = vld [vmem:[%s0 + $0x20] sm:$0xf]
  %v24 = vld [vmem:[%s0 + $0x24] sm:$0xf]
  %v25 = vld [vmem:[%s0 + $0x28] sm:$0xf]
  %v26 = vld [vmem:[%s0 + $0x2c] sm:$0xf]
  %v27 = vld [vmem:[%s0 + $0x30] sm:$0xf]
  %v28 = vld [vmem:[%s0 + $0x34] sm:$0xf]
  %v29 = vld [vmem:[%s0 + $0x38] sm:$0xf]
  %v30 = vld [vmem:[%s0 + $0x3c] sm:$0xf]
  %v31 = vld [vmem:[%s0 + $0x40] sm:$0xf]
  %v32 = vld [vmem:[%s0 + $0x44] sm:$0xf]
  %v33 = vld [vmem:[%s0 + $0x48] sm:$0xf]
  %v34 = vld [vmem:[%s0 + $0x4c] sm:$0xf]
  %v35 = vld [vmem:[%s0 + $0x50] sm:$0xf]
  %v36 = vld [vmem:[%s1] sm:$0xf]
  %v37 = vld [vmem:[%s1 + $0x4] sm:$0xf]
  %v38 = vld [vmem:[%s1 + $0x8] sm:$0xf]
  %v39 = vld [vmem:[%s1 + $0xc] sm:$0xf]
  %v40 = vld [vmem:[%s1 + $0x10] sm:$0xf]
  %v41 = vld [vmem:[%s1 + $0x14] sm:$0xf]
  %v42 = vld [vmem:[%s1 + $0x18] sm:$0xf]
  %v43 = vld [vmem:[%s1 + $0x1c] sm:$0xf]
  %v44 = vld [vmem:[%s1 + $0x20] sm:$0xf]
  %v45 = vld [vmem:[%s1 + $0x24] sm:$0xf]
  %v46 = vld [vmem:[%s1 + $0x28] sm:$0xf]
  %v47 = vld [vmem:[%s1 + $0x2c] sm:$0xf]
  %v48 = vld [vmem:[%s1 + $0x30] sm:$0xf]
  %v49 = vld [vmem:[%s1 + $0x34] sm:$0xf]
  %v50 = vld [vmem:[%s1 + $0x38] sm:$0xf]
  %v51 = vld [vmem:[%s1 + $0x3c] sm:$0xf]
  %v52 = vld [vmem:[%s2] sm:$0x1]
  %v54 = vlaneseq
  %v55 = vshrl.u32 %v54, 7
  %v56 = vsub.s32 0, %v55
  %v57 = vrot.slane %v52, %v56
  %v80 = vunpack.c.l.b16 %v15
  %v81 = vunpack.c.l.b16 %v16
  %v82 = vunpack.c.l.b16 %v17
  %v83 = vunpack.c.l.b16 %v18
  %v84 = vunpack.c.l.b16 %v19
  %v85 = vunpack.c.l.b16 %v20
  %v86 = vunpack.c.l.b16 %v21
  %v87 = vunpack.c.l.b16 %v22
  %v88 = vunpack.c.l.b16 %v23
  %v89 = vunpack.c.l.b16 %v24
  %v90 = vunpack.c.l.b16 %v25
  %v91 = vunpack.c.l.b16 %v26
  %v92 = vunpack.c.l.b16 %v27
  %v93 = vunpack.c.l.b16 %v28
  %v94 = vunpack.c.l.b16 %v29
  %v95 = vunpack.c.l.b16 %v30
  %v96 = vunpack.c.l.b16 %v31
  %v97 = vunpack.c.l.b16 %v32
  %v98 = vunpack.c.l.b16 %v33
  %v99 = vunpack.c.l.b16 %v34
  %v100 = vunpack.c.l.b16 %v35
  %v101 = vpack.c.b16 %v81, %v80
  %v102 = vpack.c.b16 %v83, %v82
  %v103 = vpack.c.b16 %v85, %v84
  %v104 = vpack.c.b16 %v87, %v86
  %v105 = vpack.c.b16 %v89, %v88
  %v106 = vpack.c.b16 %v91, %v90
  %v107 = vpack.c.b16 %v93, %v92
  %v108 = vpack.c.b16 %v95, %v94
  %v109 = vpack.c.b16 %v97, %v96
  %v110 = vpack.c.b16 %v99, %v98
  %v111 = vpack.c.b16 %v100, %v100
  %v139 = vunpack.c.l.b16 %v36
  %v140 = vunpack.c.l.b16 %v37
  %v141 = vunpack.c.l.b16 %v38
  %v142 = vunpack.c.l.b16 %v39
  %v143 = vunpack.c.l.b16 %v40
  %v144 = vunpack.c.l.b16 %v41
  %v145 = vunpack.c.l.b16 %v42
  %v146 = vunpack.c.l.b16 %v43
  %v147 = vunpack.c.l.b16 %v44
  %v148 = vunpack.c.l.b16 %v45
  %v149 = vunpack.c.l.b16 %v46
  %v150 = vunpack.c.l.b16 %v47
  %v151 = vunpack.c.l.b16 %v48
  %v152 = vunpack.c.l.b16 %v49
  %v153 = vunpack.c.l.b16 %v50
  %v154 = vunpack.c.l.b16 %v51
  %v155 = vpack.c.b16 %v140, %v139
  %v156 = vpack.c.b16 %v142, %v141
  %v157 = vpack.c.b16 %v144, %v143
  %v158 = vpack.c.b16 %v146, %v145
  %v159 = vpack.c.b16 %v148, %v147
  %v160 = vpack.c.b16 %v150, %v149
  %v161 = vpack.c.b16 %v152, %v151
  %v162 = vpack.c.b16 %v154, %v153
  %171 = vmatprep.subr.bf16.mxu0 0
  %172 = vmatpush1.bf16.msra.mxu0 %v155
  %173 = vmatprep.subr.bf16.mxu0 0
  %174 = vmatpush1.bf16.msra.mxu0 %v156
  %175 = vmatprep.subr.bf16.mxu0 0
  %176 = vmatpush1.bf16.msra.mxu0 %v157
  %177 = vmatprep.subr.bf16.mxu0 0
  %178 = vmatpush1.bf16.msra.mxu0 %v158
  %179 = vmatprep.subr.bf16.mxu0 0
  %180 = vmatpush1.bf16.msra.mxu0 %v159
  %181 = vmatprep.subr.bf16.mxu0 0
  %182 = vmatpush1.bf16.msra.mxu0 %v160
  %183 = vmatprep.subr.bf16.mxu0 0
  %184 = vmatpush1.bf16.msra.mxu0 %v161
  %185 = vmatprep.subr.bf16.mxu0 0
  %186 = vmatpush1.bf16.msra.mxu0 %v162
  %187 = vmatprep.subr.bf16.mxu0 0
  %188 = vmatpush1.bf16.msra.mxu0 0
  %189 = vmatprep.subr.bf16.mxu0 0
  %190 = vmatpush1.bf16.msra.mxu0 0
  %191 = vmatprep.subr.bf16.mxu0 0
  %192 = vmatpush1.bf16.msra.mxu0 0
  %193 = vmatprep.subr.bf16.mxu0 0
  %194 = vmatpush1.bf16.msra.mxu0 0
  %195 = vmatprep.subr.bf16.mxu0 0
  %196 = vmatpush1.bf16.msra.mxu0 0
  %197 = vmatprep.subr.bf16.mxu0 0
  %198 = vmatpush1.bf16.msra.mxu0 0
  %199 = vmatprep.subr.bf16.mxu0 0
  %200 = vmatpush1.bf16.msra.mxu0 0
  %201 = vmatprep.subr.bf16.mxu0 0
  %202 = vmatpush1.bf16.msra.mxu0 0
  %203 = vmatprep.mubr.bf16.mxu0 0
  %204 = vmatmul.mubr.bf16.gmra.mrb[0].mxu0 %v101
  %v205 = vpop.f32.mrb[0].mxu0
  %v206 = vadd.f32 %v57, %v205
  %v207 = vpop.f32.mrb[0].mxu0
  %v208 = vpop.f32.mrb[0].mxu0
  %v209 = vadd.f32 %v57, %v208
  %v210 = vpop.f32.mrb[0].mxu0
  %211 = vmatprep.mubr.bf16.mxu0 0
  %212 = vmatmul.mubr.bf16.gmra.mrb[0].mxu0 %v102
  %v213 = vpop.f32.mrb[0].mxu0
  %v214 = vadd.f32 %v57, %v213
  %v215 = vpop.f32.mrb[0].mxu0
  %v216 = vpop.f32.mrb[0].mxu0
  %v217 = vadd.f32 %v57, %v216
  %v218 = vpop.f32.mrb[0].mxu0
  %219 = vmatprep.mubr.bf16.mxu0 0
  %220 = vmatmul.mubr.bf16.gmra.mrb[0].mxu0 %v103
  %v221 = vpop.f32.mrb[0].mxu0
  %v222 = vadd.f32 %v57, %v221
  %v223 = vpop.f32.mrb[0].mxu0
  %v224 = vpop.f32.mrb[0].mxu0
  %v225 = vadd.f32 %v57, %v224
  %v226 = vpop.f32.mrb[0].mxu0
  %227 = vmatprep.mubr.bf16.mxu0 0
  %228 = vmatmul.mubr.bf16.gmra.mrb[0].mxu0 %v104
  %v229 = vpop.f32.mrb[0].mxu0
  %v230 = vadd.f32 %v57, %v229
  %v231 = vpop.f32.mrb[0].mxu0
  %v232 = vpop.f32.mrb[0].mxu0
  %v233 = vadd.f32 %v57, %v232
  %v234 = vpop.f32.mrb[0].mxu0
  %235 = vmatprep.mubr.bf16.mxu0 0
  %236 = vmatmul.mubr.bf16.gmra.mrb[0].mxu0 %v105
  %v237 = vpop.f32.mrb[0].mxu0
  %v238 = vadd.f32 %v57, %v237
  %v239 = vpop.f32.mrb[0].mxu0
  %v240 = vpop.f32.mrb[0].mxu0
  %v241 = vadd.f32 %v57, %v240
  %v242 = vpop.f32.mrb[0].mxu0
  %243 = vmatprep.mubr.bf16.mxu0 0
  %244 = vmatmul.mubr.bf16.gmra.mrb[0].mxu0 %v106
  %v245 = vpop.f32.mrb[0].mxu0
  %v246 = vadd.f32 %v57, %v245
  %v247 = vpop.f32.mrb[0].mxu0
  %v248 = vpop.f32.mrb[0].mxu0
  %v249 = vadd.f32 %v57, %v248
  %v250 = vpop.f32.mrb[0].mxu0
  %251 = vmatprep.mubr.bf16.mxu0 0
  %252 = vmatmul.mubr.bf16.gmra.mrb[0].mxu0 %v107
  %v253 = vpop.f32.mrb[0].mxu0
  %v254 = vadd.f32 %v57, %v253
  %v255 = vpop.f32.mrb[0].mxu0
  %v256 = vpop.f32.mrb[0].mxu0
  %v257 = vadd.f32 %v57, %v256
  %v258 = vpop.f32.mrb[0].mxu0
  %259 = vmatprep.mubr.bf16.mxu0 0
  %260 = vmatmul.mubr.bf16.gmra.mrb[0].mxu0 %v108
  %v261 = vpop.f32.mrb[0].mxu0
  %v262 = vadd.f32 %v57, %v261
  %v263 = vpop.f32.mrb[0].mxu0
  %v264 = vpop.f32.mrb[0].mxu0
  %v265 = vadd.f32 %v57, %v264
  %v266 = vpop.f32.mrb[0].mxu0
  %267 = vmatprep.mubr.bf16.mxu0 0
  %268 = vmatmul.mubr.bf16.gmra.mrb[0].mxu0 %v109
  %v269 = vpop.f32.mrb[0].mxu0
  %v270 = vadd.f32 %v57, %v269
  %v271 = vpop.f32.mrb[0].mxu0
  %v272 = vpop.f32.mrb[0].mxu0
  %v273 = vadd.f32 %v57, %v272
  %v274 = vpop.f32.mrb[0].mxu0
  %275 = vmatprep.mubr.bf16.mxu0 0
  %276 = vmatmul.mubr.bf16.gmra.mrb[0].mxu0 %v110
  %v277 = vpop.f32.mrb[0].mxu0
  %v278 = vadd.f32 %v57, %v277
  %v279 = vpop.f32.mrb[0].mxu0
  %v280 = vpop.f32.mrb[0].mxu0
  %v281 = vadd.f32 %v57, %v280
  %v282 = vpop.f32.mrb[0].mxu0
  %283 = vmatprep.mubr.bf16.mxu0 0
  %284 = vmatmul.mubr.bf16.gmra.mrb[0].mxu0 %v111
  %v285 = vpop.f32.mrb[0].mxu0
  %v286 = vadd.f32 %v57, %v285
  %v287 = vpop.f32.mrb[0].mxu0
  %v288 = vpop.f32.mrb[0].mxu0
  %v289 = vpop.f32.mrb[0].mxu0
  %290 = vdwg.mxu0
  %vm291 = vcmp.ge.f32.partialorder %v206, 0.0
  %vm292 = vcmp.ge.f32.partialorder %v209, 0.0
  %vm293 = vcmp.ge.f32.partialorder %v214, 0.0
  %vm294 = vcmp.ge.f32.partialorder %v217, 0.0
  %vm295 = vcmp.ge.f32.partialorder %v222, 0.0
  %vm296 = vcmp.ge.f32.partialorder %v225, 0.0
  %vm297 = vcmp.ge.f32.partialorder %v230, 0.0
  %vm298 = vcmp.ge.f32.partialorder %v233, 0.0
  %vm299 = vcmp.ge.f32.partialorder %v238, 0.0
  %vm300 = vcmp.ge.f32.partialorder %v241, 0.0
  %vm301 = vcmp.ge.f32.partialorder %v246, 0.0
  %vm302 = vcmp.ge.f32.partialorder %v249, 0.0
  %vm303 = vcmp.ge.f32.partialorder %v254, 0.0
  %vm304 = vcmp.ge.f32.partialorder %v257, 0.0
  %vm305 = vcmp.ge.f32.partialorder %v262, 0.0
  %vm306 = vcmp.ge.f32.partialorder %v265, 0.0
  %vm307 = vcmp.ge.f32.partialorder %v270, 0.0
  %vm308 = vcmp.ge.f32.partialorder %v273, 0.0
  %vm309 = vcmp.ge.f32.partialorder %v278, 0.0
  %vm310 = vcmp.ge.f32.partialorder %v281, 0.0
  %vm311 = vcmp.ge.f32.partialorder %v286, 0.0
  %v312 = vmul.f32 %v206, 0.2
  %v313 = vmul.f32 %v209, 0.2
  %v314 = vmul.f32 %v214, 0.2
  %v315 = vmul.f32 %v217, 0.2
  %v316 = vmul.f32 %v222, 0.2
  %v317 = vmul.f32 %v225, 0.2
  %v318 = vmul.f32 %v230, 0.2
  %v319 = vmul.f32 %v233, 0.2
  %v320 = vmul.f32 %v238, 0.2
  %v321 = vmul.f32 %v241, 0.2
  %v322 = vmul.f32 %v246, 0.2
  %v323 = vmul.f32 %v249, 0.2
  %v324 = vmul.f32 %v254, 0.2
  %v325 = vmul.f32 %v257, 0.2
  %v326 = vmul.f32 %v262, 0.2
  %v327 = vmul.f32 %v265, 0.2
  %v328 = vmul.f32 %v270, 0.2
  %v329 = vmul.f32 %v273, 0.2
  %v330 = vmul.f32 %v278, 0.2
  %v331 = vmul.f32 %v281, 0.2
  %v332 = vmul.f32 %v286, 0.2
  %v333 = vsel %vm291, %v206, %v312
  %v334 = vsel %vm292, %v209, %v313
  %v335 = vsel %vm293, %v214, %v314
  %v336 = vsel %vm294, %v217, %v315
  %v337 = vsel %vm295, %v222, %v316
  %v338 = vsel %vm296, %v225, %v317
  %v339 = vsel %vm297, %v230, %v318
  %v340 = vsel %vm298, %v233, %v319
  %v341 = vsel %vm299, %v238, %v320
  %v342 = vsel %vm300, %v241, %v321
  %v343 = vsel %vm301, %v246, %v322
  %v344 = vsel %vm302, %v249, %v323
  %v345 = vsel %vm303, %v254, %v324
  %v346 = vsel %vm304, %v257, %v325
  %v347 = vsel %vm305, %v262, %v326
  %v348 = vsel %vm306, %v265, %v327
  %v349 = vsel %vm307, %v270, %v328
  %v350 = vsel %vm308, %v273, %v329
  %v351 = vsel %vm309, %v278, %v330
  %v352 = vsel %vm310, %v281, %v331
  %v353 = vsel %vm311, %v286, %v332
  %v354 = vpack.c.bf16 %v334, %v333
  %v355 = vpack.c.bf16 %v336, %v335
  %v356 = vpack.c.bf16 %v338, %v337
  %v357 = vpack.c.bf16 %v340, %v339
  %v358 = vpack.c.bf16 %v342, %v341
  %v359 = vpack.c.bf16 %v344, %v343
  %v360 = vpack.c.bf16 %v346, %v345
  %v361 = vpack.c.bf16 %v348, %v347
  %v362 = vpack.c.bf16 %v350, %v349
  %v363 = vpack.c.bf16 %v352, %v351
  %v364 = vpack.c.bf16 %v353, %v353
  %v376 = vunpack.c.l.b16 %v354
  %v377 = vunpack.c.h.b16 %v354
  %v378 = vunpack.c.l.b16 %v355
  %v379 = vunpack.c.h.b16 %v355
  %v380 = vunpack.c.l.b16 %v356
  %v381 = vunpack.c.h.b16 %v356
  %v382 = vunpack.c.l.b16 %v357
  %v383 = vunpack.c.h.b16 %v357
  %v384 = vunpack.c.l.b16 %v358
  %v385 = vunpack.c.h.b16 %v358
  %v386 = vunpack.c.l.b16 %v359
  %v387 = vunpack.c.h.b16 %v359
  %v388 = vunpack.c.l.b16 %v360
  %v389 = vunpack.c.h.b16 %v360
  %v390 = vunpack.c.l.b16 %v361
  %v391 = vunpack.c.h.b16 %v361
  %v392 = vunpack.c.l.b16 %v362
  %v393 = vunpack.c.h.b16 %v362
  %v394 = vunpack.c.l.b16 %v363
  %v395 = vunpack.c.h.b16 %v363
  %v396 = vunpack.c.l.b16 %v364
  %v397 = vpack.c.b16 %v376, %v376
  %v398 = vpack.c.b16 %v377, %v377
  %v399 = vpack.c.b16 %v378, %v378
  %v400 = vpack.c.b16 %v379, %v379
  %v401 = vpack.c.b16 %v380, %v380
  %v402 = vpack.c.b16 %v381, %v381
  %v403 = vpack.c.b16 %v382, %v382
  %v404 = vpack.c.b16 %v383, %v383
  %v405 = vpack.c.b16 %v384, %v384
  %v406 = vpack.c.b16 %v385, %v385
  %v407 = vpack.c.b16 %v386, %v386
  %v408 = vpack.c.b16 %v387, %v387
  %v409 = vpack.c.b16 %v388, %v388
  %v410 = vpack.c.b16 %v389, %v389
  %v411 = vpack.c.b16 %v390, %v390
  %v412 = vpack.c.b16 %v391, %v391
  %v413 = vpack.c.b16 %v392, %v392
  %v414 = vpack.c.b16 %v393, %v393
  %v415 = vpack.c.b16 %v394, %v394
  %v416 = vpack.c.b16 %v395, %v395
  %v417 = vpack.c.b16 %v396, %v396
  %439 = vst [vmem:[%s3] sm:$0xf] %v397
  %440 = vst [vmem:[%s3 + $0x4] sm:$0xf] %v398
  %441 = vst [vmem:[%s3 + $0x8] sm:$0xf] %v399
  %442 = vst [vmem:[%s3 + $0xc] sm:$0xf] %v400
  %443 = vst [vmem:[%s3 + $0x10] sm:$0xf] %v401
  %444 = vst [vmem:[%s3 + $0x14] sm:$0xf] %v402
  %445 = vst [vmem:[%s3 + $0x18] sm:$0xf] %v403
  %446 = vst [vmem:[%s3 + $0x1c] sm:$0xf] %v404
  %447 = vst [vmem:[%s3 + $0x20] sm:$0xf] %v405
  %448 = vst [vmem:[%s3 + $0x24] sm:$0xf] %v406
  %449 = vst [vmem:[%s3 + $0x28] sm:$0xf] %v407
  %450 = vst [vmem:[%s3 + $0x2c] sm:$0xf] %v408
  %451 = vst [vmem:[%s3 + $0x30] sm:$0xf] %v409
  %452 = vst [vmem:[%s3 + $0x34] sm:$0xf] %v410
  %453 = vst [vmem:[%s3 + $0x38] sm:$0xf] %v411
  %454 = vst [vmem:[%s3 + $0x3c] sm:$0xf] %v412
  %455 = vst [vmem:[%s3 + $0x40] sm:$0xf] %v413
  %456 = vst [vmem:[%s3 + $0x44] sm:$0xf] %v414
  %457 = vst [vmem:[%s3 + $0x48] sm:$0xf] %v415
  %458 = vst [vmem:[%s3 + $0x4c] sm:$0xf] %v416
  %459 = vst [vmem:[%s3 + $0x50] sm:$0xf] %v417
  // Predicated region
  $region14: #{multi_discriminator_forward.15} parent=0 // pred_check
    _
  $region15: #{multi_discriminator_forward.15} parent=0 // pred_check_branch
    %461 = sbr.rel (0) target = $region17
  $region16: #{multi_discriminator_forward.15} parent=0 // pred_region
    _
  $region17: #{multi_discriminator_forward.15} parent=0 // pred_fallthru
    _
  // Predicated region
  $region18: #{multi_discriminator_forward.15} parent=0 // pred_check
    _
  $region19: #{multi_discriminator_forward.15} parent=0 // pred_check_branch
    %463 = sbr.rel (0) target = $region21
  $region20: #{multi_discriminator_forward.15} parent=0 // pred_region
    _
  $region21: #{multi_discriminator_forward.15} parent=0 // pred_fallthru
    _

// kernel: multi_discriminator_forward.17
$region0: #{multi_discriminator_forward.17}
  #allocation0 [shape = 'u32[]', space=smem, size = 0x4, offset = 0x4, fixed_abs, tag = 'smem constant byte address 0x4 - core index']
  #allocation1 [shape = 'u32[144,128]{1,0:T(1,128)}', space=vmem, size = 0x12000, scoped, tag = 'internal scratch']
  %s0 = inlined_call_operand.vmem [shape: bf16[56,128], index: 0, kind: input, shape index: {}]
  %s1 = inlined_call_operand.vmem [shape: f32[1,128], index: 1, kind: input, shape index: {}]
  %s2 = inlined_call_operand.vmem [shape: f32[1,128], index: 2, kind: input, shape index: {}]
  %s3 = inlined_call_operand.vmem [shape: bf16[56,128], index: 3, kind: output, shape index: {}]
  %s4 = sld [smem:[#allocation0]]
  $region22: #{multi_discriminator_forward.17} parent=0
    _
  %s6 = ssub.s32 1, %s4
  %s7 = scalar_select 0, %s6, %s4
  // Predicated region
  $region2: #{multi_discriminator_forward.17} parent=0 // pred_check
    _
  $region3: #{multi_discriminator_forward.17} parent=0 // pred_check_branch
    %9 = sbr.rel (0) target = $region5
  $region4: #{multi_discriminator_forward.17} parent=0 // pred_region
    _
  $region5: #{multi_discriminator_forward.17} parent=0 // pred_fallthru
    _
  // Predicated region
  $region6: #{multi_discriminator_forward.17} parent=0 // pred_check
    _
  $region7: #{multi_discriminator_forward.17} parent=0 // pred_check_branch
    %11 = sbr.rel (0) target = $region9
  $region8: #{multi_discriminator_forward.17} parent=0 // pred_region
    _
  $region9: #{multi_discriminator_forward.17} parent=0 // pred_fallthru
    _
  // Predicated region
  $region10: #{multi_discriminator_forward.17} parent=0 // pred_check
    _
  $region11: #{multi_discriminator_forward.17} parent=0 // pred_check_branch
    %13 = sbr.rel (0) target = $region13
  $region12: #{multi_discriminator_forward.17} parent=0 // pred_region
    _
  $region13: #{multi_discriminator_forward.17} parent=0 // pred_fallthru
    _
  %v14 = vld [vmem:[%s0] sm:$0xf]
  %v15 = vld [vmem:[%s0 + $0x4] sm:$0xf]
  %v16 = vld [vmem:[%s0 + $0x8] sm:$0xf]
  %v17 = vld [vmem:[%s0 + $0xc] sm:$0xf]
  %v18 = vld [vmem:[%s0 + $0x10] sm:$0xf]
  %v19 = vld [vmem:[%s0 + $0x14] sm:$0xf]
  %v20 = vld [vmem:[%s0 + $0x18] sm:$0xf]
  %v21 = vunpack.c.l.bf16 %v14
  %v22 = vunpack.c.l.bf16 %v15
  %v23 = vunpack.c.l.bf16 %v16
  %v24 = vunpack.c.l.bf16 %v17
  %v25 = vunpack.c.l.bf16 %v18
  %v26 = vunpack.c.l.bf16 %v19
  %v27 = vunpack.c.l.bf16 %v20
  %v28 = vld [vmem:[%s1] sm:$0x1]
  %v30 = vlaneseq
  %v31 = vshrl.u32 %v30, 7
  %v32 = vsub.s32 0, %v31
  %v33 = vrot.slane %v28, %v32
  %v35 = vmul.f32 %v21, %v33
  %v36 = vmul.f32 %v22, %v33
  %v37 = vmul.f32 %v23, %v33
  %v38 = vmul.f32 %v24, %v33
  %v39 = vmul.f32 %v25, %v33
  %v40 = vmul.f32 %v26, %v33
  %v41 = vmul.f32 %v27, %v33
  %v42 = vld [vmem:[%s2] sm:$0x1]
  %v44 = vlaneseq
  %v45 = vshrl.u32 %v44, 7
  %v46 = vsub.s32 0, %v45
  %v47 = vrot.slane %v42, %v46
  %v49 = vadd.f32 %v35, %v47
  %v50 = vadd.f32 %v36, %v47
  %v51 = vadd.f32 %v37, %v47
  %v52 = vadd.f32 %v38, %v47
  %v53 = vadd.f32 %v39, %v47
  %v54 = vadd.f32 %v40, %v47
  %v55 = vadd.f32 %v41, %v47
  %vm56 = vcmp.ge.f32.partialorder %v49, 0.0
  %vm57 = vcmp.ge.f32.partialorder %v50, 0.0
  %vm58 = vcmp.ge.f32.partialorder %v51, 0.0
  %vm59 = vcmp.ge.f32.partialorder %v52, 0.0
  %vm60 = vcmp.ge.f32.partialorder %v53, 0.0
  %vm61 = vcmp.ge.f32.partialorder %v54, 0.0
  %vm62 = vcmp.ge.f32.partialorder %v55, 0.0
  %v63 = vmul.f32 %v49, 0.2
  %v64 = vmul.f32 %v50, 0.2
  %v65 = vmul.f32 %v51, 0.2
  %v66 = vmul.f32 %v52, 0.2
  %v67 = vmul.f32 %v53, 0.2
  %v68 = vmul.f32 %v54, 0.2
  %v69 = vmul.f32 %v55, 0.2
  %v70 = vsel %vm56, %v49, %v63
  %v71 = vsel %vm57, %v50, %v64
  %v72 = vsel %vm58, %v51, %v65
  %v73 = vsel %vm59, %v52, %v66
  %v74 = vsel %vm60, %v53, %v67
  %v75 = vsel %vm61, %v54, %v68
  %v76 = vsel %vm62, %v55, %v69
  %v77 = vpack.c.bf16 %v71, %v70
  %v78 = vpack.c.bf16 %v73, %v72
  %v79 = vpack.c.bf16 %v75, %v74
  %v80 = vpack.c.bf16 %v76, %v76
  %v85 = vunpack.c.l.b16 %v77
  %v86 = vunpack.c.h.b16 %v77
  %v87 = vunpack.c.l.b16 %v78
  %v88 = vunpack.c.h.b16 %v78
  %v89 = vunpack.c.l.b16 %v79
  %v90 = vunpack.c.h.b16 %v79
  %v91 = vunpack.c.l.b16 %v80
  %v92 = vpack.c.b16 %v85, %v85
  %v93 = vpack.c.b16 %v86, %v86
  %v94 = vpack.c.b16 %v87, %v87
  %v95 = vpack.c.b16 %v88, %v88
  %v96 = vpack.c.b16 %v89, %v89
  %v97 = vpack.c.b16 %v90, %v90
  %v98 = vpack.c.b16 %v91, %v91
  %106 = vst [vmem:[%s3] sm:$0xf] %v92
  %107 = vst [vmem:[%s3 + $0x4] sm:$0xf] %v93
  %108 = vst [vmem:[%s3 + $0x8] sm:$0xf] %v94
  %109 = vst [vmem:[%s3 + $0xc] sm:$0xf] %v95
  %110 = vst [vmem:[%s3 + $0x10] sm:$0xf] %v96
  %111 = vst [vmem:[%s3 + $0x14] sm:$0xf] %v97
  %112 = vst [vmem:[%s3 + $0x18] sm:$0xf] %v98
  // Predicated region
  $region14: #{multi_discriminator_forward.17} parent=0 // pred_check
    _
  $region15: #{multi_discriminator_forward.17} parent=0 // pred_check_branch
    %114 = sbr.rel (0) target = $region17
  $region16: #{multi_discriminator_forward.17} parent=0 // pred_region
    _
  $region17: #{multi_discriminator_forward.17} parent=0 // pred_fallthru
    _
  // Predicated region
  $region18: #{multi_discriminator_forward.17} parent=0 // pred_check
    _
  $region19: #{multi_discriminator_forward.17} parent=0 // pred_check_branch
    %116 = sbr.rel (0) target = $region21
  $region20: #{multi_discriminator_forward.17} parent=0 // pred_region
    _
  $region21: #{multi_discriminator_forward.17} parent=0 // pred_fallthru
    _

// kernel: multi_discriminator_forward.16
$region0: #{multi_discriminator_forward.16}
  #allocation0 [shape = 'u32[]', space=smem, size = 0x4, offset = 0x4, fixed_abs, tag = 'smem constant byte address 0x4 - core index']
  #allocation1 [shape = 'u32[144,128]{1,0:T(1,128)}', space=vmem, size = 0x12000, scoped, tag = 'internal scratch']
  %s0 = inlined_call_operand.vmem [shape: bf16[56,2048], index: 0, kind: input, shape index: {}]
  %s1 = inlined_call_operand.vmem [shape: bf16[2048,128], index: 1, kind: input, shape index: {}]
  %s2 = inlined_call_operand.vmem [shape: bf16[56,128], index: 2, kind: output, shape index: {0}]
  %s3 = inlined_call_operand.vmem [shape: f32[8,128], index: 3, kind: output, shape index: {1}]
  %4 = xla_tuple %s2, %s3
  %s5 = sld [smem:[#allocation0]]
  $region26: #{multi_discriminator_forward.16} parent=0
    _
  %s7 = ssub.s32 1, %s5
  %s8 = scalar_select 0, %s7, %s5
  // Predicated region
  $region2: #{multi_discriminator_forward.16} parent=0 // pred_check
    _
  $region3: #{multi_discriminator_forward.16} parent=0 // pred_check_branch
    %10 = sbr.rel (0) target = $region5
  $region4: #{multi_discriminator_forward.16} parent=0 // pred_region
    _
  $region5: #{multi_discriminator_forward.16} parent=0 // pred_fallthru
    _
  // Predicated region
  $region6: #{multi_discriminator_forward.16} parent=0 // pred_check
    _
  $region7: #{multi_discriminator_forward.16} parent=0 // pred_check_branch
    %12 = sbr.rel (0) target = $region9
  $region8: #{multi_discriminator_forward.16} parent=0 // pred_region
    _
  $region9: #{multi_discriminator_forward.16} parent=0 // pred_fallthru
    _
  %v14 = vld [vmem:[%s0] sm:$0xff]
  %v15 = vld [vmem:[%s0 + $0x8] sm:$0xff]
  %v16 = vld [vmem:[%s0 + $0x10] sm:$0xff]
  %v17 = vld [vmem:[%s0 + $0x18] sm:$0xff]
  %v18 = vld [vmem:[%s0 + $0x20] sm:$0xff]
  %v19 = vld [vmem:[%s0 + $0x28] sm:$0xff]
  %v20 = vld [vmem:[%s0 + $0x30] sm:$0xff]
  %v21 = vld [vmem:[%s0 + $0x38] sm:$0xff]
  %v22 = vld [vmem:[%s0 + $0x40] sm:$0xff]
  %v23 = vld [vmem:[%s0 + $0x48] sm:$0xff]
  %v24 = vld [vmem:[%s0 + $0x50] sm:$0xff]
  %v25 = vld [vmem:[%s0 + $0x58] sm:$0xff]
  %v26 = vld [vmem:[%s0 + $0x60] sm:$0xff]
  %v27 = vld [vmem:[%s0 + $0x68] sm:$0xff]
  %v28 = vld [vmem:[%s0 + $0x70] sm:$0xff]
  %v29 = vld [vmem:[%s0 + $0x78] sm:$0xff]
  %v30 = vld [vmem:[%s0 + $0x80] sm:$0xff]
  %v31 = vld [vmem:[%s0 + $0x88] sm:$0xff]
  %v32 = vld [vmem:[%s0 + $0x90] sm:$0xff]
  %v33 = vld [vmem:[%s0 + $0x98] sm:$0xff]
  %v34 = vld [vmem:[%s0 + $0xa0] sm:$0xff]
  %v35 = vld [vmem:[%s0 + $0xa8] sm:$0xff]
  %v36 = vld [vmem:[%s0 + $0xb0] sm:$0xff]
  %v37 = vld [vmem:[%s0 + $0xb8] sm:$0xff]
  %v38 = vld [vmem:[%s0 + $0xc0] sm:$0xff]
  %v39 = vld [vmem:[%s0 + $0xc8] sm:$0xff]
  %v40 = vld [vmem:[%s0 + $0xd0] sm:$0xff]
  %v41 = vld [vmem:[%s0 + $0xd8] sm:$0xff]
  %v42 = vld [vmem:[%s0 + $0xe0] sm:$0xff]
  %v43 = vld [vmem:[%s0 + $0xe8] sm:$0xff]
  %v44 = vld [vmem:[%s0 + $0xf0] sm:$0xff]
  %v45 = vld [vmem:[%s0 + $0xf8] sm:$0xff]
  %v46 = vld [vmem:[%s0 + $0x100] sm:$0xff]
  %v47 = vld [vmem:[%s0 + $0x108] sm:$0xff]
  %v48 = vld [vmem:[%s0 + $0x110] sm:$0xff]
  %v49 = vld [vmem:[%s0 + $0x118] sm:$0xff]
  %v50 = vld [vmem:[%s0 + $0x120] sm:$0xff]
  %v51 = vld [vmem:[%s0 + $0x128] sm:$0xff]
  %v52 = vld [vmem:[%s0 + $0x130] sm:$0xff]
  %v53 = vld [vmem:[%s0 + $0x138] sm:$0xff]
  %v54 = vld [vmem:[%s0 + $0x140] sm:$0xff]
  %v55 = vld [vmem:[%s0 + $0x148] sm:$0xff]
  %v56 = vld [vmem:[%s0 + $0x150] sm:$0xff]
  %v57 = vld [vmem:[%s0 + $0x158] sm:$0xff]
  %v58 = vld [vmem:[%s0 + $0x160] sm:$0xff]
  %v59 = vld [vmem:[%s0 + $0x168] sm:$0xff]
  %v60 = vld [vmem:[%s0 + $0x170] sm:$0xff]
  %v61 = vld [vmem:[%s0 + $0x178] sm:$0xff]
  %v62 = vld [vmem:[%s0 + $0x180] sm:$0xff]
  %v63 = vld [vmem:[%s0 + $0x188] sm:$0xff]
  %v64 = vld [vmem:[%s0 + $0x190] sm:$0xff]
  %v65 = vld [vmem:[%s0 + $0x198] sm:$0xff]
  %v66 = vld [vmem:[%s0 + $0x1a0] sm:$0xff]
  %v67 = vld [vmem:[%s0 + $0x1a8] sm:$0xff]
  %v68 = vld [vmem:[%s0 + $0x1b0] sm:$0xff]
  %v69 = vld [vmem:[%s0 + $0x1b8] sm:$0xff]
  %v70 = vld [vmem:[%s1] sm:$0xf]
  %v71 = vld [vmem:[%s1 + $0x4] sm:$0xf]
  %v72 = vld [vmem:[%s1 + $0x8] sm:$0xf]
  %v73 = vld [vmem:[%s1 + $0xc] sm:$0xf]
  %v74 = vld [vmem:[%s1 + $0x10] sm:$0xf]
  %v75 = vld [vmem:[%s1 + $0x14] sm:$0xf]
  %v76 = vld [vmem:[%s1 + $0x18] sm:$0xf]
  %v77 = vld [vmem:[%s1 + $0x1c] sm:$0xf]
  %v78 = vld [vmem:[%s1 + $0x20] sm:$0xf]
  %v79 = vld [vmem:[%s1 + $0x24] sm:$0xf]
  %v80 = vld [vmem:[%s1 + $0x28] sm:$0xf]
  %v81 = vld [vmem:[%s1 + $0x2c] sm:$0xf]
  %v82 = vld [vmem:[%s1 + $0x30] sm:$0xf]
  %v83 = vld [vmem:[%s1 + $0x34] sm:$0xf]
  %v84 = vld [vmem:[%s1 + $0x38] sm:$0xf]
  %v85 = vld [vmem:[%s1 + $0x3c] sm:$0xf]
  %v86 = vld [vmem:[%s1 + $0x40] sm:$0xf]
  %v87 = vld [vmem:[%s1 + $0x44] sm:$0xf]
  %v88 = vld [vmem:[%s1 + $0x48] sm:$0xf]
  %v89 = vld [vmem:[%s1 + $0x4c] sm:$0xf]
  %v90 = vld [vmem:[%s1 + $0x50] sm:$0xf]
  %v91 = vld [vmem:[%s1 + $0x54] sm:$0xf]
  %v92 = vld [vmem:[%s1 + $0x58] sm:$0xf]
  %v93 = vld [vmem:[%s1 + $0x5c] sm:$0xf]
  %v94 = vld [vmem:[%s1 + $0x60] sm:$0xf]
  %v95 = vld [vmem:[%s1 + $0x64] sm:$0xf]
  %v96 = vld [vmem:[%s1 + $0x68] sm:$0xf]
  %v97 = vld [vmem:[%s1 + $0x6c] sm:$0xf]
  %v98 = vld [vmem:[%s1 + $0x70] sm:$0xf]
  %v99 = vld [vmem:[%s1 + $0x74] sm:$0xf]
  %v100 = vld [vmem:[%s1 + $0x78] sm:$0xf]
  %v101 = vld [vmem:[%s1 + $0x7c] sm:$0xf]
  %v102 = vld [vmem:[%s1 + $0x80] sm:$0xf]
  %v103 = vld [vmem:[%s1 + $0x84] sm:$0xf]
  %v104 = vld [vmem:[%s1 + $0x88] sm:$0xf]
  %v105 = vld [vmem:[%s1 + $0x8c] sm:$0xf]
  %v106 = vld [vmem:[%s1 + $0x90] sm:$0xf]
  %v107 = vld [vmem:[%s1 + $0x94] sm:$0xf]
  %v108 = vld [vmem:[%s1 + $0x98] sm:$0xf]
  %v109 = vld [vmem:[%s1 + $0x9c] sm:$0xf]
  %v110 = vld [vmem:[%s1 + $0xa0] sm:$0xf]
  %v111 = vld [vmem:[%s1 + $0xa4] sm:$0xf]
  %v112 = vld [vmem:[%s1 + $0xa8] sm:$0xf]
  %v113 = vld [vmem:[%s1 + $0xac] sm:$0xf]
  %v114 = vld [vmem:[%s1 + $0xb0] sm:$0xf]
  %v115 = vld [vmem:[%s1 + $0xb4] sm:$0xf]
  %v116 = vld [vmem:[%s1 + $0xb8] sm:$0xf]
  %v117 = vld [vmem:[%s1 + $0xbc] sm:$0xf]
  %v118 = vld [vmem:[%s1 + $0xc0] sm:$0xf]
  %v119 = vld [vmem:[%s1 + $0xc4] sm:$0xf]
  %v120 = vld [vmem:[%s1 + $0xc8] sm:$0xf]
  %v121 = vld [vmem:[%s1 + $0xcc] sm:$0xf]
  %v122 = vld [vmem:[%s1 + $0xd0] sm:$0xf]
  %v123 = vld [vmem:[%s1 + $0xd4] sm:$0xf]
  %v124 = vld [vmem:[%s1 + $0xd8] sm:$0xf]
  %v125 = vld [vmem:[%s1 + $0xdc] sm:$0xf]
  %v126 = vld [vmem:[%s1 + $0xe0] sm:$0xf]
  %v127 = vld [vmem:[%s1 + $0xe4] sm:$0xf]
  %v128 = vld [vmem:[%s1 + $0xe8] sm:$0xf]
  %v129 = vld [vmem:[%s1 + $0xec] sm:$0xf]
  %v130 = vld [vmem:[%s1 + $0xf0] sm:$0xf]
  %v131 = vld [vmem:[%s1 + $0xf4] sm:$0xf]
  %v132 = vld [vmem:[%s1 + $0xf8] sm:$0xf]
  %v133 = vld [vmem:[%s1 + $0xfc] sm:$0xf]
  %v134 = vld [vmem:[%s1 + $0x100] sm:$0xf]
  %v135 = vld [vmem:[%s1 + $0x104] sm:$0xf]
  %v136 = vld [vmem:[%s1 + $0x108] sm:$0xf]
  %v137 = vld [vmem:[%s1 + $0x10c] sm:$0xf]
  %v138 = vld [vmem:[%s1 + $0x110] sm:$0xf]
  %v139 = vld [vmem:[%s1 + $0x114] sm:$0xf]
  %v140 = vld [vmem:[%s1 + $0x118] sm:$0xf]
  %v141 = vld [vmem:[%s1 + $0x11c] sm:$0xf]
  %v142 = vld [vmem:[%s1 + $0x120] sm:$0xf]
  %v143 = vld [vmem:[%s1 + $0x124] sm:$0xf]
  %v144 = vld [vmem:[%s1 + $0x128] sm:$0xf]
  %v145 = vld [vmem:[%s1 + $0x12c] sm:$0xf]
  %v146 = vld [vmem:[%s1 + $0x130] sm:$0xf]
  %v147 = vld [vmem:[%s1 + $0x134] sm:$0xf]
  %v148 = vld [vmem:[%s1 + $0x138] sm:$0xf]
  %v149 = vld [vmem:[%s1 + $0x13c] sm:$0xf]
  %v150 = vld [vmem:[%s1 + $0x140] sm:$0xf]
  %v151 = vld [vmem:[%s1 + $0x144] sm:$0xf]
  %v152 = vld [vmem:[%s1 + $0x148] sm:$0xf]
  %v153 = vld [vmem:[%s1 + $0x14c] sm:$0xf]
  %v154 = vld [vmem:[%s1 + $0x150] sm:$0xf]
  %v155 = vld [vmem:[%s1 + $0x154] sm:$0xf]
  %v156 = vld [vmem:[%s1 + $0x158] sm:$0xf]
  %v157 = vld [vmem:[%s1 + $0x15c] sm:$0xf]
  %v158 = vld [vmem:[%s1 + $0x160] sm:$0xf]
  %v159 = vld [vmem:[%s1 + $0x164] sm:$0xf]
  %v160 = vld [vmem:[%s1 + $0x168] sm:$0xf]
  %v161 = vld [vmem:[%s1 + $0x16c] sm:$0xf]
  %v162 = vld [vmem:[%s1 + $0x170] sm:$0xf]
  %v163 = vld [vmem:[%s1 + $0x174] sm:$0xf]
  %v164 = vld [vmem:[%s1 + $0x178] sm:$0xf]
  %v165 = vld [vmem:[%s1 + $0x17c] sm:$0xf]
  %v166 = vld [vmem:[%s1 + $0x180] sm:$0xf]
  %v167 = vld [vmem:[%s1 + $0x184] sm:$0xf]
  %v168 = vld [vmem:[%s1 + $0x188] sm:$0xf]
  %v169 = vld [vmem:[%s1 + $0x18c] sm:$0xf]
  %v170 = vld [vmem:[%s1 + $0x190] sm:$0xf]
  %v171 = vld [vmem:[%s1 + $0x194] sm:$0xf]
  %v172 = vld [vmem:[%s1 + $0x198] sm:$0xf]
  %v173 = vld [vmem:[%s1 + $0x19c] sm:$0xf]
  %v174 = vld [vmem:[%s1 + $0x1a0] sm:$0xf]
  %v175 = vld [vmem:[%s1 + $0x1a4] sm:$0xf]
  %v176 = vld [vmem:[%s1 + $0x1a8] sm:$0xf]
  %v177 = vld [vmem:[%s1 + $0x1ac] sm:$0xf]
  %v178 = vld [vmem:[%s1 + $0x1b0] sm:$0xf]
  %v179 = vld [vmem:[%s1 + $0x1b4] sm:$0xf]
  %v180 = vld [vmem:[%s1 + $0x1b8] sm:$0xf]
  %v181 = vld [vmem:[%s1 + $0x1bc] sm:$0xf]
  %v182 = vld [vmem:[%s1 + $0x1c0] sm:$0xf]
  %v183 = vld [vmem:[%s1 + $0x1c4] sm:$0xf]
  %v184 = vld [vmem:[%s1 + $0x1c8] sm:$0xf]
  %v185 = vld [vmem:[%s1 + $0x1cc] sm:$0xf]
  %v186 = vld [vmem:[%s1 + $0x1d0] sm:$0xf]
  %v187 = vld [vmem:[%s1 + $0x1d4] sm:$0xf]
  %v188 = vld [vmem:[%s1 + $0x1d8] sm:$0xf]
  %v189 = vld [vmem:[%s1 + $0x1dc] sm:$0xf]
  %v190 = vld [vmem:[%s1 + $0x1e0] sm:$0xf]
  %v191 = vld [vmem:[%s1 + $0x1e4] sm:$0xf]
  %v192 = vld [vmem:[%s1 + $0x1e8] sm:$0xf]
  %v193 = vld [vmem:[%s1 + $0x1ec] sm:$0xf]
  %v194 = vld [vmem:[%s1 + $0x1f0] sm:$0xf]
  %v195 = vld [vmem:[%s1 + $0x1f4] sm:$0xf]
  %v196 = vld [vmem:[%s1 + $0x1f8] sm:$0xf]
  %v197 = vld [vmem:[%s1 + $0x1fc] sm:$0xf]
  %v198 = vld [vmem:[%s1 + $0x200] sm:$0xf]
  %v199 = vld [vmem:[%s1 + $0x204] sm:$0xf]
  %v200 = vld [vmem:[%s1 + $0x208] sm:$0xf]
  %v201 = vld [vmem:[%s1 + $0x20c] sm:$0xf]
  %v202 = vld [vmem:[%s1 + $0x210] sm:$0xf]
  %v203 = vld [vmem:[%s1 + $0x214] sm:$0xf]
  %v204 = vld [vmem:[%s1 + $0x218] sm:$0xf]
  %v205 = vld [vmem:[%s1 + $0x21c] sm:$0xf]
  %v206 = vld [vmem:[%s1 + $0x220] sm:$0xf]
  %v207 = vld [vmem:[%s1 + $0x224] sm:$0xf]
  %v208 = vld [vmem:[%s1 + $0x228] sm:$0xf]
  %v209 = vld [vmem:[%s1 + $0x22c] sm:$0xf]
  %v210 = vld [vmem:[%s1 + $0x230] sm:$0xf]
  %v211 = vld [vmem:[%s1 + $0x234] sm:$0xf]
  %v212 = vld [vmem:[%s1 + $0x238] sm:$0xf]
  %v213 = vld [vmem:[%s1 + $0x23c] sm:$0xf]
  %v214 = vld [vmem:[%s1 + $0x240] sm:$0xf]
  %v215 = vld [vmem:[%s1 + $0x244] sm:$0xf]
  %v216 = vld [vmem:[%s1 + $0x248] sm:$0xf]
  %v217 = vld [vmem:[%s1 + $0x24c] sm:$0xf]
  %v218 = vld [vmem:[%s1 + $0x250] sm:$0xf]
  %v219 = vld [vmem:[%s1 + $0x254] sm:$0xf]
  %v220 = vld [vmem:[%s1 + $0x258] sm:$0xf]
  %v221 = vld [vmem:[%s1 + $0x25c] sm:$0xf]
  %v222 = vld [vmem:[%s1 + $0x260] sm:$0xf]
  %v223 = vld [vmem:[%s1 + $0x264] sm:$0xf]
  %v224 = vld [vmem:[%s1 + $0x268] sm:$0xf]
  %v225 = vld [vmem:[%s1 + $0x26c] sm:$0xf]
  %v226 = vld [vmem:[%s1 + $0x270] sm:$0xf]
  %v227 = vld [vmem:[%s1 + $0x274] sm:$0xf]
  %v228 = vld [vmem:[%s1 + $0x278] sm:$0xf]
  %v229 = vld [vmem:[%s1 + $0x27c] sm:$0xf]
  %v230 = vld [vmem:[%s1 + $0x280] sm:$0xf]
  %v231 = vld [vmem:[%s1 + $0x284] sm:$0xf]
  %v232 = vld [vmem:[%s1 + $0x288] sm:$0xf]
  %v233 = vld [vmem:[%s1 + $0x28c] sm:$0xf]
  %v234 = vld [vmem:[%s1 + $0x290] sm:$0xf]
  %v235 = vld [vmem:[%s1 + $0x294] sm:$0xf]
  %v236 = vld [vmem:[%s1 + $0x298] sm:$0xf]
  %v237 = vld [vmem:[%s1 + $0x29c] sm:$0xf]
  %v238 = vld [vmem:[%s1 + $0x2a0] sm:$0xf]
  %v239 = vld [vmem:[%s1 + $0x2a4] sm:$0xf]
  %v240 = vld [vmem:[%s1 + $0x2a8] sm:$0xf]
  %v241 = vld [vmem:[%s1 + $0x2ac] sm:$0xf]
  %v242 = vld [vmem:[%s1 + $0x2b0] sm:$0xf]
  %v243 = vld [vmem:[%s1 + $0x2b4] sm:$0xf]
  %v244 = vld [vmem:[%s1 + $0x2b8] sm:$0xf]
  %v245 = vld [vmem:[%s1 + $0x2bc] sm:$0xf]
  %v246 = vld [vmem:[%s1 + $0x2c0] sm:$0xf]
  %v247 = vld [vmem:[%s1 + $0x2c4] sm:$0xf]
  %v248 = vld [vmem:[%s1 + $0x2c8] sm:$0xf]
  %v249 = vld [vmem:[%s1 + $0x2cc] sm:$0xf]
  %v250 = vld [vmem:[%s1 + $0x2d0] sm:$0xf]
  %v251 = vld [vmem:[%s1 + $0x2d4] sm:$0xf]
  %v252 = vld [vmem:[%s1 + $0x2d8] sm:$0xf]
  %v253 = vld [vmem:[%s1 + $0x2dc] sm:$0xf]
  %v254 = vld [vmem:[%s1 + $0x2e0] sm:$0xf]
  %v255 = vld [vmem:[%s1 + $0x2e4] sm:$0xf]
  %v256 = vld [vmem:[%s1 + $0x2e8] sm:$0xf]
  %v257 = vld [vmem:[%s1 + $0x2ec] sm:$0xf]
  %v258 = vld [vmem:[%s1 + $0x2f0] sm:$0xf]
  %v259 = vld [vmem:[%s1 + $0x2f4] sm:$0xf]
  %v260 = vld [vmem:[%s1 + $0x2f8] sm:$0xf]
  %v261 = vld [vmem:[%s1 + $0x2fc] sm:$0xf]
  %v262 = vld [vmem:[%s1 + $0x300] sm:$0xf]
  %v263 = vld [vmem:[%s1 + $0x304] sm:$0xf]
  %v264 = vld [vmem:[%s1 + $0x308] sm:$0xf]
  %v265 = vld [vmem:[%s1 + $0x30c] sm:$0xf]
  %v266 = vld [vmem:[%s1 + $0x310] sm:$0xf]
  %v267 = vld [vmem:[%s1 + $0x314] sm:$0xf]
  %v268 = vld [vmem:[%s1 + $0x318] sm:$0xf]
  %v269 = vld [vmem:[%s1 + $0x31c] sm:$0xf]
  %v270 = vld [vmem:[%s1 + $0x320] sm:$0xf]
  %v271 = vld [vmem:[%s1 + $0x324] sm:$0xf]
  %v272 = vld [vmem:[%s1 + $0x328] sm:$0xf]
  %v273 = vld [vmem:[%s1 + $0x32c] sm:$0xf]
  %v274 = vld [vmem:[%s1 + $0x330] sm:$0xf]
  %v275 = vld [vmem:[%s1 + $0x334] sm:$0xf]
  %v276 = vld [vmem:[%s1 + $0x338] sm:$0xf]
  %v277 = vld [vmem:[%s1 + $0x33c] sm:$0xf]
  %v278 = vld [vmem:[%s1 + $0x340] sm:$0xf]
  %v279 = vld [vmem:[%s1 + $0x344] sm:$0xf]
  %v280 = vld [vmem:[%s1 + $0x348] sm:$0xf]
  %v281 = vld [vmem:[%s1 + $0x34c] sm:$0xf]
  %v282 = vld [vmem:[%s1 + $0x350] sm:$0xf]
  %v283 = vld [vmem:[%s1 + $0x354] sm:$0xf]
  %v284 = vld [vmem:[%s1 + $0x358] sm:$0xf]
  %v285 = vld [vmem:[%s1 + $0x35c] sm:$0xf]
  %v286 = vld [vmem:[%s1 + $0x360] sm:$0xf]
  %v287 = vld [vmem:[%s1 + $0x364] sm:$0xf]
  %v288 = vld [vmem:[%s1 + $0x368] sm:$0xf]
  %v289 = vld [vmem:[%s1 + $0x36c] sm:$0xf]
  %v290 = vld [vmem:[%s1 + $0x370] sm:$0xf]
  %v291 = vld [vmem:[%s1 + $0x374] sm:$0xf]
  %v292 = vld [vmem:[%s1 + $0x378] sm:$0xf]
  %v293 = vld [vmem:[%s1 + $0x37c] sm:$0xf]
  %v294 = vld [vmem:[%s1 + $0x380] sm:$0xf]
  %v295 = vld [vmem:[%s1 + $0x384] sm:$0xf]
  %v296 = vld [vmem:[%s1 + $0x388] sm:$0xf]
  %v297 = vld [vmem:[%s1 + $0x38c] sm:$0xf]
  %v298 = vld [vmem:[%s1 + $0x390] sm:$0xf]
  %v299 = vld [vmem:[%s1 + $0x394] sm:$0xf]
  %v300 = vld [vmem:[%s1 + $0x398] sm:$0xf]
  %v301 = vld [vmem:[%s1 + $0x39c] sm:$0xf]
  %v302 = vld [vmem:[%s1 + $0x3a0] sm:$0xf]
  %v303 = vld [vmem:[%s1 + $0x3a4] sm:$0xf]
  %v304 = vld [vmem:[%s1 + $0x3a8] sm:$0xf]
  %v305 = vld [vmem:[%s1 + $0x3ac] sm:$0xf]
  %v306 = vld [vmem:[%s1 + $0x3b0] sm:$0xf]
  %v307 = vld [vmem:[%s1 + $0x3b4] sm:$0xf]
  %v308 = vld [vmem:[%s1 + $0x3b8] sm:$0xf]
  %v309 = vld [vmem:[%s1 + $0x3bc] sm:$0xf]
  %v310 = vld [vmem:[%s1 + $0x3c0] sm:$0xf]
  %v311 = vld [vmem:[%s1 + $0x3c4] sm:$0xf]
  %v312 = vld [vmem:[%s1 + $0x3c8] sm:$0xf]
  %v313 = vld [vmem:[%s1 + $0x3cc] sm:$0xf]
  %v314 = vld [vmem:[%s1 + $0x3d0] sm:$0xf]
  %v315 = vld [vmem:[%s1 + $0x3d4] sm:$0xf]
  %v316 = vld [vmem:[%s1 + $0x3d8] sm:$0xf]
  %v317 = vld [vmem:[%s1 + $0x3dc] sm:$0xf]
  %v318 = vld [vmem:[%s1 + $0x3e0] sm:$0xf]
  %v319 = vld [vmem:[%s1 + $0x3e4] sm:$0xf]
  %v320 = vld [vmem:[%s1 + $0x3e8] sm:$0xf]
  %v321 = vld [vmem:[%s1 + $0x3ec] sm:$0xf]
  %v322 = vld [vmem:[%s1 + $0x3f0] sm:$0xf]
  %v323 = vld [vmem:[%s1 + $0x3f4] sm:$0xf]
  %v324 = vld [vmem:[%s1 + $0x3f8] sm:$0xf]
  %v325 = vld [vmem:[%s1 + $0x3fc] sm:$0xf]
  %v382 = vunpack.c.l.b16 %v14
  %v383 = vunpack.c.h.b16 %v14
  %v384 = vunpack.c.l.b16 %v15
  %v385 = vunpack.c.h.b16 %v15
  %v386 = vunpack.c.l.b16 %v16
  %v387 = vunpack.c.h.b16 %v16
  %v388 = vunpack.c.l.b16 %v17
  %v389 = vunpack.c.h.b16 %v17
  %v390 = vunpack.c.l.b16 %v18
  %v391 = vunpack.c.h.b16 %v18
  %v392 = vunpack.c.l.b16 %v19
  %v393 = vunpack.c.h.b16 %v19
  %v394 = vunpack.c.l.b16 %v20
  %v395 = vunpack.c.h.b16 %v20
  %v396 = vunpack.c.l.b16 %v21
  %v397 = vunpack.c.h.b16 %v21
  %v398 = vunpack.c.l.b16 %v22
  %v399 = vunpack.c.h.b16 %v22
  %v400 = vunpack.c.l.b16 %v23
  %v401 = vunpack.c.h.b16 %v23
  %v402 = vunpack.c.l.b16 %v24
  %v403 = vunpack.c.h.b16 %v24
  %v404 = vunpack.c.l.b16 %v25
  %v405 = vunpack.c.h.b16 %v25
  %v406 = vunpack.c.l.b16 %v26
  %v407 = vunpack.c.h.b16 %v26
  %v408 = vunpack.c.l.b16 %v27
  %v409 = vunpack.c.h.b16 %v27
  %v410 = vunpack.c.l.b16 %v28
  %v411 = vunpack.c.h.b16 %v28
  %v412 = vunpack.c.l.b16 %v29
  %v413 = vunpack.c.h.b16 %v29
  %v414 = vunpack.c.l.b16 %v30
  %v415 = vunpack.c.h.b16 %v30
  %v416 = vunpack.c.l.b16 %v31
  %v417 = vunpack.c.h.b16 %v31
  %v418 = vunpack.c.l.b16 %v32
  %v419 = vunpack.c.h.b16 %v32
  %v420 = vunpack.c.l.b16 %v33
  %v421 = vunpack.c.h.b16 %v33
  %v422 = vunpack.c.l.b16 %v34
  %v423 = vunpack.c.h.b16 %v34
  %v424 = vunpack.c.l.b16 %v35
  %v425 = vunpack.c.h.b16 %v35
  %v426 = vunpack.c.l.b16 %v36
  %v427 = vunpack.c.h.b16 %v36
  %v428 = vunpack.c.l.b16 %v37
  %v429 = vunpack.c.h.b16 %v37
  %v430 = vunpack.c.l.b16 %v38
  %v431 = vunpack.c.h.b16 %v38
  %v432 = vunpack.c.l.b16 %v39
  %v433 = vunpack.c.h.b16 %v39
  %v434 = vunpack.c.l.b16 %v40
  %v435 = vunpack.c.h.b16 %v40
  %v436 = vunpack.c.l.b16 %v41
  %v437 = vunpack.c.h.b16 %v41
  %v438 = vunpack.c.l.b16 %v42
  %v439 = vunpack.c.h.b16 %v42
  %v440 = vunpack.c.l.b16 %v43
  %v441 = vunpack.c.h.b16 %v43
  %v442 = vunpack.c.l.b16 %v44
  %v443 = vunpack.c.h.b16 %v44
  %v444 = vunpack.c.l.b16 %v45
  %v445 = vunpack.c.h.b16 %v45
  %v446 = vunpack.c.l.b16 %v46
  %v447 = vunpack.c.h.b16 %v46
  %v448 = vunpack.c.l.b16 %v47
  %v449 = vunpack.c.h.b16 %v47
  %v450 = vunpack.c.l.b16 %v48
  %v451 = vunpack.c.h.b16 %v48
  %v452 = vunpack.c.l.b16 %v49
  %v453 = vunpack.c.h.b16 %v49
  %v454 = vunpack.c.l.b16 %v50
  %v455 = vunpack.c.h.b16 %v50
  %v456 = vunpack.c.l.b16 %v51
  %v457 = vunpack.c.h.b16 %v51
  %v458 = vunpack.c.l.b16 %v52
  %v459 = vunpack.c.h.b16 %v52
  %v460 = vunpack.c.l.b16 %v53
  %v461 = vunpack.c.h.b16 %v53
  %v462 = vunpack.c.l.b16 %v54
  %v463 = vunpack.c.h.b16 %v54
  %v464 = vunpack.c.l.b16 %v55
  %v465 = vunpack.c.h.b16 %v55
  %v466 = vunpack.c.l.b16 %v56
  %v467 = vunpack.c.h.b16 %v56
  %v468 = vunpack.c.l.b16 %v57
  %v469 = vunpack.c.h.b16 %v57
  %v470 = vunpack.c.l.b16 %v58
  %v471 = vunpack.c.h.b16 %v58
  %v472 = vunpack.c.l.b16 %v59
  %v473 = vunpack.c.h.b16 %v59
  %v474 = vunpack.c.l.b16 %v60
  %v475 = vunpack.c.h.b16 %v60
  %v476 = vunpack.c.l.b16 %v61
  %v477 = vunpack.c.h.b16 %v61
  %v478 = vunpack.c.l.b16 %v62
  %v479 = vunpack.c.h.b16 %v62
  %v480 = vunpack.c.l.b16 %v63
  %v481 = vunpack.c.h.b16 %v63
  %v482 = vunpack.c.l.b16 %v64
  %v483 = vunpack.c.h.b16 %v64
  %v484 = vunpack.c.l.b16 %v65
  %v485 = vunpack.c.h.b16 %v65
  %v486 = vunpack.c.l.b16 %v66
  %v487 = vunpack.c.h.b16 %v66
  %v488 = vunpack.c.l.b16 %v67
  %v489 = vunpack.c.h.b16 %v67
  %v490 = vunpack.c.l.b16 %v68
  %v491 = vunpack.c.h.b16 %v68
  %v492 = vunpack.c.l.b16 %v69
  %v493 = vunpack.c.h.b16 %v69
  %v494 = vpack.c.b16 %v398, %v382
  %v495 = vpack.c.b16 %v399, %v383
  %v496 = vpack.c.b16 %v400, %v384
  %v497 = vpack.c.b16 %v401, %v385
  %v498 = vpack.c.b16 %v402, %v386
  %v499 = vpack.c.b16 %v403, %v387
  %v500 = vpack.c.b16 %v404, %v388
  %v501 = vpack.c.b16 %v405, %v389
  %v502 = vpack.c.b16 %v406, %v390
  %v503 = vpack.c.b16 %v407, %v391
  %v504 = vpack.c.b16 %v408, %v392
  %v505 = vpack.c.b16 %v409, %v393
  %v506 = vpack.c.b16 %v410, %v394
  %v507 = vpack.c.b16 %v411, %v395
  %v508 = vpack.c.b16 %v412, %v396
  %v509 = vpack.c.b16 %v413, %v397
  %v510 = vpack.c.b16 %v430, %v414
  %v511 = vpack.c.b16 %v431, %v415
  %v512 = vpack.c.b16 %v432, %v416
  %v513 = vpack.c.b16 %v433, %v417
  %v514 = vpack.c.b16 %v434, %v418
  %v515 = vpack.c.b16 %v435, %v419
  %v516 = vpack.c.b16 %v436, %v420
  %v517 = vpack.c.b16 %v437, %v421
  %v518 = vpack.c.b16 %v438, %v422
  %v519 = vpack.c.b16 %v439, %v423
  %v520 = vpack.c.b16 %v440, %v424
  %v521 = vpack.c.b16 %v441, %v425
  %v522 = vpack.c.b16 %v442, %v426
  %v523 = vpack.c.b16 %v443, %v427
  %v524 = vpack.c.b16 %v444, %v428
  %v525 = vpack.c.b16 %v445, %v429
  %v526 = vpack.c.b16 %v462, %v446
  %v527 = vpack.c.b16 %v463, %v447
  %v528 = vpack.c.b16 %v464, %v448
  %v529 = vpack.c.b16 %v465, %v449
  %v530 = vpack.c.b16 %v466, %v450
  %v531 = vpack.c.b16 %v467, %v451
  %v532 = vpack.c.b16 %v468, %v452
  %v533 = vpack.c.b16 %v469, %v453
  %v534 = vpack.c.b16 %v470, %v454
  %v535 = vpack.c.b16 %v471, %v455
  %v536 = vpack.c.b16 %v472, %v456
  %v537 = vpack.c.b16 %v473, %v457
  %v538 = vpack.c.b16 %v474, %v458
  %v539 = vpack.c.b16 %v475, %v459
  %v540 = vpack.c.b16 %v476, %v460
  %v541 = vpack.c.b16 %v477, %v461
  %v542 = vpack.c.b16 %v478, %v478
  %v543 = vpack.c.b16 %v479, %v479
  %v544 = vpack.c.b16 %v480, %v480
  %v545 = vpack.c.b16 %v481, %v481
  %v546 = vpack.c.b16 %v482, %v482
  %v547 = vpack.c.b16 %v483, %v483
  %v548 = vpack.c.b16 %v484, %v484
  %v549 = vpack.c.b16 %v485, %v485
  %v550 = vpack.c.b16 %v486, %v486
  %v551 = vpack.c.b16 %v487, %v487
  %v552 = vpack.c.b16 %v488, %v488
  %v553 = vpack.c.b16 %v489, %v489
  %v554 = vpack.c.b16 %v490, %v490
  %v555 = vpack.c.b16 %v491, %v491
  %v556 = vpack.c.b16 %v492, %v492
  %v557 = vpack.c.b16 %v493, %v493
  %v878 = vunpack.c.l.b16 %v70
  %v879 = vunpack.c.l.b16 %v71
  %v880 = vunpack.c.l.b16 %v72
  %v881 = vunpack.c.l.b16 %v73
  %v882 = vunpack.c.l.b16 %v74
  %v883 = vunpack.c.l.b16 %v75
  %v884 = vunpack.c.l.b16 %v76
  %v885 = vunpack.c.l.b16 %v77
  %v886 = vunpack.c.l.b16 %v78
  %v887 = vunpack.c.l.b16 %v79
  %v888 = vunpack.c.l.b16 %v80
  %v889 = vunpack.c.l.b16 %v81
  %v890 = vunpack.c.l.b16 %v82
  %v891 = vunpack.c.l.b16 %v83
  %v892 = vunpack.c.l.b16 %v84
  %v893 = vunpack.c.l.b16 %v85
  %v894 = vunpack.c.l.b16 %v86
  %v895 = vunpack.c.l.b16 %v87
  %v896 = vunpack.c.l.b16 %v88
  %v897 = vunpack.c.l.b16 %v89
  %v898 = vunpack.c.l.b16 %v90
  %v899 = vunpack.c.l.b16 %v91
  %v900 = vunpack.c.l.b16 %v92
  %v901 = vunpack.c.l.b16 %v93
  %v902 = vunpack.c.l.b16 %v94
  %v903 = vunpack.c.l.b16 %v95
  %v904 = vunpack.c.l.b16 %v96
  %v905 = vunpack.c.l.b16 %v97
  %v906 = vunpack.c.l.b16 %v98
  %v907 = vunpack.c.l.b16 %v99
  %v908 = vunpack.c.l.b16 %v100
  %v909 = vunpack.c.l.b16 %v101
  %v910 = vunpack.c.l.b16 %v102
  %v911 = vunpack.c.l.b16 %v103
  %v912 = vunpack.c.l.b16 %v104
  %v913 = vunpack.c.l.b16 %v105
  %v914 = vunpack.c.l.b16 %v106
  %v915 = vunpack.c.l.b16 %v107
  %v916 = vunpack.c.l.b16 %v108
  %v917 = vunpack.c.l.b16 %v109
  %v918 = vunpack.c.l.b16 %v110
  %v919 = vunpack.c.l.b16 %v111
  %v920 = vunpack.c.l.b16 %v112
  %v921 = vunpack.c.l.b16 %v113
  %v922 = vunpack.c.l.b16 %v114
  %v923 = vunpack.c.l.b16 %v115
  %v924 = vunpack.c.l.b16 %v116
  %v925 = vunpack.c.l.b16 %v117
  %v926 = vunpack.c.l.b16 %v118
  %v927 = vunpack.c.l.b16 %v119
  %v928 = vunpack.c.l.b16 %v120
  %v929 = vunpack.c.l.b16 %v121
  %v930 = vunpack.c.l.b16 %v122
  %v931 = vunpack.c.l.b16 %v123
  %v932 = vunpack.c.l.b16 %v124
  %v933 = vunpack.c.l.b16 %v125
  %v934 = vunpack.c.l.b16 %v126
  %v935 = vunpack.c.l.b16 %v127
  %v936 = vunpack.c.l.b16 %v128
  %v937 = vunpack.c.l.b16 %v129
  %v938 = vunpack.c.l.b16 %v130
  %v939 = vunpack.c.l.b16 %v131
  %v940 = vunpack.c.l.b16 %v132
  %v941 = vunpack.c.l.b16 %v133
  %v942 = vunpack.c.l.b16 %v134
  %v943 = vunpack.c.l.b16 %v135
  %v944 = vunpack.c.l.b16 %v136
  %v945 = vunpack.c.l.b16 %v137
  %v946 = vunpack.c.l.b16 %v138
  %v947 = vunpack.c.l.b16 %v139
  %v948 = vunpack.c.l.b16 %v140
  %v949 = vunpack.c.l.b16 %v141
  %v950 = vunpack.c.l.b16 %v142
  %v951 = vunpack.c.l.b16 %v143
  %v952 = vunpack.c.l.b16 %v144
  %v953 = vunpack.c.l.b16 %v145
  %v954 = vunpack.c.l.b16 %v146
  %v955 = vunpack.c.l.b16 %v147
  %v956 = vunpack.c.l.b16 %v148
  %v957 = vunpack.c.l.b16 %v149
  %v958 = vunpack.c.l.b16 %v150
  %v959 = vunpack.c.l.b16 %v151
  %v960 = vunpack.c.l.b16 %v152
  %v961 = vunpack.c.l.b16 %v153
  %v962 = vunpack.c.l.b16 %v154
  %v963 = vunpack.c.l.b16 %v155
  %v964 = vunpack.c.l.b16 %v156
  %v965 = vunpack.c.l.b16 %v157
  %v966 = vunpack.c.l.b16 %v158
  %v967 = vunpack.c.l.b16 %v159
  %v968 = vunpack.c.l.b16 %v160
  %v969 = vunpack.c.l.b16 %v161
  %v970 = vunpack.c.l.b16 %v162
  %v971 = vunpack.c.l.b16 %v163
  %v972 = vunpack.c.l.b16 %v164
  %v973 = vunpack.c.l.b16 %v165
  %v974 = vunpack.c.l.b16 %v166
  %v975 = vunpack.c.l.b16 %v167
  %v976 = vunpack.c.l.b16 %v168
  %v977 = vunpack.c.l.b16 %v169
  %v978 = vunpack.c.l.b16 %v170
  %v979 = vunpack.c.l.b16 %v171
  %v980 = vunpack.c.l.b16 %v172
  %v981 = vunpack.c.l.b16 %v173
  %v982 = vunpack.c.l.b16 %v174
  %v983 = vunpack.c.l.b16 %v175
  %v984 = vunpack.c.l.b16 %v176
  %v985 = vunpack.c.l.b16 %v177
  %v986 = vunpack.c.l.b16 %v178
  %v987 = vunpack.c.l.b16 %v179
  %v988 = vunpack.c.l.b16 %v180
  %v989 = vunpack.c.l.b16 %v181
  %v990 = vunpack.c.l.b16 %v182
  %v991 = vunpack.c.l.b16 %v183
  %v992 = vunpack.c.l.b16 %v184
  %v993 = vunpack.c.l.b16 %v185
  %v994 = vunpack.c.l.b16 %v186
  %v995 = vunpack.c.l.b16 %v187
  %v996 = vunpack.c.l.b16 %v188
  %v997 = vunpack.c.l.b16 %v189
  %v998 = vunpack.c.l.b16 %v190
  %v999 = vunpack.c.l.b16 %v191
  %v1000 = vunpack.c.l.b16 %v192
  %v1001 = vunpack.c.l.b16 %v193
  %v1002 = vunpack.c.l.b16 %v194
  %v1003 = vunpack.c.l.b16 %v195
  %v1004 = vunpack.c.l.b16 %v196
  %v1005 = vunpack.c.l.b16 %v197
  %v1006 = vunpack.c.l.b16 %v198
  %v1007 = vunpack.c.l.b16 %v199
  %v1008 = vunpack.c.l.b16 %v200
  %v1009 = vunpack.c.l.b16 %v201
  %v1010 = vunpack.c.l.b16 %v202
  %v1011 = vunpack.c.l.b16 %v203
  %v1012 = vunpack.c.l.b16 %v204
  %v1013 = vunpack.c.l.b16 %v205
  %v1014 = vunpack.c.l.b16 %v206
  %v1015 = vunpack.c.l.b16 %v207
  %v1016 = vunpack.c.l.b16 %v208
  %v1017 = vunpack.c.l.b16 %v209
  %v1018 = vunpack.c.l.b16 %v210
  %v1019 = vunpack.c.l.b16 %v211
  %v1020 = vunpack.c.l.b16 %v212
  %v1021 = vunpack.c.l.b16 %v213
  %v1022 = vunpack.c.l.b16 %v214
  %v1023 = vunpack.c.l.b16 %v215
  %v1024 = vunpack.c.l.b16 %v216
  %v1025 = vunpack.c.l.b16 %v217
  %v1026 = vunpack.c.l.b16 %v218
  %v1027 = vunpack.c.l.b16 %v219
  %v1028 = vunpack.c.l.b16 %v220
  %v1029 = vunpack.c.l.b16 %v221
  %v1030 = vunpack.c.l.b16 %v222
  %v1031 = vunpack.c.l.b16 %v223
  %v1032 = vunpack.c.l.b16 %v224
  %v1033 = vunpack.c.l.b16 %v225
  %v1034 = vunpack.c.l.b16 %v226
  %v1035 = vunpack.c.l.b16 %v227
  %v1036 = vunpack.c.l.b16 %v228
  %v1037 = vunpack.c.l.b16 %v229
  %v1038 = vunpack.c.l.b16 %v230
  %v1039 = vunpack.c.l.b16 %v231
  %v1040 = vunpack.c.l.b16 %v232
  %v1041 = vunpack.c.l.b16 %v233
  %v1042 = vunpack.c.l.b16 %v234
  %v1043 = vunpack.c.l.b16 %v235
  %v1044 = vunpack.c.l.b16 %v236
  %v1045 = vunpack.c.l.b16 %v237
  %v1046 = vunpack.c.l.b16 %v238
  %v1047 = vunpack.c.l.b16 %v239
  %v1048 = vunpack.c.l.b16 %v240
  %v1049 = vunpack.c.l.b16 %v241
  %v1050 = vunpack.c.l.b16 %v242
  %v1051 = vunpack.c.l.b16 %v243
  %v1052 = vunpack.c.l.b16 %v244
  %v1053 = vunpack.c.l.b16 %v245
  %v1054 = vunpack.c.l.b16 %v246
  %v1055 = vunpack.c.l.b16 %v247
  %v1056 = vunpack.c.l.b16 %v248
  %v1057 = vunpack.c.l.b16 %v249
  %v1058 = vunpack.c.l.b16 %v250
  %v1059 = vunpack.c.l.b16 %v251
  %v1060 = vunpack.c.l.b16 %v252
  %v1061 = vunpack.c.l.b16 %v253
  %v1062 = vunpack.c.l.b16 %v254
  %v1063 = vunpack.c.l.b16 %v255
  %v1064 = vunpack.c.l.b16 %v256
  %v1065 = vunpack.c.l.b16 %v257
  %v1066 = vunpack.c.l.b16 %v258
  %v1067 = vunpack.c.l.b16 %v259
  %v1068 = vunpack.c.l.b16 %v260
  %v1069 = vunpack.c.l.b16 %v261
  %v1070 = vunpack.c.l.b16 %v262
  %v1071 = vunpack.c.l.b16 %v263
  %v1072 = vunpack.c.l.b16 %v264
  %v1073 = vunpack.c.l.b16 %v265
  %v1074 = vunpack.c.l.b16 %v266
  %v1075 = vunpack.c.l.b16 %v267
  %v1076 = vunpack.c.l.b16 %v268
  %v1077 = vunpack.c.l.b16 %v269
  %v1078 = vunpack.c.l.b16 %v270
  %v1079 = vunpack.c.l.b16 %v271
  %v1080 = vunpack.c.l.b16 %v272
  %v1081 = vunpack.c.l.b16 %v273
  %v1082 = vunpack.c.l.b16 %v274
  %v1083 = vunpack.c.l.b16 %v275
  %v1084 = vunpack.c.l.b16 %v276
  %v1085 = vunpack.c.l.b16 %v277
  %v1086 = vunpack.c.l.b16 %v278
  %v1087 = vunpack.c.l.b16 %v279
  %v1088 = vunpack.c.l.b16 %v280
  %v1089 = vunpack.c.l.b16 %v281
  %v1090 = vunpack.c.l.b16 %v282
  %v1091 = vunpack.c.l.b16 %v283
  %v1092 = vunpack.c.l.b16 %v284
  %v1093 = vunpack.c.l.b16 %v285
  %v1094 = vunpack.c.l.b16 %v286
  %v1095 = vunpack.c.l.b16 %v287
  %v1096 = vunpack.c.l.b16 %v288
  %v1097 = vunpack.c.l.b16 %v289
  %v1098 = vunpack.c.l.b16 %v290
  %v1099 = vunpack.c.l.b16 %v291
  %v1100 = vunpack.c.l.b16 %v292
  %v1101 = vunpack.c.l.b16 %v293
  %v1102 = vunpack.c.l.b16 %v294
  %v1103 = vunpack.c.l.b16 %v295
  %v1104 = vunpack.c.l.b16 %v296
  %v1105 = vunpack.c.l.b16 %v297
  %v1106 = vunpack.c.l.b16 %v298
  %v1107 = vunpack.c.l.b16 %v299
  %v1108 = vunpack.c.l.b16 %v300
  %v1109 = vunpack.c.l.b16 %v301
  %v1110 = vunpack.c.l.b16 %v302
  %v1111 = vunpack.c.l.b16 %v303
  %v1112 = vunpack.c.l.b16 %v304
  %v1113 = vunpack.c.l.b16 %v305
  %v1114 = vunpack.c.l.b16 %v306
  %v1115 = vunpack.c.l.b16 %v307
  %v1116 = vunpack.c.l.b16 %v308
  %v1117 = vunpack.c.l.b16 %v309
  %v1118 = vunpack.c.l.b16 %v310
  %v1119 = vunpack.c.l.b16 %v311
  %v1120 = vunpack.c.l.b16 %v312
  %v1121 = vunpack.c.l.b16 %v313
  %v1122 = vunpack.c.l.b16 %v314
  %v1123 = vunpack.c.l.b16 %v315
  %v1124 = vunpack.c.l.b16 %v316
  %v1125 = vunpack.c.l.b16 %v317
  %v1126 = vunpack.c.l.b16 %v318
  %v1127 = vunpack.c.l.b16 %v319
  %v1128 = vunpack.c.l.b16 %v320
  %v1129 = vunpack.c.l.b16 %v321
  %v1130 = vunpack.c.l.b16 %v322
  %v1131 = vunpack.c.l.b16 %v323
  %v1132 = vunpack.c.l.b16 %v324
  %v1133 = vunpack.c.l.b16 %v325
  %v1134 = vpack.c.b16 %v879, %v878
  %v1135 = vpack.c.b16 %v881, %v880
  %v1136 = vpack.c.b16 %v883, %v882
  %v1137 = vpack.c.b16 %v885, %v884
  %v1138 = vpack.c.b16 %v887, %v886
  %v1139 = vpack.c.b16 %v889, %v888
  %v1140 = vpack.c.b16 %v891, %v890
  %v1141 = vpack.c.b16 %v893, %v892
  %v1142 = vpack.c.b16 %v895, %v894
  %v1143 = vpack.c.b16 %v897, %v896
  %v1144 = vpack.c.b16 %v899, %v898
  %v1145 = vpack.c.b16 %v901, %v900
  %v1146 = vpack.c.b16 %v903, %v902
  %v1147 = vpack.c.b16 %v905, %v904
  %v1148 = vpack.c.b16 %v907, %v906
  %v1149 = vpack.c.b16 %v909, %v908
  %v1150 = vpack.c.b16 %v911, %v910
  %v1151 = vpack.c.b16 %v913, %v912
  %v1152 = vpack.c.b16 %v915, %v914
  %v1153 = vpack.c.b16 %v917, %v916
  %v1154 = vpack.c.b16 %v919, %v918
  %v1155 = vpack.c.b16 %v921, %v920
  %v1156 = vpack.c.b16 %v923, %v922
  %v1157 = vpack.c.b16 %v925, %v924
  %v1158 = vpack.c.b16 %v927, %v926
  %v1159 = vpack.c.b16 %v929, %v928
  %v1160 = vpack.c.b16 %v931, %v930
  %v1161 = vpack.c.b16 %v933, %v932
  %v1162 = vpack.c.b16 %v935, %v934
  %v1163 = vpack.c.b16 %v937, %v936
  %v1164 = vpack.c.b16 %v939, %v938
  %v1165 = vpack.c.b16 %v941, %v940
  %v1166 = vpack.c.b16 %v943, %v942
  %v1167 = vpack.c.b16 %v945, %v944
  %v1168 = vpack.c.b16 %v947, %v946
  %v1169 = vpack.c.b16 %v949, %v948
  %v1170 = vpack.c.b16 %v951, %v950
  %v1171 = vpack.c.b16 %v953, %v952
  %v1172 = vpack.c.b16 %v955, %v954
  %v1173 = vpack.c.b16 %v957, %v956
  %v1174 = vpack.c.b16 %v959, %v958
  %v1175 = vpack.c.b16 %v961, %v960
  %v1176 = vpack.c.b16 %v963, %v962
  %v1177 = vpack.c.b16 %v965, %v964
  %v1178 = vpack.c.b16 %v967, %v966
  %v1179 = vpack.c.b16 %v969, %v968
  %v1180 = vpack.c.b16 %v971, %v970
  %v1181 = vpack.c.b16 %v973, %v972
  %v1182 = vpack.c.b16 %v975, %v974
  %v1183 = vpack.c.b16 %v977, %v976
  %v1184 = vpack.c.b16 %v979, %v978
  %v1185 = vpack.c.b16 %v981, %v980
  %v1186 = vpack.c.b16 %v983, %v982
  %v1187 = vpack.c.b16 %v985, %v984
  %v1188 = vpack.c.b16 %v987, %v986
  %v1189 = vpack.c.b16 %v989, %v988
  %v1190 = vpack.c.b16 %v991, %v990
  %v1191 = vpack.c.b16 %v993, %v992
  %v1192 = vpack.c.b16 %v995, %v994
  %v1193 = vpack.c.b16 %v997, %v996
  %v1194 = vpack.c.b16 %v999, %v998
  %v1195 = vpack.c.b16 %v1001, %v1000
  %v1196 = vpack.c.b16 %v1003, %v1002
  %v1197 = vpack.c.b16 %v1005, %v1004
  %v1198 = vpack.c.b16 %v1007, %v1006
  %v1199 = vpack.c.b16 %v1009, %v1008
  %v1200 = vpack.c.b16 %v1011, %v1010
  %v1201 = vpack.c.b16 %v1013, %v1012
  %v1202 = vpack.c.b16 %v1015, %v1014
  %v1203 = vpack.c.b16 %v1017, %v1016
  %v1204 = vpack.c.b16 %v1019, %v1018
  %v1205 = vpack.c.b16 %v1021, %v1020
  %v1206 = vpack.c.b16 %v1023, %v1022
  %v1207 = vpack.c.b16 %v1025, %v1024
  %v1208 = vpack.c.b16 %v1027, %v1026
  %v1209 = vpack.c.b16 %v1029, %v1028
  %v1210 = vpack.c.b16 %v1031, %v1030
  %v1211 = vpack.c.b16 %v1033, %v1032
  %v1212 = vpack.c.b16 %v1035, %v1034
  %v1213 = vpack.c.b16 %v1037, %v1036
  %v1214 = vpack.c.b16 %v1039, %v1038
  %v1215 = vpack.c.b16 %v1041, %v1040
  %v1216 = vpack.c.b16 %v1043, %v1042
  %v1217 = vpack.c.b16 %v1045, %v1044
  %v1218 = vpack.c.b16 %v1047, %v1046
  %v1219 = vpack.c.b16 %v1049, %v1048
  %v1220 = vpack.c.b16 %v1051, %v1050
  %v1221 = vpack.c.b16 %v1053, %v1052
  %v1222 = vpack.c.b16 %v1055, %v1054
  %v1223 = vpack.c.b16 %v1057, %v1056
  %v1224 = vpack.c.b16 %v1059, %v1058
  %v1225 = vpack.c.b16 %v1061, %v1060
  %v1226 = vpack.c.b16 %v1063, %v1062
  %v1227 = vpack.c.b16 %v1065, %v1064
  %v1228 = vpack.c.b16 %v1067, %v1066
  %v1229 = vpack.c.b16 %v1069, %v1068
  %v1230 = vpack.c.b16 %v1071, %v1070
  %v1231 = vpack.c.b16 %v1073, %v1072
  %v1232 = vpack.c.b16 %v1075, %v1074
  %v1233 = vpack.c.b16 %v1077, %v1076
  %v1234 = vpack.c.b16 %v1079, %v1078
  %v1235 = vpack.c.b16 %v1081, %v1080
  %v1236 = vpack.c.b16 %v1083, %v1082
  %v1237 = vpack.c.b16 %v1085, %v1084
  %v1238 = vpack.c.b16 %v1087, %v1086
  %v1239 = vpack.c.b16 %v1089, %v1088
  %v1240 = vpack.c.b16 %v1091, %v1090
  %v1241 = vpack.c.b16 %v1093, %v1092
  %v1242 = vpack.c.b16 %v1095, %v1094
  %v1243 = vpack.c.b16 %v1097, %v1096
  %v1244 = vpack.c.b16 %v1099, %v1098
  %v1245 = vpack.c.b16 %v1101, %v1100
  %v1246 = vpack.c.b16 %v1103, %v1102
  %v1247 = vpack.c.b16 %v1105, %v1104
  %v1248 = vpack.c.b16 %v1107, %v1106
  %v1249 = vpack.c.b16 %v1109, %v1108
  %v1250 = vpack.c.b16 %v1111, %v1110
  %v1251 = vpack.c.b16 %v1113, %v1112
  %v1252 = vpack.c.b16 %v1115, %v1114
  %v1253 = vpack.c.b16 %v1117, %v1116
  %v1254 = vpack.c.b16 %v1119, %v1118
  %v1255 = vpack.c.b16 %v1121, %v1120
  %v1256 = vpack.c.b16 %v1123, %v1122
  %v1257 = vpack.c.b16 %v1125, %v1124
  %v1258 = vpack.c.b16 %v1127, %v1126
  %v1259 = vpack.c.b16 %v1129, %v1128
  %v1260 = vpack.c.b16 %v1131, %v1130
  %v1261 = vpack.c.b16 %v1133, %v1132
  %1390 = vmatprep.subr.bf16.mxu0 0
  %1391 = vmatpush1.bf16.msra.mxu0 %v1134
  %1392 = vmatprep.subr.bf16.mxu0 0
  %1393 = vmatpush1.bf16.msra.mxu0 %v1135
  %1394 = vmatprep.subr.bf16.mxu0 0
  %1395 = vmatpush1.bf16.msra.mxu0 %v1136
  %1396 = vmatprep.subr.bf16.mxu0 0
  %1397 = vmatpush1.bf16.msra.mxu0 %v1137
  %1398 = vmatprep.subr.bf16.mxu0 0
  %1399 = vmatpush1.bf16.msra.mxu0 %v1138
  %1400 = vmatprep.subr.bf16.mxu0 0
  %1401 = vmatpush1.bf16.msra.mxu0 %v1139
  %1402 = vmatprep.subr.bf16.mxu0 0
  %1403 = vmatpush1.bf16.msra.mxu0 %v1140
  %1404 = vmatprep.subr.bf16.mxu0 0
  %1405 = vmatpush1.bf16.msra.mxu0 %v1141
  %1406 = vmatprep.subr.bf16.mxu0 0
  %1407 = vmatpush1.bf16.msra.mxu0 %v1142
  %1408 = vmatprep.subr.bf16.mxu0 0
  %1409 = vmatpush1.bf16.msra.mxu0 %v1143
  %1410 = vmatprep.subr.bf16.mxu0 0
  %1411 = vmatpush1.bf16.msra.mxu0 %v1144
  %1412 = vmatprep.subr.bf16.mxu0 0
  %1413 = vmatpush1.bf16.msra.mxu0 %v1145
  %1414 = vmatprep.subr.bf16.mxu0 0
  %1415 = vmatpush1.bf16.msra.mxu0 %v1146
  %1416 = vmatprep.subr.bf16.mxu0 0
  %1417 = vmatpush1.bf16.msra.mxu0 %v1147
  %1418 = vmatprep.subr.bf16.mxu0 0
  %1419 = vmatpush1.bf16.msra.mxu0 %v1148
  %1420 = vmatprep.subr.bf16.mxu0 0
  %1421 = vmatpush1.bf16.msra.mxu0 %v1149
  %1422 = vmatprep.mubr.bf16.mxu0 %v495
  %1423 = vmatmul.mubr.bf16.gmra.mrb[0].mxu0 %v494
  %v1424 = vpop.f32.mrb[0].mxu0
  %v1425 = vadd.f32 0.0, %v1424
  %v1426 = vpop.f32.mrb[0].mxu0
  %v1427 = vpop.f32.mrb[0].mxu0
  %v1428 = vadd.f32 0.0, %v1427
  %v1429 = vpop.f32.mrb[0].mxu0
  %1430 = vmatprep.mubr.bf16.mxu0 %v511
  %1431 = vmatmul.mubr.bf16.gmra.mrb[0].mxu0 %v510
  %v1432 = vpop.f32.mrb[0].mxu0
  %v1433 = vadd.f32 0.0, %v1432
  %v1434 = vpop.f32.mrb[0].mxu0
  %v1435 = vpop.f32.mrb[0].mxu0
  %v1436 = vadd.f32 0.0, %v1435
  %v1437 = vpop.f32.mrb[0].mxu0
  %1438 = vmatprep.mubr.bf16.mxu0 %v527
  %1439 = vmatmul.mubr.bf16.gmra.mrb[0].mxu0 %v526
  %v1440 = vpop.f32.mrb[0].mxu0
  %v1441 = vadd.f32 0.0, %v1440
  %v1442 = vpop.f32.mrb[0].mxu0
  %v1443 = vpop.f32.mrb[0].mxu0
  %v1444 = vadd.f32 0.0, %v1443
  %v1445 = vpop.f32.mrb[0].mxu0
  %1446 = vmatprep.mubr.bf16.mxu0 %v543
  %1447 = vmatmul.mubr.bf16.gmra.mrb[0].mxu0 %v542
  %v1448 = vpop.f32.mrb[0].mxu0
  %v1449 = vadd.f32 0.0, %v1448
  %v1450 = vpop.f32.mrb[0].mxu0
  %v1451 = vpop.f32.mrb[0].mxu0
  %v1452 = vpop.f32.mrb[0].mxu0
  %1453 = vdwg.mxu0
  %1454 = vmatprep.subr.bf16.mxu0 0
  %1455 = vmatpush1.bf16.msra.mxu0 %v1150
  %1456 = vmatprep.subr.bf16.mxu0 0
  %1457 = vmatpush1.bf16.msra.mxu0 %v1151
  %1458 = vmatprep.subr.bf16.mxu0 0
  %1459 = vmatpush1.bf16.msra.mxu0 %v1152
  %1460 = vmatprep.subr.bf16.mxu0 0
  %1461 = vmatpush1.bf16.msra.mxu0 %v1153
  %1462 = vmatprep.subr.bf16.mxu0 0
  %1463 = vmatpush1.bf16.msra.mxu0 %v1154
  %1464 = vmatprep.subr.bf16.mxu0 0
  %1465 = vmatpush1.bf16.msra.mxu0 %v1155
  %1466 = vmatprep.subr.bf16.mxu0 0
  %1467 = vmatpush1.bf16.msra.mxu0 %v1156
  %1468 = vmatprep.subr.bf16.mxu0 0
  %1469 = vmatpush1.bf16.msra.mxu0 %v1157
  %1470 = vmatprep.subr.bf16.mxu0 0
  %1471 = vmatpush1.bf16.msra.mxu0 %v1158
  %1472 = vmatprep.subr.bf16.mxu0 0
  %1473 = vmatpush1.bf16.msra.mxu0 %v1159
  %1474 = vmatprep.subr.bf16.mxu0 0
  %1475 = vmatpush1.bf16.msra.mxu0 %v1160
  %1476 = vmatprep.subr.bf16.mxu0 0
  %1477 = vmatpush1.bf16.msra.mxu0 %v1161
  %1478 = vmatprep.subr.bf16.mxu0 0
  %1479 = vmatpush1.bf16.msra.mxu0 %v1162
  %1480 = vmatprep.subr.bf16.mxu0 0
  %1481 = vmatpush1.bf16.msra.mxu0 %v1163
  %1482 = vmatprep.subr.bf16.mxu0 0
  %1483 = vmatpush1.bf16.msra.mxu0 %v1164
  %1484 = vmatprep.subr.bf16.mxu0 0
  %1485 = vmatpush1.bf16.msra.mxu0 %v1165
  %1486 = vmatprep.mubr.bf16.mxu0 %v497
  %1487 = vmatmul.mubr.bf16.gmra.mrb[0].mxu0 %v496
  %v1488 = vpop.f32.mrb[0].mxu0
  %v1489 = vadd.f32 %v1425, %v1488
  %v1490 = vpop.f32.mrb[0].mxu0
  %v1491 = vpop.f32.mrb[0].mxu0
  %v1492 = vadd.f32 %v1428, %v1491
  %v1493 = vpop.f32.mrb[0].mxu0
  %1494 = vmatprep.mubr.bf16.mxu0 %v513
  %1495 = vmatmul.mubr.bf16.gmra.mrb[0].mxu0 %v512
  %v1496 = vpop.f32.mrb[0].mxu0
  %v1497 = vadd.f32 %v1433, %v1496
  %v1498 = vpop.f32.mrb[0].mxu0
  %v1499 = vpop.f32.mrb[0].mxu0
  %v1500 = vadd.f32 %v1436, %v1499
  %v1501 = vpop.f32.mrb[0].mxu0
  %1502 = vmatprep.mubr.bf16.mxu0 %v529
  %1503 = vmatmul.mubr.bf16.gmra.mrb[0].mxu0 %v528
  %v1504 = vpop.f32.mrb[0].mxu0
  %v1505 = vadd.f32 %v1441, %v1504
  %v1506 = vpop.f32.mrb[0].mxu0
  %v1507 = vpop.f32.mrb[0].mxu0
  %v1508 = vadd.f32 %v1444, %v1507
  %v1509 = vpop.f32.mrb[0].mxu0
  %1510 = vmatprep.mubr.bf16.mxu0 %v545
  %1511 = vmatmul.mubr.bf16.gmra.mrb[0].mxu0 %v544
  %v1512 = vpop.f32.mrb[0].mxu0
  %v1513 = vadd.f32 %v1449, %v1512
  %v1514 = vpop.f32.mrb[0].mxu0
  %v1515 = vpop.f32.mrb[0].mxu0
  %v1516 = vpop.f32.mrb[0].mxu0
  %1517 = vdwg.mxu0
  %1518 = vmatprep.subr.bf16.mxu0 0
  %1519 = vmatpush1.bf16.msra.mxu0 %v1166
  %1520 = vmatprep.subr.bf16.mxu0 0
  %1521 = vmatpush1.bf16.msra.mxu0 %v1167
  %1522 = vmatprep.subr.bf16.mxu0 0
  %1523 = vmatpush1.bf16.msra.mxu0 %v1168
  %1524 = vmatprep.subr.bf16.mxu0 0
  %1525 = vmatpush1.bf16.msra.mxu0 %v1169
  %1526 = vmatprep.subr.bf16.mxu0 0
  %1527 = vmatpush1.bf16.msra.mxu0 %v1170
  %1528 = vmatprep.subr.bf16.mxu0 0
  %1529 = vmatpush1.bf16.msra.mxu0 %v1171
  %1530 = vmatprep.subr.bf16.mxu0 0
  %1531 = vmatpush1.bf16.msra.mxu0 %v1172
  %1532 = vmatprep.subr.bf16.mxu0 0
  %1533 = vmatpush1.bf16.msra.mxu0 %v1173
  %1534 = vmatprep.subr.bf16.mxu0 0
  %1535 = vmatpush1.bf16.msra.mxu0 %v1174
  %1536 = vmatprep.subr.bf16.mxu0 0
  %1537 = vmatpush1.bf16.msra.mxu0 %v1175
  %1538 = vmatprep.subr.bf16.mxu0 0
  %1539 = vmatpush1.bf16.msra.mxu0 %v1176
  %1540 = vmatprep.subr.bf16.mxu0 0
  %1541 = vmatpush1.bf16.msra.mxu0 %v1177
  %1542 = vmatprep.subr.bf16.mxu0 0
  %1543 = vmatpush1.bf16.msra.mxu0 %v1178
  %1544 = vmatprep.subr.bf16.mxu0 0
  %1545 = vmatpush1.bf16.msra.mxu0 %v1179
  %1546 = vmatprep.subr.bf16.mxu0 0
  %1547 = vmatpush1.bf16.msra.mxu0 %v1180
  %1548 = vmatprep.subr.bf16.mxu0 0
  %1549 = vmatpush1.bf16.msra.mxu0 %v1181
  %1550 = vmatprep.mubr.bf16.mxu0 %v499
  %1551 = vmatmul.mubr.bf16.gmra.mrb[0].mxu0 %v498
  %v1552 = vpop.f32.mrb[0].mxu0
  %v1553 = vadd.f32 %v1489, %v1552
  %v1554 = vpop.f32.mrb[0].mxu0
  %v1555 = vpop.f32.mrb[0].mxu0
  %v1556 = vadd.f32 %v1492, %v1555
  %v1557 = vpop.f32.mrb[0].mxu0
  %1558 = vmatprep.mubr.bf16.mxu0 %v515
  %1559 = vmatmul.mubr.bf16.gmra.mrb[0].mxu0 %v514
  %v1560 = vpop.f32.mrb[0].mxu0
  %v1561 = vadd.f32 %v1497, %v1560
  %v1562 = vpop.f32.mrb[0].mxu0
  %v1563 = vpop.f32.mrb[0].mxu0
  %v1564 = vadd.f32 %v1500, %v1563
  %v1565 = vpop.f32.mrb[0].mxu0
  %1566 = vmatprep.mubr.bf16.mxu0 %v531
  %1567 = vmatmul.mubr.bf16.gmra.mrb[0].mxu0 %v530
  %v1568 = vpop.f32.mrb[0].mxu0
  %v1569 = vadd.f32 %v1505, %v1568
  %v1570 = vpop.f32.mrb[0].mxu0
  %v1571 = vpop.f32.mrb[0].mxu0
  %v1572 = vadd.f32 %v1508, %v1571
  %v1573 = vpop.f32.mrb[0].mxu0
  %1574 = vmatprep.mubr.bf16.mxu0 %v547
  %1575 = vmatmul.mubr.bf16.gmra.mrb[0].mxu0 %v546
  %v1576 = vpop.f32.mrb[0].mxu0
  %v1577 = vadd.f32 %v1513, %v1576
  %v1578 = vpop.f32.mrb[0].mxu0
  %v1579 = vpop.f32.mrb[0].mxu0
  %v1580 = vpop.f32.mrb[0].mxu0
  %1581 = vdwg.mxu0
  %1582 = vmatprep.subr.bf16.mxu0 0
  %1583 = vmatpush1.bf16.msra.mxu0 %v1182
  %1584 = vmatprep.subr.bf16.mxu0 0
  %1585 = vmatpush1.bf16.msra.mxu0 %v1183
  %1586 = vmatprep.subr.bf16.mxu0 0
  %1587 = vmatpush1.bf16.msra.mxu0 %v1184
  %1588 = vmatprep.subr.bf16.mxu0 0
  %1589 = vmatpush1.bf16.msra.mxu0 %v1185
  %1590 = vmatprep.subr.bf16.mxu0 0
  %1591 = vmatpush1.bf16.msra.mxu0 %v1186
  %1592 = vmatprep.subr.bf16.mxu0 0
  %1593 = vmatpush1.bf16.msra.mxu0 %v1187
  %1594 = vmatprep.subr.bf16.mxu0 0
  %1595 = vmatpush1.bf16.msra.mxu0 %v1188
  %1596 = vmatprep.subr.bf16.mxu0 0
  %1597 = vmatpush1.bf16.msra.mxu0 %v1189
  %1598 = vmatprep.subr.bf16.mxu0 0
  %1599 = vmatpush1.bf16.msra.mxu0 %v1190
  %1600 = vmatprep.subr.bf16.mxu0 0
  %1601 = vmatpush1.bf16.msra.mxu0 %v1191
  %1602 = vmatprep.subr.bf16.mxu0 0
  %1603 = vmatpush1.bf16.msra.mxu0 %v1192
  %1604 = vmatprep.subr.bf16.mxu0 0
  %1605 = vmatpush1.bf16.msra.mxu0 %v1193
  %1606 = vmatprep.subr.bf16.mxu0 0
  %1607 = vmatpush1.bf16.msra.mxu0 %v1194
  %1608 = vmatprep.subr.bf16.mxu0 0
  %1609 = vmatpush1.bf16.msra.mxu0 %v1195
  %1610 = vmatprep.subr.bf16.mxu0 0
  %1611 = vmatpush1.bf16.msra.mxu0 %v1196
  %1612 = vmatprep.subr.bf16.mxu0 0
  %1613 = vmatpush1.bf16.msra.mxu0 %v1197
  %1614 = vmatprep.mubr.bf16.mxu0 %v501
  %1615 = vmatmul.mubr.bf16.gmra.mrb[0].mxu0 %v500
  %v1616 = vpop.f32.mrb[0].mxu0
  %v1617 = vadd.f32 %v1553, %v1616
  %v1618 = vpop.f32.mrb[0].mxu0
  %v1619 = vpop.f32.mrb[0].mxu0
  %v1620 = vadd.f32 %v1556, %v1619
  %v1621 = vpop.f32.mrb[0].mxu0
  %1622 = vmatprep.mubr.bf16.mxu0 %v517
  %1623 = vmatmul.mubr.bf16.gmra.mrb[0].mxu0 %v516
  %v1624 = vpop.f32.mrb[0].mxu0
  %v1625 = vadd.f32 %v1561, %v1624
  %v1626 = vpop.f32.mrb[0].mxu0
  %v1627 = vpop.f32.mrb[0].mxu0
  %v1628 = vadd.f32 %v1564, %v1627
  %v1629 = vpop.f32.mrb[0].mxu0
  %1630 = vmatprep.mubr.bf16.mxu0 %v533
  %1631 = vmatmul.mubr.bf16.gmra.mrb[0].mxu0 %v532
  %v1632 = vpop.f32.mrb[0].mxu0
  %v1633 = vadd.f32 %v1569, %v1632
  %v1634 = vpop.f32.mrb[0].mxu0
  %v1635 = vpop.f32.mrb[0].mxu0
  %v1636 = vadd.f32 %v1572, %v1635
  %v1637 = vpop.f32.mrb[0].mxu0
  %1638 = vmatprep.mubr.bf16.mxu0 %v549
  %1639 = vmatmul.mubr.bf16.gmra.mrb[0].mxu0 %v548
  %v1640 = vpop.f32.mrb[0].mxu0
  %v1641 = vadd.f32 %v1577, %v1640
  %v1642 = vpop.f32.mrb[0].mxu0
  %v1643 = vpop.f32.mrb[0].mxu0
  %v1644 = vpop.f32.mrb[0].mxu0
  %1645 = vdwg.mxu0
  %1646 = vmatprep.subr.bf16.mxu0 0
  %1647 = vmatpush1.bf16.msra.mxu0 %v1198
  %1648 = vmatprep.subr.bf16.mxu0 0
  %1649 = vmatpush1.bf16.msra.mxu0 %v1199
  %1650 = vmatprep.subr.bf16.mxu0 0
  %1651 = vmatpush1.bf16.msra.mxu0 %v1200
  %1652 = vmatprep.subr.bf16.mxu0 0
  %1653 = vmatpush1.bf16.msra.mxu0 %v1201
  %1654 = vmatprep.subr.bf16.mxu0 0
  %1655 = vmatpush1.bf16.msra.mxu0 %v1202
  %1656 = vmatprep.subr.bf16.mxu0 0
  %1657 = vmatpush1.bf16.msra.mxu0 %v1203
  %1658 = vmatprep.subr.bf16.mxu0 0
  %1659 = vmatpush1.bf16.msra.mxu0 %v1204
  %1660 = vmatprep.subr.bf16.mxu0 0
  %1661 = vmatpush1.bf16.msra.mxu0 %v1205
  %1662 = vmatprep.subr.bf16.mxu0 0
  %1663 = vmatpush1.bf16.msra.mxu0 %v1206
  %1664 = vmatprep.subr.bf16.mxu0 0
  %1665 = vmatpush1.bf16.msra.mxu0 %v1207
  %1666 = vmatprep.subr.bf16.mxu0 0
  %1667 = vmatpush1.bf16.msra.mxu0 %v1208
  %1668 = vmatprep.subr.bf16.mxu0 0
  %1669 = vmatpush1.bf16.msra.mxu0 %v1209
  %1670 = vmatprep.subr.bf16.mxu0 0
  %1671 = vmatpush1.bf16.msra.mxu0 %v1210
  %1672 = vmatprep.subr.bf16.mxu0 0
  %1673 = vmatpush1.bf16.msra.mxu0 %v1211
  %1674 = vmatprep.subr.bf16.mxu0 0
  %1675 = vmatpush1.bf16.msra.mxu0 %v1212
  %1676 = vmatprep.subr.bf16.mxu0 0
  %1677 = vmatpush1.bf16.msra.mxu0 %v1213
  %1678 = vmatprep.mubr.bf16.mxu0 %v503
  %1679 = vmatmul.mubr.bf16.gmra.mrb[0].mxu0 %v502
  %v1680 = vpop.f32.mrb[0].mxu0
  %v1681 = vadd.f32 %v1617, %v1680
  %v1682 = vpop.f32.mrb[0].mxu0
  %v1683 = vpop.f32.mrb[0].mxu0
  %v1684 = vadd.f32 %v1620, %v1683
  %v1685 = vpop.f32.mrb[0].mxu0
  %1686 = vmatprep.mubr.bf16.mxu0 %v519
  %1687 = vmatmul.mubr.bf16.gmra.mrb[0].mxu0 %v518
  %v1688 = vpop.f32.mrb[0].mxu0
  %v1689 = vadd.f32 %v1625, %v1688
  %v1690 = vpop.f32.mrb[0].mxu0
  %v1691 = vpop.f32.mrb[0].mxu0
  %v1692 = vadd.f32 %v1628, %v1691
  %v1693 = vpop.f32.mrb[0].mxu0
  %1694 = vmatprep.mubr.bf16.mxu0 %v535
  %1695 = vmatmul.mubr.bf16.gmra.mrb[0].mxu0 %v534
  %v1696 = vpop.f32.mrb[0].mxu0
  %v1697 = vadd.f32 %v1633, %v1696
  %v1698 = vpop.f32.mrb[0].mxu0
  %v1699 = vpop.f32.mrb[0].mxu0
  %v1700 = vadd.f32 %v1636, %v1699
  %v1701 = vpop.f32.mrb[0].mxu0
  %1702 = vmatprep.mubr.bf16.mxu0 %v551
  %1703 = vmatmul.mubr.bf16.gmra.mrb[0].mxu0 %v550
  %v1704 = vpop.f32.mrb[0].mxu0
  %v1705 = vadd.f32 %v1641, %v1704
  %v1706 = vpop.f32.mrb[0].mxu0
  %v1707 = vpop.f32.mrb[0].mxu0
  %v1708 = vpop.f32.mrb[0].mxu0
  %1709 = vdwg.mxu0
  %1710 = vmatprep.subr.bf16.mxu0 0
  %1711 = vmatpush1.bf16.msra.mxu0 %v1214
  %1712 = vmatprep.subr.bf16.mxu0 0
  %1713 = vmatpush1.bf16.msra.mxu0 %v1215
  %1714 = vmatprep.subr.bf16.mxu0 0
  %1715 = vmatpush1.bf16.msra.mxu0 %v1216
  %1716 = vmatprep.subr.bf16.mxu0 0
  %1717 = vmatpush1.bf16.msra.mxu0 %v1217
  %1718 = vmatprep.subr.bf16.mxu0 0
  %1719 = vmatpush1.bf16.msra.mxu0 %v1218
  %1720 = vmatprep.subr.bf16.mxu0 0
  %1721 = vmatpush1.bf16.msra.mxu0 %v1219
  %1722 = vmatprep.subr.bf16.mxu0 0
  %1723 = vmatpush1.bf16.msra.mxu0 %v1220
  %1724 = vmatprep.subr.bf16.mxu0 0
  %1725 = vmatpush1.bf16.msra.mxu0 %v1221
  %1726 = vmatprep.subr.bf16.mxu0 0
  %1727 = vmatpush1.bf16.msra.mxu0 %v1222
  %1728 = vmatprep.subr.bf16.mxu0 0
  %1729 = vmatpush1.bf16.msra.mxu0 %v1223
  %1730 = vmatprep.subr.bf16.mxu0 0
  %1731 = vmatpush1.bf16.msra.mxu0 %v1224
  %1732 = vmatprep.subr.bf16.mxu0 0
  %1733 = vmatpush1.bf16.msra.mxu0 %v1225
  %1734 = vmatprep.subr.bf16.mxu0 0
  %1735 = vmatpush1.bf16.msra.mxu0 %v1226
  %1736 = vmatprep.subr.bf16.mxu0 0
  %1737 = vmatpush1.bf16.msra.mxu0 %v1227
  %1738 = vmatprep.subr.bf16.mxu0 0
  %1739 = vmatpush1.bf16.msra.mxu0 %v1228
  %1740 = vmatprep.subr.bf16.mxu0 0
  %1741 = vmatpush1.bf16.msra.mxu0 %v1229
  %1742 = vmatprep.mubr.bf16.mxu0 %v505
  %1743 = vmatmul.mubr.bf16.gmra.mrb[0].mxu0 %v504
  %v1744 = vpop.f32.mrb[0].mxu0
  %v1745 = vadd.f32 %v1681, %v1744
  %v1746 = vpop.f32.mrb[0].mxu0
  %v1747 = vpop.f32.mrb[0].mxu0
  %v1748 = vadd.f32 %v1684, %v1747
  %v1749 = vpop.f32.mrb[0].mxu0
  %1750 = vmatprep.mubr.bf16.mxu0 %v521
  %1751 = vmatmul.mubr.bf16.gmra.mrb[0].mxu0 %v520
  %v1752 = vpop.f32.mrb[0].mxu0
  %v1753 = vadd.f32 %v1689, %v1752
  %v1754 = vpop.f32.mrb[0].mxu0
  %v1755 = vpop.f32.mrb[0].mxu0
  %v1756 = vadd.f32 %v1692, %v1755
  %v1757 = vpop.f32.mrb[0].mxu0
  %1758 = vmatprep.mubr.bf16.mxu0 %v537
  %1759 = vmatmul.mubr.bf16.gmra.mrb[0].mxu0 %v536
  %v1760 = vpop.f32.mrb[0].mxu0
  %v1761 = vadd.f32 %v1697, %v1760
  %v1762 = vpop.f32.mrb[0].mxu0
  %v1763 = vpop.f32.mrb[0].mxu0
  %v1764 = vadd.f32 %v1700, %v1763
  %v1765 = vpop.f32.mrb[0].mxu0
  %1766 = vmatprep.mubr.bf16.mxu0 %v553
  %1767 = vmatmul.mubr.bf16.gmra.mrb[0].mxu0 %v552
  %v1768 = vpop.f32.mrb[0].mxu0
  %v1769 = vadd.f32 %v1705, %v1768
  %v1770 = vpop.f32.mrb[0].mxu0
  %v1771 = vpop.f32.mrb[0].mxu0
  %v1772 = vpop.f32.mrb[0].mxu0
  %1773 = vdwg.mxu0
  %1774 = vmatprep.subr.bf16.mxu0 0
  %1775 = vmatpush1.bf16.msra.mxu0 %v1230
  %1776 = vmatprep.subr.bf16.mxu0 0
  %1777 = vmatpush1.bf16.msra.mxu0 %v1231
  %1778 = vmatprep.subr.bf16.mxu0 0
  %1779 = vmatpush1.bf16.msra.mxu0 %v1232
  %1780 = vmatprep.subr.bf16.mxu0 0
  %1781 = vmatpush1.bf16.msra.mxu0 %v1233
  %1782 = vmatprep.subr.bf16.mxu0 0
  %1783 = vmatpush1.bf16.msra.mxu0 %v1234
  %1784 = vmatprep.subr.bf16.mxu0 0
  %1785 = vmatpush1.bf16.msra.mxu0 %v1235
  %1786 = vmatprep.subr.bf16.mxu0 0
  %1787 = vmatpush1.bf16.msra.mxu0 %v1236
  %1788 = vmatprep.subr.bf16.mxu0 0
  %1789 = vmatpush1.bf16.msra.mxu0 %v1237
  %1790 = vmatprep.subr.bf16.mxu0 0
  %1791 = vmatpush1.bf16.msra.mxu0 %v1238
  %1792 = vmatprep.subr.bf16.mxu0 0
  %1793 = vmatpush1.bf16.msra.mxu0 %v1239
  %1794 = vmatprep.subr.bf16.mxu0 0
  %1795 = vmatpush1.bf16.msra.mxu0 %v1240
  %1796 = vmatprep.subr.bf16.mxu0 0
  %1797 = vmatpush1.bf16.msra.mxu0 %v1241
  %1798 = vmatprep.subr.bf16.mxu0 0
  %1799 = vmatpush1.bf16.msra.mxu0 %v1242
  %1800 = vmatprep.subr.bf16.mxu0 0
  %1801 = vmatpush1.bf16.msra.mxu0 %v1243
  %1802 = vmatprep.subr.bf16.mxu0 0
  %1803 = vmatpush1.bf16.msra.mxu0 %v1244
  %1804 = vmatprep.subr.bf16.mxu0 0
  %1805 = vmatpush1.bf16.msra.mxu0 %v1245
  %1806 = vmatprep.mubr.bf16.mxu0 %v507
  %1807 = vmatmul.mubr.bf16.gmra.mrb[0].mxu0 %v506
  %v1808 = vpop.f32.mrb[0].mxu0
  %v1809 = vadd.f32 %v1745, %v1808
  %v1810 = vpop.f32.mrb[0].mxu0
  %v1811 = vpop.f32.mrb[0].mxu0
  %v1812 = vadd.f32 %v1748, %v1811
  %v1813 = vpop.f32.mrb[0].mxu0
  %1814 = vmatprep.mubr.bf16.mxu0 %v523
  %1815 = vmatmul.mubr.bf16.gmra.mrb[0].mxu0 %v522
  %v1816 = vpop.f32.mrb[0].mxu0
  %v1817 = vadd.f32 %v1753, %v1816
  %v1818 = vpop.f32.mrb[0].mxu0
  %v1819 = vpop.f32.mrb[0].mxu0
  %v1820 = vadd.f32 %v1756, %v1819
  %v1821 = vpop.f32.mrb[0].mxu0
  %1822 = vmatprep.mubr.bf16.mxu0 %v539
  %1823 = vmatmul.mubr.bf16.gmra.mrb[0].mxu0 %v538
  %v1824 = vpop.f32.mrb[0].mxu0
  %v1825 = vadd.f32 %v1761, %v1824
  %v1826 = vpop.f32.mrb[0].mxu0
  %v1827 = vpop.f32.mrb[0].mxu0
  %v1828 = vadd.f32 %v1764, %v1827
  %v1829 = vpop.f32.mrb[0].mxu0
  %1830 = vmatprep.mubr.bf16.mxu0 %v555
  %1831 = vmatmul.mubr.bf16.gmra.mrb[0].mxu0 %v554
  %v1832 = vpop.f32.mrb[0].mxu0
  %v1833 = vadd.f32 %v1769, %v1832
  %v1834 = vpop.f32.mrb[0].mxu0
  %v1835 = vpop.f32.mrb[0].mxu0
  %v1836 = vpop.f32.mrb[0].mxu0
  %1837 = vdwg.mxu0
  %1838 = vmatprep.subr.bf16.mxu0 0
  %1839 = vmatpush1.bf16.msra.mxu0 %v1246
  %1840 = vmatprep.subr.bf16.mxu0 0
  %1841 = vmatpush1.bf16.msra.mxu0 %v1247
  %1842 = vmatprep.subr.bf16.mxu0 0
  %1843 = vmatpush1.bf16.msra.mxu0 %v1248
  %1844 = vmatprep.subr.bf16.mxu0 0
  %1845 = vmatpush1.bf16.msra.mxu0 %v1249
  %1846 = vmatprep.subr.bf16.mxu0 0
  %1847 = vmatpush1.bf16.msra.mxu0 %v1250
  %1848 = vmatprep.subr.bf16.mxu0 0
  %1849 = vmatpush1.bf16.msra.mxu0 %v1251
  %1850 = vmatprep.subr.bf16.mxu0 0
  %1851 = vmatpush1.bf16.msra.mxu0 %v1252
  %1852 = vmatprep.subr.bf16.mxu0 0
  %1853 = vmatpush1.bf16.msra.mxu0 %v1253
  %1854 = vmatprep.subr.bf16.mxu0 0
  %1855 = vmatpush1.bf16.msra.mxu0 %v1254
  %1856 = vmatprep.subr.bf16.mxu0 0
  %1857 = vmatpush1.bf16.msra.mxu0 %v1255
  %1858 = vmatprep.subr.bf16.mxu0 0
  %1859 = vmatpush1.bf16.msra.mxu0 %v1256
  %1860 = vmatprep.subr.bf16.mxu0 0
  %1861 = vmatpush1.bf16.msra.mxu0 %v1257
  %1862 = vmatprep.subr.bf16.mxu0 0
  %1863 = vmatpush1.bf16.msra.mxu0 %v1258
  %1864 = vmatprep.subr.bf16.mxu0 0
  %1865 = vmatpush1.bf16.msra.mxu0 %v1259
  %1866 = vmatprep.subr.bf16.mxu0 0
  %1867 = vmatpush1.bf16.msra.mxu0 %v1260
  %1868 = vmatprep.subr.bf16.mxu0 0
  %1869 = vmatpush1.bf16.msra.mxu0 %v1261
  %1870 = vmatprep.mubr.bf16.mxu0 %v509
  %1871 = vmatmul.mubr.bf16.gmra.mrb[0].mxu0 %v508
  %v1872 = vpop.f32.mrb[0].mxu0
  %v1873 = vadd.f32 %v1809, %v1872
  %v1874 = vpop.f32.mrb[0].mxu0
  %v1875 = vpop.f32.mrb[0].mxu0
  %v1876 = vadd.f32 %v1812, %v1875
  %v1877 = vpop.f32.mrb[0].mxu0
  %1878 = vmatprep.mubr.bf16.mxu0 %v525
  %1879 = vmatmul.mubr.bf16.gmra.mrb[0].mxu0 %v524
  %v1880 = vpop.f32.mrb[0].mxu0
  %v1881 = vadd.f32 %v1817, %v1880
  %v1882 = vpop.f32.mrb[0].mxu0
  %v1883 = vpop.f32.mrb[0].mxu0
  %v1884 = vadd.f32 %v1820, %v1883
  %v1885 = vpop.f32.mrb[0].mxu0
  %1886 = vmatprep.mubr.bf16.mxu0 %v541
  %1887 = vmatmul.mubr.bf16.gmra.mrb[0].mxu0 %v540
  %v1888 = vpop.f32.mrb[0].mxu0
  %v1889 = vadd.f32 %v1825, %v1888
  %v1890 = vpop.f32.mrb[0].mxu0
  %v1891 = vpop.f32.mrb[0].mxu0
  %v1892 = vadd.f32 %v1828, %v1891
  %v1893 = vpop.f32.mrb[0].mxu0
  %1894 = vmatprep.mubr.bf16.mxu0 %v557
  %1895 = vmatmul.mubr.bf16.gmra.mrb[0].mxu0 %v556
  %v1896 = vpop.f32.mrb[0].mxu0
  %v1897 = vadd.f32 %v1833, %v1896
  %v1898 = vpop.f32.mrb[0].mxu0
  %v1899 = vpop.f32.mrb[0].mxu0
  %v1900 = vpop.f32.mrb[0].mxu0
  %1901 = vdwg.mxu0
  %v1902 = vpack.c.bf16 %v1876, %v1873
  %v1903 = vpack.c.bf16 %v1884, %v1881
  %v1904 = vpack.c.bf16 %v1892, %v1889
  %v1905 = vpack.c.bf16 %v1897, %v1897
  %v1910 = vunpack.c.l.b16 %v1902
  %v1911 = vunpack.c.h.b16 %v1902
  %v1912 = vunpack.c.l.b16 %v1903
  %v1913 = vunpack.c.h.b16 %v1903
  %v1914 = vunpack.c.l.b16 %v1904
  %v1915 = vunpack.c.h.b16 %v1904
  %v1916 = vunpack.c.l.b16 %v1905
  %v1917 = vpack.c.b16 %v1910, %v1910
  %v1918 = vpack.c.b16 %v1911, %v1911
  %v1919 = vpack.c.b16 %v1912, %v1912
  %v1920 = vpack.c.b16 %v1913, %v1913
  %v1921 = vpack.c.b16 %v1914, %v1914
  %v1922 = vpack.c.b16 %v1915, %v1915
  %v1923 = vpack.c.b16 %v1916, %v1916
  %1931 = vst [vmem:[%s2] sm:$0xf] %v1917
  %1932 = vst [vmem:[%s2 + $0x4] sm:$0xf] %v1918
  %1933 = vst [vmem:[%s2 + $0x8] sm:$0xf] %v1919
  %1934 = vst [vmem:[%s2 + $0xc] sm:$0xf] %v1920
  %1935 = vst [vmem:[%s2 + $0x10] sm:$0xf] %v1921
  %1936 = vst [vmem:[%s2 + $0x14] sm:$0xf] %v1922
  %1937 = vst [vmem:[%s2 + $0x18] sm:$0xf] %v1923
  %s1938 = smul.u32 0, 56
  %v1939 = vlaneseq
  %v1940 = vshrl.u32 %v1939, 7
  %v1941 = vadd.s32 %v1940, 8
  %v1942 = vadd.s32 %v1940, 16
  %v1943 = vadd.s32 %v1940, 24
  %v1944 = vadd.s32 %v1940, 32
  %v1945 = vadd.s32 %v1940, 40
  %v1946 = vadd.s32 %v1940, 48
  %v1947 = vstv %s1938
  %v1948 = vadd.s32 %v1947, %v1940
  %v1949 = vadd.s32 %v1947, %v1941
  %v1950 = vadd.s32 %v1947, %v1942
  %v1951 = vadd.s32 %v1947, %v1943
  %v1952 = vadd.s32 %v1947, %v1944
  %v1953 = vadd.s32 %v1947, %v1945
  %v1954 = vadd.s32 %v1947, %v1946
  %vm1955 = vcmp.lt.s32.totalorder %v1948, 50
  %vm1956 = vcmp.lt.s32.totalorder %v1949, 50
  %vm1957 = vcmp.lt.s32.totalorder %v1950, 50
  %vm1958 = vcmp.lt.s32.totalorder %v1951, 50
  %vm1959 = vcmp.lt.s32.totalorder %v1952, 50
  %vm1960 = vcmp.lt.s32.totalorder %v1953, 50
  %vm1961 = vcmp.lt.s32.totalorder %v1954, 50
  %v1962 = vsel %vm1955, %v1873, 0.0
  %v1963 = vsel %vm1956, %v1876, 0.0
  %v1964 = vsel %vm1957, %v1881, 0.0
  %v1965 = vsel %vm1958, %v1884, 0.0
  %v1966 = vsel %vm1959, %v1889, 0.0
  %v1967 = vsel %vm1960, %v1892, 0.0
  %v1968 = vsel %vm1961, %v1897, 0.0
  %v1969 = vadd.f32 %v1962, %v1963
  %v1970 = vadd.f32 %v1969, %v1964
  %v1971 = vadd.f32 %v1970, %v1965
  %v1972 = vadd.f32 %v1971, %v1966
  %v1973 = vadd.f32 %v1972, %v1967
  %v1974 = vadd.f32 %v1973, %v1968
  %v1975 = vrot.slane %v1974, 4
  %v1976 = vadd.f32 %v1974, %v1975
  %v1977 = vrot.slane %v1976, 2
  %v1978 = vadd.f32 %v1976, %v1977
  %v1979 = vrot.slane %v1978, 1
  %v1980 = vadd.f32 %v1978, %v1979
  %v1981 = vmul.f32 %v1962, %v1962
  %v1982 = vmul.f32 %v1963, %v1963
  %v1983 = vmul.f32 %v1964, %v1964
  %v1984 = vmul.f32 %v1965, %v1965
  %v1985 = vmul.f32 %v1966, %v1966
  %v1986 = vmul.f32 %v1967, %v1967
  %v1987 = vmul.f32 %v1968, %v1968
  %v1988 = vadd.f32 %v1981, %v1982
  %v1989 = vadd.f32 %v1988, %v1983
  %v1990 = vadd.f32 %v1989, %v1984
  %v1991 = vadd.f32 %v1990, %v1985
  %v1992 = vadd.f32 %v1991, %v1986
  %v1993 = vadd.f32 %v1992, %v1987
  %v1994 = vrot.slane %v1993, 4
  %v1995 = vadd.f32 %v1993, %v1994
  %v1996 = vrot.slane %v1995, 2
  %v1997 = vadd.f32 %v1995, %v1996
  %v1998 = vrot.slane %v1997, 1
  %v1999 = vadd.f32 %v1997, %v1998
  %vm2000 = vcmp.eq.s32.totalorder %v1940, 0
  %vm2001 = vcmp.eq.s32.totalorder %v1940, 1
  %v2002 = vsel %vm2001, %v1999, 0.0
  %v2003 = vsel %vm2000, %v1980, %v2002
  %2004 = vst [vmem:[%s3] sm:$0xff] %v2003
  // Predicated region
  $region10: #{multi_discriminator_forward.16} parent=0 // pred_check
    _
  $region11: #{multi_discriminator_forward.16} parent=0 // pred_check_branch
    %2006 = sbr.rel (0) target = $region13
  $region12: #{multi_discriminator_forward.16} parent=0 // pred_region
    _
  $region13: #{multi_discriminator_forward.16} parent=0 // pred_fallthru
    _
  // Predicated region
  $region14: #{multi_discriminator_forward.16} parent=0 // pred_check
    _
  $region15: #{multi_discriminator_forward.16} parent=0 // pred_check_branch
    %2008 = sbr.rel (0) target = $region17
  $region16: #{multi_discriminator_forward.16} parent=0 // pred_region
    _
  $region17: #{multi_discriminator_forward.16} parent=0 // pred_fallthru
    _
  // Predicated region
  $region18: #{multi_discriminator_forward.16} parent=0 // pred_check
    _
  $region19: #{multi_discriminator_forward.16} parent=0 // pred_check_branch
    %2010 = sbr.rel (0) target = $region21
  $region20: #{multi_discriminator_forward.16} parent=0 // pred_region
    _
  $region21: #{multi_discriminator_forward.16} parent=0 // pred_fallthru
    _
  // Predicated region
  $region22: #{multi_discriminator_forward.16} parent=0 // pred_check
    _
  $region23: #{multi_discriminator_forward.16} parent=0 // pred_check_branch
    %2012 = sbr.rel (0) target = $region25
  $region24: #{multi_discriminator_forward.16} parent=0 // pred_region
    _
  $region25: #{multi_discriminator_forward.16} parent=0 // pred_fallthru
    _

// kernel: multi_discriminator_forward.19
$region0: #{multi_discriminator_forward.19}
  #allocation0 [shape = 'u32[]', space=smem, size = 0x4, offset = 0x4, fixed_abs, tag = 'smem constant byte address 0x4 - core index']
  #allocation1 [shape = 'u32[144,128]{1,0:T(1,128)}', space=vmem, size = 0x12000, scoped, tag = 'internal scratch']
  %s0 = inlined_call_operand.vmem [shape: bf16[24,128], index: 0, kind: input, shape index: {}]
  %s1 = inlined_call_operand.vmem [shape: f32[1,128], index: 1, kind: input, shape index: {}]
  %s2 = inlined_call_operand.vmem [shape: f32[1,128], index: 2, kind: input, shape index: {}]
  %s3 = inlined_call_operand.vmem [shape: bf16[24,128], index: 3, kind: output, shape index: {}]
  %s4 = sld [smem:[#allocation0]]
  $region22: #{multi_discriminator_forward.19} parent=0
    _
  %s6 = ssub.s32 1, %s4
  %s7 = scalar_select 0, %s6, %s4
  // Predicated region
  $region2: #{multi_discriminator_forward.19} parent=0 // pred_check
    _
  $region3: #{multi_discriminator_forward.19} parent=0 // pred_check_branch
    %9 = sbr.rel (0) target = $region5
  $region4: #{multi_discriminator_forward.19} parent=0 // pred_region
    _
  $region5: #{multi_discriminator_forward.19} parent=0 // pred_fallthru
    _
  // Predicated region
  $region6: #{multi_discriminator_forward.19} parent=0 // pred_check
    _
  $region7: #{multi_discriminator_forward.19} parent=0 // pred_check_branch
    %11 = sbr.rel (0) target = $region9
  $region8: #{multi_discriminator_forward.19} parent=0 // pred_region
    _
  $region9: #{multi_discriminator_forward.19} parent=0 // pred_fallthru
    _
  // Predicated region
  $region10: #{multi_discriminator_forward.19} parent=0 // pred_check
    _
  $region11: #{multi_discriminator_forward.19} parent=0 // pred_check_branch
    %13 = sbr.rel (0) target = $region13
  $region12: #{multi_discriminator_forward.19} parent=0 // pred_region
    _
  $region13: #{multi_discriminator_forward.19} parent=0 // pred_fallthru
    _
  %v14 = vld [vmem:[%s0] sm:$0xf]
  %v15 = vld [vmem:[%s0 + $0x4] sm:$0xf]
  %v16 = vld [vmem:[%s0 + $0x8] sm:$0xf]
  %v17 = vunpack.c.l.bf16 %v14
  %v18 = vunpack.c.l.bf16 %v15
  %v19 = vunpack.c.l.bf16 %v16
  %v20 = vld [vmem:[%s1] sm:$0x1]
  %v22 = vlaneseq
  %v23 = vshrl.u32 %v22, 7
  %v24 = vsub.s32 0, %v23
  %v25 = vrot.slane %v20, %v24
  %v27 = vmul.f32 %v17, %v25
  %v28 = vmul.f32 %v18, %v25
  %v29 = vmul.f32 %v19, %v25
  %v30 = vld [vmem:[%s2] sm:$0x1]
  %v32 = vlaneseq
  %v33 = vshrl.u32 %v32, 7
  %v34 = vsub.s32 0, %v33
  %v35 = vrot.slane %v30, %v34
  %v37 = vadd.f32 %v27, %v35
  %v38 = vadd.f32 %v28, %v35
  %v39 = vadd.f32 %v29, %v35
  %vm40 = vcmp.ge.f32.partialorder %v37, 0.0
  %vm41 = vcmp.ge.f32.partialorder %v38, 0.0
  %vm42 = vcmp.ge.f32.partialorder %v39, 0.0
  %v43 = vmul.f32 %v37, 0.2
  %v44 = vmul.f32 %v38, 0.2
  %v45 = vmul.f32 %v39, 0.2
  %v46 = vsel %vm40, %v37, %v43
  %v47 = vsel %vm41, %v38, %v44
  %v48 = vsel %vm42, %v39, %v45
  %v49 = vpack.c.bf16 %v47, %v46
  %v50 = vpack.c.bf16 %v48, %v48
  %v53 = vunpack.c.l.b16 %v49
  %v54 = vunpack.c.h.b16 %v49
  %v55 = vunpack.c.l.b16 %v50
  %v56 = vpack.c.b16 %v53, %v53
  %v57 = vpack.c.b16 %v54, %v54
  %v58 = vpack.c.b16 %v55, %v55
  %62 = vst [vmem:[%s3] sm:$0xf] %v56
  %63 = vst [vmem:[%s3 + $0x4] sm:$0xf] %v57
  %64 = vst [vmem:[%s3 + $0x8] sm:$0xf] %v58
  // Predicated region
  $region14: #{multi_discriminator_forward.19} parent=0 // pred_check
    _
  $region15: #{multi_discriminator_forward.19} parent=0 // pred_check_branch
    %66 = sbr.rel (0) target = $region17
  $region16: #{multi_discriminator_forward.19} parent=0 // pred_region
    _
  $region17: #{multi_discriminator_forward.19} parent=0 // pred_fallthru
    _
  // Predicated region
  $region18: #{multi_discriminator_forward.19} parent=0 // pred_check
    _
  $region19: #{multi_discriminator_forward.19} parent=0 // pred_check_branch
    %68 = sbr.rel (0) target = $region21
  $region20: #{multi_discriminator_forward.19} parent=0 // pred_region
    _
  $region21: #{multi_discriminator_forward.19} parent=0 // pred_fallthru
    _

// kernel: multi_discriminator_forward.24
$region0: #{multi_discriminator_forward.24}
  #allocation0 [shape = 'u32[]', space=smem, size = 0x4, offset = 0x4, fixed_abs, tag = 'smem constant byte address 0x4 - core index']
  #allocation1 [shape = 'u32[144,128]{1,0:T(1,128)}', space=vmem, size = 0x12000, scoped, tag = 'internal scratch']
  %s0 = inlined_call_operand.vmem [shape: bf16[8,128], index: 0, kind: input, shape index: {}]
  %s1 = inlined_call_operand.vmem [shape: f32[1,128], index: 1, kind: input, shape index: {}]
  %s2 = inlined_call_operand.vmem [shape: f32[1,128], index: 2, kind: input, shape index: {}]
  %s3 = inlined_call_operand.vmem [shape: bf16[8,128], index: 3, kind: output, shape index: {}]
  %s4 = sld [smem:[#allocation0]]
  $region22: #{multi_discriminator_forward.24} parent=0
    _
  %s6 = ssub.s32 1, %s4
  %s7 = scalar_select 0, %s6, %s4
  // Predicated region
  $region2: #{multi_discriminator_forward.24} parent=0 // pred_check
    _
  $region3: #{multi_discriminator_forward.24} parent=0 // pred_check_branch
    %9 = sbr.rel (0) target = $region5
  $region4: #{multi_discriminator_forward.24} parent=0 // pred_region
    _
  $region5: #{multi_discriminator_forward.24} parent=0 // pred_fallthru
    _
  // Predicated region
  $region6: #{multi_discriminator_forward.24} parent=0 // pred_check
    _
  $region7: #{multi_discriminator_forward.24} parent=0 // pred_check_branch
    %11 = sbr.rel (0) target = $region9
  $region8: #{multi_discriminator_forward.24} parent=0 // pred_region
    _
  $region9: #{multi_discriminator_forward.24} parent=0 // pred_fallthru
    _
  // Predicated region
  $region10: #{multi_discriminator_forward.24} parent=0 // pred_check
    _
  $region11: #{multi_discriminator_forward.24} parent=0 // pred_check_branch
    %13 = sbr.rel (0) target = $region13
  $region12: #{multi_discriminator_forward.24} parent=0 // pred_region
    _
  $region13: #{multi_discriminator_forward.24} parent=0 // pred_fallthru
    _
  %v14 = vld [vmem:[%s0] sm:$0xf]
  %v15 = vunpack.c.l.bf16 %v14
  %v16 = vld [vmem:[%s1] sm:$0x1]
  %v18 = vlaneseq
  %v19 = vshrl.u32 %v18, 7
  %v20 = vsub.s32 0, %v19
  %v21 = vrot.slane %v16, %v20
  %v23 = vmul.f32 %v15, %v21
  %v24 = vld [vmem:[%s2] sm:$0x1]
  %v26 = vlaneseq
  %v27 = vshrl.u32 %v26, 7
  %v28 = vsub.s32 0, %v27
  %v29 = vrot.slane %v24, %v28
  %v31 = vadd.f32 %v23, %v29
  %vm32 = vcmp.ge.f32.partialorder %v31, 0.0
  %v33 = vmul.f32 %v31, 0.2
  %v34 = vsel %vm32, %v31, %v33
  %v35 = vpack.c.bf16 %v34, %v34
  %36 = vst [vmem:[%s3] sm:$0xf] %v35
  // Predicated region
  $region14: #{multi_discriminator_forward.24} parent=0 // pred_check
    _
  $region15: #{multi_discriminator_forward.24} parent=0 // pred_check_branch
    %38 = sbr.rel (0) target = $region17
  $region16: #{multi_discriminator_forward.24} parent=0 // pred_region
    _
  $region17: #{multi_discriminator_forward.24} parent=0 // pred_fallthru
    _
  // Predicated region
  $region18: #{multi_discriminator_forward.24} parent=0 // pred_check
    _
  $region19: #{multi_discriminator_forward.24} parent=0 // pred_check_branch
    %40 = sbr.rel (0) target = $region21
  $region20: #{multi_discriminator_forward.24} parent=0 // pred_region
    _
  $region21: #{multi_discriminator_forward.24} parent=0 // pred_fallthru
    _

// kernel: multi_discriminator_forward.18
$region0: #{multi_discriminator_forward.18}
  #allocation0 [shape = 'u32[]', space=smem, size = 0x4, offset = 0x4, fixed_abs, tag = 'smem constant byte address 0x4 - core index']
  #allocation1 [shape = 'u32[144,128]{1,0:T(1,128)}', space=vmem, size = 0x12000, scoped, tag = 'internal scratch']
  %s0 = inlined_call_operand.vmem [shape: bf16[24,2048], index: 0, kind: input, shape index: {}]
  %s1 = inlined_call_operand.vmem [shape: bf16[2048,128], index: 1, kind: input, shape index: {}]
  %s2 = inlined_call_operand.vmem [shape: bf16[24,128], index: 2, kind: output, shape index: {0}]
  %s3 = inlined_call_operand.vmem [shape: f32[8,128], index: 3, kind: output, shape index: {1}]
  %4 = xla_tuple %s2, %s3
  %s5 = sld [smem:[#allocation0]]
  $region26: #{multi_discriminator_forward.18} parent=0
    _
  %s7 = ssub.s32 1, %s5
  %s8 = scalar_select 0, %s7, %s5
  // Predicated region
  $region2: #{multi_discriminator_forward.18} parent=0 // pred_check
    _
  $region3: #{multi_discriminator_forward.18} parent=0 // pred_check_branch
    %10 = sbr.rel (0) target = $region5
  $region4: #{multi_discriminator_forward.18} parent=0 // pred_region
    _
  $region5: #{multi_discriminator_forward.18} parent=0 // pred_fallthru
    _
  // Predicated region
  $region6: #{multi_discriminator_forward.18} parent=0 // pred_check
    _
  $region7: #{multi_discriminator_forward.18} parent=0 // pred_check_branch
    %12 = sbr.rel (0) target = $region9
  $region8: #{multi_discriminator_forward.18} parent=0 // pred_region
    _
  $region9: #{multi_discriminator_forward.18} parent=0 // pred_fallthru
    _
  %v14 = vld [vmem:[%s0] sm:$0xff]
  %v15 = vld [vmem:[%s0 + $0x8] sm:$0xff]
  %v16 = vld [vmem:[%s0 + $0x10] sm:$0xff]
  %v17 = vld [vmem:[%s0 + $0x18] sm:$0xff]
  %v18 = vld [vmem:[%s0 + $0x20] sm:$0xff]
  %v19 = vld [vmem:[%s0 + $0x28] sm:$0xff]
  %v20 = vld [vmem:[%s0 + $0x30] sm:$0xff]
  %v21 = vld [vmem:[%s0 + $0x38] sm:$0xff]
  %v22 = vld [vmem:[%s0 + $0x40] sm:$0xff]
  %v23 = vld [vmem:[%s0 + $0x48] sm:$0xff]
  %v24 = vld [vmem:[%s0 + $0x50] sm:$0xff]
  %v25 = vld [vmem:[%s0 + $0x58] sm:$0xff]
  %v26 = vld [vmem:[%s0 + $0x60] sm:$0xff]
  %v27 = vld [vmem:[%s0 + $0x68] sm:$0xff]
  %v28 = vld [vmem:[%s0 + $0x70] sm:$0xff]
  %v29 = vld [vmem:[%s0 + $0x78] sm:$0xff]
  %v30 = vld [vmem:[%s0 + $0x80] sm:$0xff]
  %v31 = vld [vmem:[%s0 + $0x88] sm:$0xff]
  %v32 = vld [vmem:[%s0 + $0x90] sm:$0xff]
  %v33 = vld [vmem:[%s0 + $0x98] sm:$0xff]
  %v34 = vld [vmem:[%s0 + $0xa0] sm:$0xff]
  %v35 = vld [vmem:[%s0 + $0xa8] sm:$0xff]
  %v36 = vld [vmem:[%s0 + $0xb0] sm:$0xff]
  %v37 = vld [vmem:[%s0 + $0xb8] sm:$0xff]
  %v38 = vld [vmem:[%s1] sm:$0xf]
  %v39 = vld [vmem:[%s1 + $0x4] sm:$0xf]
  %v40 = vld [vmem:[%s1 + $0x8] sm:$0xf]
  %v41 = vld [vmem:[%s1 + $0xc] sm:$0xf]
  %v42 = vld [vmem:[%s1 + $0x10] sm:$0xf]
  %v43 = vld [vmem:[%s1 + $0x14] sm:$0xf]
  %v44 = vld [vmem:[%s1 + $0x18] sm:$0xf]
  %v45 = vld [vmem:[%s1 + $0x1c] sm:$0xf]
  %v46 = vld [vmem:[%s1 + $0x20] sm:$0xf]
  %v47 = vld [vmem:[%s1 + $0x24] sm:$0xf]
  %v48 = vld [vmem:[%s1 + $0x28] sm:$0xf]
  %v49 = vld [vmem:[%s1 + $0x2c] sm:$0xf]
  %v50 = vld [vmem:[%s1 + $0x30] sm:$0xf]
  %v51 = vld [vmem:[%s1 + $0x34] sm:$0xf]
  %v52 = vld [vmem:[%s1 + $0x38] sm:$0xf]
  %v53 = vld [vmem:[%s1 + $0x3c] sm:$0xf]
  %v54 = vld [vmem:[%s1 + $0x40] sm:$0xf]
  %v55 = vld [vmem:[%s1 + $0x44] sm:$0xf]
  %v56 = vld [vmem:[%s1 + $0x48] sm:$0xf]
  %v57 = vld [vmem:[%s1 + $0x4c] sm:$0xf]
  %v58 = vld [vmem:[%s1 + $0x50] sm:$0xf]
  %v59 = vld [vmem:[%s1 + $0x54] sm:$0xf]
  %v60 = vld [vmem:[%s1 + $0x58] sm:$0xf]
  %v61 = vld [vmem:[%s1 + $0x5c] sm:$0xf]
  %v62 = vld [vmem:[%s1 + $0x60] sm:$0xf]
  %v63 = vld [vmem:[%s1 + $0x64] sm:$0xf]
  %v64 = vld [vmem:[%s1 + $0x68] sm:$0xf]
  %v65 = vld [vmem:[%s1 + $0x6c] sm:$0xf]
  %v66 = vld [vmem:[%s1 + $0x70] sm:$0xf]
  %v67 = vld [vmem:[%s1 + $0x74] sm:$0xf]
  %v68 = vld [vmem:[%s1 + $0x78] sm:$0xf]
  %v69 = vld [vmem:[%s1 + $0x7c] sm:$0xf]
  %v70 = vld [vmem:[%s1 + $0x80] sm:$0xf]
  %v71 = vld [vmem:[%s1 + $0x84] sm:$0xf]
  %v72 = vld [vmem:[%s1 + $0x88] sm:$0xf]
  %v73 = vld [vmem:[%s1 + $0x8c] sm:$0xf]
  %v74 = vld [vmem:[%s1 + $0x90] sm:$0xf]
  %v75 = vld [vmem:[%s1 + $0x94] sm:$0xf]
  %v76 = vld [vmem:[%s1 + $0x98] sm:$0xf]
  %v77 = vld [vmem:[%s1 + $0x9c] sm:$0xf]
  %v78 = vld [vmem:[%s1 + $0xa0] sm:$0xf]
  %v79 = vld [vmem:[%s1 + $0xa4] sm:$0xf]
  %v80 = vld [vmem:[%s1 + $0xa8] sm:$0xf]
  %v81 = vld [vmem:[%s1 + $0xac] sm:$0xf]
  %v82 = vld [vmem:[%s1 + $0xb0] sm:$0xf]
  %v83 = vld [vmem:[%s1 + $0xb4] sm:$0xf]
  %v84 = vld [vmem:[%s1 + $0xb8] sm:$0xf]
  %v85 = vld [vmem:[%s1 + $0xbc] sm:$0xf]
  %v86 = vld [vmem:[%s1 + $0xc0] sm:$0xf]
  %v87 = vld [vmem:[%s1 + $0xc4] sm:$0xf]
  %v88 = vld [vmem:[%s1 + $0xc8] sm:$0xf]
  %v89 = vld [vmem:[%s1 + $0xcc] sm:$0xf]
  %v90 = vld [vmem:[%s1 + $0xd0] sm:$0xf]
  %v91 = vld [vmem:[%s1 + $0xd4] sm:$0xf]
  %v92 = vld [vmem:[%s1 + $0xd8] sm:$0xf]
  %v93 = vld [vmem:[%s1 + $0xdc] sm:$0xf]
  %v94 = vld [vmem:[%s1 + $0xe0] sm:$0xf]
  %v95 = vld [vmem:[%s1 + $0xe4] sm:$0xf]
  %v96 = vld [vmem:[%s1 + $0xe8] sm:$0xf]
  %v97 = vld [vmem:[%s1 + $0xec] sm:$0xf]
  %v98 = vld [vmem:[%s1 + $0xf0] sm:$0xf]
  %v99 = vld [vmem:[%s1 + $0xf4] sm:$0xf]
  %v100 = vld [vmem:[%s1 + $0xf8] sm:$0xf]
  %v101 = vld [vmem:[%s1 + $0xfc] sm:$0xf]
  %v102 = vld [vmem:[%s1 + $0x100] sm:$0xf]
  %v103 = vld [vmem:[%s1 + $0x104] sm:$0xf]
  %v104 = vld [vmem:[%s1 + $0x108] sm:$0xf]
  %v105 = vld [vmem:[%s1 + $0x10c] sm:$0xf]
  %v106 = vld [vmem:[%s1 + $0x110] sm:$0xf]
  %v107 = vld [vmem:[%s1 + $0x114] sm:$0xf]
  %v108 = vld [vmem:[%s1 + $0x118] sm:$0xf]
  %v109 = vld [vmem:[%s1 + $0x11c] sm:$0xf]
  %v110 = vld [vmem:[%s1 + $0x120] sm:$0xf]
  %v111 = vld [vmem:[%s1 + $0x124] sm:$0xf]
  %v112 = vld [vmem:[%s1 + $0x128] sm:$0xf]
  %v113 = vld [vmem:[%s1 + $0x12c] sm:$0xf]
  %v114 = vld [vmem:[%s1 + $0x130] sm:$0xf]
  %v115 = vld [vmem:[%s1 + $0x134] sm:$0xf]
  %v116 = vld [vmem:[%s1 + $0x138] sm:$0xf]
  %v117 = vld [vmem:[%s1 + $0x13c] sm:$0xf]
  %v118 = vld [vmem:[%s1 + $0x140] sm:$0xf]
  %v119 = vld [vmem:[%s1 + $0x144] sm:$0xf]
  %v120 = vld [vmem:[%s1 + $0x148] sm:$0xf]
  %v121 = vld [vmem:[%s1 + $0x14c] sm:$0xf]
  %v122 = vld [vmem:[%s1 + $0x150] sm:$0xf]
  %v123 = vld [vmem:[%s1 + $0x154] sm:$0xf]
  %v124 = vld [vmem:[%s1 + $0x158] sm:$0xf]
  %v125 = vld [vmem:[%s1 + $0x15c] sm:$0xf]
  %v126 = vld [vmem:[%s1 + $0x160] sm:$0xf]
  %v127 = vld [vmem:[%s1 + $0x164] sm:$0xf]
  %v128 = vld [vmem:[%s1 + $0x168] sm:$0xf]
  %v129 = vld [vmem:[%s1 + $0x16c] sm:$0xf]
  %v130 = vld [vmem:[%s1 + $0x170] sm:$0xf]
  %v131 = vld [vmem:[%s1 + $0x174] sm:$0xf]
  %v132 = vld [vmem:[%s1 + $0x178] sm:$0xf]
  %v133 = vld [vmem:[%s1 + $0x17c] sm:$0xf]
  %v134 = vld [vmem:[%s1 + $0x180] sm:$0xf]
  %v135 = vld [vmem:[%s1 + $0x184] sm:$0xf]
  %v136 = vld [vmem:[%s1 + $0x188] sm:$0xf]
  %v137 = vld [vmem:[%s1 + $0x18c] sm:$0xf]
  %v138 = vld [vmem:[%s1 + $0x190] sm:$0xf]
  %v139 = vld [vmem:[%s1 + $0x194] sm:$0xf]
  %v140 = vld [vmem:[%s1 + $0x198] sm:$0xf]
  %v141 = vld [vmem:[%s1 + $0x19c] sm:$0xf]
  %v142 = vld [vmem:[%s1 + $0x1a0] sm:$0xf]
  %v143 = vld [vmem:[%s1 + $0x1a4] sm:$0xf]
  %v144 = vld [vmem:[%s1 + $0x1a8] sm:$0xf]
  %v145 = vld [vmem:[%s1 + $0x1ac] sm:$0xf]
  %v146 = vld [vmem:[%s1 + $0x1b0] sm:$0xf]
  %v147 = vld [vmem:[%s1 + $0x1b4] sm:$0xf]
  %v148 = vld [vmem:[%s1 + $0x1b8] sm:$0xf]
  %v149 = vld [vmem:[%s1 + $0x1bc] sm:$0xf]
  %v150 = vld [vmem:[%s1 + $0x1c0] sm:$0xf]
  %v151 = vld [vmem:[%s1 + $0x1c4] sm:$0xf]
  %v152 = vld [vmem:[%s1 + $0x1c8] sm:$0xf]
  %v153 = vld [vmem:[%s1 + $0x1cc] sm:$0xf]
  %v154 = vld [vmem:[%s1 + $0x1d0] sm:$0xf]
  %v155 = vld [vmem:[%s1 + $0x1d4] sm:$0xf]
  %v156 = vld [vmem:[%s1 + $0x1d8] sm:$0xf]
  %v157 = vld [vmem:[%s1 + $0x1dc] sm:$0xf]
  %v158 = vld [vmem:[%s1 + $0x1e0] sm:$0xf]
  %v159 = vld [vmem:[%s1 + $0x1e4] sm:$0xf]
  %v160 = vld [vmem:[%s1 + $0x1e8] sm:$0xf]
  %v161 = vld [vmem:[%s1 + $0x1ec] sm:$0xf]
  %v162 = vld [vmem:[%s1 + $0x1f0] sm:$0xf]
  %v163 = vld [vmem:[%s1 + $0x1f4] sm:$0xf]
  %v164 = vld [vmem:[%s1 + $0x1f8] sm:$0xf]
  %v165 = vld [vmem:[%s1 + $0x1fc] sm:$0xf]
  %v166 = vld [vmem:[%s1 + $0x200] sm:$0xf]
  %v167 = vld [vmem:[%s1 + $0x204] sm:$0xf]
  %v168 = vld [vmem:[%s1 + $0x208] sm:$0xf]
  %v169 = vld [vmem:[%s1 + $0x20c] sm:$0xf]
  %v170 = vld [vmem:[%s1 + $0x210] sm:$0xf]
  %v171 = vld [vmem:[%s1 + $0x214] sm:$0xf]
  %v172 = vld [vmem:[%s1 + $0x218] sm:$0xf]
  %v173 = vld [vmem:[%s1 + $0x21c] sm:$0xf]
  %v174 = vld [vmem:[%s1 + $0x220] sm:$0xf]
  %v175 = vld [vmem:[%s1 + $0x224] sm:$0xf]
  %v176 = vld [vmem:[%s1 + $0x228] sm:$0xf]
  %v177 = vld [vmem:[%s1 + $0x22c] sm:$0xf]
  %v178 = vld [vmem:[%s1 + $0x230] sm:$0xf]
  %v179 = vld [vmem:[%s1 + $0x234] sm:$0xf]
  %v180 = vld [vmem:[%s1 + $0x238] sm:$0xf]
  %v181 = vld [vmem:[%s1 + $0x23c] sm:$0xf]
  %v182 = vld [vmem:[%s1 + $0x240] sm:$0xf]
  %v183 = vld [vmem:[%s1 + $0x244] sm:$0xf]
  %v184 = vld [vmem:[%s1 + $0x248] sm:$0xf]
  %v185 = vld [vmem:[%s1 + $0x24c] sm:$0xf]
  %v186 = vld [vmem:[%s1 + $0x250] sm:$0xf]
  %v187 = vld [vmem:[%s1 + $0x254] sm:$0xf]
  %v188 = vld [vmem:[%s1 + $0x258] sm:$0xf]
  %v189 = vld [vmem:[%s1 + $0x25c] sm:$0xf]
  %v190 = vld [vmem:[%s1 + $0x260] sm:$0xf]
  %v191 = vld [vmem:[%s1 + $0x264] sm:$0xf]
  %v192 = vld [vmem:[%s1 + $0x268] sm:$0xf]
  %v193 = vld [vmem:[%s1 + $0x26c] sm:$0xf]
  %v194 = vld [vmem:[%s1 + $0x270] sm:$0xf]
  %v195 = vld [vmem:[%s1 + $0x274] sm:$0xf]
  %v196 = vld [vmem:[%s1 + $0x278] sm:$0xf]
  %v197 = vld [vmem:[%s1 + $0x27c] sm:$0xf]
  %v198 = vld [vmem:[%s1 + $0x280] sm:$0xf]
  %v199 = vld [vmem:[%s1 + $0x284] sm:$0xf]
  %v200 = vld [vmem:[%s1 + $0x288] sm:$0xf]
  %v201 = vld [vmem:[%s1 + $0x28c] sm:$0xf]
  %v202 = vld [vmem:[%s1 + $0x290] sm:$0xf]
  %v203 = vld [vmem:[%s1 + $0x294] sm:$0xf]
  %v204 = vld [vmem:[%s1 + $0x298] sm:$0xf]
  %v205 = vld [vmem:[%s1 + $0x29c] sm:$0xf]
  %v206 = vld [vmem:[%s1 + $0x2a0] sm:$0xf]
  %v207 = vld [vmem:[%s1 + $0x2a4] sm:$0xf]
  %v208 = vld [vmem:[%s1 + $0x2a8] sm:$0xf]
  %v209 = vld [vmem:[%s1 + $0x2ac] sm:$0xf]
  %v210 = vld [vmem:[%s1 + $0x2b0] sm:$0xf]
  %v211 = vld [vmem:[%s1 + $0x2b4] sm:$0xf]
  %v212 = vld [vmem:[%s1 + $0x2b8] sm:$0xf]
  %v213 = vld [vmem:[%s1 + $0x2bc] sm:$0xf]
  %v214 = vld [vmem:[%s1 + $0x2c0] sm:$0xf]
  %v215 = vld [vmem:[%s1 + $0x2c4] sm:$0xf]
  %v216 = vld [vmem:[%s1 + $0x2c8] sm:$0xf]
  %v217 = vld [vmem:[%s1 + $0x2cc] sm:$0xf]
  %v218 = vld [vmem:[%s1 + $0x2d0] sm:$0xf]
  %v219 = vld [vmem:[%s1 + $0x2d4] sm:$0xf]
  %v220 = vld [vmem:[%s1 + $0x2d8] sm:$0xf]
  %v221 = vld [vmem:[%s1 + $0x2dc] sm:$0xf]
  %v222 = vld [vmem:[%s1 + $0x2e0] sm:$0xf]
  %v223 = vld [vmem:[%s1 + $0x2e4] sm:$0xf]
  %v224 = vld [vmem:[%s1 + $0x2e8] sm:$0xf]
  %v225 = vld [vmem:[%s1 + $0x2ec] sm:$0xf]
  %v226 = vld [vmem:[%s1 + $0x2f0] sm:$0xf]
  %v227 = vld [vmem:[%s1 + $0x2f4] sm:$0xf]
  %v228 = vld [vmem:[%s1 + $0x2f8] sm:$0xf]
  %v229 = vld [vmem:[%s1 + $0x2fc] sm:$0xf]
  %v230 = vld [vmem:[%s1 + $0x300] sm:$0xf]
  %v231 = vld [vmem:[%s1 + $0x304] sm:$0xf]
  %v232 = vld [vmem:[%s1 + $0x308] sm:$0xf]
  %v233 = vld [vmem:[%s1 + $0x30c] sm:$0xf]
  %v234 = vld [vmem:[%s1 + $0x310] sm:$0xf]
  %v235 = vld [vmem:[%s1 + $0x314] sm:$0xf]
  %v236 = vld [vmem:[%s1 + $0x318] sm:$0xf]
  %v237 = vld [vmem:[%s1 + $0x31c] sm:$0xf]
  %v238 = vld [vmem:[%s1 + $0x320] sm:$0xf]
  %v239 = vld [vmem:[%s1 + $0x324] sm:$0xf]
  %v240 = vld [vmem:[%s1 + $0x328] sm:$0xf]
  %v241 = vld [vmem:[%s1 + $0x32c] sm:$0xf]
  %v242 = vld [vmem:[%s1 + $0x330] sm:$0xf]
  %v243 = vld [vmem:[%s1 + $0x334] sm:$0xf]
  %v244 = vld [vmem:[%s1 + $0x338] sm:$0xf]
  %v245 = vld [vmem:[%s1 + $0x33c] sm:$0xf]
  %v246 = vld [vmem:[%s1 + $0x340] sm:$0xf]
  %v247 = vld [vmem:[%s1 + $0x344] sm:$0xf]
  %v248 = vld [vmem:[%s1 + $0x348] sm:$0xf]
  %v249 = vld [vmem:[%s1 + $0x34c] sm:$0xf]
  %v250 = vld [vmem:[%s1 + $0x350] sm:$0xf]
  %v251 = vld [vmem:[%s1 + $0x354] sm:$0xf]
  %v252 = vld [vmem:[%s1 + $0x358] sm:$0xf]
  %v253 = vld [vmem:[%s1 + $0x35c] sm:$0xf]
  %v254 = vld [vmem:[%s1 + $0x360] sm:$0xf]
  %v255 = vld [vmem:[%s1 + $0x364] sm:$0xf]
  %v256 = vld [vmem:[%s1 + $0x368] sm:$0xf]
  %v257 = vld [vmem:[%s1 + $0x36c] sm:$0xf]
  %v258 = vld [vmem:[%s1 + $0x370] sm:$0xf]
  %v259 = vld [vmem:[%s1 + $0x374] sm:$0xf]
  %v260 = vld [vmem:[%s1 + $0x378] sm:$0xf]
  %v261 = vld [vmem:[%s1 + $0x37c] sm:$0xf]
  %v262 = vld [vmem:[%s1 + $0x380] sm:$0xf]
  %v263 = vld [vmem:[%s1 + $0x384] sm:$0xf]
  %v264 = vld [vmem:[%s1 + $0x388] sm:$0xf]
  %v265 = vld [vmem:[%s1 + $0x38c] sm:$0xf]
  %v266 = vld [vmem:[%s1 + $0x390] sm:$0xf]
  %v267 = vld [vmem:[%s1 + $0x394] sm:$0xf]
  %v268 = vld [vmem:[%s1 + $0x398] sm:$0xf]
  %v269 = vld [vmem:[%s1 + $0x39c] sm:$0xf]
  %v270 = vld [vmem:[%s1 + $0x3a0] sm:$0xf]
  %v271 = vld [vmem:[%s1 + $0x3a4] sm:$0xf]
  %v272 = vld [vmem:[%s1 + $0x3a8] sm:$0xf]
  %v273 = vld [vmem:[%s1 + $0x3ac] sm:$0xf]
  %v274 = vld [vmem:[%s1 + $0x3b0] sm:$0xf]
  %v275 = vld [vmem:[%s1 + $0x3b4] sm:$0xf]
  %v276 = vld [vmem:[%s1 + $0x3b8] sm:$0xf]
  %v277 = vld [vmem:[%s1 + $0x3bc] sm:$0xf]
  %v278 = vld [vmem:[%s1 + $0x3c0] sm:$0xf]
  %v279 = vld [vmem:[%s1 + $0x3c4] sm:$0xf]
  %v280 = vld [vmem:[%s1 + $0x3c8] sm:$0xf]
  %v281 = vld [vmem:[%s1 + $0x3cc] sm:$0xf]
  %v282 = vld [vmem:[%s1 + $0x3d0] sm:$0xf]
  %v283 = vld [vmem:[%s1 + $0x3d4] sm:$0xf]
  %v284 = vld [vmem:[%s1 + $0x3d8] sm:$0xf]
  %v285 = vld [vmem:[%s1 + $0x3dc] sm:$0xf]
  %v286 = vld [vmem:[%s1 + $0x3e0] sm:$0xf]
  %v287 = vld [vmem:[%s1 + $0x3e4] sm:$0xf]
  %v288 = vld [vmem:[%s1 + $0x3e8] sm:$0xf]
  %v289 = vld [vmem:[%s1 + $0x3ec] sm:$0xf]
  %v290 = vld [vmem:[%s1 + $0x3f0] sm:$0xf]
  %v291 = vld [vmem:[%s1 + $0x3f4] sm:$0xf]
  %v292 = vld [vmem:[%s1 + $0x3f8] sm:$0xf]
  %v293 = vld [vmem:[%s1 + $0x3fc] sm:$0xf]
  %v318 = vunpack.c.l.b16 %v14
  %v319 = vunpack.c.h.b16 %v14
  %v320 = vunpack.c.l.b16 %v15
  %v321 = vunpack.c.h.b16 %v15
  %v322 = vunpack.c.l.b16 %v16
  %v323 = vunpack.c.h.b16 %v16
  %v324 = vunpack.c.l.b16 %v17
  %v325 = vunpack.c.h.b16 %v17
  %v326 = vunpack.c.l.b16 %v18
  %v327 = vunpack.c.h.b16 %v18
  %v328 = vunpack.c.l.b16 %v19
  %v329 = vunpack.c.h.b16 %v19
  %v330 = vunpack.c.l.b16 %v20
  %v331 = vunpack.c.h.b16 %v20
  %v332 = vunpack.c.l.b16 %v21
  %v333 = vunpack.c.h.b16 %v21
  %v334 = vunpack.c.l.b16 %v22
  %v335 = vunpack.c.h.b16 %v22
  %v336 = vunpack.c.l.b16 %v23
  %v337 = vunpack.c.h.b16 %v23
  %v338 = vunpack.c.l.b16 %v24
  %v339 = vunpack.c.h.b16 %v24
  %v340 = vunpack.c.l.b16 %v25
  %v341 = vunpack.c.h.b16 %v25
  %v342 = vunpack.c.l.b16 %v26
  %v343 = vunpack.c.h.b16 %v26
  %v344 = vunpack.c.l.b16 %v27
  %v345 = vunpack.c.h.b16 %v27
  %v346 = vunpack.c.l.b16 %v28
  %v347 = vunpack.c.h.b16 %v28
  %v348 = vunpack.c.l.b16 %v29
  %v349 = vunpack.c.h.b16 %v29
  %v350 = vunpack.c.l.b16 %v30
  %v351 = vunpack.c.h.b16 %v30
  %v352 = vunpack.c.l.b16 %v31
  %v353 = vunpack.c.h.b16 %v31
  %v354 = vunpack.c.l.b16 %v32
  %v355 = vunpack.c.h.b16 %v32
  %v356 = vunpack.c.l.b16 %v33
  %v357 = vunpack.c.h.b16 %v33
  %v358 = vunpack.c.l.b16 %v34
  %v359 = vunpack.c.h.b16 %v34
  %v360 = vunpack.c.l.b16 %v35
  %v361 = vunpack.c.h.b16 %v35
  %v362 = vunpack.c.l.b16 %v36
  %v363 = vunpack.c.h.b16 %v36
  %v364 = vunpack.c.l.b16 %v37
  %v365 = vunpack.c.h.b16 %v37
  %v366 = vpack.c.b16 %v334, %v318
  %v367 = vpack.c.b16 %v335, %v319
  %v368 = vpack.c.b16 %v336, %v320
  %v369 = vpack.c.b16 %v337, %v321
  %v370 = vpack.c.b16 %v338, %v322
  %v371 = vpack.c.b16 %v339, %v323
  %v372 = vpack.c.b16 %v340, %v324
  %v373 = vpack.c.b16 %v341, %v325
  %v374 = vpack.c.b16 %v342, %v326
  %v375 = vpack.c.b16 %v343, %v327
  %v376 = vpack.c.b16 %v344, %v328
  %v377 = vpack.c.b16 %v345, %v329
  %v378 = vpack.c.b16 %v346, %v330
  %v379 = vpack.c.b16 %v347, %v331
  %v380 = vpack.c.b16 %v348, %v332
  %v381 = vpack.c.b16 %v349, %v333
  %v382 = vpack.c.b16 %v350, %v350
  %v383 = vpack.c.b16 %v351, %v351
  %v384 = vpack.c.b16 %v352, %v352
  %v385 = vpack.c.b16 %v353, %v353
  %v386 = vpack.c.b16 %v354, %v354
  %v387 = vpack.c.b16 %v355, %v355
  %v388 = vpack.c.b16 %v356, %v356
  %v389 = vpack.c.b16 %v357, %v357
  %v390 = vpack.c.b16 %v358, %v358
  %v391 = vpack.c.b16 %v359, %v359
  %v392 = vpack.c.b16 %v360, %v360
  %v393 = vpack.c.b16 %v361, %v361
  %v394 = vpack.c.b16 %v362, %v362
  %v395 = vpack.c.b16 %v363, %v363
  %v396 = vpack.c.b16 %v364, %v364
  %v397 = vpack.c.b16 %v365, %v365
  %v686 = vunpack.c.l.b16 %v38
  %v687 = vunpack.c.l.b16 %v39
  %v688 = vunpack.c.l.b16 %v40
  %v689 = vunpack.c.l.b16 %v41
  %v690 = vunpack.c.l.b16 %v42
  %v691 = vunpack.c.l.b16 %v43
  %v692 = vunpack.c.l.b16 %v44
  %v693 = vunpack.c.l.b16 %v45
  %v694 = vunpack.c.l.b16 %v46
  %v695 = vunpack.c.l.b16 %v47
  %v696 = vunpack.c.l.b16 %v48
  %v697 = vunpack.c.l.b16 %v49
  %v698 = vunpack.c.l.b16 %v50
  %v699 = vunpack.c.l.b16 %v51
  %v700 = vunpack.c.l.b16 %v52
  %v701 = vunpack.c.l.b16 %v53
  %v702 = vunpack.c.l.b16 %v54
  %v703 = vunpack.c.l.b16 %v55
  %v704 = vunpack.c.l.b16 %v56
  %v705 = vunpack.c.l.b16 %v57
  %v706 = vunpack.c.l.b16 %v58
  %v707 = vunpack.c.l.b16 %v59
  %v708 = vunpack.c.l.b16 %v60
  %v709 = vunpack.c.l.b16 %v61
  %v710 = vunpack.c.l.b16 %v62
  %v711 = vunpack.c.l.b16 %v63
  %v712 = vunpack.c.l.b16 %v64
  %v713 = vunpack.c.l.b16 %v65
  %v714 = vunpack.c.l.b16 %v66
  %v715 = vunpack.c.l.b16 %v67
  %v716 = vunpack.c.l.b16 %v68
  %v717 = vunpack.c.l.b16 %v69
  %v718 = vunpack.c.l.b16 %v70
  %v719 = vunpack.c.l.b16 %v71
  %v720 = vunpack.c.l.b16 %v72
  %v721 = vunpack.c.l.b16 %v73
  %v722 = vunpack.c.l.b16 %v74
  %v723 = vunpack.c.l.b16 %v75
  %v724 = vunpack.c.l.b16 %v76
  %v725 = vunpack.c.l.b16 %v77
  %v726 = vunpack.c.l.b16 %v78
  %v727 = vunpack.c.l.b16 %v79
  %v728 = vunpack.c.l.b16 %v80
  %v729 = vunpack.c.l.b16 %v81
  %v730 = vunpack.c.l.b16 %v82
  %v731 = vunpack.c.l.b16 %v83
  %v732 = vunpack.c.l.b16 %v84
  %v733 = vunpack.c.l.b16 %v85
  %v734 = vunpack.c.l.b16 %v86
  %v735 = vunpack.c.l.b16 %v87
  %v736 = vunpack.c.l.b16 %v88
  %v737 = vunpack.c.l.b16 %v89
  %v738 = vunpack.c.l.b16 %v90
  %v739 = vunpack.c.l.b16 %v91
  %v740 = vunpack.c.l.b16 %v92
  %v741 = vunpack.c.l.b16 %v93
  %v742 = vunpack.c.l.b16 %v94
  %v743 = vunpack.c.l.b16 %v95
  %v744 = vunpack.c.l.b16 %v96
  %v745 = vunpack.c.l.b16 %v97
  %v746 = vunpack.c.l.b16 %v98
  %v747 = vunpack.c.l.b16 %v99
  %v748 = vunpack.c.l.b16 %v100
  %v749 = vunpack.c.l.b16 %v101
  %v750 = vunpack.c.l.b16 %v102
  %v751 = vunpack.c.l.b16 %v103
  %v752 = vunpack.c.l.b16 %v104
  %v753 = vunpack.c.l.b16 %v105
  %v754 = vunpack.c.l.b16 %v106
  %v755 = vunpack.c.l.b16 %v107
  %v756 = vunpack.c.l.b16 %v108
  %v757 = vunpack.c.l.b16 %v109
  %v758 = vunpack.c.l.b16 %v110
  %v759 = vunpack.c.l.b16 %v111
  %v760 = vunpack.c.l.b16 %v112
  %v761 = vunpack.c.l.b16 %v113
  %v762 = vunpack.c.l.b16 %v114
  %v763 = vunpack.c.l.b16 %v115
  %v764 = vunpack.c.l.b16 %v116
  %v765 = vunpack.c.l.b16 %v117
  %v766 = vunpack.c.l.b16 %v118
  %v767 = vunpack.c.l.b16 %v119
  %v768 = vunpack.c.l.b16 %v120
  %v769 = vunpack.c.l.b16 %v121
  %v770 = vunpack.c.l.b16 %v122
  %v771 = vunpack.c.l.b16 %v123
  %v772 = vunpack.c.l.b16 %v124
  %v773 = vunpack.c.l.b16 %v125
  %v774 = vunpack.c.l.b16 %v126
  %v775 = vunpack.c.l.b16 %v127
  %v776 = vunpack.c.l.b16 %v128
  %v777 = vunpack.c.l.b16 %v129
  %v778 = vunpack.c.l.b16 %v130
  %v779 = vunpack.c.l.b16 %v131
  %v780 = vunpack.c.l.b16 %v132
  %v781 = vunpack.c.l.b16 %v133
  %v782 = vunpack.c.l.b16 %v134
  %v783 = vunpack.c.l.b16 %v135
  %v784 = vunpack.c.l.b16 %v136
  %v785 = vunpack.c.l.b16 %v137
  %v786 = vunpack.c.l.b16 %v138
  %v787 = vunpack.c.l.b16 %v139
  %v788 = vunpack.c.l.b16 %v140
  %v789 = vunpack.c.l.b16 %v141
  %v790 = vunpack.c.l.b16 %v142
  %v791 = vunpack.c.l.b16 %v143
  %v792 = vunpack.c.l.b16 %v144
  %v793 = vunpack.c.l.b16 %v145
  %v794 = vunpack.c.l.b16 %v146
  %v795 = vunpack.c.l.b16 %v147
  %v796 = vunpack.c.l.b16 %v148
  %v797 = vunpack.c.l.b16 %v149
  %v798 = vunpack.c.l.b16 %v150
  %v799 = vunpack.c.l.b16 %v151
  %v800 = vunpack.c.l.b16 %v152
  %v801 = vunpack.c.l.b16 %v153
  %v802 = vunpack.c.l.b16 %v154
  %v803 = vunpack.c.l.b16 %v155
  %v804 = vunpack.c.l.b16 %v156
  %v805 = vunpack.c.l.b16 %v157
  %v806 = vunpack.c.l.b16 %v158
  %v807 = vunpack.c.l.b16 %v159
  %v808 = vunpack.c.l.b16 %v160
  %v809 = vunpack.c.l.b16 %v161
  %v810 = vunpack.c.l.b16 %v162
  %v811 = vunpack.c.l.b16 %v163
  %v812 = vunpack.c.l.b16 %v164
  %v813 = vunpack.c.l.b16 %v165
  %v814 = vunpack.c.l.b16 %v166
  %v815 = vunpack.c.l.b16 %v167
  %v816 = vunpack.c.l.b16 %v168
  %v817 = vunpack.c.l.b16 %v169
  %v818 = vunpack.c.l.b16 %v170
  %v819 = vunpack.c.l.b16 %v171
  %v820 = vunpack.c.l.b16 %v172
  %v821 = vunpack.c.l.b16 %v173
  %v822 = vunpack.c.l.b16 %v174
  %v823 = vunpack.c.l.b16 %v175
  %v824 = vunpack.c.l.b16 %v176
  %v825 = vunpack.c.l.b16 %v177
  %v826 = vunpack.c.l.b16 %v178
  %v827 = vunpack.c.l.b16 %v179
  %v828 = vunpack.c.l.b16 %v180
  %v829 = vunpack.c.l.b16 %v181
  %v830 = vunpack.c.l.b16 %v182
  %v831 = vunpack.c.l.b16 %v183
  %v832 = vunpack.c.l.b16 %v184
  %v833 = vunpack.c.l.b16 %v185
  %v834 = vunpack.c.l.b16 %v186
  %v835 = vunpack.c.l.b16 %v187
  %v836 = vunpack.c.l.b16 %v188
  %v837 = vunpack.c.l.b16 %v189
  %v838 = vunpack.c.l.b16 %v190
  %v839 = vunpack.c.l.b16 %v191
  %v840 = vunpack.c.l.b16 %v192
  %v841 = vunpack.c.l.b16 %v193
  %v842 = vunpack.c.l.b16 %v194
  %v843 = vunpack.c.l.b16 %v195
  %v844 = vunpack.c.l.b16 %v196
  %v845 = vunpack.c.l.b16 %v197
  %v846 = vunpack.c.l.b16 %v198
  %v847 = vunpack.c.l.b16 %v199
  %v848 = vunpack.c.l.b16 %v200
  %v849 = vunpack.c.l.b16 %v201
  %v850 = vunpack.c.l.b16 %v202
  %v851 = vunpack.c.l.b16 %v203
  %v852 = vunpack.c.l.b16 %v204
  %v853 = vunpack.c.l.b16 %v205
  %v854 = vunpack.c.l.b16 %v206
  %v855 = vunpack.c.l.b16 %v207
  %v856 = vunpack.c.l.b16 %v208
  %v857 = vunpack.c.l.b16 %v209
  %v858 = vunpack.c.l.b16 %v210
  %v859 = vunpack.c.l.b16 %v211
  %v860 = vunpack.c.l.b16 %v212
  %v861 = vunpack.c.l.b16 %v213
  %v862 = vunpack.c.l.b16 %v214
  %v863 = vunpack.c.l.b16 %v215
  %v864 = vunpack.c.l.b16 %v216
  %v865 = vunpack.c.l.b16 %v217
  %v866 = vunpack.c.l.b16 %v218
  %v867 = vunpack.c.l.b16 %v219
  %v868 = vunpack.c.l.b16 %v220
  %v869 = vunpack.c.l.b16 %v221
  %v870 = vunpack.c.l.b16 %v222
  %v871 = vunpack.c.l.b16 %v223
  %v872 = vunpack.c.l.b16 %v224
  %v873 = vunpack.c.l.b16 %v225
  %v874 = vunpack.c.l.b16 %v226
  %v875 = vunpack.c.l.b16 %v227
  %v876 = vunpack.c.l.b16 %v228
  %v877 = vunpack.c.l.b16 %v229
  %v878 = vunpack.c.l.b16 %v230
  %v879 = vunpack.c.l.b16 %v231
  %v880 = vunpack.c.l.b16 %v232
  %v881 = vunpack.c.l.b16 %v233
  %v882 = vunpack.c.l.b16 %v234
  %v883 = vunpack.c.l.b16 %v235
  %v884 = vunpack.c.l.b16 %v236
  %v885 = vunpack.c.l.b16 %v237
  %v886 = vunpack.c.l.b16 %v238
  %v887 = vunpack.c.l.b16 %v239
  %v888 = vunpack.c.l.b16 %v240
  %v889 = vunpack.c.l.b16 %v241
  %v890 = vunpack.c.l.b16 %v242
  %v891 = vunpack.c.l.b16 %v243
  %v892 = vunpack.c.l.b16 %v244
  %v893 = vunpack.c.l.b16 %v245
  %v894 = vunpack.c.l.b16 %v246
  %v895 = vunpack.c.l.b16 %v247
  %v896 = vunpack.c.l.b16 %v248
  %v897 = vunpack.c.l.b16 %v249
  %v898 = vunpack.c.l.b16 %v250
  %v899 = vunpack.c.l.b16 %v251
  %v900 = vunpack.c.l.b16 %v252
  %v901 = vunpack.c.l.b16 %v253
  %v902 = vunpack.c.l.b16 %v254
  %v903 = vunpack.c.l.b16 %v255
  %v904 = vunpack.c.l.b16 %v256
  %v905 = vunpack.c.l.b16 %v257
  %v906 = vunpack.c.l.b16 %v258
  %v907 = vunpack.c.l.b16 %v259
  %v908 = vunpack.c.l.b16 %v260
  %v909 = vunpack.c.l.b16 %v261
  %v910 = vunpack.c.l.b16 %v262
  %v911 = vunpack.c.l.b16 %v263
  %v912 = vunpack.c.l.b16 %v264
  %v913 = vunpack.c.l.b16 %v265
  %v914 = vunpack.c.l.b16 %v266
  %v915 = vunpack.c.l.b16 %v267
  %v916 = vunpack.c.l.b16 %v268
  %v917 = vunpack.c.l.b16 %v269
  %v918 = vunpack.c.l.b16 %v270
  %v919 = vunpack.c.l.b16 %v271
  %v920 = vunpack.c.l.b16 %v272
  %v921 = vunpack.c.l.b16 %v273
  %v922 = vunpack.c.l.b16 %v274
  %v923 = vunpack.c.l.b16 %v275
  %v924 = vunpack.c.l.b16 %v276
  %v925 = vunpack.c.l.b16 %v277
  %v926 = vunpack.c.l.b16 %v278
  %v927 = vunpack.c.l.b16 %v279
  %v928 = vunpack.c.l.b16 %v280
  %v929 = vunpack.c.l.b16 %v281
  %v930 = vunpack.c.l.b16 %v282
  %v931 = vunpack.c.l.b16 %v283
  %v932 = vunpack.c.l.b16 %v284
  %v933 = vunpack.c.l.b16 %v285
  %v934 = vunpack.c.l.b16 %v286
  %v935 = vunpack.c.l.b16 %v287
  %v936 = vunpack.c.l.b16 %v288
  %v937 = vunpack.c.l.b16 %v289
  %v938 = vunpack.c.l.b16 %v290
  %v939 = vunpack.c.l.b16 %v291
  %v940 = vunpack.c.l.b16 %v292
  %v941 = vunpack.c.l.b16 %v293
  %v942 = vpack.c.b16 %v687, %v686
  %v943 = vpack.c.b16 %v689, %v688
  %v944 = vpack.c.b16 %v691, %v690
  %v945 = vpack.c.b16 %v693, %v692
  %v946 = vpack.c.b16 %v695, %v694
  %v947 = vpack.c.b16 %v697, %v696
  %v948 = vpack.c.b16 %v699, %v698
  %v949 = vpack.c.b16 %v701, %v700
  %v950 = vpack.c.b16 %v703, %v702
  %v951 = vpack.c.b16 %v705, %v704
  %v952 = vpack.c.b16 %v707, %v706
  %v953 = vpack.c.b16 %v709, %v708
  %v954 = vpack.c.b16 %v711, %v710
  %v955 = vpack.c.b16 %v713, %v712
  %v956 = vpack.c.b16 %v715, %v714
  %v957 = vpack.c.b16 %v717, %v716
  %v958 = vpack.c.b16 %v719, %v718
  %v959 = vpack.c.b16 %v721, %v720
  %v960 = vpack.c.b16 %v723, %v722
  %v961 = vpack.c.b16 %v725, %v724
  %v962 = vpack.c.b16 %v727, %v726
  %v963 = vpack.c.b16 %v729, %v728
  %v964 = vpack.c.b16 %v731, %v730
  %v965 = vpack.c.b16 %v733, %v732
  %v966 = vpack.c.b16 %v735, %v734
  %v967 = vpack.c.b16 %v737, %v736
  %v968 = vpack.c.b16 %v739, %v738
  %v969 = vpack.c.b16 %v741, %v740
  %v970 = vpack.c.b16 %v743, %v742
  %v971 = vpack.c.b16 %v745, %v744
  %v972 = vpack.c.b16 %v747, %v746
  %v973 = vpack.c.b16 %v749, %v748
  %v974 = vpack.c.b16 %v751, %v750
  %v975 = vpack.c.b16 %v753, %v752
  %v976 = vpack.c.b16 %v755, %v754
  %v977 = vpack.c.b16 %v757, %v756
  %v978 = vpack.c.b16 %v759, %v758
  %v979 = vpack.c.b16 %v761, %v760
  %v980 = vpack.c.b16 %v763, %v762
  %v981 = vpack.c.b16 %v765, %v764
  %v982 = vpack.c.b16 %v767, %v766
  %v983 = vpack.c.b16 %v769, %v768
  %v984 = vpack.c.b16 %v771, %v770
  %v985 = vpack.c.b16 %v773, %v772
  %v986 = vpack.c.b16 %v775, %v774
  %v987 = vpack.c.b16 %v777, %v776
  %v988 = vpack.c.b16 %v779, %v778
  %v989 = vpack.c.b16 %v781, %v780
  %v990 = vpack.c.b16 %v783, %v782
  %v991 = vpack.c.b16 %v785, %v784
  %v992 = vpack.c.b16 %v787, %v786
  %v993 = vpack.c.b16 %v789, %v788
  %v994 = vpack.c.b16 %v791, %v790
  %v995 = vpack.c.b16 %v793, %v792
  %v996 = vpack.c.b16 %v795, %v794
  %v997 = vpack.c.b16 %v797, %v796
  %v998 = vpack.c.b16 %v799, %v798
  %v999 = vpack.c.b16 %v801, %v800
  %v1000 = vpack.c.b16 %v803, %v802
  %v1001 = vpack.c.b16 %v805, %v804
  %v1002 = vpack.c.b16 %v807, %v806
  %v1003 = vpack.c.b16 %v809, %v808
  %v1004 = vpack.c.b16 %v811, %v810
  %v1005 = vpack.c.b16 %v813, %v812
  %v1006 = vpack.c.b16 %v815, %v814
  %v1007 = vpack.c.b16 %v817, %v816
  %v1008 = vpack.c.b16 %v819, %v818
  %v1009 = vpack.c.b16 %v821, %v820
  %v1010 = vpack.c.b16 %v823, %v822
  %v1011 = vpack.c.b16 %v825, %v824
  %v1012 = vpack.c.b16 %v827, %v826
  %v1013 = vpack.c.b16 %v829, %v828
  %v1014 = vpack.c.b16 %v831, %v830
  %v1015 = vpack.c.b16 %v833, %v832
  %v1016 = vpack.c.b16 %v835, %v834
  %v1017 = vpack.c.b16 %v837, %v836
  %v1018 = vpack.c.b16 %v839, %v838
  %v1019 = vpack.c.b16 %v841, %v840
  %v1020 = vpack.c.b16 %v843, %v842
  %v1021 = vpack.c.b16 %v845, %v844
  %v1022 = vpack.c.b16 %v847, %v846
  %v1023 = vpack.c.b16 %v849, %v848
  %v1024 = vpack.c.b16 %v851, %v850
  %v1025 = vpack.c.b16 %v853, %v852
  %v1026 = vpack.c.b16 %v855, %v854
  %v1027 = vpack.c.b16 %v857, %v856
  %v1028 = vpack.c.b16 %v859, %v858
  %v1029 = vpack.c.b16 %v861, %v860
  %v1030 = vpack.c.b16 %v863, %v862
  %v1031 = vpack.c.b16 %v865, %v864
  %v1032 = vpack.c.b16 %v867, %v866
  %v1033 = vpack.c.b16 %v869, %v868
  %v1034 = vpack.c.b16 %v871, %v870
  %v1035 = vpack.c.b16 %v873, %v872
  %v1036 = vpack.c.b16 %v875, %v874
  %v1037 = vpack.c.b16 %v877, %v876
  %v1038 = vpack.c.b16 %v879, %v878
  %v1039 = vpack.c.b16 %v881, %v880
  %v1040 = vpack.c.b16 %v883, %v882
  %v1041 = vpack.c.b16 %v885, %v884
  %v1042 = vpack.c.b16 %v887, %v886
  %v1043 = vpack.c.b16 %v889, %v888
  %v1044 = vpack.c.b16 %v891, %v890
  %v1045 = vpack.c.b16 %v893, %v892
  %v1046 = vpack.c.b16 %v895, %v894
  %v1047 = vpack.c.b16 %v897, %v896
  %v1048 = vpack.c.b16 %v899, %v898
  %v1049 = vpack.c.b16 %v901, %v900
  %v1050 = vpack.c.b16 %v903, %v902
  %v1051 = vpack.c.b16 %v905, %v904
  %v1052 = vpack.c.b16 %v907, %v906
  %v1053 = vpack.c.b16 %v909, %v908
  %v1054 = vpack.c.b16 %v911, %v910
  %v1055 = vpack.c.b16 %v913, %v912
  %v1056 = vpack.c.b16 %v915, %v914
  %v1057 = vpack.c.b16 %v917, %v916
  %v1058 = vpack.c.b16 %v919, %v918
  %v1059 = vpack.c.b16 %v921, %v920
  %v1060 = vpack.c.b16 %v923, %v922
  %v1061 = vpack.c.b16 %v925, %v924
  %v1062 = vpack.c.b16 %v927, %v926
  %v1063 = vpack.c.b16 %v929, %v928
  %v1064 = vpack.c.b16 %v931, %v930
  %v1065 = vpack.c.b16 %v933, %v932
  %v1066 = vpack.c.b16 %v935, %v934
  %v1067 = vpack.c.b16 %v937, %v936
  %v1068 = vpack.c.b16 %v939, %v938
  %v1069 = vpack.c.b16 %v941, %v940
  %1198 = vmatprep.subr.bf16.mxu0 0
  %1199 = vmatpush1.bf16.msra.mxu0 %v942
  %1200 = vmatprep.subr.bf16.mxu0 0
  %1201 = vmatpush1.bf16.msra.mxu0 %v943
  %1202 = vmatprep.subr.bf16.mxu0 0
  %1203 = vmatpush1.bf16.msra.mxu0 %v944
  %1204 = vmatprep.subr.bf16.mxu0 0
  %1205 = vmatpush1.bf16.msra.mxu0 %v945
  %1206 = vmatprep.subr.bf16.mxu0 0
  %1207 = vmatpush1.bf16.msra.mxu0 %v946
  %1208 = vmatprep.subr.bf16.mxu0 0
  %1209 = vmatpush1.bf16.msra.mxu0 %v947
  %1210 = vmatprep.subr.bf16.mxu0 0
  %1211 = vmatpush1.bf16.msra.mxu0 %v948
  %1212 = vmatprep.subr.bf16.mxu0 0
  %1213 = vmatpush1.bf16.msra.mxu0 %v949
  %1214 = vmatprep.subr.bf16.mxu0 0
  %1215 = vmatpush1.bf16.msra.mxu0 %v950
  %1216 = vmatprep.subr.bf16.mxu0 0
  %1217 = vmatpush1.bf16.msra.mxu0 %v951
  %1218 = vmatprep.subr.bf16.mxu0 0
  %1219 = vmatpush1.bf16.msra.mxu0 %v952
  %1220 = vmatprep.subr.bf16.mxu0 0
  %1221 = vmatpush1.bf16.msra.mxu0 %v953
  %1222 = vmatprep.subr.bf16.mxu0 0
  %1223 = vmatpush1.bf16.msra.mxu0 %v954
  %1224 = vmatprep.subr.bf16.mxu0 0
  %1225 = vmatpush1.bf16.msra.mxu0 %v955
  %1226 = vmatprep.subr.bf16.mxu0 0
  %1227 = vmatpush1.bf16.msra.mxu0 %v956
  %1228 = vmatprep.subr.bf16.mxu0 0
  %1229 = vmatpush1.bf16.msra.mxu0 %v957
  %1230 = vmatprep.mubr.bf16.mxu0 %v367
  %1231 = vmatmul.mubr.bf16.gmra.mrb[0].mxu0 %v366
  %v1232 = vpop.f32.mrb[0].mxu0
  %v1233 = vadd.f32 0.0, %v1232
  %v1234 = vpop.f32.mrb[0].mxu0
  %v1235 = vpop.f32.mrb[0].mxu0
  %v1236 = vadd.f32 0.0, %v1235
  %v1237 = vpop.f32.mrb[0].mxu0
  %1238 = vmatprep.mubr.bf16.mxu0 %v383
  %1239 = vmatmul.mubr.bf16.gmra.mrb[0].mxu0 %v382
  %v1240 = vpop.f32.mrb[0].mxu0
  %v1241 = vadd.f32 0.0, %v1240
  %v1242 = vpop.f32.mrb[0].mxu0
  %v1243 = vpop.f32.mrb[0].mxu0
  %v1244 = vpop.f32.mrb[0].mxu0
  %1245 = vdwg.mxu0
  %1246 = vmatprep.subr.bf16.mxu0 0
  %1247 = vmatpush1.bf16.msra.mxu0 %v958
  %1248 = vmatprep.subr.bf16.mxu0 0
  %1249 = vmatpush1.bf16.msra.mxu0 %v959
  %1250 = vmatprep.subr.bf16.mxu0 0
  %1251 = vmatpush1.bf16.msra.mxu0 %v960
  %1252 = vmatprep.subr.bf16.mxu0 0
  %1253 = vmatpush1.bf16.msra.mxu0 %v961
  %1254 = vmatprep.subr.bf16.mxu0 0
  %1255 = vmatpush1.bf16.msra.mxu0 %v962
  %1256 = vmatprep.subr.bf16.mxu0 0
  %1257 = vmatpush1.bf16.msra.mxu0 %v963
  %1258 = vmatprep.subr.bf16.mxu0 0
  %1259 = vmatpush1.bf16.msra.mxu0 %v964
  %1260 = vmatprep.subr.bf16.mxu0 0
  %1261 = vmatpush1.bf16.msra.mxu0 %v965
  %1262 = vmatprep.subr.bf16.mxu0 0
  %1263 = vmatpush1.bf16.msra.mxu0 %v966
  %1264 = vmatprep.subr.bf16.mxu0 0
  %1265 = vmatpush1.bf16.msra.mxu0 %v967
  %1266 = vmatprep.subr.bf16.mxu0 0
  %1267 = vmatpush1.bf16.msra.mxu0 %v968
  %1268 = vmatprep.subr.bf16.mxu0 0
  %1269 = vmatpush1.bf16.msra.mxu0 %v969
  %1270 = vmatprep.subr.bf16.mxu0 0
  %1271 = vmatpush1.bf16.msra.mxu0 %v970
  %1272 = vmatprep.subr.bf16.mxu0 0
  %1273 = vmatpush1.bf16.msra.mxu0 %v971
  %1274 = vmatprep.subr.bf16.mxu0 0
  %1275 = vmatpush1.bf16.msra.mxu0 %v972
  %1276 = vmatprep.subr.bf16.mxu0 0
  %1277 = vmatpush1.bf16.msra.mxu0 %v973
  %1278 = vmatprep.mubr.bf16.mxu0 %v369
  %1279 = vmatmul.mubr.bf16.gmra.mrb[0].mxu0 %v368
  %v1280 = vpop.f32.mrb[0].mxu0
  %v1281 = vadd.f32 %v1233, %v1280
  %v1282 = vpop.f32.mrb[0].mxu0
  %v1283 = vpop.f32.mrb[0].mxu0
  %v1284 = vadd.f32 %v1236, %v1283
  %v1285 = vpop.f32.mrb[0].mxu0
  %1286 = vmatprep.mubr.bf16.mxu0 %v385
  %1287 = vmatmul.mubr.bf16.gmra.mrb[0].mxu0 %v384
  %v1288 = vpop.f32.mrb[0].mxu0
  %v1289 = vadd.f32 %v1241, %v1288
  %v1290 = vpop.f32.mrb[0].mxu0
  %v1291 = vpop.f32.mrb[0].mxu0
  %v1292 = vpop.f32.mrb[0].mxu0
  %1293 = vdwg.mxu0
  %1294 = vmatprep.subr.bf16.mxu0 0
  %1295 = vmatpush1.bf16.msra.mxu0 %v974
  %1296 = vmatprep.subr.bf16.mxu0 0
  %1297 = vmatpush1.bf16.msra.mxu0 %v975
  %1298 = vmatprep.subr.bf16.mxu0 0
  %1299 = vmatpush1.bf16.msra.mxu0 %v976
  %1300 = vmatprep.subr.bf16.mxu0 0
  %1301 = vmatpush1.bf16.msra.mxu0 %v977
  %1302 = vmatprep.subr.bf16.mxu0 0
  %1303 = vmatpush1.bf16.msra.mxu0 %v978
  %1304 = vmatprep.subr.bf16.mxu0 0
  %1305 = vmatpush1.bf16.msra.mxu0 %v979
  %1306 = vmatprep.subr.bf16.mxu0 0
  %1307 = vmatpush1.bf16.msra.mxu0 %v980
  %1308 = vmatprep.subr.bf16.mxu0 0
  %1309 = vmatpush1.bf16.msra.mxu0 %v981
  %1310 = vmatprep.subr.bf16.mxu0 0
  %1311 = vmatpush1.bf16.msra.mxu0 %v982
  %1312 = vmatprep.subr.bf16.mxu0 0
  %1313 = vmatpush1.bf16.msra.mxu0 %v983
  %1314 = vmatprep.subr.bf16.mxu0 0
  %1315 = vmatpush1.bf16.msra.mxu0 %v984
  %1316 = vmatprep.subr.bf16.mxu0 0
  %1317 = vmatpush1.bf16.msra.mxu0 %v985
  %1318 = vmatprep.subr.bf16.mxu0 0
  %1319 = vmatpush1.bf16.msra.mxu0 %v986
  %1320 = vmatprep.subr.bf16.mxu0 0
  %1321 = vmatpush1.bf16.msra.mxu0 %v987
  %1322 = vmatprep.subr.bf16.mxu0 0
  %1323 = vmatpush1.bf16.msra.mxu0 %v988
  %1324 = vmatprep.subr.bf16.mxu0 0
  %1325 = vmatpush1.bf16.msra.mxu0 %v989
  %1326 = vmatprep.mubr.bf16.mxu0 %v371
  %1327 = vmatmul.mubr.bf16.gmra.mrb[0].mxu0 %v370
  %v1328 = vpop.f32.mrb[0].mxu0
  %v1329 = vadd.f32 %v1281, %v1328
  %v1330 = vpop.f32.mrb[0].mxu0
  %v1331 = vpop.f32.mrb[0].mxu0
  %v1332 = vadd.f32 %v1284, %v1331
  %v1333 = vpop.f32.mrb[0].mxu0
  %1334 = vmatprep.mubr.bf16.mxu0 %v387
  %1335 = vmatmul.mubr.bf16.gmra.mrb[0].mxu0 %v386
  %v1336 = vpop.f32.mrb[0].mxu0
  %v1337 = vadd.f32 %v1289, %v1336
  %v1338 = vpop.f32.mrb[0].mxu0
  %v1339 = vpop.f32.mrb[0].mxu0
  %v1340 = vpop.f32.mrb[0].mxu0
  %1341 = vdwg.mxu0
  %1342 = vmatprep.subr.bf16.mxu0 0
  %1343 = vmatpush1.bf16.msra.mxu0 %v990
  %1344 = vmatprep.subr.bf16.mxu0 0
  %1345 = vmatpush1.bf16.msra.mxu0 %v991
  %1346 = vmatprep.subr.bf16.mxu0 0
  %1347 = vmatpush1.bf16.msra.mxu0 %v992
  %1348 = vmatprep.subr.bf16.mxu0 0
  %1349 = vmatpush1.bf16.msra.mxu0 %v993
  %1350 = vmatprep.subr.bf16.mxu0 0
  %1351 = vmatpush1.bf16.msra.mxu0 %v994
  %1352 = vmatprep.subr.bf16.mxu0 0
  %1353 = vmatpush1.bf16.msra.mxu0 %v995
  %1354 = vmatprep.subr.bf16.mxu0 0
  %1355 = vmatpush1.bf16.msra.mxu0 %v996
  %1356 = vmatprep.subr.bf16.mxu0 0
  %1357 = vmatpush1.bf16.msra.mxu0 %v997
  %1358 = vmatprep.subr.bf16.mxu0 0
  %1359 = vmatpush1.bf16.msra.mxu0 %v998
  %1360 = vmatprep.subr.bf16.mxu0 0
  %1361 = vmatpush1.bf16.msra.mxu0 %v999
  %1362 = vmatprep.subr.bf16.mxu0 0
  %1363 = vmatpush1.bf16.msra.mxu0 %v1000
  %1364 = vmatprep.subr.bf16.mxu0 0
  %1365 = vmatpush1.bf16.msra.mxu0 %v1001
  %1366 = vmatprep.subr.bf16.mxu0 0
  %1367 = vmatpush1.bf16.msra.mxu0 %v1002
  %1368 = vmatprep.subr.bf16.mxu0 0
  %1369 = vmatpush1.bf16.msra.mxu0 %v1003
  %1370 = vmatprep.subr.bf16.mxu0 0
  %1371 = vmatpush1.bf16.msra.mxu0 %v1004
  %1372 = vmatprep.subr.bf16.mxu0 0
  %1373 = vmatpush1.bf16.msra.mxu0 %v1005
  %1374 = vmatprep.mubr.bf16.mxu0 %v373
  %1375 = vmatmul.mubr.bf16.gmra.mrb[0].mxu0 %v372
  %v1376 = vpop.f32.mrb[0].mxu0
  %v1377 = vadd.f32 %v1329, %v1376
  %v1378 = vpop.f32.mrb[0].mxu0
  %v1379 = vpop.f32.mrb[0].mxu0
  %v1380 = vadd.f32 %v1332, %v1379
  %v1381 = vpop.f32.mrb[0].mxu0
  %1382 = vmatprep.mubr.bf16.mxu0 %v389
  %1383 = vmatmul.mubr.bf16.gmra.mrb[0].mxu0 %v388
  %v1384 = vpop.f32.mrb[0].mxu0
  %v1385 = vadd.f32 %v1337, %v1384
  %v1386 = vpop.f32.mrb[0].mxu0
  %v1387 = vpop.f32.mrb[0].mxu0
  %v1388 = vpop.f32.mrb[0].mxu0
  %1389 = vdwg.mxu0
  %1390 = vmatprep.subr.bf16.mxu0 0
  %1391 = vmatpush1.bf16.msra.mxu0 %v1006
  %1392 = vmatprep.subr.bf16.mxu0 0
  %1393 = vmatpush1.bf16.msra.mxu0 %v1007
  %1394 = vmatprep.subr.bf16.mxu0 0
  %1395 = vmatpush1.bf16.msra.mxu0 %v1008
  %1396 = vmatprep.subr.bf16.mxu0 0
  %1397 = vmatpush1.bf16.msra.mxu0 %v1009
  %1398 = vmatprep.subr.bf16.mxu0 0
  %1399 = vmatpush1.bf16.msra.mxu0 %v1010
  %1400 = vmatprep.subr.bf16.mxu0 0
  %1401 = vmatpush1.bf16.msra.mxu0 %v1011
  %1402 = vmatprep.subr.bf16.mxu0 0
  %1403 = vmatpush1.bf16.msra.mxu0 %v1012
  %1404 = vmatprep.subr.bf16.mxu0 0
  %1405 = vmatpush1.bf16.msra.mxu0 %v1013
  %1406 = vmatprep.subr.bf16.mxu0 0
  %1407 = vmatpush1.bf16.msra.mxu0 %v1014
  %1408 = vmatprep.subr.bf16.mxu0 0
  %1409 = vmatpush1.bf16.msra.mxu0 %v1015
  %1410 = vmatprep.subr.bf16.mxu0 0
  %1411 = vmatpush1.bf16.msra.mxu0 %v1016
  %1412 = vmatprep.subr.bf16.mxu0 0
  %1413 = vmatpush1.bf16.msra.mxu0 %v1017
  %1414 = vmatprep.subr.bf16.mxu0 0
  %1415 = vmatpush1.bf16.msra.mxu0 %v1018
  %1416 = vmatprep.subr.bf16.mxu0 0
  %1417 = vmatpush1.bf16.msra.mxu0 %v1019
  %1418 = vmatprep.subr.bf16.mxu0 0
  %1419 = vmatpush1.bf16.msra.mxu0 %v1020
  %1420 = vmatprep.subr.bf16.mxu0 0
  %1421 = vmatpush1.bf16.msra.mxu0 %v1021
  %1422 = vmatprep.mubr.bf16.mxu0 %v375
  %1423 = vmatmul.mubr.bf16.gmra.mrb[0].mxu0 %v374
  %v1424 = vpop.f32.mrb[0].mxu0
  %v1425 = vadd.f32 %v1377, %v1424
  %v1426 = vpop.f32.mrb[0].mxu0
  %v1427 = vpop.f32.mrb[0].mxu0
  %v1428 = vadd.f32 %v1380, %v1427
  %v1429 = vpop.f32.mrb[0].mxu0
  %1430 = vmatprep.mubr.bf16.mxu0 %v391
  %1431 = vmatmul.mubr.bf16.gmra.mrb[0].mxu0 %v390
  %v1432 = vpop.f32.mrb[0].mxu0
  %v1433 = vadd.f32 %v1385, %v1432
  %v1434 = vpop.f32.mrb[0].mxu0
  %v1435 = vpop.f32.mrb[0].mxu0
  %v1436 = vpop.f32.mrb[0].mxu0
  %1437 = vdwg.mxu0
  %1438 = vmatprep.subr.bf16.mxu0 0
  %1439 = vmatpush1.bf16.msra.mxu0 %v1022
  %1440 = vmatprep.subr.bf16.mxu0 0
  %1441 = vmatpush1.bf16.msra.mxu0 %v1023
  %1442 = vmatprep.subr.bf16.mxu0 0
  %1443 = vmatpush1.bf16.msra.mxu0 %v1024
  %1444 = vmatprep.subr.bf16.mxu0 0
  %1445 = vmatpush1.bf16.msra.mxu0 %v1025
  %1446 = vmatprep.subr.bf16.mxu0 0
  %1447 = vmatpush1.bf16.msra.mxu0 %v1026
  %1448 = vmatprep.subr.bf16.mxu0 0
  %1449 = vmatpush1.bf16.msra.mxu0 %v1027
  %1450 = vmatprep.subr.bf16.mxu0 0
  %1451 = vmatpush1.bf16.msra.mxu0 %v1028
  %1452 = vmatprep.subr.bf16.mxu0 0
  %1453 = vmatpush1.bf16.msra.mxu0 %v1029
  %1454 = vmatprep.subr.bf16.mxu0 0
  %1455 = vmatpush1.bf16.msra.mxu0 %v1030
  %1456 = vmatprep.subr.bf16.mxu0 0
  %1457 = vmatpush1.bf16.msra.mxu0 %v1031
  %1458 = vmatprep.subr.bf16.mxu0 0
  %1459 = vmatpush1.bf16.msra.mxu0 %v1032
  %1460 = vmatprep.subr.bf16.mxu0 0
  %1461 = vmatpush1.bf16.msra.mxu0 %v1033
  %1462 = vmatprep.subr.bf16.mxu0 0
  %1463 = vmatpush1.bf16.msra.mxu0 %v1034
  %1464 = vmatprep.subr.bf16.mxu0 0
  %1465 = vmatpush1.bf16.msra.mxu0 %v1035
  %1466 = vmatprep.subr.bf16.mxu0 0
  %1467 = vmatpush1.bf16.msra.mxu0 %v1036
  %1468 = vmatprep.subr.bf16.mxu0 0
  %1469 = vmatpush1.bf16.msra.mxu0 %v1037
  %1470 = vmatprep.mubr.bf16.mxu0 %v377
  %1471 = vmatmul.mubr.bf16.gmra.mrb[0].mxu0 %v376
  %v1472 = vpop.f32.mrb[0].mxu0
  %v1473 = vadd.f32 %v1425, %v1472
  %v1474 = vpop.f32.mrb[0].mxu0
  %v1475 = vpop.f32.mrb[0].mxu0
  %v1476 = vadd.f32 %v1428, %v1475
  %v1477 = vpop.f32.mrb[0].mxu0
  %1478 = vmatprep.mubr.bf16.mxu0 %v393
  %1479 = vmatmul.mubr.bf16.gmra.mrb[0].mxu0 %v392
  %v1480 = vpop.f32.mrb[0].mxu0
  %v1481 = vadd.f32 %v1433, %v1480
  %v1482 = vpop.f32.mrb[0].mxu0
  %v1483 = vpop.f32.mrb[0].mxu0
  %v1484 = vpop.f32.mrb[0].mxu0
  %1485 = vdwg.mxu0
  %1486 = vmatprep.subr.bf16.mxu0 0
  %1487 = vmatpush1.bf16.msra.mxu0 %v1038
  %1488 = vmatprep.subr.bf16.mxu0 0
  %1489 = vmatpush1.bf16.msra.mxu0 %v1039
  %1490 = vmatprep.subr.bf16.mxu0 0
  %1491 = vmatpush1.bf16.msra.mxu0 %v1040
  %1492 = vmatprep.subr.bf16.mxu0 0
  %1493 = vmatpush1.bf16.msra.mxu0 %v1041
  %1494 = vmatprep.subr.bf16.mxu0 0
  %1495 = vmatpush1.bf16.msra.mxu0 %v1042
  %1496 = vmatprep.subr.bf16.mxu0 0
  %1497 = vmatpush1.bf16.msra.mxu0 %v1043
  %1498 = vmatprep.subr.bf16.mxu0 0
  %1499 = vmatpush1.bf16.msra.mxu0 %v1044
  %1500 = vmatprep.subr.bf16.mxu0 0
  %1501 = vmatpush1.bf16.msra.mxu0 %v1045
  %1502 = vmatprep.subr.bf16.mxu0 0
  %1503 = vmatpush1.bf16.msra.mxu0 %v1046
  %1504 = vmatprep.subr.bf16.mxu0 0
  %1505 = vmatpush1.bf16.msra.mxu0 %v1047
  %1506 = vmatprep.subr.bf16.mxu0 0
  %1507 = vmatpush1.bf16.msra.mxu0 %v1048
  %1508 = vmatprep.subr.bf16.mxu0 0
  %1509 = vmatpush1.bf16.msra.mxu0 %v1049
  %1510 = vmatprep.subr.bf16.mxu0 0
  %1511 = vmatpush1.bf16.msra.mxu0 %v1050
  %1512 = vmatprep.subr.bf16.mxu0 0
  %1513 = vmatpush1.bf16.msra.mxu0 %v1051
  %1514 = vmatprep.subr.bf16.mxu0 0
  %1515 = vmatpush1.bf16.msra.mxu0 %v1052
  %1516 = vmatprep.subr.bf16.mxu0 0
  %1517 = vmatpush1.bf16.msra.mxu0 %v1053
  %1518 = vmatprep.mubr.bf16.mxu0 %v379
  %1519 = vmatmul.mubr.bf16.gmra.mrb[0].mxu0 %v378
  %v1520 = vpop.f32.mrb[0].mxu0
  %v1521 = vadd.f32 %v1473, %v1520
  %v1522 = vpop.f32.mrb[0].mxu0
  %v1523 = vpop.f32.mrb[0].mxu0
  %v1524 = vadd.f32 %v1476, %v1523
  %v1525 = vpop.f32.mrb[0].mxu0
  %1526 = vmatprep.mubr.bf16.mxu0 %v395
  %1527 = vmatmul.mubr.bf16.gmra.mrb[0].mxu0 %v394
  %v1528 = vpop.f32.mrb[0].mxu0
  %v1529 = vadd.f32 %v1481, %v1528
  %v1530 = vpop.f32.mrb[0].mxu0
  %v1531 = vpop.f32.mrb[0].mxu0
  %v1532 = vpop.f32.mrb[0].mxu0
  %1533 = vdwg.mxu0
  %1534 = vmatprep.subr.bf16.mxu0 0
  %1535 = vmatpush1.bf16.msra.mxu0 %v1054
  %1536 = vmatprep.subr.bf16.mxu0 0
  %1537 = vmatpush1.bf16.msra.mxu0 %v1055
  %1538 = vmatprep.subr.bf16.mxu0 0
  %1539 = vmatpush1.bf16.msra.mxu0 %v1056
  %1540 = vmatprep.subr.bf16.mxu0 0
  %1541 = vmatpush1.bf16.msra.mxu0 %v1057
  %1542 = vmatprep.subr.bf16.mxu0 0
  %1543 = vmatpush1.bf16.msra.mxu0 %v1058
  %1544 = vmatprep.subr.bf16.mxu0 0
  %1545 = vmatpush1.bf16.msra.mxu0 %v1059
  %1546 = vmatprep.subr.bf16.mxu0 0
  %1547 = vmatpush1.bf16.msra.mxu0 %v1060
  %1548 = vmatprep.subr.bf16.mxu0 0
  %1549 = vmatpush1.bf16.msra.mxu0 %v1061
  %1550 = vmatprep.subr.bf16.mxu0 0
  %1551 = vmatpush1.bf16.msra.mxu0 %v1062
  %1552 = vmatprep.subr.bf16.mxu0 0
  %1553 = vmatpush1.bf16.msra.mxu0 %v1063
  %1554 = vmatprep.subr.bf16.mxu0 0
  %1555 = vmatpush1.bf16.msra.mxu0 %v1064
  %1556 = vmatprep.subr.bf16.mxu0 0
  %1557 = vmatpush1.bf16.msra.mxu0 %v1065
  %1558 = vmatprep.subr.bf16.mxu0 0
  %1559 = vmatpush1.bf16.msra.mxu0 %v1066
  %1560 = vmatprep.subr.bf16.mxu0 0
  %1561 = vmatpush1.bf16.msra.mxu0 %v1067
  %1562 = vmatprep.subr.bf16.mxu0 0
  %1563 = vmatpush1.bf16.msra.mxu0 %v1068
  %1564 = vmatprep.subr.bf16.mxu0 0
  %1565 = vmatpush1.bf16.msra.mxu0 %v1069
  %1566 = vmatprep.mubr.bf16.mxu0 %v381
  %1567 = vmatmul.mubr.bf16.gmra.mrb[0].mxu0 %v380
  %v1568 = vpop.f32.mrb[0].mxu0
  %v1569 = vadd.f32 %v1521, %v1568
  %v1570 = vpop.f32.mrb[0].mxu0
  %v1571 = vpop.f32.mrb[0].mxu0
  %v1572 = vadd.f32 %v1524, %v1571
  %v1573 = vpop.f32.mrb[0].mxu0
  %1574 = vmatprep.mubr.bf16.mxu0 %v397
  %1575 = vmatmul.mubr.bf16.gmra.mrb[0].mxu0 %v396
  %v1576 = vpop.f32.mrb[0].mxu0
  %v1577 = vadd.f32 %v1529, %v1576
  %v1578 = vpop.f32.mrb[0].mxu0
  %v1579 = vpop.f32.mrb[0].mxu0
  %v1580 = vpop.f32.mrb[0].mxu0
  %1581 = vdwg.mxu0
  %v1582 = vpack.c.bf16 %v1572, %v1569
  %v1583 = vpack.c.bf16 %v1577, %v1577
  %v1586 = vunpack.c.l.b16 %v1582
  %v1587 = vunpack.c.h.b16 %v1582
  %v1588 = vunpack.c.l.b16 %v1583
  %v1589 = vpack.c.b16 %v1586, %v1586
  %v1590 = vpack.c.b16 %v1587, %v1587
  %v1591 = vpack.c.b16 %v1588, %v1588
  %1595 = vst [vmem:[%s2] sm:$0xf] %v1589
  %1596 = vst [vmem:[%s2 + $0x4] sm:$0xf] %v1590
  %1597 = vst [vmem:[%s2 + $0x8] sm:$0xf] %v1591
  %s1598 = smul.u32 0, 24
  %v1599 = vlaneseq
  %v1600 = vshrl.u32 %v1599, 7
  %v1601 = vadd.s32 %v1600, 8
  %v1602 = vadd.s32 %v1600, 16
  %v1603 = vstv %s1598
  %v1604 = vadd.s32 %v1603, %v1600
  %v1605 = vadd.s32 %v1603, %v1601
  %v1606 = vadd.s32 %v1603, %v1602
  %vm1607 = vcmp.lt.s32.totalorder %v1604, 18
  %vm1608 = vcmp.lt.s32.totalorder %v1605, 18
  %vm1609 = vcmp.lt.s32.totalorder %v1606, 18
  %v1610 = vsel %vm1607, %v1569, 0.0
  %v1611 = vsel %vm1608, %v1572, 0.0
  %v1612 = vsel %vm1609, %v1577, 0.0
  %v1613 = vadd.f32 %v1610, %v1611
  %v1614 = vadd.f32 %v1613, %v1612
  %v1615 = vrot.slane %v1614, 4
  %v1616 = vadd.f32 %v1614, %v1615
  %v1617 = vrot.slane %v1616, 2
  %v1618 = vadd.f32 %v1616, %v1617
  %v1619 = vrot.slane %v1618, 1
  %v1620 = vadd.f32 %v1618, %v1619
  %v1621 = vmul.f32 %v1610, %v1610
  %v1622 = vmul.f32 %v1611, %v1611
  %v1623 = vmul.f32 %v1612, %v1612
  %v1624 = vadd.f32 %v1621, %v1622
  %v1625 = vadd.f32 %v1624, %v1623
  %v1626 = vrot.slane %v1625, 4
  %v1627 = vadd.f32 %v1625, %v1626
  %v1628 = vrot.slane %v1627, 2
  %v1629 = vadd.f32 %v1627, %v1628
  %v1630 = vrot.slane %v1629, 1
  %v1631 = vadd.f32 %v1629, %v1630
  %vm1632 = vcmp.eq.s32.totalorder %v1600, 0
  %vm1633 = vcmp.eq.s32.totalorder %v1600, 1
  %v1634 = vsel %vm1633, %v1631, 0.0
  %v1635 = vsel %vm1632, %v1620, %v1634
  %1636 = vst [vmem:[%s3] sm:$0xff] %v1635
  // Predicated region
  $region10: #{multi_discriminator_forward.18} parent=0 // pred_check
    _
  $region11: #{multi_discriminator_forward.18} parent=0 // pred_check_branch
    %1638 = sbr.rel (0) target = $region13
  $region12: #{multi_discriminator_forward.18} parent=0 // pred_region
    _
  $region13: #{multi_discriminator_forward.18} parent=0 // pred_fallthru
    _
  // Predicated region
  $region14: #{multi_discriminator_forward.18} parent=0 // pred_check
    _
  $region15: #{multi_discriminator_forward.18} parent=0 // pred_check_branch
    %1640 = sbr.rel (0) target = $region17
  $region16: #{multi_discriminator_forward.18} parent=0 // pred_region
    _
  $region17: #{multi_discriminator_forward.18} parent=0 // pred_fallthru
    _
  // Predicated region
  $region18: #{multi_discriminator_forward.18} parent=0 // pred_check
    _
  $region19: #{multi_discriminator_forward.18} parent=0 // pred_check_branch
    %1642 = sbr.rel (0) target = $region21
  $region20: #{multi_discriminator_forward.18} parent=0 // pred_region
    _
  $region21: #{multi_discriminator_forward.18} parent=0 // pred_fallthru
    _
  // Predicated region
  $region22: #{multi_discriminator_forward.18} parent=0 // pred_check
    _
  $region23: #{multi_discriminator_forward.18} parent=0 // pred_check_branch
    %1644 = sbr.rel (0) target = $region25
  $region24: #{multi_discriminator_forward.18} parent=0 // pred_region
    _
  $region25: #{multi_discriminator_forward.18} parent=0 // pred_fallthru
    _

// kernel: multi_discriminator_forward.23
$region0: #{multi_discriminator_forward.23}
  #allocation0 [shape = 'u32[]', space=smem, size = 0x4, offset = 0x4, fixed_abs, tag = 'smem constant byte address 0x4 - core index']
  #allocation1 [shape = 'u32[144,128]{1,0:T(1,128)}', space=vmem, size = 0x12000, scoped, tag = 'internal scratch']
  %s0 = inlined_call_operand.vmem [shape: bf16[8,2048], index: 0, kind: input, shape index: {}]
  %s1 = inlined_call_operand.vmem [shape: bf16[2048,128], index: 1, kind: input, shape index: {}]
  %s2 = inlined_call_operand.vmem [shape: bf16[8,128], index: 2, kind: output, shape index: {0}]
  %s3 = inlined_call_operand.vmem [shape: f32[8,128], index: 3, kind: output, shape index: {1}]
  %4 = xla_tuple %s2, %s3
  %s5 = sld [smem:[#allocation0]]
  $region26: #{multi_discriminator_forward.23} parent=0
    _
  %s7 = ssub.s32 1, %s5
  %s8 = scalar_select 0, %s7, %s5
  // Predicated region
  $region2: #{multi_discriminator_forward.23} parent=0 // pred_check
    _
  $region3: #{multi_discriminator_forward.23} parent=0 // pred_check_branch
    %10 = sbr.rel (0) target = $region5
  $region4: #{multi_discriminator_forward.23} parent=0 // pred_region
    _
  $region5: #{multi_discriminator_forward.23} parent=0 // pred_fallthru
    _
  // Predicated region
  $region6: #{multi_discriminator_forward.23} parent=0 // pred_check
    _
  $region7: #{multi_discriminator_forward.23} parent=0 // pred_check_branch
    %12 = sbr.rel (0) target = $region9
  $region8: #{multi_discriminator_forward.23} parent=0 // pred_region
    _
  $region9: #{multi_discriminator_forward.23} parent=0 // pred_fallthru
    _
  %v14 = vld [vmem:[%s0] sm:$0xff]
  %v15 = vld [vmem:[%s0 + $0x8] sm:$0xff]
  %v16 = vld [vmem:[%s0 + $0x10] sm:$0xff]
  %v17 = vld [vmem:[%s0 + $0x18] sm:$0xff]
  %v18 = vld [vmem:[%s0 + $0x20] sm:$0xff]
  %v19 = vld [vmem:[%s0 + $0x28] sm:$0xff]
  %v20 = vld [vmem:[%s0 + $0x30] sm:$0xff]
  %v21 = vld [vmem:[%s0 + $0x38] sm:$0xff]
  %v22 = vld [vmem:[%s1] sm:$0xf]
  %v23 = vld [vmem:[%s1 + $0x4] sm:$0xf]
  %v24 = vld [vmem:[%s1 + $0x8] sm:$0xf]
  %v25 = vld [vmem:[%s1 + $0xc] sm:$0xf]
  %v26 = vld [vmem:[%s1 + $0x10] sm:$0xf]
  %v27 = vld [vmem:[%s1 + $0x14] sm:$0xf]
  %v28 = vld [vmem:[%s1 + $0x18] sm:$0xf]
  %v29 = vld [vmem:[%s1 + $0x1c] sm:$0xf]
  %v30 = vld [vmem:[%s1 + $0x20] sm:$0xf]
  %v31 = vld [vmem:[%s1 + $0x24] sm:$0xf]
  %v32 = vld [vmem:[%s1 + $0x28] sm:$0xf]
  %v33 = vld [vmem:[%s1 + $0x2c] sm:$0xf]
  %v34 = vld [vmem:[%s1 + $0x30] sm:$0xf]
  %v35 = vld [vmem:[%s1 + $0x34] sm:$0xf]
  %v36 = vld [vmem:[%s1 + $0x38] sm:$0xf]
  %v37 = vld [vmem:[%s1 + $0x3c] sm:$0xf]
  %v38 = vld [vmem:[%s1 + $0x40] sm:$0xf]
  %v39 = vld [vmem:[%s1 + $0x44] sm:$0xf]
  %v40 = vld [vmem:[%s1 + $0x48] sm:$0xf]
  %v41 = vld [vmem:[%s1 + $0x4c] sm:$0xf]
  %v42 = vld [vmem:[%s1 + $0x50] sm:$0xf]
  %v43 = vld [vmem:[%s1 + $0x54] sm:$0xf]
  %v44 = vld [vmem:[%s1 + $0x58] sm:$0xf]
  %v45 = vld [vmem:[%s1 + $0x5c] sm:$0xf]
  %v46 = vld [vmem:[%s1 + $0x60] sm:$0xf]
  %v47 = vld [vmem:[%s1 + $0x64] sm:$0xf]
  %v48 = vld [vmem:[%s1 + $0x68] sm:$0xf]
  %v49 = vld [vmem:[%s1 + $0x6c] sm:$0xf]
  %v50 = vld [vmem:[%s1 + $0x70] sm:$0xf]
  %v51 = vld [vmem:[%s1 + $0x74] sm:$0xf]
  %v52 = vld [vmem:[%s1 + $0x78] sm:$0xf]
  %v53 = vld [vmem:[%s1 + $0x7c] sm:$0xf]
  %v54 = vld [vmem:[%s1 + $0x80] sm:$0xf]
  %v55 = vld [vmem:[%s1 + $0x84] sm:$0xf]
  %v56 = vld [vmem:[%s1 + $0x88] sm:$0xf]
  %v57 = vld [vmem:[%s1 + $0x8c] sm:$0xf]
  %v58 = vld [vmem:[%s1 + $0x90] sm:$0xf]
  %v59 = vld [vmem:[%s1 + $0x94] sm:$0xf]
  %v60 = vld [vmem:[%s1 + $0x98] sm:$0xf]
  %v61 = vld [vmem:[%s1 + $0x9c] sm:$0xf]
  %v62 = vld [vmem:[%s1 + $0xa0] sm:$0xf]
  %v63 = vld [vmem:[%s1 + $0xa4] sm:$0xf]
  %v64 = vld [vmem:[%s1 + $0xa8] sm:$0xf]
  %v65 = vld [vmem:[%s1 + $0xac] sm:$0xf]
  %v66 = vld [vmem:[%s1 + $0xb0] sm:$0xf]
  %v67 = vld [vmem:[%s1 + $0xb4] sm:$0xf]
  %v68 = vld [vmem:[%s1 + $0xb8] sm:$0xf]
  %v69 = vld [vmem:[%s1 + $0xbc] sm:$0xf]
  %v70 = vld [vmem:[%s1 + $0xc0] sm:$0xf]
  %v71 = vld [vmem:[%s1 + $0xc4] sm:$0xf]
  %v72 = vld [vmem:[%s1 + $0xc8] sm:$0xf]
  %v73 = vld [vmem:[%s1 + $0xcc] sm:$0xf]
  %v74 = vld [vmem:[%s1 + $0xd0] sm:$0xf]
  %v75 = vld [vmem:[%s1 + $0xd4] sm:$0xf]
  %v76 = vld [vmem:[%s1 + $0xd8] sm:$0xf]
  %v77 = vld [vmem:[%s1 + $0xdc] sm:$0xf]
  %v78 = vld [vmem:[%s1 + $0xe0] sm:$0xf]
  %v79 = vld [vmem:[%s1 + $0xe4] sm:$0xf]
  %v80 = vld [vmem:[%s1 + $0xe8] sm:$0xf]
  %v81 = vld [vmem:[%s1 + $0xec] sm:$0xf]
  %v82 = vld [vmem:[%s1 + $0xf0] sm:$0xf]
  %v83 = vld [vmem:[%s1 + $0xf4] sm:$0xf]
  %v84 = vld [vmem:[%s1 + $0xf8] sm:$0xf]
  %v85 = vld [vmem:[%s1 + $0xfc] sm:$0xf]
  %v86 = vld [vmem:[%s1 + $0x100] sm:$0xf]
  %v87 = vld [vmem:[%s1 + $0x104] sm:$0xf]
  %v88 = vld [vmem:[%s1 + $0x108] sm:$0xf]
  %v89 = vld [vmem:[%s1 + $0x10c] sm:$0xf]
  %v90 = vld [vmem:[%s1 + $0x110] sm:$0xf]
  %v91 = vld [vmem:[%s1 + $0x114] sm:$0xf]
  %v92 = vld [vmem:[%s1 + $0x118] sm:$0xf]
  %v93 = vld [vmem:[%s1 + $0x11c] sm:$0xf]
  %v94 = vld [vmem:[%s1 + $0x120] sm:$0xf]
  %v95 = vld [vmem:[%s1 + $0x124] sm:$0xf]
  %v96 = vld [vmem:[%s1 + $0x128] sm:$0xf]
  %v97 = vld [vmem:[%s1 + $0x12c] sm:$0xf]
  %v98 = vld [vmem:[%s1 + $0x130] sm:$0xf]
  %v99 = vld [vmem:[%s1 + $0x134] sm:$0xf]
  %v100 = vld [vmem:[%s1 + $0x138] sm:$0xf]
  %v101 = vld [vmem:[%s1 + $0x13c] sm:$0xf]
  %v102 = vld [vmem:[%s1 + $0x140] sm:$0xf]
  %v103 = vld [vmem:[%s1 + $0x144] sm:$0xf]
  %v104 = vld [vmem:[%s1 + $0x148] sm:$0xf]
  %v105 = vld [vmem:[%s1 + $0x14c] sm:$0xf]
  %v106 = vld [vmem:[%s1 + $0x150] sm:$0xf]
  %v107 = vld [vmem:[%s1 + $0x154] sm:$0xf]
  %v108 = vld [vmem:[%s1 + $0x158] sm:$0xf]
  %v109 = vld [vmem:[%s1 + $0x15c] sm:$0xf]
  %v110 = vld [vmem:[%s1 + $0x160] sm:$0xf]
  %v111 = vld [vmem:[%s1 + $0x164] sm:$0xf]
  %v112 = vld [vmem:[%s1 + $0x168] sm:$0xf]
  %v113 = vld [vmem:[%s1 + $0x16c] sm:$0xf]
  %v114 = vld [vmem:[%s1 + $0x170] sm:$0xf]
  %v115 = vld [vmem:[%s1 + $0x174] sm:$0xf]
  %v116 = vld [vmem:[%s1 + $0x178] sm:$0xf]
  %v117 = vld [vmem:[%s1 + $0x17c] sm:$0xf]
  %v118 = vld [vmem:[%s1 + $0x180] sm:$0xf]
  %v119 = vld [vmem:[%s1 + $0x184] sm:$0xf]
  %v120 = vld [vmem:[%s1 + $0x188] sm:$0xf]
  %v121 = vld [vmem:[%s1 + $0x18c] sm:$0xf]
  %v122 = vld [vmem:[%s1 + $0x190] sm:$0xf]
  %v123 = vld [vmem:[%s1 + $0x194] sm:$0xf]
  %v124 = vld [vmem:[%s1 + $0x198] sm:$0xf]
  %v125 = vld [vmem:[%s1 + $0x19c] sm:$0xf]
  %v126 = vld [vmem:[%s1 + $0x1a0] sm:$0xf]
  %v127 = vld [vmem:[%s1 + $0x1a4] sm:$0xf]
  %v128 = vld [vmem:[%s1 + $0x1a8] sm:$0xf]
  %v129 = vld [vmem:[%s1 + $0x1ac] sm:$0xf]
  %v130 = vld [vmem:[%s1 + $0x1b0] sm:$0xf]
  %v131 = vld [vmem:[%s1 + $0x1b4] sm:$0xf]
  %v132 = vld [vmem:[%s1 + $0x1b8] sm:$0xf]
  %v133 = vld [vmem:[%s1 + $0x1bc] sm:$0xf]
  %v134 = vld [vmem:[%s1 + $0x1c0] sm:$0xf]
  %v135 = vld [vmem:[%s1 + $0x1c4] sm:$0xf]
  %v136 = vld [vmem:[%s1 + $0x1c8] sm:$0xf]
  %v137 = vld [vmem:[%s1 + $0x1cc] sm:$0xf]
  %v138 = vld [vmem:[%s1 + $0x1d0] sm:$0xf]
  %v139 = vld [vmem:[%s1 + $0x1d4] sm:$0xf]
  %v140 = vld [vmem:[%s1 + $0x1d8] sm:$0xf]
  %v141 = vld [vmem:[%s1 + $0x1dc] sm:$0xf]
  %v142 = vld [vmem:[%s1 + $0x1e0] sm:$0xf]
  %v143 = vld [vmem:[%s1 + $0x1e4] sm:$0xf]
  %v144 = vld [vmem:[%s1 + $0x1e8] sm:$0xf]
  %v145 = vld [vmem:[%s1 + $0x1ec] sm:$0xf]
  %v146 = vld [vmem:[%s1 + $0x1f0] sm:$0xf]
  %v147 = vld [vmem:[%s1 + $0x1f4] sm:$0xf]
  %v148 = vld [vmem:[%s1 + $0x1f8] sm:$0xf]
  %v149 = vld [vmem:[%s1 + $0x1fc] sm:$0xf]
  %v150 = vld [vmem:[%s1 + $0x200] sm:$0xf]
  %v151 = vld [vmem:[%s1 + $0x204] sm:$0xf]
  %v152 = vld [vmem:[%s1 + $0x208] sm:$0xf]
  %v153 = vld [vmem:[%s1 + $0x20c] sm:$0xf]
  %v154 = vld [vmem:[%s1 + $0x210] sm:$0xf]
  %v155 = vld [vmem:[%s1 + $0x214] sm:$0xf]
  %v156 = vld [vmem:[%s1 + $0x218] sm:$0xf]
  %v157 = vld [vmem:[%s1 + $0x21c] sm:$0xf]
  %v158 = vld [vmem:[%s1 + $0x220] sm:$0xf]
  %v159 = vld [vmem:[%s1 + $0x224] sm:$0xf]
  %v160 = vld [vmem:[%s1 + $0x228] sm:$0xf]
  %v161 = vld [vmem:[%s1 + $0x22c] sm:$0xf]
  %v162 = vld [vmem:[%s1 + $0x230] sm:$0xf]
  %v163 = vld [vmem:[%s1 + $0x234] sm:$0xf]
  %v164 = vld [vmem:[%s1 + $0x238] sm:$0xf]
  %v165 = vld [vmem:[%s1 + $0x23c] sm:$0xf]
  %v166 = vld [vmem:[%s1 + $0x240] sm:$0xf]
  %v167 = vld [vmem:[%s1 + $0x244] sm:$0xf]
  %v168 = vld [vmem:[%s1 + $0x248] sm:$0xf]
  %v169 = vld [vmem:[%s1 + $0x24c] sm:$0xf]
  %v170 = vld [vmem:[%s1 + $0x250] sm:$0xf]
  %v171 = vld [vmem:[%s1 + $0x254] sm:$0xf]
  %v172 = vld [vmem:[%s1 + $0x258] sm:$0xf]
  %v173 = vld [vmem:[%s1 + $0x25c] sm:$0xf]
  %v174 = vld [vmem:[%s1 + $0x260] sm:$0xf]
  %v175 = vld [vmem:[%s1 + $0x264] sm:$0xf]
  %v176 = vld [vmem:[%s1 + $0x268] sm:$0xf]
  %v177 = vld [vmem:[%s1 + $0x26c] sm:$0xf]
  %v178 = vld [vmem:[%s1 + $0x270] sm:$0xf]
  %v179 = vld [vmem:[%s1 + $0x274] sm:$0xf]
  %v180 = vld [vmem:[%s1 + $0x278] sm:$0xf]
  %v181 = vld [vmem:[%s1 + $0x27c] sm:$0xf]
  %v182 = vld [vmem:[%s1 + $0x280] sm:$0xf]
  %v183 = vld [vmem:[%s1 + $0x284] sm:$0xf]
  %v184 = vld [vmem:[%s1 + $0x288] sm:$0xf]
  %v185 = vld [vmem:[%s1 + $0x28c] sm:$0xf]
  %v186 = vld [vmem:[%s1 + $0x290] sm:$0xf]
  %v187 = vld [vmem:[%s1 + $0x294] sm:$0xf]
  %v188 = vld [vmem:[%s1 + $0x298] sm:$0xf]
  %v189 = vld [vmem:[%s1 + $0x29c] sm:$0xf]
  %v190 = vld [vmem:[%s1 + $0x2a0] sm:$0xf]
  %v191 = vld [vmem:[%s1 + $0x2a4] sm:$0xf]
  %v192 = vld [vmem:[%s1 + $0x2a8] sm:$0xf]
  %v193 = vld [vmem:[%s1 + $0x2ac] sm:$0xf]
  %v194 = vld [vmem:[%s1 + $0x2b0] sm:$0xf]
  %v195 = vld [vmem:[%s1 + $0x2b4] sm:$0xf]
  %v196 = vld [vmem:[%s1 + $0x2b8] sm:$0xf]
  %v197 = vld [vmem:[%s1 + $0x2bc] sm:$0xf]
  %v198 = vld [vmem:[%s1 + $0x2c0] sm:$0xf]
  %v199 = vld [vmem:[%s1 + $0x2c4] sm:$0xf]
  %v200 = vld [vmem:[%s1 + $0x2c8] sm:$0xf]
  %v201 = vld [vmem:[%s1 + $0x2cc] sm:$0xf]
  %v202 = vld [vmem:[%s1 + $0x2d0] sm:$0xf]
  %v203 = vld [vmem:[%s1 + $0x2d4] sm:$0xf]
  %v204 = vld [vmem:[%s1 + $0x2d8] sm:$0xf]
  %v205 = vld [vmem:[%s1 + $0x2dc] sm:$0xf]
  %v206 = vld [vmem:[%s1 + $0x2e0] sm:$0xf]
  %v207 = vld [vmem:[%s1 + $0x2e4] sm:$0xf]
  %v208 = vld [vmem:[%s1 + $0x2e8] sm:$0xf]
  %v209 = vld [vmem:[%s1 + $0x2ec] sm:$0xf]
  %v210 = vld [vmem:[%s1 + $0x2f0] sm:$0xf]
  %v211 = vld [vmem:[%s1 + $0x2f4] sm:$0xf]
  %v212 = vld [vmem:[%s1 + $0x2f8] sm:$0xf]
  %v213 = vld [vmem:[%s1 + $0x2fc] sm:$0xf]
  %v214 = vld [vmem:[%s1 + $0x300] sm:$0xf]
  %v215 = vld [vmem:[%s1 + $0x304] sm:$0xf]
  %v216 = vld [vmem:[%s1 + $0x308] sm:$0xf]
  %v217 = vld [vmem:[%s1 + $0x30c] sm:$0xf]
  %v218 = vld [vmem:[%s1 + $0x310] sm:$0xf]
  %v219 = vld [vmem:[%s1 + $0x314] sm:$0xf]
  %v220 = vld [vmem:[%s1 + $0x318] sm:$0xf]
  %v221 = vld [vmem:[%s1 + $0x31c] sm:$0xf]
  %v222 = vld [vmem:[%s1 + $0x320] sm:$0xf]
  %v223 = vld [vmem:[%s1 + $0x324] sm:$0xf]
  %v224 = vld [vmem:[%s1 + $0x328] sm:$0xf]
  %v225 = vld [vmem:[%s1 + $0x32c] sm:$0xf]
  %v226 = vld [vmem:[%s1 + $0x330] sm:$0xf]
  %v227 = vld [vmem:[%s1 + $0x334] sm:$0xf]
  %v228 = vld [vmem:[%s1 + $0x338] sm:$0xf]
  %v229 = vld [vmem:[%s1 + $0x33c] sm:$0xf]
  %v230 = vld [vmem:[%s1 + $0x340] sm:$0xf]
  %v231 = vld [vmem:[%s1 + $0x344] sm:$0xf]
  %v232 = vld [vmem:[%s1 + $0x348] sm:$0xf]
  %v233 = vld [vmem:[%s1 + $0x34c] sm:$0xf]
  %v234 = vld [vmem:[%s1 + $0x350] sm:$0xf]
  %v235 = vld [vmem:[%s1 + $0x354] sm:$0xf]
  %v236 = vld [vmem:[%s1 + $0x358] sm:$0xf]
  %v237 = vld [vmem:[%s1 + $0x35c] sm:$0xf]
  %v238 = vld [vmem:[%s1 + $0x360] sm:$0xf]
  %v239 = vld [vmem:[%s1 + $0x364] sm:$0xf]
  %v240 = vld [vmem:[%s1 + $0x368] sm:$0xf]
  %v241 = vld [vmem:[%s1 + $0x36c] sm:$0xf]
  %v242 = vld [vmem:[%s1 + $0x370] sm:$0xf]
  %v243 = vld [vmem:[%s1 + $0x374] sm:$0xf]
  %v244 = vld [vmem:[%s1 + $0x378] sm:$0xf]
  %v245 = vld [vmem:[%s1 + $0x37c] sm:$0xf]
  %v246 = vld [vmem:[%s1 + $0x380] sm:$0xf]
  %v247 = vld [vmem:[%s1 + $0x384] sm:$0xf]
  %v248 = vld [vmem:[%s1 + $0x388] sm:$0xf]
  %v249 = vld [vmem:[%s1 + $0x38c] sm:$0xf]
  %v250 = vld [vmem:[%s1 + $0x390] sm:$0xf]
  %v251 = vld [vmem:[%s1 + $0x394] sm:$0xf]
  %v252 = vld [vmem:[%s1 + $0x398] sm:$0xf]
  %v253 = vld [vmem:[%s1 + $0x39c] sm:$0xf]
  %v254 = vld [vmem:[%s1 + $0x3a0] sm:$0xf]
  %v255 = vld [vmem:[%s1 + $0x3a4] sm:$0xf]
  %v256 = vld [vmem:[%s1 + $0x3a8] sm:$0xf]
  %v257 = vld [vmem:[%s1 + $0x3ac] sm:$0xf]
  %v258 = vld [vmem:[%s1 + $0x3b0] sm:$0xf]
  %v259 = vld [vmem:[%s1 + $0x3b4] sm:$0xf]
  %v260 = vld [vmem:[%s1 + $0x3b8] sm:$0xf]
  %v261 = vld [vmem:[%s1 + $0x3bc] sm:$0xf]
  %v262 = vld [vmem:[%s1 + $0x3c0] sm:$0xf]
  %v263 = vld [vmem:[%s1 + $0x3c4] sm:$0xf]
  %v264 = vld [vmem:[%s1 + $0x3c8] sm:$0xf]
  %v265 = vld [vmem:[%s1 + $0x3cc] sm:$0xf]
  %v266 = vld [vmem:[%s1 + $0x3d0] sm:$0xf]
  %v267 = vld [vmem:[%s1 + $0x3d4] sm:$0xf]
  %v268 = vld [vmem:[%s1 + $0x3d8] sm:$0xf]
  %v269 = vld [vmem:[%s1 + $0x3dc] sm:$0xf]
  %v270 = vld [vmem:[%s1 + $0x3e0] sm:$0xf]
  %v271 = vld [vmem:[%s1 + $0x3e4] sm:$0xf]
  %v272 = vld [vmem:[%s1 + $0x3e8] sm:$0xf]
  %v273 = vld [vmem:[%s1 + $0x3ec] sm:$0xf]
  %v274 = vld [vmem:[%s1 + $0x3f0] sm:$0xf]
  %v275 = vld [vmem:[%s1 + $0x3f4] sm:$0xf]
  %v276 = vld [vmem:[%s1 + $0x3f8] sm:$0xf]
  %v277 = vld [vmem:[%s1 + $0x3fc] sm:$0xf]
  %v286 = vunpack.c.l.b16 %v14
  %v287 = vunpack.c.h.b16 %v14
  %v288 = vunpack.c.l.b16 %v15
  %v289 = vunpack.c.h.b16 %v15
  %v290 = vunpack.c.l.b16 %v16
  %v291 = vunpack.c.h.b16 %v16
  %v292 = vunpack.c.l.b16 %v17
  %v293 = vunpack.c.h.b16 %v17
  %v294 = vunpack.c.l.b16 %v18
  %v295 = vunpack.c.h.b16 %v18
  %v296 = vunpack.c.l.b16 %v19
  %v297 = vunpack.c.h.b16 %v19
  %v298 = vunpack.c.l.b16 %v20
  %v299 = vunpack.c.h.b16 %v20
  %v300 = vunpack.c.l.b16 %v21
  %v301 = vunpack.c.h.b16 %v21
  %v302 = vpack.c.b16 %v286, %v286
  %v303 = vpack.c.b16 %v287, %v287
  %v304 = vpack.c.b16 %v288, %v288
  %v305 = vpack.c.b16 %v289, %v289
  %v306 = vpack.c.b16 %v290, %v290
  %v307 = vpack.c.b16 %v291, %v291
  %v308 = vpack.c.b16 %v292, %v292
  %v309 = vpack.c.b16 %v293, %v293
  %v310 = vpack.c.b16 %v294, %v294
  %v311 = vpack.c.b16 %v295, %v295
  %v312 = vpack.c.b16 %v296, %v296
  %v313 = vpack.c.b16 %v297, %v297
  %v314 = vpack.c.b16 %v298, %v298
  %v315 = vpack.c.b16 %v299, %v299
  %v316 = vpack.c.b16 %v300, %v300
  %v317 = vpack.c.b16 %v301, %v301
  %v590 = vunpack.c.l.b16 %v22
  %v591 = vunpack.c.l.b16 %v23
  %v592 = vunpack.c.l.b16 %v24
  %v593 = vunpack.c.l.b16 %v25
  %v594 = vunpack.c.l.b16 %v26
  %v595 = vunpack.c.l.b16 %v27
  %v596 = vunpack.c.l.b16 %v28
  %v597 = vunpack.c.l.b16 %v29
  %v598 = vunpack.c.l.b16 %v30
  %v599 = vunpack.c.l.b16 %v31
  %v600 = vunpack.c.l.b16 %v32
  %v601 = vunpack.c.l.b16 %v33
  %v602 = vunpack.c.l.b16 %v34
  %v603 = vunpack.c.l.b16 %v35
  %v604 = vunpack.c.l.b16 %v36
  %v605 = vunpack.c.l.b16 %v37
  %v606 = vunpack.c.l.b16 %v38
  %v607 = vunpack.c.l.b16 %v39
  %v608 = vunpack.c.l.b16 %v40
  %v609 = vunpack.c.l.b16 %v41
  %v610 = vunpack.c.l.b16 %v42
  %v611 = vunpack.c.l.b16 %v43
  %v612 = vunpack.c.l.b16 %v44
  %v613 = vunpack.c.l.b16 %v45
  %v614 = vunpack.c.l.b16 %v46
  %v615 = vunpack.c.l.b16 %v47
  %v616 = vunpack.c.l.b16 %v48
  %v617 = vunpack.c.l.b16 %v49
  %v618 = vunpack.c.l.b16 %v50
  %v619 = vunpack.c.l.b16 %v51
  %v620 = vunpack.c.l.b16 %v52
  %v621 = vunpack.c.l.b16 %v53
  %v622 = vunpack.c.l.b16 %v54
  %v623 = vunpack.c.l.b16 %v55
  %v624 = vunpack.c.l.b16 %v56
  %v625 = vunpack.c.l.b16 %v57
  %v626 = vunpack.c.l.b16 %v58
  %v627 = vunpack.c.l.b16 %v59
  %v628 = vunpack.c.l.b16 %v60
  %v629 = vunpack.c.l.b16 %v61
  %v630 = vunpack.c.l.b16 %v62
  %v631 = vunpack.c.l.b16 %v63
  %v632 = vunpack.c.l.b16 %v64
  %v633 = vunpack.c.l.b16 %v65
  %v634 = vunpack.c.l.b16 %v66
  %v635 = vunpack.c.l.b16 %v67
  %v636 = vunpack.c.l.b16 %v68
  %v637 = vunpack.c.l.b16 %v69
  %v638 = vunpack.c.l.b16 %v70
  %v639 = vunpack.c.l.b16 %v71
  %v640 = vunpack.c.l.b16 %v72
  %v641 = vunpack.c.l.b16 %v73
  %v642 = vunpack.c.l.b16 %v74
  %v643 = vunpack.c.l.b16 %v75
  %v644 = vunpack.c.l.b16 %v76
  %v645 = vunpack.c.l.b16 %v77
  %v646 = vunpack.c.l.b16 %v78
  %v647 = vunpack.c.l.b16 %v79
  %v648 = vunpack.c.l.b16 %v80
  %v649 = vunpack.c.l.b16 %v81
  %v650 = vunpack.c.l.b16 %v82
  %v651 = vunpack.c.l.b16 %v83
  %v652 = vunpack.c.l.b16 %v84
  %v653 = vunpack.c.l.b16 %v85
  %v654 = vunpack.c.l.b16 %v86
  %v655 = vunpack.c.l.b16 %v87
  %v656 = vunpack.c.l.b16 %v88
  %v657 = vunpack.c.l.b16 %v89
  %v658 = vunpack.c.l.b16 %v90
  %v659 = vunpack.c.l.b16 %v91
  %v660 = vunpack.c.l.b16 %v92
  %v661 = vunpack.c.l.b16 %v93
  %v662 = vunpack.c.l.b16 %v94
  %v663 = vunpack.c.l.b16 %v95
  %v664 = vunpack.c.l.b16 %v96
  %v665 = vunpack.c.l.b16 %v97
  %v666 = vunpack.c.l.b16 %v98
  %v667 = vunpack.c.l.b16 %v99
  %v668 = vunpack.c.l.b16 %v100
  %v669 = vunpack.c.l.b16 %v101
  %v670 = vunpack.c.l.b16 %v102
  %v671 = vunpack.c.l.b16 %v103
  %v672 = vunpack.c.l.b16 %v104
  %v673 = vunpack.c.l.b16 %v105
  %v674 = vunpack.c.l.b16 %v106
  %v675 = vunpack.c.l.b16 %v107
  %v676 = vunpack.c.l.b16 %v108
  %v677 = vunpack.c.l.b16 %v109
  %v678 = vunpack.c.l.b16 %v110
  %v679 = vunpack.c.l.b16 %v111
  %v680 = vunpack.c.l.b16 %v112
  %v681 = vunpack.c.l.b16 %v113
  %v682 = vunpack.c.l.b16 %v114
  %v683 = vunpack.c.l.b16 %v115
  %v684 = vunpack.c.l.b16 %v116
  %v685 = vunpack.c.l.b16 %v117
  %v686 = vunpack.c.l.b16 %v118
  %v687 = vunpack.c.l.b16 %v119
  %v688 = vunpack.c.l.b16 %v120
  %v689 = vunpack.c.l.b16 %v121
  %v690 = vunpack.c.l.b16 %v122
  %v691 = vunpack.c.l.b16 %v123
  %v692 = vunpack.c.l.b16 %v124
  %v693 = vunpack.c.l.b16 %v125
  %v694 = vunpack.c.l.b16 %v126
  %v695 = vunpack.c.l.b16 %v127
  %v696 = vunpack.c.l.b16 %v128
  %v697 = vunpack.c.l.b16 %v129
  %v698 = vunpack.c.l.b16 %v130
  %v699 = vunpack.c.l.b16 %v131
  %v700 = vunpack.c.l.b16 %v132
  %v701 = vunpack.c.l.b16 %v133
  %v702 = vunpack.c.l.b16 %v134
  %v703 = vunpack.c.l.b16 %v135
  %v704 = vunpack.c.l.b16 %v136
  %v705 = vunpack.c.l.b16 %v137
  %v706 = vunpack.c.l.b16 %v138
  %v707 = vunpack.c.l.b16 %v139
  %v708 = vunpack.c.l.b16 %v140
  %v709 = vunpack.c.l.b16 %v141
  %v710 = vunpack.c.l.b16 %v142
  %v711 = vunpack.c.l.b16 %v143
  %v712 = vunpack.c.l.b16 %v144
  %v713 = vunpack.c.l.b16 %v145
  %v714 = vunpack.c.l.b16 %v146
  %v715 = vunpack.c.l.b16 %v147
  %v716 = vunpack.c.l.b16 %v148
  %v717 = vunpack.c.l.b16 %v149
  %v718 = vunpack.c.l.b16 %v150
  %v719 = vunpack.c.l.b16 %v151
  %v720 = vunpack.c.l.b16 %v152
  %v721 = vunpack.c.l.b16 %v153
  %v722 = vunpack.c.l.b16 %v154
  %v723 = vunpack.c.l.b16 %v155
  %v724 = vunpack.c.l.b16 %v156
  %v725 = vunpack.c.l.b16 %v157
  %v726 = vunpack.c.l.b16 %v158
  %v727 = vunpack.c.l.b16 %v159
  %v728 = vunpack.c.l.b16 %v160
  %v729 = vunpack.c.l.b16 %v161
  %v730 = vunpack.c.l.b16 %v162
  %v731 = vunpack.c.l.b16 %v163
  %v732 = vunpack.c.l.b16 %v164
  %v733 = vunpack.c.l.b16 %v165
  %v734 = vunpack.c.l.b16 %v166
  %v735 = vunpack.c.l.b16 %v167
  %v736 = vunpack.c.l.b16 %v168
  %v737 = vunpack.c.l.b16 %v169
  %v738 = vunpack.c.l.b16 %v170
  %v739 = vunpack.c.l.b16 %v171
  %v740 = vunpack.c.l.b16 %v172
  %v741 = vunpack.c.l.b16 %v173
  %v742 = vunpack.c.l.b16 %v174
  %v743 = vunpack.c.l.b16 %v175
  %v744 = vunpack.c.l.b16 %v176
  %v745 = vunpack.c.l.b16 %v177
  %v746 = vunpack.c.l.b16 %v178
  %v747 = vunpack.c.l.b16 %v179
  %v748 = vunpack.c.l.b16 %v180
  %v749 = vunpack.c.l.b16 %v181
  %v750 = vunpack.c.l.b16 %v182
  %v751 = vunpack.c.l.b16 %v183
  %v752 = vunpack.c.l.b16 %v184
  %v753 = vunpack.c.l.b16 %v185
  %v754 = vunpack.c.l.b16 %v186
  %v755 = vunpack.c.l.b16 %v187
  %v756 = vunpack.c.l.b16 %v188
  %v757 = vunpack.c.l.b16 %v189
  %v758 = vunpack.c.l.b16 %v190
  %v759 = vunpack.c.l.b16 %v191
  %v760 = vunpack.c.l.b16 %v192
  %v761 = vunpack.c.l.b16 %v193
  %v762 = vunpack.c.l.b16 %v194
  %v763 = vunpack.c.l.b16 %v195
  %v764 = vunpack.c.l.b16 %v196
  %v765 = vunpack.c.l.b16 %v197
  %v766 = vunpack.c.l.b16 %v198
  %v767 = vunpack.c.l.b16 %v199
  %v768 = vunpack.c.l.b16 %v200
  %v769 = vunpack.c.l.b16 %v201
  %v770 = vunpack.c.l.b16 %v202
  %v771 = vunpack.c.l.b16 %v203
  %v772 = vunpack.c.l.b16 %v204
  %v773 = vunpack.c.l.b16 %v205
  %v774 = vunpack.c.l.b16 %v206
  %v775 = vunpack.c.l.b16 %v207
  %v776 = vunpack.c.l.b16 %v208
  %v777 = vunpack.c.l.b16 %v209
  %v778 = vunpack.c.l.b16 %v210
  %v779 = vunpack.c.l.b16 %v211
  %v780 = vunpack.c.l.b16 %v212
  %v781 = vunpack.c.l.b16 %v213
  %v782 = vunpack.c.l.b16 %v214
  %v783 = vunpack.c.l.b16 %v215
  %v784 = vunpack.c.l.b16 %v216
  %v785 = vunpack.c.l.b16 %v217
  %v786 = vunpack.c.l.b16 %v218
  %v787 = vunpack.c.l.b16 %v219
  %v788 = vunpack.c.l.b16 %v220
  %v789 = vunpack.c.l.b16 %v221
  %v790 = vunpack.c.l.b16 %v222
  %v791 = vunpack.c.l.b16 %v223
  %v792 = vunpack.c.l.b16 %v224
  %v793 = vunpack.c.l.b16 %v225
  %v794 = vunpack.c.l.b16 %v226
  %v795 = vunpack.c.l.b16 %v227
  %v796 = vunpack.c.l.b16 %v228
  %v797 = vunpack.c.l.b16 %v229
  %v798 = vunpack.c.l.b16 %v230
  %v799 = vunpack.c.l.b16 %v231
  %v800 = vunpack.c.l.b16 %v232
  %v801 = vunpack.c.l.b16 %v233
  %v802 = vunpack.c.l.b16 %v234
  %v803 = vunpack.c.l.b16 %v235
  %v804 = vunpack.c.l.b16 %v236
  %v805 = vunpack.c.l.b16 %v237
  %v806 = vunpack.c.l.b16 %v238
  %v807 = vunpack.c.l.b16 %v239
  %v808 = vunpack.c.l.b16 %v240
  %v809 = vunpack.c.l.b16 %v241
  %v810 = vunpack.c.l.b16 %v242
  %v811 = vunpack.c.l.b16 %v243
  %v812 = vunpack.c.l.b16 %v244
  %v813 = vunpack.c.l.b16 %v245
  %v814 = vunpack.c.l.b16 %v246
  %v815 = vunpack.c.l.b16 %v247
  %v816 = vunpack.c.l.b16 %v248
  %v817 = vunpack.c.l.b16 %v249
  %v818 = vunpack.c.l.b16 %v250
  %v819 = vunpack.c.l.b16 %v251
  %v820 = vunpack.c.l.b16 %v252
  %v821 = vunpack.c.l.b16 %v253
  %v822 = vunpack.c.l.b16 %v254
  %v823 = vunpack.c.l.b16 %v255
  %v824 = vunpack.c.l.b16 %v256
  %v825 = vunpack.c.l.b16 %v257
  %v826 = vunpack.c.l.b16 %v258
  %v827 = vunpack.c.l.b16 %v259
  %v828 = vunpack.c.l.b16 %v260
  %v829 = vunpack.c.l.b16 %v261
  %v830 = vunpack.c.l.b16 %v262
  %v831 = vunpack.c.l.b16 %v263
  %v832 = vunpack.c.l.b16 %v264
  %v833 = vunpack.c.l.b16 %v265
  %v834 = vunpack.c.l.b16 %v266
  %v835 = vunpack.c.l.b16 %v267
  %v836 = vunpack.c.l.b16 %v268
  %v837 = vunpack.c.l.b16 %v269
  %v838 = vunpack.c.l.b16 %v270
  %v839 = vunpack.c.l.b16 %v271
  %v840 = vunpack.c.l.b16 %v272
  %v841 = vunpack.c.l.b16 %v273
  %v842 = vunpack.c.l.b16 %v274
  %v843 = vunpack.c.l.b16 %v275
  %v844 = vunpack.c.l.b16 %v276
  %v845 = vunpack.c.l.b16 %v277
  %v846 = vpack.c.b16 %v591, %v590
  %v847 = vpack.c.b16 %v593, %v592
  %v848 = vpack.c.b16 %v595, %v594
  %v849 = vpack.c.b16 %v597, %v596
  %v850 = vpack.c.b16 %v599, %v598
  %v851 = vpack.c.b16 %v601, %v600
  %v852 = vpack.c.b16 %v603, %v602
  %v853 = vpack.c.b16 %v605, %v604
  %v854 = vpack.c.b16 %v607, %v606
  %v855 = vpack.c.b16 %v609, %v608
  %v856 = vpack.c.b16 %v611, %v610
  %v857 = vpack.c.b16 %v613, %v612
  %v858 = vpack.c.b16 %v615, %v614
  %v859 = vpack.c.b16 %v617, %v616
  %v860 = vpack.c.b16 %v619, %v618
  %v861 = vpack.c.b16 %v621, %v620
  %v862 = vpack.c.b16 %v623, %v622
  %v863 = vpack.c.b16 %v625, %v624
  %v864 = vpack.c.b16 %v627, %v626
  %v865 = vpack.c.b16 %v629, %v628
  %v866 = vpack.c.b16 %v631, %v630
  %v867 = vpack.c.b16 %v633, %v632
  %v868 = vpack.c.b16 %v635, %v634
  %v869 = vpack.c.b16 %v637, %v636
  %v870 = vpack.c.b16 %v639, %v638
  %v871 = vpack.c.b16 %v641, %v640
  %v872 = vpack.c.b16 %v643, %v642
  %v873 = vpack.c.b16 %v645, %v644
  %v874 = vpack.c.b16 %v647, %v646
  %v875 = vpack.c.b16 %v649, %v648
  %v876 = vpack.c.b16 %v651, %v650
  %v877 = vpack.c.b16 %v653, %v652
  %v878 = vpack.c.b16 %v655, %v654
  %v879 = vpack.c.b16 %v657, %v656
  %v880 = vpack.c.b16 %v659, %v658
  %v881 = vpack.c.b16 %v661, %v660
  %v882 = vpack.c.b16 %v663, %v662
  %v883 = vpack.c.b16 %v665, %v664
  %v884 = vpack.c.b16 %v667, %v666
  %v885 = vpack.c.b16 %v669, %v668
  %v886 = vpack.c.b16 %v671, %v670
  %v887 = vpack.c.b16 %v673, %v672
  %v888 = vpack.c.b16 %v675, %v674
  %v889 = vpack.c.b16 %v677, %v676
  %v890 = vpack.c.b16 %v679, %v678
  %v891 = vpack.c.b16 %v681, %v680
  %v892 = vpack.c.b16 %v683, %v682
  %v893 = vpack.c.b16 %v685, %v684
  %v894 = vpack.c.b16 %v687, %v686
  %v895 = vpack.c.b16 %v689, %v688
  %v896 = vpack.c.b16 %v691, %v690
  %v897 = vpack.c.b16 %v693, %v692
  %v898 = vpack.c.b16 %v695, %v694
  %v899 = vpack.c.b16 %v697, %v696
  %v900 = vpack.c.b16 %v699, %v698
  %v901 = vpack.c.b16 %v701, %v700
  %v902 = vpack.c.b16 %v703, %v702
  %v903 = vpack.c.b16 %v705, %v704
  %v904 = vpack.c.b16 %v707, %v706
  %v905 = vpack.c.b16 %v709, %v708
  %v906 = vpack.c.b16 %v711, %v710
  %v907 = vpack.c.b16 %v713, %v712
  %v908 = vpack.c.b16 %v715, %v714
  %v909 = vpack.c.b16 %v717, %v716
  %v910 = vpack.c.b16 %v719, %v718
  %v911 = vpack.c.b16 %v721, %v720
  %v912 = vpack.c.b16 %v723, %v722
  %v913 = vpack.c.b16 %v725, %v724
  %v914 = vpack.c.b16 %v727, %v726
  %v915 = vpack.c.b16 %v729, %v728
  %v916 = vpack.c.b16 %v731, %v730
  %v917 = vpack.c.b16 %v733, %v732
  %v918 = vpack.c.b16 %v735, %v734
  %v919 = vpack.c.b16 %v737, %v736
  %v920 = vpack.c.b16 %v739, %v738
  %v921 = vpack.c.b16 %v741, %v740
  %v922 = vpack.c.b16 %v743, %v742
  %v923 = vpack.c.b16 %v745, %v744
  %v924 = vpack.c.b16 %v747, %v746
  %v925 = vpack.c.b16 %v749, %v748
  %v926 = vpack.c.b16 %v751, %v750
  %v927 = vpack.c.b16 %v753, %v752
  %v928 = vpack.c.b16 %v755, %v754
  %v929 = vpack.c.b16 %v757, %v756
  %v930 = vpack.c.b16 %v759, %v758
  %v931 = vpack.c.b16 %v761, %v760
  %v932 = vpack.c.b16 %v763, %v762
  %v933 = vpack.c.b16 %v765, %v764
  %v934 = vpack.c.b16 %v767, %v766
  %v935 = vpack.c.b16 %v769, %v768
  %v936 = vpack.c.b16 %v771, %v770
  %v937 = vpack.c.b16 %v773, %v772
  %v938 = vpack.c.b16 %v775, %v774
  %v939 = vpack.c.b16 %v777, %v776
  %v940 = vpack.c.b16 %v779, %v778
  %v941 = vpack.c.b16 %v781, %v780
  %v942 = vpack.c.b16 %v783, %v782
  %v943 = vpack.c.b16 %v785, %v784
  %v944 = vpack.c.b16 %v787, %v786
  %v945 = vpack.c.b16 %v789, %v788
  %v946 = vpack.c.b16 %v791, %v790
  %v947 = vpack.c.b16 %v793, %v792
  %v948 = vpack.c.b16 %v795, %v794
  %v949 = vpack.c.b16 %v797, %v796
  %v950 = vpack.c.b16 %v799, %v798
  %v951 = vpack.c.b16 %v801, %v800
  %v952 = vpack.c.b16 %v803, %v802
  %v953 = vpack.c.b16 %v805, %v804
  %v954 = vpack.c.b16 %v807, %v806
  %v955 = vpack.c.b16 %v809, %v808
  %v956 = vpack.c.b16 %v811, %v810
  %v957 = vpack.c.b16 %v813, %v812
  %v958 = vpack.c.b16 %v815, %v814
  %v959 = vpack.c.b16 %v817, %v816
  %v960 = vpack.c.b16 %v819, %v818
  %v961 = vpack.c.b16 %v821, %v820
  %v962 = vpack.c.b16 %v823, %v822
  %v963 = vpack.c.b16 %v825, %v824
  %v964 = vpack.c.b16 %v827, %v826
  %v965 = vpack.c.b16 %v829, %v828
  %v966 = vpack.c.b16 %v831, %v830
  %v967 = vpack.c.b16 %v833, %v832
  %v968 = vpack.c.b16 %v835, %v834
  %v969 = vpack.c.b16 %v837, %v836
  %v970 = vpack.c.b16 %v839, %v838
  %v971 = vpack.c.b16 %v841, %v840
  %v972 = vpack.c.b16 %v843, %v842
  %v973 = vpack.c.b16 %v845, %v844
  %1102 = vmatprep.subr.bf16.mxu0 0
  %1103 = vmatpush1.bf16.msra.mxu0 %v846
  %1104 = vmatprep.subr.bf16.mxu0 0
  %1105 = vmatpush1.bf16.msra.mxu0 %v847
  %1106 = vmatprep.subr.bf16.mxu0 0
  %1107 = vmatpush1.bf16.msra.mxu0 %v848
  %1108 = vmatprep.subr.bf16.mxu0 0
  %1109 = vmatpush1.bf16.msra.mxu0 %v849
  %1110 = vmatprep.subr.bf16.mxu0 0
  %1111 = vmatpush1.bf16.msra.mxu0 %v850
  %1112 = vmatprep.subr.bf16.mxu0 0
  %1113 = vmatpush1.bf16.msra.mxu0 %v851
  %1114 = vmatprep.subr.bf16.mxu0 0
  %1115 = vmatpush1.bf16.msra.mxu0 %v852
  %1116 = vmatprep.subr.bf16.mxu0 0
  %1117 = vmatpush1.bf16.msra.mxu0 %v853
  %1118 = vmatprep.subr.bf16.mxu0 0
  %1119 = vmatpush1.bf16.msra.mxu0 %v854
  %1120 = vmatprep.subr.bf16.mxu0 0
  %1121 = vmatpush1.bf16.msra.mxu0 %v855
  %1122 = vmatprep.subr.bf16.mxu0 0
  %1123 = vmatpush1.bf16.msra.mxu0 %v856
  %1124 = vmatprep.subr.bf16.mxu0 0
  %1125 = vmatpush1.bf16.msra.mxu0 %v857
  %1126 = vmatprep.subr.bf16.mxu0 0
  %1127 = vmatpush1.bf16.msra.mxu0 %v858
  %1128 = vmatprep.subr.bf16.mxu0 0
  %1129 = vmatpush1.bf16.msra.mxu0 %v859
  %1130 = vmatprep.subr.bf16.mxu0 0
  %1131 = vmatpush1.bf16.msra.mxu0 %v860
  %1132 = vmatprep.subr.bf16.mxu0 0
  %1133 = vmatpush1.bf16.msra.mxu0 %v861
  %1134 = vmatprep.mubr.bf16.mxu0 %v303
  %1135 = vmatmul.mubr.bf16.gmra.mrb[0].mxu0 %v302
  %v1136 = vpop.f32.mrb[0].mxu0
  %v1137 = vadd.f32 0.0, %v1136
  %v1138 = vpop.f32.mrb[0].mxu0
  %v1139 = vpop.f32.mrb[0].mxu0
  %v1140 = vpop.f32.mrb[0].mxu0
  %1141 = vdwg.mxu0
  %1142 = vmatprep.subr.bf16.mxu0 0
  %1143 = vmatpush1.bf16.msra.mxu0 %v862
  %1144 = vmatprep.subr.bf16.mxu0 0
  %1145 = vmatpush1.bf16.msra.mxu0 %v863
  %1146 = vmatprep.subr.bf16.mxu0 0
  %1147 = vmatpush1.bf16.msra.mxu0 %v864
  %1148 = vmatprep.subr.bf16.mxu0 0
  %1149 = vmatpush1.bf16.msra.mxu0 %v865
  %1150 = vmatprep.subr.bf16.mxu0 0
  %1151 = vmatpush1.bf16.msra.mxu0 %v866
  %1152 = vmatprep.subr.bf16.mxu0 0
  %1153 = vmatpush1.bf16.msra.mxu0 %v867
  %1154 = vmatprep.subr.bf16.mxu0 0
  %1155 = vmatpush1.bf16.msra.mxu0 %v868
  %1156 = vmatprep.subr.bf16.mxu0 0
  %1157 = vmatpush1.bf16.msra.mxu0 %v869
  %1158 = vmatprep.subr.bf16.mxu0 0
  %1159 = vmatpush1.bf16.msra.mxu0 %v870
  %1160 = vmatprep.subr.bf16.mxu0 0
  %1161 = vmatpush1.bf16.msra.mxu0 %v871
  %1162 = vmatprep.subr.bf16.mxu0 0
  %1163 = vmatpush1.bf16.msra.mxu0 %v872
  %1164 = vmatprep.subr.bf16.mxu0 0
  %1165 = vmatpush1.bf16.msra.mxu0 %v873
  %1166 = vmatprep.subr.bf16.mxu0 0
  %1167 = vmatpush1.bf16.msra.mxu0 %v874
  %1168 = vmatprep.subr.bf16.mxu0 0
  %1169 = vmatpush1.bf16.msra.mxu0 %v875
  %1170 = vmatprep.subr.bf16.mxu0 0
  %1171 = vmatpush1.bf16.msra.mxu0 %v876
  %1172 = vmatprep.subr.bf16.mxu0 0
  %1173 = vmatpush1.bf16.msra.mxu0 %v877
  %1174 = vmatprep.mubr.bf16.mxu0 %v305
  %1175 = vmatmul.mubr.bf16.gmra.mrb[0].mxu0 %v304
  %v1176 = vpop.f32.mrb[0].mxu0
  %v1177 = vadd.f32 %v1137, %v1176
  %v1178 = vpop.f32.mrb[0].mxu0
  %v1179 = vpop.f32.mrb[0].mxu0
  %v1180 = vpop.f32.mrb[0].mxu0
  %1181 = vdwg.mxu0
  %1182 = vmatprep.subr.bf16.mxu0 0
  %1183 = vmatpush1.bf16.msra.mxu0 %v878
  %1184 = vmatprep.subr.bf16.mxu0 0
  %1185 = vmatpush1.bf16.msra.mxu0 %v879
  %1186 = vmatprep.subr.bf16.mxu0 0
  %1187 = vmatpush1.bf16.msra.mxu0 %v880
  %1188 = vmatprep.subr.bf16.mxu0 0
  %1189 = vmatpush1.bf16.msra.mxu0 %v881
  %1190 = vmatprep.subr.bf16.mxu0 0
  %1191 = vmatpush1.bf16.msra.mxu0 %v882
  %1192 = vmatprep.subr.bf16.mxu0 0
  %1193 = vmatpush1.bf16.msra.mxu0 %v883
  %1194 = vmatprep.subr.bf16.mxu0 0
  %1195 = vmatpush1.bf16.msra.mxu0 %v884
  %1196 = vmatprep.subr.bf16.mxu0 0
  %1197 = vmatpush1.bf16.msra.mxu0 %v885
  %1198 = vmatprep.subr.bf16.mxu0 0
  %1199 = vmatpush1.bf16.msra.mxu0 %v886
  %1200 = vmatprep.subr.bf16.mxu0 0
  %1201 = vmatpush1.bf16.msra.mxu0 %v887
  %1202 = vmatprep.subr.bf16.mxu0 0
  %1203 = vmatpush1.bf16.msra.mxu0 %v888
  %1204 = vmatprep.subr.bf16.mxu0 0
  %1205 = vmatpush1.bf16.msra.mxu0 %v889
  %1206 = vmatprep.subr.bf16.mxu0 0
  %1207 = vmatpush1.bf16.msra.mxu0 %v890
  %1208 = vmatprep.subr.bf16.mxu0 0
  %1209 = vmatpush1.bf16.msra.mxu0 %v891
  %1210 = vmatprep.subr.bf16.mxu0 0
  %1211 = vmatpush1.bf16.msra.mxu0 %v892
  %1212 = vmatprep.subr.bf16.mxu0 0
  %1213 = vmatpush1.bf16.msra.mxu0 %v893
  %1214 = vmatprep.mubr.bf16.mxu0 %v307
  %1215 = vmatmul.mubr.bf16.gmra.mrb[0].mxu0 %v306
  %v1216 = vpop.f32.mrb[0].mxu0
  %v1217 = vadd.f32 %v1177, %v1216
  %v1218 = vpop.f32.mrb[0].mxu0
  %v1219 = vpop.f32.mrb[0].mxu0
  %v1220 = vpop.f32.mrb[0].mxu0
  %1221 = vdwg.mxu0
  %1222 = vmatprep.subr.bf16.mxu0 0
  %1223 = vmatpush1.bf16.msra.mxu0 %v894
  %1224 = vmatprep.subr.bf16.mxu0 0
  %1225 = vmatpush1.bf16.msra.mxu0 %v895
  %1226 = vmatprep.subr.bf16.mxu0 0
  %1227 = vmatpush1.bf16.msra.mxu0 %v896
  %1228 = vmatprep.subr.bf16.mxu0 0
  %1229 = vmatpush1.bf16.msra.mxu0 %v897
  %1230 = vmatprep.subr.bf16.mxu0 0
  %1231 = vmatpush1.bf16.msra.mxu0 %v898
  %1232 = vmatprep.subr.bf16.mxu0 0
  %1233 = vmatpush1.bf16.msra.mxu0 %v899
  %1234 = vmatprep.subr.bf16.mxu0 0
  %1235 = vmatpush1.bf16.msra.mxu0 %v900
  %1236 = vmatprep.subr.bf16.mxu0 0
  %1237 = vmatpush1.bf16.msra.mxu0 %v901
  %1238 = vmatprep.subr.bf16.mxu0 0
  %1239 = vmatpush1.bf16.msra.mxu0 %v902
  %1240 = vmatprep.subr.bf16.mxu0 0
  %1241 = vmatpush1.bf16.msra.mxu0 %v903
  %1242 = vmatprep.subr.bf16.mxu0 0
  %1243 = vmatpush1.bf16.msra.mxu0 %v904
  %1244 = vmatprep.subr.bf16.mxu0 0
  %1245 = vmatpush1.bf16.msra.mxu0 %v905
  %1246 = vmatprep.subr.bf16.mxu0 0
  %1247 = vmatpush1.bf16.msra.mxu0 %v906
  %1248 = vmatprep.subr.bf16.mxu0 0
  %1249 = vmatpush1.bf16.msra.mxu0 %v907
  %1250 = vmatprep.subr.bf16.mxu0 0
  %1251 = vmatpush1.bf16.msra.mxu0 %v908
  %1252 = vmatprep.subr.bf16.mxu0 0
  %1253 = vmatpush1.bf16.msra.mxu0 %v909
  %1254 = vmatprep.mubr.bf16.mxu0 %v309
  %1255 = vmatmul.mubr.bf16.gmra.mrb[0].mxu0 %v308
  %v1256 = vpop.f32.mrb[0].mxu0
  %v1257 = vadd.f32 %v1217, %v1256
  %v1258 = vpop.f32.mrb[0].mxu0
  %v1259 = vpop.f32.mrb[0].mxu0
  %v1260 = vpop.f32.mrb[0].mxu0
  %1261 = vdwg.mxu0
  %1262 = vmatprep.subr.bf16.mxu0 0
  %1263 = vmatpush1.bf16.msra.mxu0 %v910
  %1264 = vmatprep.subr.bf16.mxu0 0
  %1265 = vmatpush1.bf16.msra.mxu0 %v911
  %1266 = vmatprep.subr.bf16.mxu0 0
  %1267 = vmatpush1.bf16.msra.mxu0 %v912
  %1268 = vmatprep.subr.bf16.mxu0 0
  %1269 = vmatpush1.bf16.msra.mxu0 %v913
  %1270 = vmatprep.subr.bf16.mxu0 0
  %1271 = vmatpush1.bf16.msra.mxu0 %v914
  %1272 = vmatprep.subr.bf16.mxu0 0
  %1273 = vmatpush1.bf16.msra.mxu0 %v915
  %1274 = vmatprep.subr.bf16.mxu0 0
  %1275 = vmatpush1.bf16.msra.mxu0 %v916
  %1276 = vmatprep.subr.bf16.mxu0 0
  %1277 = vmatpush1.bf16.msra.mxu0 %v917
  %1278 = vmatprep.subr.bf16.mxu0 0
  %1279 = vmatpush1.bf16.msra.mxu0 %v918
  %1280 = vmatprep.subr.bf16.mxu0 0
  %1281 = vmatpush1.bf16.msra.mxu0 %v919
  %1282 = vmatprep.subr.bf16.mxu0 0
  %1283 = vmatpush1.bf16.msra.mxu0 %v920
  %1284 = vmatprep.subr.bf16.mxu0 0
  %1285 = vmatpush1.bf16.msra.mxu0 %v921
  %1286 = vmatprep.subr.bf16.mxu0 0
  %1287 = vmatpush1.bf16.msra.mxu0 %v922
  %1288 = vmatprep.subr.bf16.mxu0 0
  %1289 = vmatpush1.bf16.msra.mxu0 %v923
  %1290 = vmatprep.subr.bf16.mxu0 0
  %1291 = vmatpush1.bf16.msra.mxu0 %v924
  %1292 = vmatprep.subr.bf16.mxu0 0
  %1293 = vmatpush1.bf16.msra.mxu0 %v925
  %1294 = vmatprep.mubr.bf16.mxu0 %v311
  %1295 = vmatmul.mubr.bf16.gmra.mrb[0].mxu0 %v310
  %v1296 = vpop.f32.mrb[0].mxu0
  %v1297 = vadd.f32 %v1257, %v1296
  %v1298 = vpop.f32.mrb[0].mxu0
  %v1299 = vpop.f32.mrb[0].mxu0
  %v1300 = vpop.f32.mrb[0].mxu0
  %1301 = vdwg.mxu0
  %1302 = vmatprep.subr.bf16.mxu0 0
  %1303 = vmatpush1.bf16.msra.mxu0 %v926
  %1304 = vmatprep.subr.bf16.mxu0 0
  %1305 = vmatpush1.bf16.msra.mxu0 %v927
  %1306 = vmatprep.subr.bf16.mxu0 0
  %1307 = vmatpush1.bf16.msra.mxu0 %v928
  %1308 = vmatprep.subr.bf16.mxu0 0
  %1309 = vmatpush1.bf16.msra.mxu0 %v929
  %1310 = vmatprep.subr.bf16.mxu0 0
  %1311 = vmatpush1.bf16.msra.mxu0 %v930
  %1312 = vmatprep.subr.bf16.mxu0 0
  %1313 = vmatpush1.bf16.msra.mxu0 %v931
  %1314 = vmatprep.subr.bf16.mxu0 0
  %1315 = vmatpush1.bf16.msra.mxu0 %v932
  %1316 = vmatprep.subr.bf16.mxu0 0
  %1317 = vmatpush1.bf16.msra.mxu0 %v933
  %1318 = vmatprep.subr.bf16.mxu0 0
  %1319 = vmatpush1.bf16.msra.mxu0 %v934
  %1320 = vmatprep.subr.bf16.mxu0 0
  %1321 = vmatpush1.bf16.msra.mxu0 %v935
  %1322 = vmatprep.subr.bf16.mxu0 0
  %1323 = vmatpush1.bf16.msra.mxu0 %v936
  %1324 = vmatprep.subr.bf16.mxu0 0
  %1325 = vmatpush1.bf16.msra.mxu0 %v937
  %1326 = vmatprep.subr.bf16.mxu0 0
  %1327 = vmatpush1.bf16.msra.mxu0 %v938
  %1328 = vmatprep.subr.bf16.mxu0 0
  %1329 = vmatpush1.bf16.msra.mxu0 %v939
  %1330 = vmatprep.subr.bf16.mxu0 0
  %1331 = vmatpush1.bf16.msra.mxu0 %v940
  %1332 = vmatprep.subr.bf16.mxu0 0
  %1333 = vmatpush1.bf16.msra.mxu0 %v941
  %1334 = vmatprep.mubr.bf16.mxu0 %v313
  %1335 = vmatmul.mubr.bf16.gmra.mrb[0].mxu0 %v312
  %v1336 = vpop.f32.mrb[0].mxu0
  %v1337 = vadd.f32 %v1297, %v1336
  %v1338 = vpop.f32.mrb[0].mxu0
  %v1339 = vpop.f32.mrb[0].mxu0
  %v1340 = vpop.f32.mrb[0].mxu0
  %1341 = vdwg.mxu0
  %1342 = vmatprep.subr.bf16.mxu0 0
  %1343 = vmatpush1.bf16.msra.mxu0 %v942
  %1344 = vmatprep.subr.bf16.mxu0 0
  %1345 = vmatpush1.bf16.msra.mxu0 %v943
  %1346 = vmatprep.subr.bf16.mxu0 0
  %1347 = vmatpush1.bf16.msra.mxu0 %v944
  %1348 = vmatprep.subr.bf16.mxu0 0
  %1349 = vmatpush1.bf16.msra.mxu0 %v945
  %1350 = vmatprep.subr.bf16.mxu0 0
  %1351 = vmatpush1.bf16.msra.mxu0 %v946
  %1352 = vmatprep.subr.bf16.mxu0 0
  %1353 = vmatpush1.bf16.msra.mxu0 %v947
  %1354 = vmatprep.subr.bf16.mxu0 0
  %1355 = vmatpush1.bf16.msra.mxu0 %v948
  %1356 = vmatprep.subr.bf16.mxu0 0
  %1357 = vmatpush1.bf16.msra.mxu0 %v949
  %1358 = vmatprep.subr.bf16.mxu0 0
  %1359 = vmatpush1.bf16.msra.mxu0 %v950
  %1360 = vmatprep.subr.bf16.mxu0 0
  %1361 = vmatpush1.bf16.msra.mxu0 %v951
  %1362 = vmatprep.subr.bf16.mxu0 0
  %1363 = vmatpush1.bf16.msra.mxu0 %v952
  %1364 = vmatprep.subr.bf16.mxu0 0
  %1365 = vmatpush1.bf16.msra.mxu0 %v953
  %1366 = vmatprep.subr.bf16.mxu0 0
  %1367 = vmatpush1.bf16.msra.mxu0 %v954
  %1368 = vmatprep.subr.bf16.mxu0 0
  %1369 = vmatpush1.bf16.msra.mxu0 %v955
  %1370 = vmatprep.subr.bf16.mxu0 0
  %1371 = vmatpush1.bf16.msra.mxu0 %v956
  %1372 = vmatprep.subr.bf16.mxu0 0
  %1373 = vmatpush1.bf16.msra.mxu0 %v957
  %1374 = vmatprep.mubr.bf16.mxu0 %v315
  %1375 = vmatmul.mubr.bf16.gmra.mrb[0].mxu0 %v314
  %v1376 = vpop.f32.mrb[0].mxu0
  %v1377 = vadd.f32 %v1337, %v1376
  %v1378 = vpop.f32.mrb[0].mxu0
  %v1379 = vpop.f32.mrb[0].mxu0
  %v1380 = vpop.f32.mrb[0].mxu0
  %1381 = vdwg.mxu0
  %1382 = vmatprep.subr.bf16.mxu0 0
  %1383 = vmatpush1.bf16.msra.mxu0 %v958
  %1384 = vmatprep.subr.bf16.mxu0 0
  %1385 = vmatpush1.bf16.msra.mxu0 %v959
  %1386 = vmatprep.subr.bf16.mxu0 0
  %1387 = vmatpush1.bf16.msra.mxu0 %v960
  %1388 = vmatprep.subr.bf16.mxu0 0
  %1389 = vmatpush1.bf16.msra.mxu0 %v961
  %1390 = vmatprep.subr.bf16.mxu0 0
  %1391 = vmatpush1.bf16.msra.mxu0 %v962
  %1392 = vmatprep.subr.bf16.mxu0 0
  %1393 = vmatpush1.bf16.msra.mxu0 %v963
  %1394 = vmatprep.subr.bf16.mxu0 0
  %1395 = vmatpush1.bf16.msra.mxu0 %v964
  %1396 = vmatprep.subr.bf16.mxu0 0
  %1397 = vmatpush1.bf16.msra.mxu0 %v965
  %1398 = vmatprep.subr.bf16.mxu0 0
  %1399 = vmatpush1.bf16.msra.mxu0 %v966
  %1400 = vmatprep.subr.bf16.mxu0 0
  %1401 = vmatpush1.bf16.msra.mxu0 %v967
  %1402 = vmatprep.subr.bf16.mxu0 0
  %1403 = vmatpush1.bf16.msra.mxu0 %v968
  %1404 = vmatprep.subr.bf16.mxu0 0
  %1405 = vmatpush1.bf16.msra.mxu0 %v969
  %1406 = vmatprep.subr.bf16.mxu0 0
  %1407 = vmatpush1.bf16.msra.mxu0 %v970
  %1408 = vmatprep.subr.bf16.mxu0 0
  %1409 = vmatpush1.bf16.msra.mxu0 %v971
  %1410 = vmatprep.subr.bf16.mxu0 0
  %1411 = vmatpush1.bf16.msra.mxu0 %v972
  %1412 = vmatprep.subr.bf16.mxu0 0
  %1413 = vmatpush1.bf16.msra.mxu0 %v973
  %1414 = vmatprep.mubr.bf16.mxu0 %v317
  %1415 = vmatmul.mubr.bf16.gmra.mrb[0].mxu0 %v316
  %v1416 = vpop.f32.mrb[0].mxu0
  %v1417 = vadd.f32 %v1377, %v1416
  %v1418 = vpop.f32.mrb[0].mxu0
  %v1419 = vpop.f32.mrb[0].mxu0
  %v1420 = vpop.f32.mrb[0].mxu0
  %1421 = vdwg.mxu0
  %v1422 = vpack.c.bf16 %v1417, %v1417
  %1423 = vst [vmem:[%s2] sm:$0xf] %v1422
  %s1424 = smul.u32 0, 8
  %v1425 = vlaneseq
  %v1426 = vshrl.u32 %v1425, 7
  %v1427 = vstv %s1424
  %v1428 = vadd.s32 %v1427, %v1426
  %vm1429 = vcmp.lt.s32.totalorder %v1428, 8
  %v1430 = vsel %vm1429, %v1417, 0.0
  %v1431 = vrot.slane %v1430, 4
  %v1432 = vadd.f32 %v1430, %v1431
  %v1433 = vrot.slane %v1432, 2
  %v1434 = vadd.f32 %v1432, %v1433
  %v1435 = vrot.slane %v1434, 1
  %v1436 = vadd.f32 %v1434, %v1435
  %v1437 = vmul.f32 %v1430, %v1430
  %v1438 = vrot.slane %v1437, 4
  %v1439 = vadd.f32 %v1437, %v1438
  %v1440 = vrot.slane %v1439, 2
  %v1441 = vadd.f32 %v1439, %v1440
  %v1442 = vrot.slane %v1441, 1
  %v1443 = vadd.f32 %v1441, %v1442
  %vm1444 = vcmp.eq.s32.totalorder %v1426, 0
  %vm1445 = vcmp.eq.s32.totalorder %v1426, 1
  %v1446 = vsel %vm1445, %v1443, 0.0
  %v1447 = vsel %vm1444, %v1436, %v1446
  %1448 = vst [vmem:[%s3] sm:$0xff] %v1447
  // Predicated region
  $region10: #{multi_discriminator_forward.23} parent=0 // pred_check
    _
  $region11: #{multi_discriminator_forward.23} parent=0 // pred_check_branch
    %1450 = sbr.rel (0) target = $region13
  $region12: #{multi_discriminator_forward.23} parent=0 // pred_region
    _
  $region13: #{multi_discriminator_forward.23} parent=0 // pred_fallthru
    _
  // Predicated region
  $region14: #{multi_discriminator_forward.23} parent=0 // pred_check
    _
  $region15: #{multi_discriminator_forward.23} parent=0 // pred_check_branch
    %1452 = sbr.rel (0) target = $region17
  $region16: #{multi_discriminator_forward.23} parent=0 // pred_region
    _
  $region17: #{multi_discriminator_forward.23} parent=0 // pred_fallthru
    _
  // Predicated region
  $region18: #{multi_discriminator_forward.23} parent=0 // pred_check
    _
  $region19: #{multi_discriminator_forward.23} parent=0 // pred_check_branch
    %1454 = sbr.rel (0) target = $region21
  $region20: #{multi_discriminator_forward.23} parent=0 // pred_region
    _
  $region21: #{multi_discriminator_forward.23} parent=0 // pred_fallthru
    _
  // Predicated region
  $region22: #{multi_discriminator_forward.23} parent=0 // pred_check
    _
  $region23: #{multi_discriminator_forward.23} parent=0 // pred_check_branch
    %1456 = sbr.rel (0) target = $region25
  $region24: #{multi_discriminator_forward.23} parent=0 // pred_region
    _
  $region25: #{multi_discriminator_forward.23} parent=0 // pred_fallthru
    _

// kernel: multi_discriminator_forward.21
$region0: #{multi_discriminator_forward.21}
  #allocation0 [shape = 'u32[]', space=smem, size = 0x4, offset = 0x4, fixed_abs, tag = 'smem constant byte address 0x4 - core index']
  #allocation1 [shape = 'u32[144,128]{1,0:T(1,128)}', space=vmem, size = 0x12000, scoped, tag = 'internal scratch']
  %s0 = inlined_call_operand.vmem [shape: bf16[32,128], index: 0, kind: input, shape index: {}]
  %s1 = inlined_call_operand.vmem [shape: f32[1,128], index: 1, kind: input, shape index: {}]
  %s2 = inlined_call_operand.vmem [shape: f32[1,128], index: 2, kind: input, shape index: {}]
  %s3 = inlined_call_operand.vmem [shape: bf16[32,128], index: 3, kind: output, shape index: {}]
  %s4 = sld [smem:[#allocation0]]
  $region22: #{multi_discriminator_forward.21} parent=0
    _
  %s6 = ssub.s32 1, %s4
  %s7 = scalar_select 0, %s6, %s4
  // Predicated region
  $region2: #{multi_discriminator_forward.21} parent=0 // pred_check
    _
  $region3: #{multi_discriminator_forward.21} parent=0 // pred_check_branch
    %9 = sbr.rel (0) target = $region5
  $region4: #{multi_discriminator_forward.21} parent=0 // pred_region
    _
  $region5: #{multi_discriminator_forward.21} parent=0 // pred_fallthru
    _
  // Predicated region
  $region6: #{multi_discriminator_forward.21} parent=0 // pred_check
    _
  $region7: #{multi_discriminator_forward.21} parent=0 // pred_check_branch
    %11 = sbr.rel (0) target = $region9
  $region8: #{multi_discriminator_forward.21} parent=0 // pred_region
    _
  $region9: #{multi_discriminator_forward.21} parent=0 // pred_fallthru
    _
  // Predicated region
  $region10: #{multi_discriminator_forward.21} parent=0 // pred_check
    _
  $region11: #{multi_discriminator_forward.21} parent=0 // pred_check_branch
    %13 = sbr.rel (0) target = $region13
  $region12: #{multi_discriminator_forward.21} parent=0 // pred_region
    _
  $region13: #{multi_discriminator_forward.21} parent=0 // pred_fallthru
    _
  %v14 = vld [vmem:[%s0] sm:$0xf]
  %v15 = vld [vmem:[%s0 + $0x4] sm:$0xf]
  %v16 = vld [vmem:[%s0 + $0x8] sm:$0xf]
  %v17 = vld [vmem:[%s0 + $0xc] sm:$0xf]
  %v18 = vunpack.c.l.bf16 %v14
  %v19 = vunpack.c.l.bf16 %v15
  %v20 = vunpack.c.l.bf16 %v16
  %v21 = vunpack.c.l.bf16 %v17
  %v22 = vld [vmem:[%s1] sm:$0x1]
  %v24 = vlaneseq
  %v25 = vshrl.u32 %v24, 7
  %v26 = vsub.s32 0, %v25
  %v27 = vrot.slane %v22, %v26
  %v29 = vmul.f32 %v18, %v27
  %v30 = vmul.f32 %v19, %v27
  %v31 = vmul.f32 %v20, %v27
  %v32 = vmul.f32 %v21, %v27
  %v33 = vld [vmem:[%s2] sm:$0x1]
  %v35 = vlaneseq
  %v36 = vshrl.u32 %v35, 7
  %v37 = vsub.s32 0, %v36
  %v38 = vrot.slane %v33, %v37
  %v40 = vadd.f32 %v29, %v38
  %v41 = vadd.f32 %v30, %v38
  %v42 = vadd.f32 %v31, %v38
  %v43 = vadd.f32 %v32, %v38
  %vm44 = vcmp.ge.f32.partialorder %v40, 0.0
  %vm45 = vcmp.ge.f32.partialorder %v41, 0.0
  %vm46 = vcmp.ge.f32.partialorder %v42, 0.0
  %vm47 = vcmp.ge.f32.partialorder %v43, 0.0
  %v48 = vmul.f32 %v40, 0.2
  %v49 = vmul.f32 %v41, 0.2
  %v50 = vmul.f32 %v42, 0.2
  %v51 = vmul.f32 %v43, 0.2
  %v52 = vsel %vm44, %v40, %v48
  %v53 = vsel %vm45, %v41, %v49
  %v54 = vsel %vm46, %v42, %v50
  %v55 = vsel %vm47, %v43, %v51
  %v56 = vpack.c.bf16 %v53, %v52
  %v57 = vpack.c.bf16 %v55, %v54
  %v60 = vunpack.c.l.b16 %v56
  %v61 = vunpack.c.h.b16 %v56
  %v62 = vunpack.c.l.b16 %v57
  %v63 = vunpack.c.h.b16 %v57
  %v64 = vpack.c.b16 %v60, %v60
  %v65 = vpack.c.b16 %v61, %v61
  %v66 = vpack.c.b16 %v62, %v62
  %v67 = vpack.c.b16 %v63, %v63
  %72 = vst [vmem:[%s3] sm:$0xf] %v64
  %73 = vst [vmem:[%s3 + $0x4] sm:$0xf] %v65
  %74 = vst [vmem:[%s3 + $0x8] sm:$0xf] %v66
  %75 = vst [vmem:[%s3 + $0xc] sm:$0xf] %v67
  // Predicated region
  $region14: #{multi_discriminator_forward.21} parent=0 // pred_check
    _
  $region15: #{multi_discriminator_forward.21} parent=0 // pred_check_branch
    %77 = sbr.rel (0) target = $region17
  $region16: #{multi_discriminator_forward.21} parent=0 // pred_region
    _
  $region17: #{multi_discriminator_forward.21} parent=0 // pred_fallthru
    _
  // Predicated region
  $region18: #{multi_discriminator_forward.21} parent=0 // pred_check
    _
  $region19: #{multi_discriminator_forward.21} parent=0 // pred_check_branch
    %79 = sbr.rel (0) target = $region21
  $region20: #{multi_discriminator_forward.21} parent=0 // pred_region
    _
  $region21: #{multi_discriminator_forward.21} parent=0 // pred_fallthru
    _

// kernel: multi_discriminator_forward.29
$region0: #{multi_discriminator_forward.29}
  #allocation0 [shape = 'u32[]', space=smem, size = 0x4, offset = 0x4, fixed_abs, tag = 'smem constant byte address 0x4 - core index']
  #allocation1 [shape = 'u32[144,128]{1,0:T(1,128)}', space=vmem, size = 0x12000, scoped, tag = 'internal scratch']
  %s0 = inlined_call_operand.vmem [shape: bf16[32,2048], index: 0, kind: input, shape index: {}]
  %s1 = inlined_call_operand.vmem [shape: bf16[2048,128], index: 1, kind: input, shape index: {}]
  %s2 = inlined_call_operand.vmem [shape: f32[1,128], index: 2, kind: input, shape index: {}]
  %s3 = inlined_call_operand.vmem [shape: f32[32,128], index: 3, kind: output, shape index: {}]
  %s4 = sld [smem:[#allocation0]]
  $region22: #{multi_discriminator_forward.29} parent=0
    _
  %s6 = ssub.s32 1, %s4
  %s7 = scalar_select 0, %s6, %s4
  // Predicated region
  $region2: #{multi_discriminator_forward.29} parent=0 // pred_check
    _
  $region3: #{multi_discriminator_forward.29} parent=0 // pred_check_branch
    %9 = sbr.rel (0) target = $region5
  $region4: #{multi_discriminator_forward.29} parent=0 // pred_region
    _
  $region5: #{multi_discriminator_forward.29} parent=0 // pred_fallthru
    _
  // Predicated region
  $region6: #{multi_discriminator_forward.29} parent=0 // pred_check
    _
  $region7: #{multi_discriminator_forward.29} parent=0 // pred_check_branch
    %11 = sbr.rel (0) target = $region9
  $region8: #{multi_discriminator_forward.29} parent=0 // pred_region
    _
  $region9: #{multi_discriminator_forward.29} parent=0 // pred_fallthru
    _
  // Predicated region
  $region10: #{multi_discriminator_forward.29} parent=0 // pred_check
    _
  $region11: #{multi_discriminator_forward.29} parent=0 // pred_check_branch
    %13 = sbr.rel (0) target = $region13
  $region12: #{multi_discriminator_forward.29} parent=0 // pred_region
    _
  $region13: #{multi_discriminator_forward.29} parent=0 // pred_fallthru
    _
  %v15 = vld [vmem:[%s0] sm:$0xff]
  %v16 = vld [vmem:[%s0 + $0x8] sm:$0xff]
  %v17 = vld [vmem:[%s0 + $0x10] sm:$0xff]
  %v18 = vld [vmem:[%s0 + $0x18] sm:$0xff]
  %v19 = vld [vmem:[%s0 + $0x20] sm:$0xff]
  %v20 = vld [vmem:[%s0 + $0x28] sm:$0xff]
  %v21 = vld [vmem:[%s0 + $0x30] sm:$0xff]
  %v22 = vld [vmem:[%s0 + $0x38] sm:$0xff]
  %v23 = vld [vmem:[%s0 + $0x40] sm:$0xff]
  %v24 = vld [vmem:[%s0 + $0x48] sm:$0xff]
  %v25 = vld [vmem:[%s0 + $0x50] sm:$0xff]
  %v26 = vld [vmem:[%s0 + $0x58] sm:$0xff]
  %v27 = vld [vmem:[%s0 + $0x60] sm:$0xff]
  %v28 = vld [vmem:[%s0 + $0x68] sm:$0xff]
  %v29 = vld [vmem:[%s0 + $0x70] sm:$0xff]
  %v30 = vld [vmem:[%s0 + $0x78] sm:$0xff]
  %v31 = vld [vmem:[%s0 + $0x80] sm:$0xff]
  %v32 = vld [vmem:[%s0 + $0x88] sm:$0xff]
  %v33 = vld [vmem:[%s0 + $0x90] sm:$0xff]
  %v34 = vld [vmem:[%s0 + $0x98] sm:$0xff]
  %v35 = vld [vmem:[%s0 + $0xa0] sm:$0xff]
  %v36 = vld [vmem:[%s0 + $0xa8] sm:$0xff]
  %v37 = vld [vmem:[%s0 + $0xb0] sm:$0xff]
  %v38 = vld [vmem:[%s0 + $0xb8] sm:$0xff]
  %v39 = vld [vmem:[%s0 + $0xc0] sm:$0xff]
  %v40 = vld [vmem:[%s0 + $0xc8] sm:$0xff]
  %v41 = vld [vmem:[%s0 + $0xd0] sm:$0xff]
  %v42 = vld [vmem:[%s0 + $0xd8] sm:$0xff]
  %v43 = vld [vmem:[%s0 + $0xe0] sm:$0xff]
  %v44 = vld [vmem:[%s0 + $0xe8] sm:$0xff]
  %v45 = vld [vmem:[%s0 + $0xf0] sm:$0xff]
  %v46 = vld [vmem:[%s0 + $0xf8] sm:$0xff]
  %v47 = vld [vmem:[%s1] sm:$0xf]
  %v48 = vld [vmem:[%s1 + $0x4] sm:$0xf]
  %v49 = vld [vmem:[%s1 + $0x8] sm:$0xf]
  %v50 = vld [vmem:[%s1 + $0xc] sm:$0xf]
  %v51 = vld [vmem:[%s1 + $0x10] sm:$0xf]
  %v52 = vld [vmem:[%s1 + $0x14] sm:$0xf]
  %v53 = vld [vmem:[%s1 + $0x18] sm:$0xf]
  %v54 = vld [vmem:[%s1 + $0x1c] sm:$0xf]
  %v55 = vld [vmem:[%s1 + $0x20] sm:$0xf]
  %v56 = vld [vmem:[%s1 + $0x24] sm:$0xf]
  %v57 = vld [vmem:[%s1 + $0x28] sm:$0xf]
  %v58 = vld [vmem:[%s1 + $0x2c] sm:$0xf]
  %v59 = vld [vmem:[%s1 + $0x30] sm:$0xf]
  %v60 = vld [vmem:[%s1 + $0x34] sm:$0xf]
  %v61 = vld [vmem:[%s1 + $0x38] sm:$0xf]
  %v62 = vld [vmem:[%s1 + $0x3c] sm:$0xf]
  %v63 = vld [vmem:[%s1 + $0x40] sm:$0xf]
  %v64 = vld [vmem:[%s1 + $0x44] sm:$0xf]
  %v65 = vld [vmem:[%s1 + $0x48] sm:$0xf]
  %v66 = vld [vmem:[%s1 + $0x4c] sm:$0xf]
  %v67 = vld [vmem:[%s1 + $0x50] sm:$0xf]
  %v68 = vld [vmem:[%s1 + $0x54] sm:$0xf]
  %v69 = vld [vmem:[%s1 + $0x58] sm:$0xf]
  %v70 = vld [vmem:[%s1 + $0x5c] sm:$0xf]
  %v71 = vld [vmem:[%s1 + $0x60] sm:$0xf]
  %v72 = vld [vmem:[%s1 + $0x64] sm:$0xf]
  %v73 = vld [vmem:[%s1 + $0x68] sm:$0xf]
  %v74 = vld [vmem:[%s1 + $0x6c] sm:$0xf]
  %v75 = vld [vmem:[%s1 + $0x70] sm:$0xf]
  %v76 = vld [vmem:[%s1 + $0x74] sm:$0xf]
  %v77 = vld [vmem:[%s1 + $0x78] sm:$0xf]
  %v78 = vld [vmem:[%s1 + $0x7c] sm:$0xf]
  %v79 = vld [vmem:[%s1 + $0x80] sm:$0xf]
  %v80 = vld [vmem:[%s1 + $0x84] sm:$0xf]
  %v81 = vld [vmem:[%s1 + $0x88] sm:$0xf]
  %v82 = vld [vmem:[%s1 + $0x8c] sm:$0xf]
  %v83 = vld [vmem:[%s1 + $0x90] sm:$0xf]
  %v84 = vld [vmem:[%s1 + $0x94] sm:$0xf]
  %v85 = vld [vmem:[%s1 + $0x98] sm:$0xf]
  %v86 = vld [vmem:[%s1 + $0x9c] sm:$0xf]
  %v87 = vld [vmem:[%s1 + $0xa0] sm:$0xf]
  %v88 = vld [vmem:[%s1 + $0xa4] sm:$0xf]
  %v89 = vld [vmem:[%s1 + $0xa8] sm:$0xf]
  %v90 = vld [vmem:[%s1 + $0xac] sm:$0xf]
  %v91 = vld [vmem:[%s1 + $0xb0] sm:$0xf]
  %v92 = vld [vmem:[%s1 + $0xb4] sm:$0xf]
  %v93 = vld [vmem:[%s1 + $0xb8] sm:$0xf]
  %v94 = vld [vmem:[%s1 + $0xbc] sm:$0xf]
  %v95 = vld [vmem:[%s1 + $0xc0] sm:$0xf]
  %v96 = vld [vmem:[%s1 + $0xc4] sm:$0xf]
  %v97 = vld [vmem:[%s1 + $0xc8] sm:$0xf]
  %v98 = vld [vmem:[%s1 + $0xcc] sm:$0xf]
  %v99 = vld [vmem:[%s1 + $0xd0] sm:$0xf]
  %v100 = vld [vmem:[%s1 + $0xd4] sm:$0xf]
  %v101 = vld [vmem:[%s1 + $0xd8] sm:$0xf]
  %v102 = vld [vmem:[%s1 + $0xdc] sm:$0xf]
  %v103 = vld [vmem:[%s1 + $0xe0] sm:$0xf]
  %v104 = vld [vmem:[%s1 + $0xe4] sm:$0xf]
  %v105 = vld [vmem:[%s1 + $0xe8] sm:$0xf]
  %v106 = vld [vmem:[%s1 + $0xec] sm:$0xf]
  %v107 = vld [vmem:[%s1 + $0xf0] sm:$0xf]
  %v108 = vld [vmem:[%s1 + $0xf4] sm:$0xf]
  %v109 = vld [vmem:[%s1 + $0xf8] sm:$0xf]
  %v110 = vld [vmem:[%s1 + $0xfc] sm:$0xf]
  %v111 = vld [vmem:[%s1 + $0x100] sm:$0xf]
  %v112 = vld [vmem:[%s1 + $0x104] sm:$0xf]
  %v113 = vld [vmem:[%s1 + $0x108] sm:$0xf]
  %v114 = vld [vmem:[%s1 + $0x10c] sm:$0xf]
  %v115 = vld [vmem:[%s1 + $0x110] sm:$0xf]
  %v116 = vld [vmem:[%s1 + $0x114] sm:$0xf]
  %v117 = vld [vmem:[%s1 + $0x118] sm:$0xf]
  %v118 = vld [vmem:[%s1 + $0x11c] sm:$0xf]
  %v119 = vld [vmem:[%s1 + $0x120] sm:$0xf]
  %v120 = vld [vmem:[%s1 + $0x124] sm:$0xf]
  %v121 = vld [vmem:[%s1 + $0x128] sm:$0xf]
  %v122 = vld [vmem:[%s1 + $0x12c] sm:$0xf]
  %v123 = vld [vmem:[%s1 + $0x130] sm:$0xf]
  %v124 = vld [vmem:[%s1 + $0x134] sm:$0xf]
  %v125 = vld [vmem:[%s1 + $0x138] sm:$0xf]
  %v126 = vld [vmem:[%s1 + $0x13c] sm:$0xf]
  %v127 = vld [vmem:[%s1 + $0x140] sm:$0xf]
  %v128 = vld [vmem:[%s1 + $0x144] sm:$0xf]
  %v129 = vld [vmem:[%s1 + $0x148] sm:$0xf]
  %v130 = vld [vmem:[%s1 + $0x14c] sm:$0xf]
  %v131 = vld [vmem:[%s1 + $0x150] sm:$0xf]
  %v132 = vld [vmem:[%s1 + $0x154] sm:$0xf]
  %v133 = vld [vmem:[%s1 + $0x158] sm:$0xf]
  %v134 = vld [vmem:[%s1 + $0x15c] sm:$0xf]
  %v135 = vld [vmem:[%s1 + $0x160] sm:$0xf]
  %v136 = vld [vmem:[%s1 + $0x164] sm:$0xf]
  %v137 = vld [vmem:[%s1 + $0x168] sm:$0xf]
  %v138 = vld [vmem:[%s1 + $0x16c] sm:$0xf]
  %v139 = vld [vmem:[%s1 + $0x170] sm:$0xf]
  %v140 = vld [vmem:[%s1 + $0x174] sm:$0xf]
  %v141 = vld [vmem:[%s1 + $0x178] sm:$0xf]
  %v142 = vld [vmem:[%s1 + $0x17c] sm:$0xf]
  %v143 = vld [vmem:[%s1 + $0x180] sm:$0xf]
  %v144 = vld [vmem:[%s1 + $0x184] sm:$0xf]
  %v145 = vld [vmem:[%s1 + $0x188] sm:$0xf]
  %v146 = vld [vmem:[%s1 + $0x18c] sm:$0xf]
  %v147 = vld [vmem:[%s1 + $0x190] sm:$0xf]
  %v148 = vld [vmem:[%s1 + $0x194] sm:$0xf]
  %v149 = vld [vmem:[%s1 + $0x198] sm:$0xf]
  %v150 = vld [vmem:[%s1 + $0x19c] sm:$0xf]
  %v151 = vld [vmem:[%s1 + $0x1a0] sm:$0xf]
  %v152 = vld [vmem:[%s1 + $0x1a4] sm:$0xf]
  %v153 = vld [vmem:[%s1 + $0x1a8] sm:$0xf]
  %v154 = vld [vmem:[%s1 + $0x1ac] sm:$0xf]
  %v155 = vld [vmem:[%s1 + $0x1b0] sm:$0xf]
  %v156 = vld [vmem:[%s1 + $0x1b4] sm:$0xf]
  %v157 = vld [vmem:[%s1 + $0x1b8] sm:$0xf]
  %v158 = vld [vmem:[%s1 + $0x1bc] sm:$0xf]
  %v159 = vld [vmem:[%s1 + $0x1c0] sm:$0xf]
  %v160 = vld [vmem:[%s1 + $0x1c4] sm:$0xf]
  %v161 = vld [vmem:[%s1 + $0x1c8] sm:$0xf]
  %v162 = vld [vmem:[%s1 + $0x1cc] sm:$0xf]
  %v163 = vld [vmem:[%s1 + $0x1d0] sm:$0xf]
  %v164 = vld [vmem:[%s1 + $0x1d4] sm:$0xf]
  %v165 = vld [vmem:[%s1 + $0x1d8] sm:$0xf]
  %v166 = vld [vmem:[%s1 + $0x1dc] sm:$0xf]
  %v167 = vld [vmem:[%s1 + $0x1e0] sm:$0xf]
  %v168 = vld [vmem:[%s1 + $0x1e4] sm:$0xf]
  %v169 = vld [vmem:[%s1 + $0x1e8] sm:$0xf]
  %v170 = vld [vmem:[%s1 + $0x1ec] sm:$0xf]
  %v171 = vld [vmem:[%s1 + $0x1f0] sm:$0xf]
  %v172 = vld [vmem:[%s1 + $0x1f4] sm:$0xf]
  %v173 = vld [vmem:[%s1 + $0x1f8] sm:$0xf]
  %v174 = vld [vmem:[%s1 + $0x1fc] sm:$0xf]
  %v175 = vld [vmem:[%s1 + $0x200] sm:$0xf]
  %v176 = vld [vmem:[%s1 + $0x204] sm:$0xf]
  %v177 = vld [vmem:[%s1 + $0x208] sm:$0xf]
  %v178 = vld [vmem:[%s1 + $0x20c] sm:$0xf]
  %v179 = vld [vmem:[%s1 + $0x210] sm:$0xf]
  %v180 = vld [vmem:[%s1 + $0x214] sm:$0xf]
  %v181 = vld [vmem:[%s1 + $0x218] sm:$0xf]
  %v182 = vld [vmem:[%s1 + $0x21c] sm:$0xf]
  %v183 = vld [vmem:[%s1 + $0x220] sm:$0xf]
  %v184 = vld [vmem:[%s1 + $0x224] sm:$0xf]
  %v185 = vld [vmem:[%s1 + $0x228] sm:$0xf]
  %v186 = vld [vmem:[%s1 + $0x22c] sm:$0xf]
  %v187 = vld [vmem:[%s1 + $0x230] sm:$0xf]
  %v188 = vld [vmem:[%s1 + $0x234] sm:$0xf]
  %v189 = vld [vmem:[%s1 + $0x238] sm:$0xf]
  %v190 = vld [vmem:[%s1 + $0x23c] sm:$0xf]
  %v191 = vld [vmem:[%s1 + $0x240] sm:$0xf]
  %v192 = vld [vmem:[%s1 + $0x244] sm:$0xf]
  %v193 = vld [vmem:[%s1 + $0x248] sm:$0xf]
  %v194 = vld [vmem:[%s1 + $0x24c] sm:$0xf]
  %v195 = vld [vmem:[%s1 + $0x250] sm:$0xf]
  %v196 = vld [vmem:[%s1 + $0x254] sm:$0xf]
  %v197 = vld [vmem:[%s1 + $0x258] sm:$0xf]
  %v198 = vld [vmem:[%s1 + $0x25c] sm:$0xf]
  %v199 = vld [vmem:[%s1 + $0x260] sm:$0xf]
  %v200 = vld [vmem:[%s1 + $0x264] sm:$0xf]
  %v201 = vld [vmem:[%s1 + $0x268] sm:$0xf]
  %v202 = vld [vmem:[%s1 + $0x26c] sm:$0xf]
  %v203 = vld [vmem:[%s1 + $0x270] sm:$0xf]
  %v204 = vld [vmem:[%s1 + $0x274] sm:$0xf]
  %v205 = vld [vmem:[%s1 + $0x278] sm:$0xf]
  %v206 = vld [vmem:[%s1 + $0x27c] sm:$0xf]
  %v207 = vld [vmem:[%s1 + $0x280] sm:$0xf]
  %v208 = vld [vmem:[%s1 + $0x284] sm:$0xf]
  %v209 = vld [vmem:[%s1 + $0x288] sm:$0xf]
  %v210 = vld [vmem:[%s1 + $0x28c] sm:$0xf]
  %v211 = vld [vmem:[%s1 + $0x290] sm:$0xf]
  %v212 = vld [vmem:[%s1 + $0x294] sm:$0xf]
  %v213 = vld [vmem:[%s1 + $0x298] sm:$0xf]
  %v214 = vld [vmem:[%s1 + $0x29c] sm:$0xf]
  %v215 = vld [vmem:[%s1 + $0x2a0] sm:$0xf]
  %v216 = vld [vmem:[%s1 + $0x2a4] sm:$0xf]
  %v217 = vld [vmem:[%s1 + $0x2a8] sm:$0xf]
  %v218 = vld [vmem:[%s1 + $0x2ac] sm:$0xf]
  %v219 = vld [vmem:[%s1 + $0x2b0] sm:$0xf]
  %v220 = vld [vmem:[%s1 + $0x2b4] sm:$0xf]
  %v221 = vld [vmem:[%s1 + $0x2b8] sm:$0xf]
  %v222 = vld [vmem:[%s1 + $0x2bc] sm:$0xf]
  %v223 = vld [vmem:[%s1 + $0x2c0] sm:$0xf]
  %v224 = vld [vmem:[%s1 + $0x2c4] sm:$0xf]
  %v225 = vld [vmem:[%s1 + $0x2c8] sm:$0xf]
  %v226 = vld [vmem:[%s1 + $0x2cc] sm:$0xf]
  %v227 = vld [vmem:[%s1 + $0x2d0] sm:$0xf]
  %v228 = vld [vmem:[%s1 + $0x2d4] sm:$0xf]
  %v229 = vld [vmem:[%s1 + $0x2d8] sm:$0xf]
  %v230 = vld [vmem:[%s1 + $0x2dc] sm:$0xf]
  %v231 = vld [vmem:[%s1 + $0x2e0] sm:$0xf]
  %v232 = vld [vmem:[%s1 + $0x2e4] sm:$0xf]
  %v233 = vld [vmem:[%s1 + $0x2e8] sm:$0xf]
  %v234 = vld [vmem:[%s1 + $0x2ec] sm:$0xf]
  %v235 = vld [vmem:[%s1 + $0x2f0] sm:$0xf]
  %v236 = vld [vmem:[%s1 + $0x2f4] sm:$0xf]
  %v237 = vld [vmem:[%s1 + $0x2f8] sm:$0xf]
  %v238 = vld [vmem:[%s1 + $0x2fc] sm:$0xf]
  %v239 = vld [vmem:[%s1 + $0x300] sm:$0xf]
  %v240 = vld [vmem:[%s1 + $0x304] sm:$0xf]
  %v241 = vld [vmem:[%s1 + $0x308] sm:$0xf]
  %v242 = vld [vmem:[%s1 + $0x30c] sm:$0xf]
  %v243 = vld [vmem:[%s1 + $0x310] sm:$0xf]
  %v244 = vld [vmem:[%s1 + $0x314] sm:$0xf]
  %v245 = vld [vmem:[%s1 + $0x318] sm:$0xf]
  %v246 = vld [vmem:[%s1 + $0x31c] sm:$0xf]
  %v247 = vld [vmem:[%s1 + $0x320] sm:$0xf]
  %v248 = vld [vmem:[%s1 + $0x324] sm:$0xf]
  %v249 = vld [vmem:[%s1 + $0x328] sm:$0xf]
  %v250 = vld [vmem:[%s1 + $0x32c] sm:$0xf]
  %v251 = vld [vmem:[%s1 + $0x330] sm:$0xf]
  %v252 = vld [vmem:[%s1 + $0x334] sm:$0xf]
  %v253 = vld [vmem:[%s1 + $0x338] sm:$0xf]
  %v254 = vld [vmem:[%s1 + $0x33c] sm:$0xf]
  %v255 = vld [vmem:[%s1 + $0x340] sm:$0xf]
  %v256 = vld [vmem:[%s1 + $0x344] sm:$0xf]
  %v257 = vld [vmem:[%s1 + $0x348] sm:$0xf]
  %v258 = vld [vmem:[%s1 + $0x34c] sm:$0xf]
  %v259 = vld [vmem:[%s1 + $0x350] sm:$0xf]
  %v260 = vld [vmem:[%s1 + $0x354] sm:$0xf]
  %v261 = vld [vmem:[%s1 + $0x358] sm:$0xf]
  %v262 = vld [vmem:[%s1 + $0x35c] sm:$0xf]
  %v263 = vld [vmem:[%s1 + $0x360] sm:$0xf]
  %v264 = vld [vmem:[%s1 + $0x364] sm:$0xf]
  %v265 = vld [vmem:[%s1 + $0x368] sm:$0xf]
  %v266 = vld [vmem:[%s1 + $0x36c] sm:$0xf]
  %v267 = vld [vmem:[%s1 + $0x370] sm:$0xf]
  %v268 = vld [vmem:[%s1 + $0x374] sm:$0xf]
  %v269 = vld [vmem:[%s1 + $0x378] sm:$0xf]
  %v270 = vld [vmem:[%s1 + $0x37c] sm:$0xf]
  %v271 = vld [vmem:[%s1 + $0x380] sm:$0xf]
  %v272 = vld [vmem:[%s1 + $0x384] sm:$0xf]
  %v273 = vld [vmem:[%s1 + $0x388] sm:$0xf]
  %v274 = vld [vmem:[%s1 + $0x38c] sm:$0xf]
  %v275 = vld [vmem:[%s1 + $0x390] sm:$0xf]
  %v276 = vld [vmem:[%s1 + $0x394] sm:$0xf]
  %v277 = vld [vmem:[%s1 + $0x398] sm:$0xf]
  %v278 = vld [vmem:[%s1 + $0x39c] sm:$0xf]
  %v279 = vld [vmem:[%s1 + $0x3a0] sm:$0xf]
  %v280 = vld [vmem:[%s1 + $0x3a4] sm:$0xf]
  %v281 = vld [vmem:[%s1 + $0x3a8] sm:$0xf]
  %v282 = vld [vmem:[%s1 + $0x3ac] sm:$0xf]
  %v283 = vld [vmem:[%s1 + $0x3b0] sm:$0xf]
  %v284 = vld [vmem:[%s1 + $0x3b4] sm:$0xf]
  %v285 = vld [vmem:[%s1 + $0x3b8] sm:$0xf]
  %v286 = vld [vmem:[%s1 + $0x3bc] sm:$0xf]
  %v287 = vld [vmem:[%s1 + $0x3c0] sm:$0xf]
  %v288 = vld [vmem:[%s1 + $0x3c4] sm:$0xf]
  %v289 = vld [vmem:[%s1 + $0x3c8] sm:$0xf]
  %v290 = vld [vmem:[%s1 + $0x3cc] sm:$0xf]
  %v291 = vld [vmem:[%s1 + $0x3d0] sm:$0xf]
  %v292 = vld [vmem:[%s1 + $0x3d4] sm:$0xf]
  %v293 = vld [vmem:[%s1 + $0x3d8] sm:$0xf]
  %v294 = vld [vmem:[%s1 + $0x3dc] sm:$0xf]
  %v295 = vld [vmem:[%s1 + $0x3e0] sm:$0xf]
  %v296 = vld [vmem:[%s1 + $0x3e4] sm:$0xf]
  %v297 = vld [vmem:[%s1 + $0x3e8] sm:$0xf]
  %v298 = vld [vmem:[%s1 + $0x3ec] sm:$0xf]
  %v299 = vld [vmem:[%s1 + $0x3f0] sm:$0xf]
  %v300 = vld [vmem:[%s1 + $0x3f4] sm:$0xf]
  %v301 = vld [vmem:[%s1 + $0x3f8] sm:$0xf]
  %v302 = vld [vmem:[%s1 + $0x3fc] sm:$0xf]
  %v303 = vld [vmem:[%s2] sm:$0x1]
  %v305 = vlaneseq
  %v306 = vshrl.u32 %v305, 7
  %v307 = vsub.s32 0, %v306
  %v308 = vrot.slane %v303, %v307
  %v342 = vunpack.c.l.b16 %v15
  %v343 = vunpack.c.h.b16 %v15
  %v344 = vunpack.c.l.b16 %v16
  %v345 = vunpack.c.h.b16 %v16
  %v346 = vunpack.c.l.b16 %v17
  %v347 = vunpack.c.h.b16 %v17
  %v348 = vunpack.c.l.b16 %v18
  %v349 = vunpack.c.h.b16 %v18
  %v350 = vunpack.c.l.b16 %v19
  %v351 = vunpack.c.h.b16 %v19
  %v352 = vunpack.c.l.b16 %v20
  %v353 = vunpack.c.h.b16 %v20
  %v354 = vunpack.c.l.b16 %v21
  %v355 = vunpack.c.h.b16 %v21
  %v356 = vunpack.c.l.b16 %v22
  %v357 = vunpack.c.h.b16 %v22
  %v358 = vunpack.c.l.b16 %v23
  %v359 = vunpack.c.h.b16 %v23
  %v360 = vunpack.c.l.b16 %v24
  %v361 = vunpack.c.h.b16 %v24
  %v362 = vunpack.c.l.b16 %v25
  %v363 = vunpack.c.h.b16 %v25
  %v364 = vunpack.c.l.b16 %v26
  %v365 = vunpack.c.h.b16 %v26
  %v366 = vunpack.c.l.b16 %v27
  %v367 = vunpack.c.h.b16 %v27
  %v368 = vunpack.c.l.b16 %v28
  %v369 = vunpack.c.h.b16 %v28
  %v370 = vunpack.c.l.b16 %v29
  %v371 = vunpack.c.h.b16 %v29
  %v372 = vunpack.c.l.b16 %v30
  %v373 = vunpack.c.h.b16 %v30
  %v374 = vunpack.c.l.b16 %v31
  %v375 = vunpack.c.h.b16 %v31
  %v376 = vunpack.c.l.b16 %v32
  %v377 = vunpack.c.h.b16 %v32
  %v378 = vunpack.c.l.b16 %v33
  %v379 = vunpack.c.h.b16 %v33
  %v380 = vunpack.c.l.b16 %v34
  %v381 = vunpack.c.h.b16 %v34
  %v382 = vunpack.c.l.b16 %v35
  %v383 = vunpack.c.h.b16 %v35
  %v384 = vunpack.c.l.b16 %v36
  %v385 = vunpack.c.h.b16 %v36
  %v386 = vunpack.c.l.b16 %v37
  %v387 = vunpack.c.h.b16 %v37
  %v388 = vunpack.c.l.b16 %v38
  %v389 = vunpack.c.h.b16 %v38
  %v390 = vunpack.c.l.b16 %v39
  %v391 = vunpack.c.h.b16 %v39
  %v392 = vunpack.c.l.b16 %v40
  %v393 = vunpack.c.h.b16 %v40
  %v394 = vunpack.c.l.b16 %v41
  %v395 = vunpack.c.h.b16 %v41
  %v396 = vunpack.c.l.b16 %v42
  %v397 = vunpack.c.h.b16 %v42
  %v398 = vunpack.c.l.b16 %v43
  %v399 = vunpack.c.h.b16 %v43
  %v400 = vunpack.c.l.b16 %v44
  %v401 = vunpack.c.h.b16 %v44
  %v402 = vunpack.c.l.b16 %v45
  %v403 = vunpack.c.h.b16 %v45
  %v404 = vunpack.c.l.b16 %v46
  %v405 = vunpack.c.h.b16 %v46
  %v406 = vpack.c.b16 %v358, %v342
  %v407 = vpack.c.b16 %v359, %v343
  %v408 = vpack.c.b16 %v360, %v344
  %v409 = vpack.c.b16 %v361, %v345
  %v410 = vpack.c.b16 %v362, %v346
  %v411 = vpack.c.b16 %v363, %v347
  %v412 = vpack.c.b16 %v364, %v348
  %v413 = vpack.c.b16 %v365, %v349
  %v414 = vpack.c.b16 %v366, %v350
  %v415 = vpack.c.b16 %v367, %v351
  %v416 = vpack.c.b16 %v368, %v352
  %v417 = vpack.c.b16 %v369, %v353
  %v418 = vpack.c.b16 %v370, %v354
  %v419 = vpack.c.b16 %v371, %v355
  %v420 = vpack.c.b16 %v372, %v356
  %v421 = vpack.c.b16 %v373, %v357
  %v422 = vpack.c.b16 %v390, %v374
  %v423 = vpack.c.b16 %v391, %v375
  %v424 = vpack.c.b16 %v392, %v376
  %v425 = vpack.c.b16 %v393, %v377
  %v426 = vpack.c.b16 %v394, %v378
  %v427 = vpack.c.b16 %v395, %v379
  %v428 = vpack.c.b16 %v396, %v380
  %v429 = vpack.c.b16 %v397, %v381
  %v430 = vpack.c.b16 %v398, %v382
  %v431 = vpack.c.b16 %v399, %v383
  %v432 = vpack.c.b16 %v400, %v384
  %v433 = vpack.c.b16 %v401, %v385
  %v434 = vpack.c.b16 %v402, %v386
  %v435 = vpack.c.b16 %v403, %v387
  %v436 = vpack.c.b16 %v404, %v388
  %v437 = vpack.c.b16 %v405, %v389
  %v726 = vunpack.c.l.b16 %v47
  %v727 = vunpack.c.l.b16 %v48
  %v728 = vunpack.c.l.b16 %v49
  %v729 = vunpack.c.l.b16 %v50
  %v730 = vunpack.c.l.b16 %v51
  %v731 = vunpack.c.l.b16 %v52
  %v732 = vunpack.c.l.b16 %v53
  %v733 = vunpack.c.l.b16 %v54
  %v734 = vunpack.c.l.b16 %v55
  %v735 = vunpack.c.l.b16 %v56
  %v736 = vunpack.c.l.b16 %v57
  %v737 = vunpack.c.l.b16 %v58
  %v738 = vunpack.c.l.b16 %v59
  %v739 = vunpack.c.l.b16 %v60
  %v740 = vunpack.c.l.b16 %v61
  %v741 = vunpack.c.l.b16 %v62
  %v742 = vunpack.c.l.b16 %v63
  %v743 = vunpack.c.l.b16 %v64
  %v744 = vunpack.c.l.b16 %v65
  %v745 = vunpack.c.l.b16 %v66
  %v746 = vunpack.c.l.b16 %v67
  %v747 = vunpack.c.l.b16 %v68
  %v748 = vunpack.c.l.b16 %v69
  %v749 = vunpack.c.l.b16 %v70
  %v750 = vunpack.c.l.b16 %v71
  %v751 = vunpack.c.l.b16 %v72
  %v752 = vunpack.c.l.b16 %v73
  %v753 = vunpack.c.l.b16 %v74
  %v754 = vunpack.c.l.b16 %v75
  %v755 = vunpack.c.l.b16 %v76
  %v756 = vunpack.c.l.b16 %v77
  %v757 = vunpack.c.l.b16 %v78
  %v758 = vunpack.c.l.b16 %v79
  %v759 = vunpack.c.l.b16 %v80
  %v760 = vunpack.c.l.b16 %v81
  %v761 = vunpack.c.l.b16 %v82
  %v762 = vunpack.c.l.b16 %v83
  %v763 = vunpack.c.l.b16 %v84
  %v764 = vunpack.c.l.b16 %v85
  %v765 = vunpack.c.l.b16 %v86
  %v766 = vunpack.c.l.b16 %v87
  %v767 = vunpack.c.l.b16 %v88
  %v768 = vunpack.c.l.b16 %v89
  %v769 = vunpack.c.l.b16 %v90
  %v770 = vunpack.c.l.b16 %v91
  %v771 = vunpack.c.l.b16 %v92
  %v772 = vunpack.c.l.b16 %v93
  %v773 = vunpack.c.l.b16 %v94
  %v774 = vunpack.c.l.b16 %v95
  %v775 = vunpack.c.l.b16 %v96
  %v776 = vunpack.c.l.b16 %v97
  %v777 = vunpack.c.l.b16 %v98
  %v778 = vunpack.c.l.b16 %v99
  %v779 = vunpack.c.l.b16 %v100
  %v780 = vunpack.c.l.b16 %v101
  %v781 = vunpack.c.l.b16 %v102
  %v782 = vunpack.c.l.b16 %v103
  %v783 = vunpack.c.l.b16 %v104
  %v784 = vunpack.c.l.b16 %v105
  %v785 = vunpack.c.l.b16 %v106
  %v786 = vunpack.c.l.b16 %v107
  %v787 = vunpack.c.l.b16 %v108
  %v788 = vunpack.c.l.b16 %v109
  %v789 = vunpack.c.l.b16 %v110
  %v790 = vunpack.c.l.b16 %v111
  %v791 = vunpack.c.l.b16 %v112
  %v792 = vunpack.c.l.b16 %v113
  %v793 = vunpack.c.l.b16 %v114
  %v794 = vunpack.c.l.b16 %v115
  %v795 = vunpack.c.l.b16 %v116
  %v796 = vunpack.c.l.b16 %v117
  %v797 = vunpack.c.l.b16 %v118
  %v798 = vunpack.c.l.b16 %v119
  %v799 = vunpack.c.l.b16 %v120
  %v800 = vunpack.c.l.b16 %v121
  %v801 = vunpack.c.l.b16 %v122
  %v802 = vunpack.c.l.b16 %v123
  %v803 = vunpack.c.l.b16 %v124
  %v804 = vunpack.c.l.b16 %v125
  %v805 = vunpack.c.l.b16 %v126
  %v806 = vunpack.c.l.b16 %v127
  %v807 = vunpack.c.l.b16 %v128
  %v808 = vunpack.c.l.b16 %v129
  %v809 = vunpack.c.l.b16 %v130
  %v810 = vunpack.c.l.b16 %v131
  %v811 = vunpack.c.l.b16 %v132
  %v812 = vunpack.c.l.b16 %v133
  %v813 = vunpack.c.l.b16 %v134
  %v814 = vunpack.c.l.b16 %v135
  %v815 = vunpack.c.l.b16 %v136
  %v816 = vunpack.c.l.b16 %v137
  %v817 = vunpack.c.l.b16 %v138
  %v818 = vunpack.c.l.b16 %v139
  %v819 = vunpack.c.l.b16 %v140
  %v820 = vunpack.c.l.b16 %v141
  %v821 = vunpack.c.l.b16 %v142
  %v822 = vunpack.c.l.b16 %v143
  %v823 = vunpack.c.l.b16 %v144
  %v824 = vunpack.c.l.b16 %v145
  %v825 = vunpack.c.l.b16 %v146
  %v826 = vunpack.c.l.b16 %v147
  %v827 = vunpack.c.l.b16 %v148
  %v828 = vunpack.c.l.b16 %v149
  %v829 = vunpack.c.l.b16 %v150
  %v830 = vunpack.c.l.b16 %v151
  %v831 = vunpack.c.l.b16 %v152
  %v832 = vunpack.c.l.b16 %v153
  %v833 = vunpack.c.l.b16 %v154
  %v834 = vunpack.c.l.b16 %v155
  %v835 = vunpack.c.l.b16 %v156
  %v836 = vunpack.c.l.b16 %v157
  %v837 = vunpack.c.l.b16 %v158
  %v838 = vunpack.c.l.b16 %v159
  %v839 = vunpack.c.l.b16 %v160
  %v840 = vunpack.c.l.b16 %v161
  %v841 = vunpack.c.l.b16 %v162
  %v842 = vunpack.c.l.b16 %v163
  %v843 = vunpack.c.l.b16 %v164
  %v844 = vunpack.c.l.b16 %v165
  %v845 = vunpack.c.l.b16 %v166
  %v846 = vunpack.c.l.b16 %v167
  %v847 = vunpack.c.l.b16 %v168
  %v848 = vunpack.c.l.b16 %v169
  %v849 = vunpack.c.l.b16 %v170
  %v850 = vunpack.c.l.b16 %v171
  %v851 = vunpack.c.l.b16 %v172
  %v852 = vunpack.c.l.b16 %v173
  %v853 = vunpack.c.l.b16 %v174
  %v854 = vunpack.c.l.b16 %v175
  %v855 = vunpack.c.l.b16 %v176
  %v856 = vunpack.c.l.b16 %v177
  %v857 = vunpack.c.l.b16 %v178
  %v858 = vunpack.c.l.b16 %v179
  %v859 = vunpack.c.l.b16 %v180
  %v860 = vunpack.c.l.b16 %v181
  %v861 = vunpack.c.l.b16 %v182
  %v862 = vunpack.c.l.b16 %v183
  %v863 = vunpack.c.l.b16 %v184
  %v864 = vunpack.c.l.b16 %v185
  %v865 = vunpack.c.l.b16 %v186
  %v866 = vunpack.c.l.b16 %v187
  %v867 = vunpack.c.l.b16 %v188
  %v868 = vunpack.c.l.b16 %v189
  %v869 = vunpack.c.l.b16 %v190
  %v870 = vunpack.c.l.b16 %v191
  %v871 = vunpack.c.l.b16 %v192
  %v872 = vunpack.c.l.b16 %v193
  %v873 = vunpack.c.l.b16 %v194
  %v874 = vunpack.c.l.b16 %v195
  %v875 = vunpack.c.l.b16 %v196
  %v876 = vunpack.c.l.b16 %v197
  %v877 = vunpack.c.l.b16 %v198
  %v878 = vunpack.c.l.b16 %v199
  %v879 = vunpack.c.l.b16 %v200
  %v880 = vunpack.c.l.b16 %v201
  %v881 = vunpack.c.l.b16 %v202
  %v882 = vunpack.c.l.b16 %v203
  %v883 = vunpack.c.l.b16 %v204
  %v884 = vunpack.c.l.b16 %v205
  %v885 = vunpack.c.l.b16 %v206
  %v886 = vunpack.c.l.b16 %v207
  %v887 = vunpack.c.l.b16 %v208
  %v888 = vunpack.c.l.b16 %v209
  %v889 = vunpack.c.l.b16 %v210
  %v890 = vunpack.c.l.b16 %v211
  %v891 = vunpack.c.l.b16 %v212
  %v892 = vunpack.c.l.b16 %v213
  %v893 = vunpack.c.l.b16 %v214
  %v894 = vunpack.c.l.b16 %v215
  %v895 = vunpack.c.l.b16 %v216
  %v896 = vunpack.c.l.b16 %v217
  %v897 = vunpack.c.l.b16 %v218
  %v898 = vunpack.c.l.b16 %v219
  %v899 = vunpack.c.l.b16 %v220
  %v900 = vunpack.c.l.b16 %v221
  %v901 = vunpack.c.l.b16 %v222
  %v902 = vunpack.c.l.b16 %v223
  %v903 = vunpack.c.l.b16 %v224
  %v904 = vunpack.c.l.b16 %v225
  %v905 = vunpack.c.l.b16 %v226
  %v906 = vunpack.c.l.b16 %v227
  %v907 = vunpack.c.l.b16 %v228
  %v908 = vunpack.c.l.b16 %v229
  %v909 = vunpack.c.l.b16 %v230
  %v910 = vunpack.c.l.b16 %v231
  %v911 = vunpack.c.l.b16 %v232
  %v912 = vunpack.c.l.b16 %v233
  %v913 = vunpack.c.l.b16 %v234
  %v914 = vunpack.c.l.b16 %v235
  %v915 = vunpack.c.l.b16 %v236
  %v916 = vunpack.c.l.b16 %v237
  %v917 = vunpack.c.l.b16 %v238
  %v918 = vunpack.c.l.b16 %v239
  %v919 = vunpack.c.l.b16 %v240
  %v920 = vunpack.c.l.b16 %v241
  %v921 = vunpack.c.l.b16 %v242
  %v922 = vunpack.c.l.b16 %v243
  %v923 = vunpack.c.l.b16 %v244
  %v924 = vunpack.c.l.b16 %v245
  %v925 = vunpack.c.l.b16 %v246
  %v926 = vunpack.c.l.b16 %v247
  %v927 = vunpack.c.l.b16 %v248
  %v928 = vunpack.c.l.b16 %v249
  %v929 = vunpack.c.l.b16 %v250
  %v930 = vunpack.c.l.b16 %v251
  %v931 = vunpack.c.l.b16 %v252
  %v932 = vunpack.c.l.b16 %v253
  %v933 = vunpack.c.l.b16 %v254
  %v934 = vunpack.c.l.b16 %v255
  %v935 = vunpack.c.l.b16 %v256
  %v936 = vunpack.c.l.b16 %v257
  %v937 = vunpack.c.l.b16 %v258
  %v938 = vunpack.c.l.b16 %v259
  %v939 = vunpack.c.l.b16 %v260
  %v940 = vunpack.c.l.b16 %v261
  %v941 = vunpack.c.l.b16 %v262
  %v942 = vunpack.c.l.b16 %v263
  %v943 = vunpack.c.l.b16 %v264
  %v944 = vunpack.c.l.b16 %v265
  %v945 = vunpack.c.l.b16 %v266
  %v946 = vunpack.c.l.b16 %v267
  %v947 = vunpack.c.l.b16 %v268
  %v948 = vunpack.c.l.b16 %v269
  %v949 = vunpack.c.l.b16 %v270
  %v950 = vunpack.c.l.b16 %v271
  %v951 = vunpack.c.l.b16 %v272
  %v952 = vunpack.c.l.b16 %v273
  %v953 = vunpack.c.l.b16 %v274
  %v954 = vunpack.c.l.b16 %v275
  %v955 = vunpack.c.l.b16 %v276
  %v956 = vunpack.c.l.b16 %v277
  %v957 = vunpack.c.l.b16 %v278
  %v958 = vunpack.c.l.b16 %v279
  %v959 = vunpack.c.l.b16 %v280
  %v960 = vunpack.c.l.b16 %v281
  %v961 = vunpack.c.l.b16 %v282
  %v962 = vunpack.c.l.b16 %v283
  %v963 = vunpack.c.l.b16 %v284
  %v964 = vunpack.c.l.b16 %v285
  %v965 = vunpack.c.l.b16 %v286
  %v966 = vunpack.c.l.b16 %v287
  %v967 = vunpack.c.l.b16 %v288
  %v968 = vunpack.c.l.b16 %v289
  %v969 = vunpack.c.l.b16 %v290
  %v970 = vunpack.c.l.b16 %v291
  %v971 = vunpack.c.l.b16 %v292
  %v972 = vunpack.c.l.b16 %v293
  %v973 = vunpack.c.l.b16 %v294
  %v974 = vunpack.c.l.b16 %v295
  %v975 = vunpack.c.l.b16 %v296
  %v976 = vunpack.c.l.b16 %v297
  %v977 = vunpack.c.l.b16 %v298
  %v978 = vunpack.c.l.b16 %v299
  %v979 = vunpack.c.l.b16 %v300
  %v980 = vunpack.c.l.b16 %v301
  %v981 = vunpack.c.l.b16 %v302
  %v982 = vpack.c.b16 %v727, %v726
  %v983 = vpack.c.b16 %v729, %v728
  %v984 = vpack.c.b16 %v731, %v730
  %v985 = vpack.c.b16 %v733, %v732
  %v986 = vpack.c.b16 %v735, %v734
  %v987 = vpack.c.b16 %v737, %v736
  %v988 = vpack.c.b16 %v739, %v738
  %v989 = vpack.c.b16 %v741, %v740
  %v990 = vpack.c.b16 %v743, %v742
  %v991 = vpack.c.b16 %v745, %v744
  %v992 = vpack.c.b16 %v747, %v746
  %v993 = vpack.c.b16 %v749, %v748
  %v994 = vpack.c.b16 %v751, %v750
  %v995 = vpack.c.b16 %v753, %v752
  %v996 = vpack.c.b16 %v755, %v754
  %v997 = vpack.c.b16 %v757, %v756
  %v998 = vpack.c.b16 %v759, %v758
  %v999 = vpack.c.b16 %v761, %v760
  %v1000 = vpack.c.b16 %v763, %v762
  %v1001 = vpack.c.b16 %v765, %v764
  %v1002 = vpack.c.b16 %v767, %v766
  %v1003 = vpack.c.b16 %v769, %v768
  %v1004 = vpack.c.b16 %v771, %v770
  %v1005 = vpack.c.b16 %v773, %v772
  %v1006 = vpack.c.b16 %v775, %v774
  %v1007 = vpack.c.b16 %v777, %v776
  %v1008 = vpack.c.b16 %v779, %v778
  %v1009 = vpack.c.b16 %v781, %v780
  %v1010 = vpack.c.b16 %v783, %v782
  %v1011 = vpack.c.b16 %v785, %v784
  %v1012 = vpack.c.b16 %v787, %v786
  %v1013 = vpack.c.b16 %v789, %v788
  %v1014 = vpack.c.b16 %v791, %v790
  %v1015 = vpack.c.b16 %v793, %v792
  %v1016 = vpack.c.b16 %v795, %v794
  %v1017 = vpack.c.b16 %v797, %v796
  %v1018 = vpack.c.b16 %v799, %v798
  %v1019 = vpack.c.b16 %v801, %v800
  %v1020 = vpack.c.b16 %v803, %v802
  %v1021 = vpack.c.b16 %v805, %v804
  %v1022 = vpack.c.b16 %v807, %v806
  %v1023 = vpack.c.b16 %v809, %v808
  %v1024 = vpack.c.b16 %v811, %v810
  %v1025 = vpack.c.b16 %v813, %v812
  %v1026 = vpack.c.b16 %v815, %v814
  %v1027 = vpack.c.b16 %v817, %v816
  %v1028 = vpack.c.b16 %v819, %v818
  %v1029 = vpack.c.b16 %v821, %v820
  %v1030 = vpack.c.b16 %v823, %v822
  %v1031 = vpack.c.b16 %v825, %v824
  %v1032 = vpack.c.b16 %v827, %v826
  %v1033 = vpack.c.b16 %v829, %v828
  %v1034 = vpack.c.b16 %v831, %v830
  %v1035 = vpack.c.b16 %v833, %v832
  %v1036 = vpack.c.b16 %v835, %v834
  %v1037 = vpack.c.b16 %v837, %v836
  %v1038 = vpack.c.b16 %v839, %v838
  %v1039 = vpack.c.b16 %v841, %v840
  %v1040 = vpack.c.b16 %v843, %v842
  %v1041 = vpack.c.b16 %v845, %v844
  %v1042 = vpack.c.b16 %v847, %v846
  %v1043 = vpack.c.b16 %v849, %v848
  %v1044 = vpack.c.b16 %v851, %v850
  %v1045 = vpack.c.b16 %v853, %v852
  %v1046 = vpack.c.b16 %v855, %v854
  %v1047 = vpack.c.b16 %v857, %v856
  %v1048 = vpack.c.b16 %v859, %v858
  %v1049 = vpack.c.b16 %v861, %v860
  %v1050 = vpack.c.b16 %v863, %v862
  %v1051 = vpack.c.b16 %v865, %v864
  %v1052 = vpack.c.b16 %v867, %v866
  %v1053 = vpack.c.b16 %v869, %v868
  %v1054 = vpack.c.b16 %v871, %v870
  %v1055 = vpack.c.b16 %v873, %v872
  %v1056 = vpack.c.b16 %v875, %v874
  %v1057 = vpack.c.b16 %v877, %v876
  %v1058 = vpack.c.b16 %v879, %v878
  %v1059 = vpack.c.b16 %v881, %v880
  %v1060 = vpack.c.b16 %v883, %v882
  %v1061 = vpack.c.b16 %v885, %v884
  %v1062 = vpack.c.b16 %v887, %v886
  %v1063 = vpack.c.b16 %v889, %v888
  %v1064 = vpack.c.b16 %v891, %v890
  %v1065 = vpack.c.b16 %v893, %v892
  %v1066 = vpack.c.b16 %v895, %v894
  %v1067 = vpack.c.b16 %v897, %v896
  %v1068 = vpack.c.b16 %v899, %v898
  %v1069 = vpack.c.b16 %v901, %v900
  %v1070 = vpack.c.b16 %v903, %v902
  %v1071 = vpack.c.b16 %v905, %v904
  %v1072 = vpack.c.b16 %v907, %v906
  %v1073 = vpack.c.b16 %v909, %v908
  %v1074 = vpack.c.b16 %v911, %v910
  %v1075 = vpack.c.b16 %v913, %v912
  %v1076 = vpack.c.b16 %v915, %v914
  %v1077 = vpack.c.b16 %v917, %v916
  %v1078 = vpack.c.b16 %v919, %v918
  %v1079 = vpack.c.b16 %v921, %v920
  %v1080 = vpack.c.b16 %v923, %v922
  %v1081 = vpack.c.b16 %v925, %v924
  %v1082 = vpack.c.b16 %v927, %v926
  %v1083 = vpack.c.b16 %v929, %v928
  %v1084 = vpack.c.b16 %v931, %v930
  %v1085 = vpack.c.b16 %v933, %v932
  %v1086 = vpack.c.b16 %v935, %v934
  %v1087 = vpack.c.b16 %v937, %v936
  %v1088 = vpack.c.b16 %v939, %v938
  %v1089 = vpack.c.b16 %v941, %v940
  %v1090 = vpack.c.b16 %v943, %v942
  %v1091 = vpack.c.b16 %v945, %v944
  %v1092 = vpack.c.b16 %v947, %v946
  %v1093 = vpack.c.b16 %v949, %v948
  %v1094 = vpack.c.b16 %v951, %v950
  %v1095 = vpack.c.b16 %v953, %v952
  %v1096 = vpack.c.b16 %v955, %v954
  %v1097 = vpack.c.b16 %v957, %v956
  %v1098 = vpack.c.b16 %v959, %v958
  %v1099 = vpack.c.b16 %v961, %v960
  %v1100 = vpack.c.b16 %v963, %v962
  %v1101 = vpack.c.b16 %v965, %v964
  %v1102 = vpack.c.b16 %v967, %v966
  %v1103 = vpack.c.b16 %v969, %v968
  %v1104 = vpack.c.b16 %v971, %v970
  %v1105 = vpack.c.b16 %v973, %v972
  %v1106 = vpack.c.b16 %v975, %v974
  %v1107 = vpack.c.b16 %v977, %v976
  %v1108 = vpack.c.b16 %v979, %v978
  %v1109 = vpack.c.b16 %v981, %v980
  %1238 = vmatprep.subr.bf16.mxu0 0
  %1239 = vmatpush1.bf16.msra.mxu0 %v982
  %1240 = vmatprep.subr.bf16.mxu0 0
  %1241 = vmatpush1.bf16.msra.mxu0 %v983
  %1242 = vmatprep.subr.bf16.mxu0 0
  %1243 = vmatpush1.bf16.msra.mxu0 %v984
  %1244 = vmatprep.subr.bf16.mxu0 0
  %1245 = vmatpush1.bf16.msra.mxu0 %v985
  %1246 = vmatprep.subr.bf16.mxu0 0
  %1247 = vmatpush1.bf16.msra.mxu0 %v986
  %1248 = vmatprep.subr.bf16.mxu0 0
  %1249 = vmatpush1.bf16.msra.mxu0 %v987
  %1250 = vmatprep.subr.bf16.mxu0 0
  %1251 = vmatpush1.bf16.msra.mxu0 %v988
  %1252 = vmatprep.subr.bf16.mxu0 0
  %1253 = vmatpush1.bf16.msra.mxu0 %v989
  %1254 = vmatprep.subr.bf16.mxu0 0
  %1255 = vmatpush1.bf16.msra.mxu0 %v990
  %1256 = vmatprep.subr.bf16.mxu0 0
  %1257 = vmatpush1.bf16.msra.mxu0 %v991
  %1258 = vmatprep.subr.bf16.mxu0 0
  %1259 = vmatpush1.bf16.msra.mxu0 %v992
  %1260 = vmatprep.subr.bf16.mxu0 0
  %1261 = vmatpush1.bf16.msra.mxu0 %v993
  %1262 = vmatprep.subr.bf16.mxu0 0
  %1263 = vmatpush1.bf16.msra.mxu0 %v994
  %1264 = vmatprep.subr.bf16.mxu0 0
  %1265 = vmatpush1.bf16.msra.mxu0 %v995
  %1266 = vmatprep.subr.bf16.mxu0 0
  %1267 = vmatpush1.bf16.msra.mxu0 %v996
  %1268 = vmatprep.subr.bf16.mxu0 0
  %1269 = vmatpush1.bf16.msra.mxu0 %v997
  %1270 = vmatprep.mubr.bf16.mxu0 %v407
  %1271 = vmatmul.mubr.bf16.gmra.mrb[0].mxu0 %v406
  %v1272 = vpop.f32.mrb[0].mxu0
  %v1273 = vadd.f32 %v308, %v1272
  %v1274 = vpop.f32.mrb[0].mxu0
  %v1275 = vpop.f32.mrb[0].mxu0
  %v1276 = vadd.f32 %v308, %v1275
  %v1277 = vpop.f32.mrb[0].mxu0
  %1278 = vmatprep.mubr.bf16.mxu0 %v423
  %1279 = vmatmul.mubr.bf16.gmra.mrb[0].mxu0 %v422
  %v1280 = vpop.f32.mrb[0].mxu0
  %v1281 = vadd.f32 %v308, %v1280
  %v1282 = vpop.f32.mrb[0].mxu0
  %v1283 = vpop.f32.mrb[0].mxu0
  %v1284 = vadd.f32 %v308, %v1283
  %v1285 = vpop.f32.mrb[0].mxu0
  %1286 = vdwg.mxu0
  %1287 = vmatprep.subr.bf16.mxu0 0
  %1288 = vmatpush1.bf16.msra.mxu0 %v998
  %1289 = vmatprep.subr.bf16.mxu0 0
  %1290 = vmatpush1.bf16.msra.mxu0 %v999
  %1291 = vmatprep.subr.bf16.mxu0 0
  %1292 = vmatpush1.bf16.msra.mxu0 %v1000
  %1293 = vmatprep.subr.bf16.mxu0 0
  %1294 = vmatpush1.bf16.msra.mxu0 %v1001
  %1295 = vmatprep.subr.bf16.mxu0 0
  %1296 = vmatpush1.bf16.msra.mxu0 %v1002
  %1297 = vmatprep.subr.bf16.mxu0 0
  %1298 = vmatpush1.bf16.msra.mxu0 %v1003
  %1299 = vmatprep.subr.bf16.mxu0 0
  %1300 = vmatpush1.bf16.msra.mxu0 %v1004
  %1301 = vmatprep.subr.bf16.mxu0 0
  %1302 = vmatpush1.bf16.msra.mxu0 %v1005
  %1303 = vmatprep.subr.bf16.mxu0 0
  %1304 = vmatpush1.bf16.msra.mxu0 %v1006
  %1305 = vmatprep.subr.bf16.mxu0 0
  %1306 = vmatpush1.bf16.msra.mxu0 %v1007
  %1307 = vmatprep.subr.bf16.mxu0 0
  %1308 = vmatpush1.bf16.msra.mxu0 %v1008
  %1309 = vmatprep.subr.bf16.mxu0 0
  %1310 = vmatpush1.bf16.msra.mxu0 %v1009
  %1311 = vmatprep.subr.bf16.mxu0 0
  %1312 = vmatpush1.bf16.msra.mxu0 %v1010
  %1313 = vmatprep.subr.bf16.mxu0 0
  %1314 = vmatpush1.bf16.msra.mxu0 %v1011
  %1315 = vmatprep.subr.bf16.mxu0 0
  %1316 = vmatpush1.bf16.msra.mxu0 %v1012
  %1317 = vmatprep.subr.bf16.mxu0 0
  %1318 = vmatpush1.bf16.msra.mxu0 %v1013
  %1319 = vmatprep.mubr.bf16.mxu0 %v409
  %1320 = vmatmul.mubr.bf16.gmra.mrb[0].mxu0 %v408
  %v1321 = vpop.f32.mrb[0].mxu0
  %v1322 = vadd.f32 %v1273, %v1321
  %v1323 = vpop.f32.mrb[0].mxu0
  %v1324 = vpop.f32.mrb[0].mxu0
  %v1325 = vadd.f32 %v1276, %v1324
  %v1326 = vpop.f32.mrb[0].mxu0
  %1327 = vmatprep.mubr.bf16.mxu0 %v425
  %1328 = vmatmul.mubr.bf16.gmra.mrb[0].mxu0 %v424
  %v1329 = vpop.f32.mrb[0].mxu0
  %v1330 = vadd.f32 %v1281, %v1329
  %v1331 = vpop.f32.mrb[0].mxu0
  %v1332 = vpop.f32.mrb[0].mxu0
  %v1333 = vadd.f32 %v1284, %v1332
  %v1334 = vpop.f32.mrb[0].mxu0
  %1335 = vdwg.mxu0
  %1336 = vmatprep.subr.bf16.mxu0 0
  %1337 = vmatpush1.bf16.msra.mxu0 %v1014
  %1338 = vmatprep.subr.bf16.mxu0 0
  %1339 = vmatpush1.bf16.msra.mxu0 %v1015
  %1340 = vmatprep.subr.bf16.mxu0 0
  %1341 = vmatpush1.bf16.msra.mxu0 %v1016
  %1342 = vmatprep.subr.bf16.mxu0 0
  %1343 = vmatpush1.bf16.msra.mxu0 %v1017
  %1344 = vmatprep.subr.bf16.mxu0 0
  %1345 = vmatpush1.bf16.msra.mxu0 %v1018
  %1346 = vmatprep.subr.bf16.mxu0 0
  %1347 = vmatpush1.bf16.msra.mxu0 %v1019
  %1348 = vmatprep.subr.bf16.mxu0 0
  %1349 = vmatpush1.bf16.msra.mxu0 %v1020
  %1350 = vmatprep.subr.bf16.mxu0 0
  %1351 = vmatpush1.bf16.msra.mxu0 %v1021
  %1352 = vmatprep.subr.bf16.mxu0 0
  %1353 = vmatpush1.bf16.msra.mxu0 %v1022
  %1354 = vmatprep.subr.bf16.mxu0 0
  %1355 = vmatpush1.bf16.msra.mxu0 %v1023
  %1356 = vmatprep.subr.bf16.mxu0 0
  %1357 = vmatpush1.bf16.msra.mxu0 %v1024
  %1358 = vmatprep.subr.bf16.mxu0 0
  %1359 = vmatpush1.bf16.msra.mxu0 %v1025
  %1360 = vmatprep.subr.bf16.mxu0 0
  %1361 = vmatpush1.bf16.msra.mxu0 %v1026
  %1362 = vmatprep.subr.bf16.mxu0 0
  %1363 = vmatpush1.bf16.msra.mxu0 %v1027
  %1364 = vmatprep.subr.bf16.mxu0 0
  %1365 = vmatpush1.bf16.msra.mxu0 %v1028
  %1366 = vmatprep.subr.bf16.mxu0 0
  %1367 = vmatpush1.bf16.msra.mxu0 %v1029
  %1368 = vmatprep.mubr.bf16.mxu0 %v411
  %1369 = vmatmul.mubr.bf16.gmra.mrb[0].mxu0 %v410
  %v1370 = vpop.f32.mrb[0].mxu0
  %v1371 = vadd.f32 %v1322, %v1370
  %v1372 = vpop.f32.mrb[0].mxu0
  %v1373 = vpop.f32.mrb[0].mxu0
  %v1374 = vadd.f32 %v1325, %v1373
  %v1375 = vpop.f32.mrb[0].mxu0
  %1376 = vmatprep.mubr.bf16.mxu0 %v427
  %1377 = vmatmul.mubr.bf16.gmra.mrb[0].mxu0 %v426
  %v1378 = vpop.f32.mrb[0].mxu0
  %v1379 = vadd.f32 %v1330, %v1378
  %v1380 = vpop.f32.mrb[0].mxu0
  %v1381 = vpop.f32.mrb[0].mxu0
  %v1382 = vadd.f32 %v1333, %v1381
  %v1383 = vpop.f32.mrb[0].mxu0
  %1384 = vdwg.mxu0
  %1385 = vmatprep.subr.bf16.mxu0 0
  %1386 = vmatpush1.bf16.msra.mxu0 %v1030
  %1387 = vmatprep.subr.bf16.mxu0 0
  %1388 = vmatpush1.bf16.msra.mxu0 %v1031
  %1389 = vmatprep.subr.bf16.mxu0 0
  %1390 = vmatpush1.bf16.msra.mxu0 %v1032
  %1391 = vmatprep.subr.bf16.mxu0 0
  %1392 = vmatpush1.bf16.msra.mxu0 %v1033
  %1393 = vmatprep.subr.bf16.mxu0 0
  %1394 = vmatpush1.bf16.msra.mxu0 %v1034
  %1395 = vmatprep.subr.bf16.mxu0 0
  %1396 = vmatpush1.bf16.msra.mxu0 %v1035
  %1397 = vmatprep.subr.bf16.mxu0 0
  %1398 = vmatpush1.bf16.msra.mxu0 %v1036
  %1399 = vmatprep.subr.bf16.mxu0 0
  %1400 = vmatpush1.bf16.msra.mxu0 %v1037
  %1401 = vmatprep.subr.bf16.mxu0 0
  %1402 = vmatpush1.bf16.msra.mxu0 %v1038
  %1403 = vmatprep.subr.bf16.mxu0 0
  %1404 = vmatpush1.bf16.msra.mxu0 %v1039
  %1405 = vmatprep.subr.bf16.mxu0 0
  %1406 = vmatpush1.bf16.msra.mxu0 %v1040
  %1407 = vmatprep.subr.bf16.mxu0 0
  %1408 = vmatpush1.bf16.msra.mxu0 %v1041
  %1409 = vmatprep.subr.bf16.mxu0 0
  %1410 = vmatpush1.bf16.msra.mxu0 %v1042
  %1411 = vmatprep.subr.bf16.mxu0 0
  %1412 = vmatpush1.bf16.msra.mxu0 %v1043
  %1413 = vmatprep.subr.bf16.mxu0 0
  %1414 = vmatpush1.bf16.msra.mxu0 %v1044
  %1415 = vmatprep.subr.bf16.mxu0 0
  %1416 = vmatpush1.bf16.msra.mxu0 %v1045
  %1417 = vmatprep.mubr.bf16.mxu0 %v413
  %1418 = vmatmul.mubr.bf16.gmra.mrb[0].mxu0 %v412
  %v1419 = vpop.f32.mrb[0].mxu0
  %v1420 = vadd.f32 %v1371, %v1419
  %v1421 = vpop.f32.mrb[0].mxu0
  %v1422 = vpop.f32.mrb[0].mxu0
  %v1423 = vadd.f32 %v1374, %v1422
  %v1424 = vpop.f32.mrb[0].mxu0
  %1425 = vmatprep.mubr.bf16.mxu0 %v429
  %1426 = vmatmul.mubr.bf16.gmra.mrb[0].mxu0 %v428
  %v1427 = vpop.f32.mrb[0].mxu0
  %v1428 = vadd.f32 %v1379, %v1427
  %v1429 = vpop.f32.mrb[0].mxu0
  %v1430 = vpop.f32.mrb[0].mxu0
  %v1431 = vadd.f32 %v1382, %v1430
  %v1432 = vpop.f32.mrb[0].mxu0
  %1433 = vdwg.mxu0
  %1434 = vmatprep.subr.bf16.mxu0 0
  %1435 = vmatpush1.bf16.msra.mxu0 %v1046
  %1436 = vmatprep.subr.bf16.mxu0 0
  %1437 = vmatpush1.bf16.msra.mxu0 %v1047
  %1438 = vmatprep.subr.bf16.mxu0 0
  %1439 = vmatpush1.bf16.msra.mxu0 %v1048
  %1440 = vmatprep.subr.bf16.mxu0 0
  %1441 = vmatpush1.bf16.msra.mxu0 %v1049
  %1442 = vmatprep.subr.bf16.mxu0 0
  %1443 = vmatpush1.bf16.msra.mxu0 %v1050
  %1444 = vmatprep.subr.bf16.mxu0 0
  %1445 = vmatpush1.bf16.msra.mxu0 %v1051
  %1446 = vmatprep.subr.bf16.mxu0 0
  %1447 = vmatpush1.bf16.msra.mxu0 %v1052
  %1448 = vmatprep.subr.bf16.mxu0 0
  %1449 = vmatpush1.bf16.msra.mxu0 %v1053
  %1450 = vmatprep.subr.bf16.mxu0 0
  %1451 = vmatpush1.bf16.msra.mxu0 %v1054
  %1452 = vmatprep.subr.bf16.mxu0 0
  %1453 = vmatpush1.bf16.msra.mxu0 %v1055
  %1454 = vmatprep.subr.bf16.mxu0 0
  %1455 = vmatpush1.bf16.msra.mxu0 %v1056
  %1456 = vmatprep.subr.bf16.mxu0 0
  %1457 = vmatpush1.bf16.msra.mxu0 %v1057
  %1458 = vmatprep.subr.bf16.mxu0 0
  %1459 = vmatpush1.bf16.msra.mxu0 %v1058
  %1460 = vmatprep.subr.bf16.mxu0 0
  %1461 = vmatpush1.bf16.msra.mxu0 %v1059
  %1462 = vmatprep.subr.bf16.mxu0 0
  %1463 = vmatpush1.bf16.msra.mxu0 %v1060
  %1464 = vmatprep.subr.bf16.mxu0 0
  %1465 = vmatpush1.bf16.msra.mxu0 %v1061
  %1466 = vmatprep.mubr.bf16.mxu0 %v415
  %1467 = vmatmul.mubr.bf16.gmra.mrb[0].mxu0 %v414
  %v1468 = vpop.f32.mrb[0].mxu0
  %v1469 = vadd.f32 %v1420, %v1468
  %v1470 = vpop.f32.mrb[0].mxu0
  %v1471 = vpop.f32.mrb[0].mxu0
  %v1472 = vadd.f32 %v1423, %v1471
  %v1473 = vpop.f32.mrb[0].mxu0
  %1474 = vmatprep.mubr.bf16.mxu0 %v431
  %1475 = vmatmul.mubr.bf16.gmra.mrb[0].mxu0 %v430
  %v1476 = vpop.f32.mrb[0].mxu0
  %v1477 = vadd.f32 %v1428, %v1476
  %v1478 = vpop.f32.mrb[0].mxu0
  %v1479 = vpop.f32.mrb[0].mxu0
  %v1480 = vadd.f32 %v1431, %v1479
  %v1481 = vpop.f32.mrb[0].mxu0
  %1482 = vdwg.mxu0
  %1483 = vmatprep.subr.bf16.mxu0 0
  %1484 = vmatpush1.bf16.msra.mxu0 %v1062
  %1485 = vmatprep.subr.bf16.mxu0 0
  %1486 = vmatpush1.bf16.msra.mxu0 %v1063
  %1487 = vmatprep.subr.bf16.mxu0 0
  %1488 = vmatpush1.bf16.msra.mxu0 %v1064
  %1489 = vmatprep.subr.bf16.mxu0 0
  %1490 = vmatpush1.bf16.msra.mxu0 %v1065
  %1491 = vmatprep.subr.bf16.mxu0 0
  %1492 = vmatpush1.bf16.msra.mxu0 %v1066
  %1493 = vmatprep.subr.bf16.mxu0 0
  %1494 = vmatpush1.bf16.msra.mxu0 %v1067
  %1495 = vmatprep.subr.bf16.mxu0 0
  %1496 = vmatpush1.bf16.msra.mxu0 %v1068
  %1497 = vmatprep.subr.bf16.mxu0 0
  %1498 = vmatpush1.bf16.msra.mxu0 %v1069
  %1499 = vmatprep.subr.bf16.mxu0 0
  %1500 = vmatpush1.bf16.msra.mxu0 %v1070
  %1501 = vmatprep.subr.bf16.mxu0 0
  %1502 = vmatpush1.bf16.msra.mxu0 %v1071
  %1503 = vmatprep.subr.bf16.mxu0 0
  %1504 = vmatpush1.bf16.msra.mxu0 %v1072
  %1505 = vmatprep.subr.bf16.mxu0 0
  %1506 = vmatpush1.bf16.msra.mxu0 %v1073
  %1507 = vmatprep.subr.bf16.mxu0 0
  %1508 = vmatpush1.bf16.msra.mxu0 %v1074
  %1509 = vmatprep.subr.bf16.mxu0 0
  %1510 = vmatpush1.bf16.msra.mxu0 %v1075
  %1511 = vmatprep.subr.bf16.mxu0 0
  %1512 = vmatpush1.bf16.msra.mxu0 %v1076
  %1513 = vmatprep.subr.bf16.mxu0 0
  %1514 = vmatpush1.bf16.msra.mxu0 %v1077
  %1515 = vmatprep.mubr.bf16.mxu0 %v417
  %1516 = vmatmul.mubr.bf16.gmra.mrb[0].mxu0 %v416
  %v1517 = vpop.f32.mrb[0].mxu0
  %v1518 = vadd.f32 %v1469, %v1517
  %v1519 = vpop.f32.mrb[0].mxu0
  %v1520 = vpop.f32.mrb[0].mxu0
  %v1521 = vadd.f32 %v1472, %v1520
  %v1522 = vpop.f32.mrb[0].mxu0
  %1523 = vmatprep.mubr.bf16.mxu0 %v433
  %1524 = vmatmul.mubr.bf16.gmra.mrb[0].mxu0 %v432
  %v1525 = vpop.f32.mrb[0].mxu0
  %v1526 = vadd.f32 %v1477, %v1525
  %v1527 = vpop.f32.mrb[0].mxu0
  %v1528 = vpop.f32.mrb[0].mxu0
  %v1529 = vadd.f32 %v1480, %v1528
  %v1530 = vpop.f32.mrb[0].mxu0
  %1531 = vdwg.mxu0
  %1532 = vmatprep.subr.bf16.mxu0 0
  %1533 = vmatpush1.bf16.msra.mxu0 %v1078
  %1534 = vmatprep.subr.bf16.mxu0 0
  %1535 = vmatpush1.bf16.msra.mxu0 %v1079
  %1536 = vmatprep.subr.bf16.mxu0 0
  %1537 = vmatpush1.bf16.msra.mxu0 %v1080
  %1538 = vmatprep.subr.bf16.mxu0 0
  %1539 = vmatpush1.bf16.msra.mxu0 %v1081
  %1540 = vmatprep.subr.bf16.mxu0 0
  %1541 = vmatpush1.bf16.msra.mxu0 %v1082
  %1542 = vmatprep.subr.bf16.mxu0 0
  %1543 = vmatpush1.bf16.msra.mxu0 %v1083
  %1544 = vmatprep.subr.bf16.mxu0 0
  %1545 = vmatpush1.bf16.msra.mxu0 %v1084
  %1546 = vmatprep.subr.bf16.mxu0 0
  %1547 = vmatpush1.bf16.msra.mxu0 %v1085
  %1548 = vmatprep.subr.bf16.mxu0 0
  %1549 = vmatpush1.bf16.msra.mxu0 %v1086
  %1550 = vmatprep.subr.bf16.mxu0 0
  %1551 = vmatpush1.bf16.msra.mxu0 %v1087
  %1552 = vmatprep.subr.bf16.mxu0 0
  %1553 = vmatpush1.bf16.msra.mxu0 %v1088
  %1554 = vmatprep.subr.bf16.mxu0 0
  %1555 = vmatpush1.bf16.msra.mxu0 %v1089
  %1556 = vmatprep.subr.bf16.mxu0 0
  %1557 = vmatpush1.bf16.msra.mxu0 %v1090
  %1558 = vmatprep.subr.bf16.mxu0 0
  %1559 = vmatpush1.bf16.msra.mxu0 %v1091
  %1560 = vmatprep.subr.bf16.mxu0 0
  %1561 = vmatpush1.bf16.msra.mxu0 %v1092
  %1562 = vmatprep.subr.bf16.mxu0 0
  %1563 = vmatpush1.bf16.msra.mxu0 %v1093
  %1564 = vmatprep.mubr.bf16.mxu0 %v419
  %1565 = vmatmul.mubr.bf16.gmra.mrb[0].mxu0 %v418
  %v1566 = vpop.f32.mrb[0].mxu0
  %v1567 = vadd.f32 %v1518, %v1566
  %v1568 = vpop.f32.mrb[0].mxu0
  %v1569 = vpop.f32.mrb[0].mxu0
  %v1570 = vadd.f32 %v1521, %v1569
  %v1571 = vpop.f32.mrb[0].mxu0
  %1572 = vmatprep.mubr.bf16.mxu0 %v435
  %1573 = vmatmul.mubr.bf16.gmra.mrb[0].mxu0 %v434
  %v1574 = vpop.f32.mrb[0].mxu0
  %v1575 = vadd.f32 %v1526, %v1574
  %v1576 = vpop.f32.mrb[0].mxu0
  %v1577 = vpop.f32.mrb[0].mxu0
  %v1578 = vadd.f32 %v1529, %v1577
  %v1579 = vpop.f32.mrb[0].mxu0
  %1580 = vdwg.mxu0
  %1581 = vmatprep.subr.bf16.mxu0 0
  %1582 = vmatpush1.bf16.msra.mxu0 %v1094
  %1583 = vmatprep.subr.bf16.mxu0 0
  %1584 = vmatpush1.bf16.msra.mxu0 %v1095
  %1585 = vmatprep.subr.bf16.mxu0 0
  %1586 = vmatpush1.bf16.msra.mxu0 %v1096
  %1587 = vmatprep.subr.bf16.mxu0 0
  %1588 = vmatpush1.bf16.msra.mxu0 %v1097
  %1589 = vmatprep.subr.bf16.mxu0 0
  %1590 = vmatpush1.bf16.msra.mxu0 %v1098
  %1591 = vmatprep.subr.bf16.mxu0 0
  %1592 = vmatpush1.bf16.msra.mxu0 %v1099
  %1593 = vmatprep.subr.bf16.mxu0 0
  %1594 = vmatpush1.bf16.msra.mxu0 %v1100
  %1595 = vmatprep.subr.bf16.mxu0 0
  %1596 = vmatpush1.bf16.msra.mxu0 %v1101
  %1597 = vmatprep.subr.bf16.mxu0 0
  %1598 = vmatpush1.bf16.msra.mxu0 %v1102
  %1599 = vmatprep.subr.bf16.mxu0 0
  %1600 = vmatpush1.bf16.msra.mxu0 %v1103
  %1601 = vmatprep.subr.bf16.mxu0 0
  %1602 = vmatpush1.bf16.msra.mxu0 %v1104
  %1603 = vmatprep.subr.bf16.mxu0 0
  %1604 = vmatpush1.bf16.msra.mxu0 %v1105
  %1605 = vmatprep.subr.bf16.mxu0 0
  %1606 = vmatpush1.bf16.msra.mxu0 %v1106
  %1607 = vmatprep.subr.bf16.mxu0 0
  %1608 = vmatpush1.bf16.msra.mxu0 %v1107
  %1609 = vmatprep.subr.bf16.mxu0 0
  %1610 = vmatpush1.bf16.msra.mxu0 %v1108
  %1611 = vmatprep.subr.bf16.mxu0 0
  %1612 = vmatpush1.bf16.msra.mxu0 %v1109
  %1613 = vmatprep.mubr.bf16.mxu0 %v421
  %1614 = vmatmul.mubr.bf16.gmra.mrb[0].mxu0 %v420
  %v1615 = vpop.f32.mrb[0].mxu0
  %v1616 = vadd.f32 %v1567, %v1615
  %v1617 = vpop.f32.mrb[0].mxu0
  %v1618 = vpop.f32.mrb[0].mxu0
  %v1619 = vadd.f32 %v1570, %v1618
  %v1620 = vpop.f32.mrb[0].mxu0
  %1621 = vmatprep.mubr.bf16.mxu0 %v437
  %1622 = vmatmul.mubr.bf16.gmra.mrb[0].mxu0 %v436
  %v1623 = vpop.f32.mrb[0].mxu0
  %v1624 = vadd.f32 %v1575, %v1623
  %v1625 = vpop.f32.mrb[0].mxu0
  %v1626 = vpop.f32.mrb[0].mxu0
  %v1627 = vadd.f32 %v1578, %v1626
  %v1628 = vpop.f32.mrb[0].mxu0
  %1629 = vdwg.mxu0
  %1630 = vst [vmem:[%s3] sm:$0xff] %v1616
  %1631 = vst [vmem:[%s3 + $0x8] sm:$0xff] %v1619
  %1632 = vst [vmem:[%s3 + $0x10] sm:$0xff] %v1624
  %1633 = vst [vmem:[%s3 + $0x18] sm:$0xff] %v1627
  // Predicated region
  $region14: #{multi_discriminator_forward.29} parent=0 // pred_check
    _
  $region15: #{multi_discriminator_forward.29} parent=0 // pred_check_branch
    %1635 = sbr.rel (0) target = $region17
  $region16: #{multi_discriminator_forward.29} parent=0 // pred_region
    _
  $region17: #{multi_discriminator_forward.29} parent=0 // pred_fallthru
    _
  // Predicated region
  $region18: #{multi_discriminator_forward.29} parent=0 // pred_check
    _
  $region19: #{multi_discriminator_forward.29} parent=0 // pred_check_branch
    %1637 = sbr.rel (0) target = $region21
  $region20: #{multi_discriminator_forward.29} parent=0 // pred_region
    _
  $region21: #{multi_discriminator_forward.29} parent=0 // pred_fallthru
    _

// kernel: multi_discriminator_forward.20
$region0: #{multi_discriminator_forward.20}
  #allocation0 [shape = 'u32[]', space=smem, size = 0x4, offset = 0x4, fixed_abs, tag = 'smem constant byte address 0x4 - core index']
  #allocation1 [shape = 'u32[144,128]{1,0:T(1,128)}', space=vmem, size = 0x12000, scoped, tag = 'internal scratch']
  %s0 = inlined_call_operand.vmem [shape: bf16[32,2048], index: 0, kind: input, shape index: {}]
  %s1 = inlined_call_operand.vmem [shape: bf16[2048,128], index: 1, kind: input, shape index: {}]
  %s2 = inlined_call_operand.vmem [shape: bf16[32,128], index: 2, kind: output, shape index: {0}]
  %s3 = inlined_call_operand.vmem [shape: f32[8,128], index: 3, kind: output, shape index: {1}]
  %4 = xla_tuple %s2, %s3
  %s5 = sld [smem:[#allocation0]]
  $region26: #{multi_discriminator_forward.20} parent=0
    _
  %s7 = ssub.s32 1, %s5
  %s8 = scalar_select 0, %s7, %s5
  // Predicated region
  $region2: #{multi_discriminator_forward.20} parent=0 // pred_check
    _
  $region3: #{multi_discriminator_forward.20} parent=0 // pred_check_branch
    %10 = sbr.rel (0) target = $region5
  $region4: #{multi_discriminator_forward.20} parent=0 // pred_region
    _
  $region5: #{multi_discriminator_forward.20} parent=0 // pred_fallthru
    _
  // Predicated region
  $region6: #{multi_discriminator_forward.20} parent=0 // pred_check
    _
  $region7: #{multi_discriminator_forward.20} parent=0 // pred_check_branch
    %12 = sbr.rel (0) target = $region9
  $region8: #{multi_discriminator_forward.20} parent=0 // pred_region
    _
  $region9: #{multi_discriminator_forward.20} parent=0 // pred_fallthru
    _
  %v14 = vld [vmem:[%s0] sm:$0xff]
  %v15 = vld [vmem:[%s0 + $0x8] sm:$0xff]
  %v16 = vld [vmem:[%s0 + $0x10] sm:$0xff]
  %v17 = vld [vmem:[%s0 + $0x18] sm:$0xff]
  %v18 = vld [vmem:[%s0 + $0x20] sm:$0xff]
  %v19 = vld [vmem:[%s0 + $0x28] sm:$0xff]
  %v20 = vld [vmem:[%s0 + $0x30] sm:$0xff]
  %v21 = vld [vmem:[%s0 + $0x38] sm:$0xff]
  %v22 = vld [vmem:[%s0 + $0x40] sm:$0xff]
  %v23 = vld [vmem:[%s0 + $0x48] sm:$0xff]
  %v24 = vld [vmem:[%s0 + $0x50] sm:$0xff]
  %v25 = vld [vmem:[%s0 + $0x58] sm:$0xff]
  %v26 = vld [vmem:[%s0 + $0x60] sm:$0xff]
  %v27 = vld [vmem:[%s0 + $0x68] sm:$0xff]
  %v28 = vld [vmem:[%s0 + $0x70] sm:$0xff]
  %v29 = vld [vmem:[%s0 + $0x78] sm:$0xff]
  %v30 = vld [vmem:[%s0 + $0x80] sm:$0xff]
  %v31 = vld [vmem:[%s0 + $0x88] sm:$0xff]
  %v32 = vld [vmem:[%s0 + $0x90] sm:$0xff]
  %v33 = vld [vmem:[%s0 + $0x98] sm:$0xff]
  %v34 = vld [vmem:[%s0 + $0xa0] sm:$0xff]
  %v35 = vld [vmem:[%s0 + $0xa8] sm:$0xff]
  %v36 = vld [vmem:[%s0 + $0xb0] sm:$0xff]
  %v37 = vld [vmem:[%s0 + $0xb8] sm:$0xff]
  %v38 = vld [vmem:[%s0 + $0xc0] sm:$0xff]
  %v39 = vld [vmem:[%s0 + $0xc8] sm:$0xff]
  %v40 = vld [vmem:[%s0 + $0xd0] sm:$0xff]
  %v41 = vld [vmem:[%s0 + $0xd8] sm:$0xff]
  %v42 = vld [vmem:[%s0 + $0xe0] sm:$0xff]
  %v43 = vld [vmem:[%s0 + $0xe8] sm:$0xff]
  %v44 = vld [vmem:[%s0 + $0xf0] sm:$0xff]
  %v45 = vld [vmem:[%s0 + $0xf8] sm:$0xff]
  %v46 = vld [vmem:[%s1] sm:$0xf]
  %v47 = vld [vmem:[%s1 + $0x4] sm:$0xf]
  %v48 = vld [vmem:[%s1 + $0x8] sm:$0xf]
  %v49 = vld [vmem:[%s1 + $0xc] sm:$0xf]
  %v50 = vld [vmem:[%s1 + $0x10] sm:$0xf]
  %v51 = vld [vmem:[%s1 + $0x14] sm:$0xf]
  %v52 = vld [vmem:[%s1 + $0x18] sm:$0xf]
  %v53 = vld [vmem:[%s1 + $0x1c] sm:$0xf]
  %v54 = vld [vmem:[%s1 + $0x20] sm:$0xf]
  %v55 = vld [vmem:[%s1 + $0x24] sm:$0xf]
  %v56 = vld [vmem:[%s1 + $0x28] sm:$0xf]
  %v57 = vld [vmem:[%s1 + $0x2c] sm:$0xf]
  %v58 = vld [vmem:[%s1 + $0x30] sm:$0xf]
  %v59 = vld [vmem:[%s1 + $0x34] sm:$0xf]
  %v60 = vld [vmem:[%s1 + $0x38] sm:$0xf]
  %v61 = vld [vmem:[%s1 + $0x3c] sm:$0xf]
  %v62 = vld [vmem:[%s1 + $0x40] sm:$0xf]
  %v63 = vld [vmem:[%s1 + $0x44] sm:$0xf]
  %v64 = vld [vmem:[%s1 + $0x48] sm:$0xf]
  %v65 = vld [vmem:[%s1 + $0x4c] sm:$0xf]
  %v66 = vld [vmem:[%s1 + $0x50] sm:$0xf]
  %v67 = vld [vmem:[%s1 + $0x54] sm:$0xf]
  %v68 = vld [vmem:[%s1 + $0x58] sm:$0xf]
  %v69 = vld [vmem:[%s1 + $0x5c] sm:$0xf]
  %v70 = vld [vmem:[%s1 + $0x60] sm:$0xf]
  %v71 = vld [vmem:[%s1 + $0x64] sm:$0xf]
  %v72 = vld [vmem:[%s1 + $0x68] sm:$0xf]
  %v73 = vld [vmem:[%s1 + $0x6c] sm:$0xf]
  %v74 = vld [vmem:[%s1 + $0x70] sm:$0xf]
  %v75 = vld [vmem:[%s1 + $0x74] sm:$0xf]
  %v76 = vld [vmem:[%s1 + $0x78] sm:$0xf]
  %v77 = vld [vmem:[%s1 + $0x7c] sm:$0xf]
  %v78 = vld [vmem:[%s1 + $0x80] sm:$0xf]
  %v79 = vld [vmem:[%s1 + $0x84] sm:$0xf]
  %v80 = vld [vmem:[%s1 + $0x88] sm:$0xf]
  %v81 = vld [vmem:[%s1 + $0x8c] sm:$0xf]
  %v82 = vld [vmem:[%s1 + $0x90] sm:$0xf]
  %v83 = vld [vmem:[%s1 + $0x94] sm:$0xf]
  %v84 = vld [vmem:[%s1 + $0x98] sm:$0xf]
  %v85 = vld [vmem:[%s1 + $0x9c] sm:$0xf]
  %v86 = vld [vmem:[%s1 + $0xa0] sm:$0xf]
  %v87 = vld [vmem:[%s1 + $0xa4] sm:$0xf]
  %v88 = vld [vmem:[%s1 + $0xa8] sm:$0xf]
  %v89 = vld [vmem:[%s1 + $0xac] sm:$0xf]
  %v90 = vld [vmem:[%s1 + $0xb0] sm:$0xf]
  %v91 = vld [vmem:[%s1 + $0xb4] sm:$0xf]
  %v92 = vld [vmem:[%s1 + $0xb8] sm:$0xf]
  %v93 = vld [vmem:[%s1 + $0xbc] sm:$0xf]
  %v94 = vld [vmem:[%s1 + $0xc0] sm:$0xf]
  %v95 = vld [vmem:[%s1 + $0xc4] sm:$0xf]
  %v96 = vld [vmem:[%s1 + $0xc8] sm:$0xf]
  %v97 = vld [vmem:[%s1 + $0xcc] sm:$0xf]
  %v98 = vld [vmem:[%s1 + $0xd0] sm:$0xf]
  %v99 = vld [vmem:[%s1 + $0xd4] sm:$0xf]
  %v100 = vld [vmem:[%s1 + $0xd8] sm:$0xf]
  %v101 = vld [vmem:[%s1 + $0xdc] sm:$0xf]
  %v102 = vld [vmem:[%s1 + $0xe0] sm:$0xf]
  %v103 = vld [vmem:[%s1 + $0xe4] sm:$0xf]
  %v104 = vld [vmem:[%s1 + $0xe8] sm:$0xf]
  %v105 = vld [vmem:[%s1 + $0xec] sm:$0xf]
  %v106 = vld [vmem:[%s1 + $0xf0] sm:$0xf]
  %v107 = vld [vmem:[%s1 + $0xf4] sm:$0xf]
  %v108 = vld [vmem:[%s1 + $0xf8] sm:$0xf]
  %v109 = vld [vmem:[%s1 + $0xfc] sm:$0xf]
  %v110 = vld [vmem:[%s1 + $0x100] sm:$0xf]
  %v111 = vld [vmem:[%s1 + $0x104] sm:$0xf]
  %v112 = vld [vmem:[%s1 + $0x108] sm:$0xf]
  %v113 = vld [vmem:[%s1 + $0x10c] sm:$0xf]
  %v114 = vld [vmem:[%s1 + $0x110] sm:$0xf]
  %v115 = vld [vmem:[%s1 + $0x114] sm:$0xf]
  %v116 = vld [vmem:[%s1 + $0x118] sm:$0xf]
  %v117 = vld [vmem:[%s1 + $0x11c] sm:$0xf]
  %v118 = vld [vmem:[%s1 + $0x120] sm:$0xf]
  %v119 = vld [vmem:[%s1 + $0x124] sm:$0xf]
  %v120 = vld [vmem:[%s1 + $0x128] sm:$0xf]
  %v121 = vld [vmem:[%s1 + $0x12c] sm:$0xf]
  %v122 = vld [vmem:[%s1 + $0x130] sm:$0xf]
  %v123 = vld [vmem:[%s1 + $0x134] sm:$0xf]
  %v124 = vld [vmem:[%s1 + $0x138] sm:$0xf]
  %v125 = vld [vmem:[%s1 + $0x13c] sm:$0xf]
  %v126 = vld [vmem:[%s1 + $0x140] sm:$0xf]
  %v127 = vld [vmem:[%s1 + $0x144] sm:$0xf]
  %v128 = vld [vmem:[%s1 + $0x148] sm:$0xf]
  %v129 = vld [vmem:[%s1 + $0x14c] sm:$0xf]
  %v130 = vld [vmem:[%s1 + $0x150] sm:$0xf]
  %v131 = vld [vmem:[%s1 + $0x154] sm:$0xf]
  %v132 = vld [vmem:[%s1 + $0x158] sm:$0xf]
  %v133 = vld [vmem:[%s1 + $0x15c] sm:$0xf]
  %v134 = vld [vmem:[%s1 + $0x160] sm:$0xf]
  %v135 = vld [vmem:[%s1 + $0x164] sm:$0xf]
  %v136 = vld [vmem:[%s1 + $0x168] sm:$0xf]
  %v137 = vld [vmem:[%s1 + $0x16c] sm:$0xf]
  %v138 = vld [vmem:[%s1 + $0x170] sm:$0xf]
  %v139 = vld [vmem:[%s1 + $0x174] sm:$0xf]
  %v140 = vld [vmem:[%s1 + $0x178] sm:$0xf]
  %v141 = vld [vmem:[%s1 + $0x17c] sm:$0xf]
  %v142 = vld [vmem:[%s1 + $0x180] sm:$0xf]
  %v143 = vld [vmem:[%s1 + $0x184] sm:$0xf]
  %v144 = vld [vmem:[%s1 + $0x188] sm:$0xf]
  %v145 = vld [vmem:[%s1 + $0x18c] sm:$0xf]
  %v146 = vld [vmem:[%s1 + $0x190] sm:$0xf]
  %v147 = vld [vmem:[%s1 + $0x194] sm:$0xf]
  %v148 = vld [vmem:[%s1 + $0x198] sm:$0xf]
  %v149 = vld [vmem:[%s1 + $0x19c] sm:$0xf]
  %v150 = vld [vmem:[%s1 + $0x1a0] sm:$0xf]
  %v151 = vld [vmem:[%s1 + $0x1a4] sm:$0xf]
  %v152 = vld [vmem:[%s1 + $0x1a8] sm:$0xf]
  %v153 = vld [vmem:[%s1 + $0x1ac] sm:$0xf]
  %v154 = vld [vmem:[%s1 + $0x1b0] sm:$0xf]
  %v155 = vld [vmem:[%s1 + $0x1b4] sm:$0xf]
  %v156 = vld [vmem:[%s1 + $0x1b8] sm:$0xf]
  %v157 = vld [vmem:[%s1 + $0x1bc] sm:$0xf]
  %v158 = vld [vmem:[%s1 + $0x1c0] sm:$0xf]
  %v159 = vld [vmem:[%s1 + $0x1c4] sm:$0xf]
  %v160 = vld [vmem:[%s1 + $0x1c8] sm:$0xf]
  %v161 = vld [vmem:[%s1 + $0x1cc] sm:$0xf]
  %v162 = vld [vmem:[%s1 + $0x1d0] sm:$0xf]
  %v163 = vld [vmem:[%s1 + $0x1d4] sm:$0xf]
  %v164 = vld [vmem:[%s1 + $0x1d8] sm:$0xf]
  %v165 = vld [vmem:[%s1 + $0x1dc] sm:$0xf]
  %v166 = vld [vmem:[%s1 + $0x1e0] sm:$0xf]
  %v167 = vld [vmem:[%s1 + $0x1e4] sm:$0xf]
  %v168 = vld [vmem:[%s1 + $0x1e8] sm:$0xf]
  %v169 = vld [vmem:[%s1 + $0x1ec] sm:$0xf]
  %v170 = vld [vmem:[%s1 + $0x1f0] sm:$0xf]
  %v171 = vld [vmem:[%s1 + $0x1f4] sm:$0xf]
  %v172 = vld [vmem:[%s1 + $0x1f8] sm:$0xf]
  %v173 = vld [vmem:[%s1 + $0x1fc] sm:$0xf]
  %v174 = vld [vmem:[%s1 + $0x200] sm:$0xf]
  %v175 = vld [vmem:[%s1 + $0x204] sm:$0xf]
  %v176 = vld [vmem:[%s1 + $0x208] sm:$0xf]
  %v177 = vld [vmem:[%s1 + $0x20c] sm:$0xf]
  %v178 = vld [vmem:[%s1 + $0x210] sm:$0xf]
  %v179 = vld [vmem:[%s1 + $0x214] sm:$0xf]
  %v180 = vld [vmem:[%s1 + $0x218] sm:$0xf]
  %v181 = vld [vmem:[%s1 + $0x21c] sm:$0xf]
  %v182 = vld [vmem:[%s1 + $0x220] sm:$0xf]
  %v183 = vld [vmem:[%s1 + $0x224] sm:$0xf]
  %v184 = vld [vmem:[%s1 + $0x228] sm:$0xf]
  %v185 = vld [vmem:[%s1 + $0x22c] sm:$0xf]
  %v186 = vld [vmem:[%s1 + $0x230] sm:$0xf]
  %v187 = vld [vmem:[%s1 + $0x234] sm:$0xf]
  %v188 = vld [vmem:[%s1 + $0x238] sm:$0xf]
  %v189 = vld [vmem:[%s1 + $0x23c] sm:$0xf]
  %v190 = vld [vmem:[%s1 + $0x240] sm:$0xf]
  %v191 = vld [vmem:[%s1 + $0x244] sm:$0xf]
  %v192 = vld [vmem:[%s1 + $0x248] sm:$0xf]
  %v193 = vld [vmem:[%s1 + $0x24c] sm:$0xf]
  %v194 = vld [vmem:[%s1 + $0x250] sm:$0xf]
  %v195 = vld [vmem:[%s1 + $0x254] sm:$0xf]
  %v196 = vld [vmem:[%s1 + $0x258] sm:$0xf]
  %v197 = vld [vmem:[%s1 + $0x25c] sm:$0xf]
  %v198 = vld [vmem:[%s1 + $0x260] sm:$0xf]
  %v199 = vld [vmem:[%s1 + $0x264] sm:$0xf]
  %v200 = vld [vmem:[%s1 + $0x268] sm:$0xf]
  %v201 = vld [vmem:[%s1 + $0x26c] sm:$0xf]
  %v202 = vld [vmem:[%s1 + $0x270] sm:$0xf]
  %v203 = vld [vmem:[%s1 + $0x274] sm:$0xf]
  %v204 = vld [vmem:[%s1 + $0x278] sm:$0xf]
  %v205 = vld [vmem:[%s1 + $0x27c] sm:$0xf]
  %v206 = vld [vmem:[%s1 + $0x280] sm:$0xf]
  %v207 = vld [vmem:[%s1 + $0x284] sm:$0xf]
  %v208 = vld [vmem:[%s1 + $0x288] sm:$0xf]
  %v209 = vld [vmem:[%s1 + $0x28c] sm:$0xf]
  %v210 = vld [vmem:[%s1 + $0x290] sm:$0xf]
  %v211 = vld [vmem:[%s1 + $0x294] sm:$0xf]
  %v212 = vld [vmem:[%s1 + $0x298] sm:$0xf]
  %v213 = vld [vmem:[%s1 + $0x29c] sm:$0xf]
  %v214 = vld [vmem:[%s1 + $0x2a0] sm:$0xf]
  %v215 = vld [vmem:[%s1 + $0x2a4] sm:$0xf]
  %v216 = vld [vmem:[%s1 + $0x2a8] sm:$0xf]
  %v217 = vld [vmem:[%s1 + $0x2ac] sm:$0xf]
  %v218 = vld [vmem:[%s1 + $0x2b0] sm:$0xf]
  %v219 = vld [vmem:[%s1 + $0x2b4] sm:$0xf]
  %v220 = vld [vmem:[%s1 + $0x2b8] sm:$0xf]
  %v221 = vld [vmem:[%s1 + $0x2bc] sm:$0xf]
  %v222 = vld [vmem:[%s1 + $0x2c0] sm:$0xf]
  %v223 = vld [vmem:[%s1 + $0x2c4] sm:$0xf]
  %v224 = vld [vmem:[%s1 + $0x2c8] sm:$0xf]
  %v225 = vld [vmem:[%s1 + $0x2cc] sm:$0xf]
  %v226 = vld [vmem:[%s1 + $0x2d0] sm:$0xf]
  %v227 = vld [vmem:[%s1 + $0x2d4] sm:$0xf]
  %v228 = vld [vmem:[%s1 + $0x2d8] sm:$0xf]
  %v229 = vld [vmem:[%s1 + $0x2dc] sm:$0xf]
  %v230 = vld [vmem:[%s1 + $0x2e0] sm:$0xf]
  %v231 = vld [vmem:[%s1 + $0x2e4] sm:$0xf]
  %v232 = vld [vmem:[%s1 + $0x2e8] sm:$0xf]
  %v233 = vld [vmem:[%s1 + $0x2ec] sm:$0xf]
  %v234 = vld [vmem:[%s1 + $0x2f0] sm:$0xf]
  %v235 = vld [vmem:[%s1 + $0x2f4] sm:$0xf]
  %v236 = vld [vmem:[%s1 + $0x2f8] sm:$0xf]
  %v237 = vld [vmem:[%s1 + $0x2fc] sm:$0xf]
  %v238 = vld [vmem:[%s1 + $0x300] sm:$0xf]
  %v239 = vld [vmem:[%s1 + $0x304] sm:$0xf]
  %v240 = vld [vmem:[%s1 + $0x308] sm:$0xf]
  %v241 = vld [vmem:[%s1 + $0x30c] sm:$0xf]
  %v242 = vld [vmem:[%s1 + $0x310] sm:$0xf]
  %v243 = vld [vmem:[%s1 + $0x314] sm:$0xf]
  %v244 = vld [vmem:[%s1 + $0x318] sm:$0xf]
  %v245 = vld [vmem:[%s1 + $0x31c] sm:$0xf]
  %v246 = vld [vmem:[%s1 + $0x320] sm:$0xf]
  %v247 = vld [vmem:[%s1 + $0x324] sm:$0xf]
  %v248 = vld [vmem:[%s1 + $0x328] sm:$0xf]
  %v249 = vld [vmem:[%s1 + $0x32c] sm:$0xf]
  %v250 = vld [vmem:[%s1 + $0x330] sm:$0xf]
  %v251 = vld [vmem:[%s1 + $0x334] sm:$0xf]
  %v252 = vld [vmem:[%s1 + $0x338] sm:$0xf]
  %v253 = vld [vmem:[%s1 + $0x33c] sm:$0xf]
  %v254 = vld [vmem:[%s1 + $0x340] sm:$0xf]
  %v255 = vld [vmem:[%s1 + $0x344] sm:$0xf]
  %v256 = vld [vmem:[%s1 + $0x348] sm:$0xf]
  %v257 = vld [vmem:[%s1 + $0x34c] sm:$0xf]
  %v258 = vld [vmem:[%s1 + $0x350] sm:$0xf]
  %v259 = vld [vmem:[%s1 + $0x354] sm:$0xf]
  %v260 = vld [vmem:[%s1 + $0x358] sm:$0xf]
  %v261 = vld [vmem:[%s1 + $0x35c] sm:$0xf]
  %v262 = vld [vmem:[%s1 + $0x360] sm:$0xf]
  %v263 = vld [vmem:[%s1 + $0x364] sm:$0xf]
  %v264 = vld [vmem:[%s1 + $0x368] sm:$0xf]
  %v265 = vld [vmem:[%s1 + $0x36c] sm:$0xf]
  %v266 = vld [vmem:[%s1 + $0x370] sm:$0xf]
  %v267 = vld [vmem:[%s1 + $0x374] sm:$0xf]
  %v268 = vld [vmem:[%s1 + $0x378] sm:$0xf]
  %v269 = vld [vmem:[%s1 + $0x37c] sm:$0xf]
  %v270 = vld [vmem:[%s1 + $0x380] sm:$0xf]
  %v271 = vld [vmem:[%s1 + $0x384] sm:$0xf]
  %v272 = vld [vmem:[%s1 + $0x388] sm:$0xf]
  %v273 = vld [vmem:[%s1 + $0x38c] sm:$0xf]
  %v274 = vld [vmem:[%s1 + $0x390] sm:$0xf]
  %v275 = vld [vmem:[%s1 + $0x394] sm:$0xf]
  %v276 = vld [vmem:[%s1 + $0x398] sm:$0xf]
  %v277 = vld [vmem:[%s1 + $0x39c] sm:$0xf]
  %v278 = vld [vmem:[%s1 + $0x3a0] sm:$0xf]
  %v279 = vld [vmem:[%s1 + $0x3a4] sm:$0xf]
  %v280 = vld [vmem:[%s1 + $0x3a8] sm:$0xf]
  %v281 = vld [vmem:[%s1 + $0x3ac] sm:$0xf]
  %v282 = vld [vmem:[%s1 + $0x3b0] sm:$0xf]
  %v283 = vld [vmem:[%s1 + $0x3b4] sm:$0xf]
  %v284 = vld [vmem:[%s1 + $0x3b8] sm:$0xf]
  %v285 = vld [vmem:[%s1 + $0x3bc] sm:$0xf]
  %v286 = vld [vmem:[%s1 + $0x3c0] sm:$0xf]
  %v287 = vld [vmem:[%s1 + $0x3c4] sm:$0xf]
  %v288 = vld [vmem:[%s1 + $0x3c8] sm:$0xf]
  %v289 = vld [vmem:[%s1 + $0x3cc] sm:$0xf]
  %v290 = vld [vmem:[%s1 + $0x3d0] sm:$0xf]
  %v291 = vld [vmem:[%s1 + $0x3d4] sm:$0xf]
  %v292 = vld [vmem:[%s1 + $0x3d8] sm:$0xf]
  %v293 = vld [vmem:[%s1 + $0x3dc] sm:$0xf]
  %v294 = vld [vmem:[%s1 + $0x3e0] sm:$0xf]
  %v295 = vld [vmem:[%s1 + $0x3e4] sm:$0xf]
  %v296 = vld [vmem:[%s1 + $0x3e8] sm:$0xf]
  %v297 = vld [vmem:[%s1 + $0x3ec] sm:$0xf]
  %v298 = vld [vmem:[%s1 + $0x3f0] sm:$0xf]
  %v299 = vld [vmem:[%s1 + $0x3f4] sm:$0xf]
  %v300 = vld [vmem:[%s1 + $0x3f8] sm:$0xf]
  %v301 = vld [vmem:[%s1 + $0x3fc] sm:$0xf]
  %v334 = vunpack.c.l.b16 %v14
  %v335 = vunpack.c.h.b16 %v14
  %v336 = vunpack.c.l.b16 %v15
  %v337 = vunpack.c.h.b16 %v15
  %v338 = vunpack.c.l.b16 %v16
  %v339 = vunpack.c.h.b16 %v16
  %v340 = vunpack.c.l.b16 %v17
  %v341 = vunpack.c.h.b16 %v17
  %v342 = vunpack.c.l.b16 %v18
  %v343 = vunpack.c.h.b16 %v18
  %v344 = vunpack.c.l.b16 %v19
  %v345 = vunpack.c.h.b16 %v19
  %v346 = vunpack.c.l.b16 %v20
  %v347 = vunpack.c.h.b16 %v20
  %v348 = vunpack.c.l.b16 %v21
  %v349 = vunpack.c.h.b16 %v21
  %v350 = vunpack.c.l.b16 %v22
  %v351 = vunpack.c.h.b16 %v22
  %v352 = vunpack.c.l.b16 %v23
  %v353 = vunpack.c.h.b16 %v23
  %v354 = vunpack.c.l.b16 %v24
  %v355 = vunpack.c.h.b16 %v24
  %v356 = vunpack.c.l.b16 %v25
  %v357 = vunpack.c.h.b16 %v25
  %v358 = vunpack.c.l.b16 %v26
  %v359 = vunpack.c.h.b16 %v26
  %v360 = vunpack.c.l.b16 %v27
  %v361 = vunpack.c.h.b16 %v27
  %v362 = vunpack.c.l.b16 %v28
  %v363 = vunpack.c.h.b16 %v28
  %v364 = vunpack.c.l.b16 %v29
  %v365 = vunpack.c.h.b16 %v29
  %v366 = vunpack.c.l.b16 %v30
  %v367 = vunpack.c.h.b16 %v30
  %v368 = vunpack.c.l.b16 %v31
  %v369 = vunpack.c.h.b16 %v31
  %v370 = vunpack.c.l.b16 %v32
  %v371 = vunpack.c.h.b16 %v32
  %v372 = vunpack.c.l.b16 %v33
  %v373 = vunpack.c.h.b16 %v33
  %v374 = vunpack.c.l.b16 %v34
  %v375 = vunpack.c.h.b16 %v34
  %v376 = vunpack.c.l.b16 %v35
  %v377 = vunpack.c.h.b16 %v35
  %v378 = vunpack.c.l.b16 %v36
  %v379 = vunpack.c.h.b16 %v36
  %v380 = vunpack.c.l.b16 %v37
  %v381 = vunpack.c.h.b16 %v37
  %v382 = vunpack.c.l.b16 %v38
  %v383 = vunpack.c.h.b16 %v38
  %v384 = vunpack.c.l.b16 %v39
  %v385 = vunpack.c.h.b16 %v39
  %v386 = vunpack.c.l.b16 %v40
  %v387 = vunpack.c.h.b16 %v40
  %v388 = vunpack.c.l.b16 %v41
  %v389 = vunpack.c.h.b16 %v41
  %v390 = vunpack.c.l.b16 %v42
  %v391 = vunpack.c.h.b16 %v42
  %v392 = vunpack.c.l.b16 %v43
  %v393 = vunpack.c.h.b16 %v43
  %v394 = vunpack.c.l.b16 %v44
  %v395 = vunpack.c.h.b16 %v44
  %v396 = vunpack.c.l.b16 %v45
  %v397 = vunpack.c.h.b16 %v45
  %v398 = vpack.c.b16 %v350, %v334
  %v399 = vpack.c.b16 %v351, %v335
  %v400 = vpack.c.b16 %v352, %v336
  %v401 = vpack.c.b16 %v353, %v337
  %v402 = vpack.c.b16 %v354, %v338
  %v403 = vpack.c.b16 %v355, %v339
  %v404 = vpack.c.b16 %v356, %v340
  %v405 = vpack.c.b16 %v357, %v341
  %v406 = vpack.c.b16 %v358, %v342
  %v407 = vpack.c.b16 %v359, %v343
  %v408 = vpack.c.b16 %v360, %v344
  %v409 = vpack.c.b16 %v361, %v345
  %v410 = vpack.c.b16 %v362, %v346
  %v411 = vpack.c.b16 %v363, %v347
  %v412 = vpack.c.b16 %v364, %v348
  %v413 = vpack.c.b16 %v365, %v349
  %v414 = vpack.c.b16 %v382, %v366
  %v415 = vpack.c.b16 %v383, %v367
  %v416 = vpack.c.b16 %v384, %v368
  %v417 = vpack.c.b16 %v385, %v369
  %v418 = vpack.c.b16 %v386, %v370
  %v419 = vpack.c.b16 %v387, %v371
  %v420 = vpack.c.b16 %v388, %v372
  %v421 = vpack.c.b16 %v389, %v373
  %v422 = vpack.c.b16 %v390, %v374
  %v423 = vpack.c.b16 %v391, %v375
  %v424 = vpack.c.b16 %v392, %v376
  %v425 = vpack.c.b16 %v393, %v377
  %v426 = vpack.c.b16 %v394, %v378
  %v427 = vpack.c.b16 %v395, %v379
  %v428 = vpack.c.b16 %v396, %v380
  %v429 = vpack.c.b16 %v397, %v381
  %v718 = vunpack.c.l.b16 %v46
  %v719 = vunpack.c.l.b16 %v47
  %v720 = vunpack.c.l.b16 %v48
  %v721 = vunpack.c.l.b16 %v49
  %v722 = vunpack.c.l.b16 %v50
  %v723 = vunpack.c.l.b16 %v51
  %v724 = vunpack.c.l.b16 %v52
  %v725 = vunpack.c.l.b16 %v53
  %v726 = vunpack.c.l.b16 %v54
  %v727 = vunpack.c.l.b16 %v55
  %v728 = vunpack.c.l.b16 %v56
  %v729 = vunpack.c.l.b16 %v57
  %v730 = vunpack.c.l.b16 %v58
  %v731 = vunpack.c.l.b16 %v59
  %v732 = vunpack.c.l.b16 %v60
  %v733 = vunpack.c.l.b16 %v61
  %v734 = vunpack.c.l.b16 %v62
  %v735 = vunpack.c.l.b16 %v63
  %v736 = vunpack.c.l.b16 %v64
  %v737 = vunpack.c.l.b16 %v65
  %v738 = vunpack.c.l.b16 %v66
  %v739 = vunpack.c.l.b16 %v67
  %v740 = vunpack.c.l.b16 %v68
  %v741 = vunpack.c.l.b16 %v69
  %v742 = vunpack.c.l.b16 %v70
  %v743 = vunpack.c.l.b16 %v71
  %v744 = vunpack.c.l.b16 %v72
  %v745 = vunpack.c.l.b16 %v73
  %v746 = vunpack.c.l.b16 %v74
  %v747 = vunpack.c.l.b16 %v75
  %v748 = vunpack.c.l.b16 %v76
  %v749 = vunpack.c.l.b16 %v77
  %v750 = vunpack.c.l.b16 %v78
  %v751 = vunpack.c.l.b16 %v79
  %v752 = vunpack.c.l.b16 %v80
  %v753 = vunpack.c.l.b16 %v81
  %v754 = vunpack.c.l.b16 %v82
  %v755 = vunpack.c.l.b16 %v83
  %v756 = vunpack.c.l.b16 %v84
  %v757 = vunpack.c.l.b16 %v85
  %v758 = vunpack.c.l.b16 %v86
  %v759 = vunpack.c.l.b16 %v87
  %v760 = vunpack.c.l.b16 %v88
  %v761 = vunpack.c.l.b16 %v89
  %v762 = vunpack.c.l.b16 %v90
  %v763 = vunpack.c.l.b16 %v91
  %v764 = vunpack.c.l.b16 %v92
  %v765 = vunpack.c.l.b16 %v93
  %v766 = vunpack.c.l.b16 %v94
  %v767 = vunpack.c.l.b16 %v95
  %v768 = vunpack.c.l.b16 %v96
  %v769 = vunpack.c.l.b16 %v97
  %v770 = vunpack.c.l.b16 %v98
  %v771 = vunpack.c.l.b16 %v99
  %v772 = vunpack.c.l.b16 %v100
  %v773 = vunpack.c.l.b16 %v101
  %v774 = vunpack.c.l.b16 %v102
  %v775 = vunpack.c.l.b16 %v103
  %v776 = vunpack.c.l.b16 %v104
  %v777 = vunpack.c.l.b16 %v105
  %v778 = vunpack.c.l.b16 %v106
  %v779 = vunpack.c.l.b16 %v107
  %v780 = vunpack.c.l.b16 %v108
  %v781 = vunpack.c.l.b16 %v109
  %v782 = vunpack.c.l.b16 %v110
  %v783 = vunpack.c.l.b16 %v111
  %v784 = vunpack.c.l.b16 %v112
  %v785 = vunpack.c.l.b16 %v113
  %v786 = vunpack.c.l.b16 %v114
  %v787 = vunpack.c.l.b16 %v115
  %v788 = vunpack.c.l.b16 %v116
  %v789 = vunpack.c.l.b16 %v117
  %v790 = vunpack.c.l.b16 %v118
  %v791 = vunpack.c.l.b16 %v119
  %v792 = vunpack.c.l.b16 %v120
  %v793 = vunpack.c.l.b16 %v121
  %v794 = vunpack.c.l.b16 %v122
  %v795 = vunpack.c.l.b16 %v123
  %v796 = vunpack.c.l.b16 %v124
  %v797 = vunpack.c.l.b16 %v125
  %v798 = vunpack.c.l.b16 %v126
  %v799 = vunpack.c.l.b16 %v127
  %v800 = vunpack.c.l.b16 %v128
  %v801 = vunpack.c.l.b16 %v129
  %v802 = vunpack.c.l.b16 %v130
  %v803 = vunpack.c.l.b16 %v131
  %v804 = vunpack.c.l.b16 %v132
  %v805 = vunpack.c.l.b16 %v133
  %v806 = vunpack.c.l.b16 %v134
  %v807 = vunpack.c.l.b16 %v135
  %v808 = vunpack.c.l.b16 %v136
  %v809 = vunpack.c.l.b16 %v137
  %v810 = vunpack.c.l.b16 %v138
  %v811 = vunpack.c.l.b16 %v139
  %v812 = vunpack.c.l.b16 %v140
  %v813 = vunpack.c.l.b16 %v141
  %v814 = vunpack.c.l.b16 %v142
  %v815 = vunpack.c.l.b16 %v143
  %v816 = vunpack.c.l.b16 %v144
  %v817 = vunpack.c.l.b16 %v145
  %v818 = vunpack.c.l.b16 %v146
  %v819 = vunpack.c.l.b16 %v147
  %v820 = vunpack.c.l.b16 %v148
  %v821 = vunpack.c.l.b16 %v149
  %v822 = vunpack.c.l.b16 %v150
  %v823 = vunpack.c.l.b16 %v151
  %v824 = vunpack.c.l.b16 %v152
  %v825 = vunpack.c.l.b16 %v153
  %v826 = vunpack.c.l.b16 %v154
  %v827 = vunpack.c.l.b16 %v155
  %v828 = vunpack.c.l.b16 %v156
  %v829 = vunpack.c.l.b16 %v157
  %v830 = vunpack.c.l.b16 %v158
  %v831 = vunpack.c.l.b16 %v159
  %v832 = vunpack.c.l.b16 %v160
  %v833 = vunpack.c.l.b16 %v161
  %v834 = vunpack.c.l.b16 %v162
  %v835 = vunpack.c.l.b16 %v163
  %v836 = vunpack.c.l.b16 %v164
  %v837 = vunpack.c.l.b16 %v165
  %v838 = vunpack.c.l.b16 %v166
  %v839 = vunpack.c.l.b16 %v167
  %v840 = vunpack.c.l.b16 %v168
  %v841 = vunpack.c.l.b16 %v169
  %v842 = vunpack.c.l.b16 %v170
  %v843 = vunpack.c.l.b16 %v171
  %v844 = vunpack.c.l.b16 %v172
  %v845 = vunpack.c.l.b16 %v173
  %v846 = vunpack.c.l.b16 %v174
  %v847 = vunpack.c.l.b16 %v175
  %v848 = vunpack.c.l.b16 %v176
  %v849 = vunpack.c.l.b16 %v177
  %v850 = vunpack.c.l.b16 %v178
  %v851 = vunpack.c.l.b16 %v179
  %v852 = vunpack.c.l.b16 %v180
  %v853 = vunpack.c.l.b16 %v181
  %v854 = vunpack.c.l.b16 %v182
  %v855 = vunpack.c.l.b16 %v183
  %v856 = vunpack.c.l.b16 %v184
  %v857 = vunpack.c.l.b16 %v185
  %v858 = vunpack.c.l.b16 %v186
  %v859 = vunpack.c.l.b16 %v187
  %v860 = vunpack.c.l.b16 %v188
  %v861 = vunpack.c.l.b16 %v189
  %v862 = vunpack.c.l.b16 %v190
  %v863 = vunpack.c.l.b16 %v191
  %v864 = vunpack.c.l.b16 %v192
  %v865 = vunpack.c.l.b16 %v193
  %v866 = vunpack.c.l.b16 %v194
  %v867 = vunpack.c.l.b16 %v195
  %v868 = vunpack.c.l.b16 %v196
  %v869 = vunpack.c.l.b16 %v197
  %v870 = vunpack.c.l.b16 %v198
  %v871 = vunpack.c.l.b16 %v199
  %v872 = vunpack.c.l.b16 %v200
  %v873 = vunpack.c.l.b16 %v201
  %v874 = vunpack.c.l.b16 %v202
  %v875 = vunpack.c.l.b16 %v203
  %v876 = vunpack.c.l.b16 %v204
  %v877 = vunpack.c.l.b16 %v205
  %v878 = vunpack.c.l.b16 %v206
  %v879 = vunpack.c.l.b16 %v207
  %v880 = vunpack.c.l.b16 %v208
  %v881 = vunpack.c.l.b16 %v209
  %v882 = vunpack.c.l.b16 %v210
  %v883 = vunpack.c.l.b16 %v211
  %v884 = vunpack.c.l.b16 %v212
  %v885 = vunpack.c.l.b16 %v213
  %v886 = vunpack.c.l.b16 %v214
  %v887 = vunpack.c.l.b16 %v215
  %v888 = vunpack.c.l.b16 %v216
  %v889 = vunpack.c.l.b16 %v217
  %v890 = vunpack.c.l.b16 %v218
  %v891 = vunpack.c.l.b16 %v219
  %v892 = vunpack.c.l.b16 %v220
  %v893 = vunpack.c.l.b16 %v221
  %v894 = vunpack.c.l.b16 %v222
  %v895 = vunpack.c.l.b16 %v223
  %v896 = vunpack.c.l.b16 %v224
  %v897 = vunpack.c.l.b16 %v225
  %v898 = vunpack.c.l.b16 %v226
  %v899 = vunpack.c.l.b16 %v227
  %v900 = vunpack.c.l.b16 %v228
  %v901 = vunpack.c.l.b16 %v229
  %v902 = vunpack.c.l.b16 %v230
  %v903 = vunpack.c.l.b16 %v231
  %v904 = vunpack.c.l.b16 %v232
  %v905 = vunpack.c.l.b16 %v233
  %v906 = vunpack.c.l.b16 %v234
  %v907 = vunpack.c.l.b16 %v235
  %v908 = vunpack.c.l.b16 %v236
  %v909 = vunpack.c.l.b16 %v237
  %v910 = vunpack.c.l.b16 %v238
  %v911 = vunpack.c.l.b16 %v239
  %v912 = vunpack.c.l.b16 %v240
  %v913 = vunpack.c.l.b16 %v241
  %v914 = vunpack.c.l.b16 %v242
  %v915 = vunpack.c.l.b16 %v243
  %v916 = vunpack.c.l.b16 %v244
  %v917 = vunpack.c.l.b16 %v245
  %v918 = vunpack.c.l.b16 %v246
  %v919 = vunpack.c.l.b16 %v247
  %v920 = vunpack.c.l.b16 %v248
  %v921 = vunpack.c.l.b16 %v249
  %v922 = vunpack.c.l.b16 %v250
  %v923 = vunpack.c.l.b16 %v251
  %v924 = vunpack.c.l.b16 %v252
  %v925 = vunpack.c.l.b16 %v253
  %v926 = vunpack.c.l.b16 %v254
  %v927 = vunpack.c.l.b16 %v255
  %v928 = vunpack.c.l.b16 %v256
  %v929 = vunpack.c.l.b16 %v257
  %v930 = vunpack.c.l.b16 %v258
  %v931 = vunpack.c.l.b16 %v259
  %v932 = vunpack.c.l.b16 %v260
  %v933 = vunpack.c.l.b16 %v261
  %v934 = vunpack.c.l.b16 %v262
  %v935 = vunpack.c.l.b16 %v263
  %v936 = vunpack.c.l.b16 %v264
  %v937 = vunpack.c.l.b16 %v265
  %v938 = vunpack.c.l.b16 %v266
  %v939 = vunpack.c.l.b16 %v267
  %v940 = vunpack.c.l.b16 %v268
  %v941 = vunpack.c.l.b16 %v269
  %v942 = vunpack.c.l.b16 %v270
  %v943 = vunpack.c.l.b16 %v271
  %v944 = vunpack.c.l.b16 %v272
  %v945 = vunpack.c.l.b16 %v273
  %v946 = vunpack.c.l.b16 %v274
  %v947 = vunpack.c.l.b16 %v275
  %v948 = vunpack.c.l.b16 %v276
  %v949 = vunpack.c.l.b16 %v277
  %v950 = vunpack.c.l.b16 %v278
  %v951 = vunpack.c.l.b16 %v279
  %v952 = vunpack.c.l.b16 %v280
  %v953 = vunpack.c.l.b16 %v281
  %v954 = vunpack.c.l.b16 %v282
  %v955 = vunpack.c.l.b16 %v283
  %v956 = vunpack.c.l.b16 %v284
  %v957 = vunpack.c.l.b16 %v285
  %v958 = vunpack.c.l.b16 %v286
  %v959 = vunpack.c.l.b16 %v287
  %v960 = vunpack.c.l.b16 %v288
  %v961 = vunpack.c.l.b16 %v289
  %v962 = vunpack.c.l.b16 %v290
  %v963 = vunpack.c.l.b16 %v291
  %v964 = vunpack.c.l.b16 %v292
  %v965 = vunpack.c.l.b16 %v293
  %v966 = vunpack.c.l.b16 %v294
  %v967 = vunpack.c.l.b16 %v295
  %v968 = vunpack.c.l.b16 %v296
  %v969 = vunpack.c.l.b16 %v297
  %v970 = vunpack.c.l.b16 %v298
  %v971 = vunpack.c.l.b16 %v299
  %v972 = vunpack.c.l.b16 %v300
  %v973 = vunpack.c.l.b16 %v301
  %v974 = vpack.c.b16 %v719, %v718
  %v975 = vpack.c.b16 %v721, %v720
  %v976 = vpack.c.b16 %v723, %v722
  %v977 = vpack.c.b16 %v725, %v724
  %v978 = vpack.c.b16 %v727, %v726
  %v979 = vpack.c.b16 %v729, %v728
  %v980 = vpack.c.b16 %v731, %v730
  %v981 = vpack.c.b16 %v733, %v732
  %v982 = vpack.c.b16 %v735, %v734
  %v983 = vpack.c.b16 %v737, %v736
  %v984 = vpack.c.b16 %v739, %v738
  %v985 = vpack.c.b16 %v741, %v740
  %v986 = vpack.c.b16 %v743, %v742
  %v987 = vpack.c.b16 %v745, %v744
  %v988 = vpack.c.b16 %v747, %v746
  %v989 = vpack.c.b16 %v749, %v748
  %v990 = vpack.c.b16 %v751, %v750
  %v991 = vpack.c.b16 %v753, %v752
  %v992 = vpack.c.b16 %v755, %v754
  %v993 = vpack.c.b16 %v757, %v756
  %v994 = vpack.c.b16 %v759, %v758
  %v995 = vpack.c.b16 %v761, %v760
  %v996 = vpack.c.b16 %v763, %v762
  %v997 = vpack.c.b16 %v765, %v764
  %v998 = vpack.c.b16 %v767, %v766
  %v999 = vpack.c.b16 %v769, %v768
  %v1000 = vpack.c.b16 %v771, %v770
  %v1001 = vpack.c.b16 %v773, %v772
  %v1002 = vpack.c.b16 %v775, %v774
  %v1003 = vpack.c.b16 %v777, %v776
  %v1004 = vpack.c.b16 %v779, %v778
  %v1005 = vpack.c.b16 %v781, %v780
  %v1006 = vpack.c.b16 %v783, %v782
  %v1007 = vpack.c.b16 %v785, %v784
  %v1008 = vpack.c.b16 %v787, %v786
  %v1009 = vpack.c.b16 %v789, %v788
  %v1010 = vpack.c.b16 %v791, %v790
  %v1011 = vpack.c.b16 %v793, %v792
  %v1012 = vpack.c.b16 %v795, %v794
  %v1013 = vpack.c.b16 %v797, %v796
  %v1014 = vpack.c.b16 %v799, %v798
  %v1015 = vpack.c.b16 %v801, %v800
  %v1016 = vpack.c.b16 %v803, %v802
  %v1017 = vpack.c.b16 %v805, %v804
  %v1018 = vpack.c.b16 %v807, %v806
  %v1019 = vpack.c.b16 %v809, %v808
  %v1020 = vpack.c.b16 %v811, %v810
  %v1021 = vpack.c.b16 %v813, %v812
  %v1022 = vpack.c.b16 %v815, %v814
  %v1023 = vpack.c.b16 %v817, %v816
  %v1024 = vpack.c.b16 %v819, %v818
  %v1025 = vpack.c.b16 %v821, %v820
  %v1026 = vpack.c.b16 %v823, %v822
  %v1027 = vpack.c.b16 %v825, %v824
  %v1028 = vpack.c.b16 %v827, %v826
  %v1029 = vpack.c.b16 %v829, %v828
  %v1030 = vpack.c.b16 %v831, %v830
  %v1031 = vpack.c.b16 %v833, %v832
  %v1032 = vpack.c.b16 %v835, %v834
  %v1033 = vpack.c.b16 %v837, %v836
  %v1034 = vpack.c.b16 %v839, %v838
  %v1035 = vpack.c.b16 %v841, %v840
  %v1036 = vpack.c.b16 %v843, %v842
  %v1037 = vpack.c.b16 %v845, %v844
  %v1038 = vpack.c.b16 %v847, %v846
  %v1039 = vpack.c.b16 %v849, %v848
  %v1040 = vpack.c.b16 %v851, %v850
  %v1041 = vpack.c.b16 %v853, %v852
  %v1042 = vpack.c.b16 %v855, %v854
  %v1043 = vpack.c.b16 %v857, %v856
  %v1044 = vpack.c.b16 %v859, %v858
  %v1045 = vpack.c.b16 %v861, %v860
  %v1046 = vpack.c.b16 %v863, %v862
  %v1047 = vpack.c.b16 %v865, %v864
  %v1048 = vpack.c.b16 %v867, %v866
  %v1049 = vpack.c.b16 %v869, %v868
  %v1050 = vpack.c.b16 %v871, %v870
  %v1051 = vpack.c.b16 %v873, %v872
  %v1052 = vpack.c.b16 %v875, %v874
  %v1053 = vpack.c.b16 %v877, %v876
  %v1054 = vpack.c.b16 %v879, %v878
  %v1055 = vpack.c.b16 %v881, %v880
  %v1056 = vpack.c.b16 %v883, %v882
  %v1057 = vpack.c.b16 %v885, %v884
  %v1058 = vpack.c.b16 %v887, %v886
  %v1059 = vpack.c.b16 %v889, %v888
  %v1060 = vpack.c.b16 %v891, %v890
  %v1061 = vpack.c.b16 %v893, %v892
  %v1062 = vpack.c.b16 %v895, %v894
  %v1063 = vpack.c.b16 %v897, %v896
  %v1064 = vpack.c.b16 %v899, %v898
  %v1065 = vpack.c.b16 %v901, %v900
  %v1066 = vpack.c.b16 %v903, %v902
  %v1067 = vpack.c.b16 %v905, %v904
  %v1068 = vpack.c.b16 %v907, %v906
  %v1069 = vpack.c.b16 %v909, %v908
  %v1070 = vpack.c.b16 %v911, %v910
  %v1071 = vpack.c.b16 %v913, %v912
  %v1072 = vpack.c.b16 %v915, %v914
  %v1073 = vpack.c.b16 %v917, %v916
  %v1074 = vpack.c.b16 %v919, %v918
  %v1075 = vpack.c.b16 %v921, %v920
  %v1076 = vpack.c.b16 %v923, %v922
  %v1077 = vpack.c.b16 %v925, %v924
  %v1078 = vpack.c.b16 %v927, %v926
  %v1079 = vpack.c.b16 %v929, %v928
  %v1080 = vpack.c.b16 %v931, %v930
  %v1081 = vpack.c.b16 %v933, %v932
  %v1082 = vpack.c.b16 %v935, %v934
  %v1083 = vpack.c.b16 %v937, %v936
  %v1084 = vpack.c.b16 %v939, %v938
  %v1085 = vpack.c.b16 %v941, %v940
  %v1086 = vpack.c.b16 %v943, %v942
  %v1087 = vpack.c.b16 %v945, %v944
  %v1088 = vpack.c.b16 %v947, %v946
  %v1089 = vpack.c.b16 %v949, %v948
  %v1090 = vpack.c.b16 %v951, %v950
  %v1091 = vpack.c.b16 %v953, %v952
  %v1092 = vpack.c.b16 %v955, %v954
  %v1093 = vpack.c.b16 %v957, %v956
  %v1094 = vpack.c.b16 %v959, %v958
  %v1095 = vpack.c.b16 %v961, %v960
  %v1096 = vpack.c.b16 %v963, %v962
  %v1097 = vpack.c.b16 %v965, %v964
  %v1098 = vpack.c.b16 %v967, %v966
  %v1099 = vpack.c.b16 %v969, %v968
  %v1100 = vpack.c.b16 %v971, %v970
  %v1101 = vpack.c.b16 %v973, %v972
  %1230 = vmatprep.subr.bf16.mxu0 0
  %1231 = vmatpush1.bf16.msra.mxu0 %v974
  %1232 = vmatprep.subr.bf16.mxu0 0
  %1233 = vmatpush1.bf16.msra.mxu0 %v975
  %1234 = vmatprep.subr.bf16.mxu0 0
  %1235 = vmatpush1.bf16.msra.mxu0 %v976
  %1236 = vmatprep.subr.bf16.mxu0 0
  %1237 = vmatpush1.bf16.msra.mxu0 %v977
  %1238 = vmatprep.subr.bf16.mxu0 0
  %1239 = vmatpush1.bf16.msra.mxu0 %v978
  %1240 = vmatprep.subr.bf16.mxu0 0
  %1241 = vmatpush1.bf16.msra.mxu0 %v979
  %1242 = vmatprep.subr.bf16.mxu0 0
  %1243 = vmatpush1.bf16.msra.mxu0 %v980
  %1244 = vmatprep.subr.bf16.mxu0 0
  %1245 = vmatpush1.bf16.msra.mxu0 %v981
  %1246 = vmatprep.subr.bf16.mxu0 0
  %1247 = vmatpush1.bf16.msra.mxu0 %v982
  %1248 = vmatprep.subr.bf16.mxu0 0
  %1249 = vmatpush1.bf16.msra.mxu0 %v983
  %1250 = vmatprep.subr.bf16.mxu0 0
  %1251 = vmatpush1.bf16.msra.mxu0 %v984
  %1252 = vmatprep.subr.bf16.mxu0 0
  %1253 = vmatpush1.bf16.msra.mxu0 %v985
  %1254 = vmatprep.subr.bf16.mxu0 0
  %1255 = vmatpush1.bf16.msra.mxu0 %v986
  %1256 = vmatprep.subr.bf16.mxu0 0
  %1257 = vmatpush1.bf16.msra.mxu0 %v987
  %1258 = vmatprep.subr.bf16.mxu0 0
  %1259 = vmatpush1.bf16.msra.mxu0 %v988
  %1260 = vmatprep.subr.bf16.mxu0 0
  %1261 = vmatpush1.bf16.msra.mxu0 %v989
  %1262 = vmatprep.mubr.bf16.mxu0 %v399
  %1263 = vmatmul.mubr.bf16.gmra.mrb[0].mxu0 %v398
  %v1264 = vpop.f32.mrb[0].mxu0
  %v1265 = vadd.f32 0.0, %v1264
  %v1266 = vpop.f32.mrb[0].mxu0
  %v1267 = vpop.f32.mrb[0].mxu0
  %v1268 = vadd.f32 0.0, %v1267
  %v1269 = vpop.f32.mrb[0].mxu0
  %1270 = vmatprep.mubr.bf16.mxu0 %v415
  %1271 = vmatmul.mubr.bf16.gmra.mrb[0].mxu0 %v414
  %v1272 = vpop.f32.mrb[0].mxu0
  %v1273 = vadd.f32 0.0, %v1272
  %v1274 = vpop.f32.mrb[0].mxu0
  %v1275 = vpop.f32.mrb[0].mxu0
  %v1276 = vadd.f32 0.0, %v1275
  %v1277 = vpop.f32.mrb[0].mxu0
  %1278 = vdwg.mxu0
  %1279 = vmatprep.subr.bf16.mxu0 0
  %1280 = vmatpush1.bf16.msra.mxu0 %v990
  %1281 = vmatprep.subr.bf16.mxu0 0
  %1282 = vmatpush1.bf16.msra.mxu0 %v991
  %1283 = vmatprep.subr.bf16.mxu0 0
  %1284 = vmatpush1.bf16.msra.mxu0 %v992
  %1285 = vmatprep.subr.bf16.mxu0 0
  %1286 = vmatpush1.bf16.msra.mxu0 %v993
  %1287 = vmatprep.subr.bf16.mxu0 0
  %1288 = vmatpush1.bf16.msra.mxu0 %v994
  %1289 = vmatprep.subr.bf16.mxu0 0
  %1290 = vmatpush1.bf16.msra.mxu0 %v995
  %1291 = vmatprep.subr.bf16.mxu0 0
  %1292 = vmatpush1.bf16.msra.mxu0 %v996
  %1293 = vmatprep.subr.bf16.mxu0 0
  %1294 = vmatpush1.bf16.msra.mxu0 %v997
  %1295 = vmatprep.subr.bf16.mxu0 0
  %1296 = vmatpush1.bf16.msra.mxu0 %v998
  %1297 = vmatprep.subr.bf16.mxu0 0
  %1298 = vmatpush1.bf16.msra.mxu0 %v999
  %1299 = vmatprep.subr.bf16.mxu0 0
  %1300 = vmatpush1.bf16.msra.mxu0 %v1000
  %1301 = vmatprep.subr.bf16.mxu0 0
  %1302 = vmatpush1.bf16.msra.mxu0 %v1001
  %1303 = vmatprep.subr.bf16.mxu0 0
  %1304 = vmatpush1.bf16.msra.mxu0 %v1002
  %1305 = vmatprep.subr.bf16.mxu0 0
  %1306 = vmatpush1.bf16.msra.mxu0 %v1003
  %1307 = vmatprep.subr.bf16.mxu0 0
  %1308 = vmatpush1.bf16.msra.mxu0 %v1004
  %1309 = vmatprep.subr.bf16.mxu0 0
  %1310 = vmatpush1.bf16.msra.mxu0 %v1005
  %1311 = vmatprep.mubr.bf16.mxu0 %v401
  %1312 = vmatmul.mubr.bf16.gmra.mrb[0].mxu0 %v400
  %v1313 = vpop.f32.mrb[0].mxu0
  %v1314 = vadd.f32 %v1265, %v1313
  %v1315 = vpop.f32.mrb[0].mxu0
  %v1316 = vpop.f32.mrb[0].mxu0
  %v1317 = vadd.f32 %v1268, %v1316
  %v1318 = vpop.f32.mrb[0].mxu0
  %1319 = vmatprep.mubr.bf16.mxu0 %v417
  %1320 = vmatmul.mubr.bf16.gmra.mrb[0].mxu0 %v416
  %v1321 = vpop.f32.mrb[0].mxu0
  %v1322 = vadd.f32 %v1273, %v1321
  %v1323 = vpop.f32.mrb[0].mxu0
  %v1324 = vpop.f32.mrb[0].mxu0
  %v1325 = vadd.f32 %v1276, %v1324
  %v1326 = vpop.f32.mrb[0].mxu0
  %1327 = vdwg.mxu0
  %1328 = vmatprep.subr.bf16.mxu0 0
  %1329 = vmatpush1.bf16.msra.mxu0 %v1006
  %1330 = vmatprep.subr.bf16.mxu0 0
  %1331 = vmatpush1.bf16.msra.mxu0 %v1007
  %1332 = vmatprep.subr.bf16.mxu0 0
  %1333 = vmatpush1.bf16.msra.mxu0 %v1008
  %1334 = vmatprep.subr.bf16.mxu0 0
  %1335 = vmatpush1.bf16.msra.mxu0 %v1009
  %1336 = vmatprep.subr.bf16.mxu0 0
  %1337 = vmatpush1.bf16.msra.mxu0 %v1010
  %1338 = vmatprep.subr.bf16.mxu0 0
  %1339 = vmatpush1.bf16.msra.mxu0 %v1011
  %1340 = vmatprep.subr.bf16.mxu0 0
  %1341 = vmatpush1.bf16.msra.mxu0 %v1012
  %1342 = vmatprep.subr.bf16.mxu0 0
  %1343 = vmatpush1.bf16.msra.mxu0 %v1013
  %1344 = vmatprep.subr.bf16.mxu0 0
  %1345 = vmatpush1.bf16.msra.mxu0 %v1014
  %1346 = vmatprep.subr.bf16.mxu0 0
  %1347 = vmatpush1.bf16.msra.mxu0 %v1015
  %1348 = vmatprep.subr.bf16.mxu0 0
  %1349 = vmatpush1.bf16.msra.mxu0 %v1016
  %1350 = vmatprep.subr.bf16.mxu0 0
  %1351 = vmatpush1.bf16.msra.mxu0 %v1017
  %1352 = vmatprep.subr.bf16.mxu0 0
  %1353 = vmatpush1.bf16.msra.mxu0 %v1018
  %1354 = vmatprep.subr.bf16.mxu0 0
  %1355 = vmatpush1.bf16.msra.mxu0 %v1019
  %1356 = vmatprep.subr.bf16.mxu0 0
  %1357 = vmatpush1.bf16.msra.mxu0 %v1020
  %1358 = vmatprep.subr.bf16.mxu0 0
  %1359 = vmatpush1.bf16.msra.mxu0 %v1021
  %1360 = vmatprep.mubr.bf16.mxu0 %v403
  %1361 = vmatmul.mubr.bf16.gmra.mrb[0].mxu0 %v402
  %v1362 = vpop.f32.mrb[0].mxu0
  %v1363 = vadd.f32 %v1314, %v1362
  %v1364 = vpop.f32.mrb[0].mxu0
  %v1365 = vpop.f32.mrb[0].mxu0
  %v1366 = vadd.f32 %v1317, %v1365
  %v1367 = vpop.f32.mrb[0].mxu0
  %1368 = vmatprep.mubr.bf16.mxu0 %v419
  %1369 = vmatmul.mubr.bf16.gmra.mrb[0].mxu0 %v418
  %v1370 = vpop.f32.mrb[0].mxu0
  %v1371 = vadd.f32 %v1322, %v1370
  %v1372 = vpop.f32.mrb[0].mxu0
  %v1373 = vpop.f32.mrb[0].mxu0
  %v1374 = vadd.f32 %v1325, %v1373
  %v1375 = vpop.f32.mrb[0].mxu0
  %1376 = vdwg.mxu0
  %1377 = vmatprep.subr.bf16.mxu0 0
  %1378 = vmatpush1.bf16.msra.mxu0 %v1022
  %1379 = vmatprep.subr.bf16.mxu0 0
  %1380 = vmatpush1.bf16.msra.mxu0 %v1023
  %1381 = vmatprep.subr.bf16.mxu0 0
  %1382 = vmatpush1.bf16.msra.mxu0 %v1024
  %1383 = vmatprep.subr.bf16.mxu0 0
  %1384 = vmatpush1.bf16.msra.mxu0 %v1025
  %1385 = vmatprep.subr.bf16.mxu0 0
  %1386 = vmatpush1.bf16.msra.mxu0 %v1026
  %1387 = vmatprep.subr.bf16.mxu0 0
  %1388 = vmatpush1.bf16.msra.mxu0 %v1027
  %1389 = vmatprep.subr.bf16.mxu0 0
  %1390 = vmatpush1.bf16.msra.mxu0 %v1028
  %1391 = vmatprep.subr.bf16.mxu0 0
  %1392 = vmatpush1.bf16.msra.mxu0 %v1029
  %1393 = vmatprep.subr.bf16.mxu0 0
  %1394 = vmatpush1.bf16.msra.mxu0 %v1030
  %1395 = vmatprep.subr.bf16.mxu0 0
  %1396 = vmatpush1.bf16.msra.mxu0 %v1031
  %1397 = vmatprep.subr.bf16.mxu0 0
  %1398 = vmatpush1.bf16.msra.mxu0 %v1032
  %1399 = vmatprep.subr.bf16.mxu0 0
  %1400 = vmatpush1.bf16.msra.mxu0 %v1033
  %1401 = vmatprep.subr.bf16.mxu0 0
  %1402 = vmatpush1.bf16.msra.mxu0 %v1034
  %1403 = vmatprep.subr.bf16.mxu0 0
  %1404 = vmatpush1.bf16.msra.mxu0 %v1035
  %1405 = vmatprep.subr.bf16.mxu0 0
  %1406 = vmatpush1.bf16.msra.mxu0 %v1036
  %1407 = vmatprep.subr.bf16.mxu0 0
  %1408 = vmatpush1.bf16.msra.mxu0 %v1037
  %1409 = vmatprep.mubr.bf16.mxu0 %v405
  %1410 = vmatmul.mubr.bf16.gmra.mrb[0].mxu0 %v404
  %v1411 = vpop.f32.mrb[0].mxu0
  %v1412 = vadd.f32 %v1363, %v1411
  %v1413 = vpop.f32.mrb[0].mxu0
  %v1414 = vpop.f32.mrb[0].mxu0
  %v1415 = vadd.f32 %v1366, %v1414
  %v1416 = vpop.f32.mrb[0].mxu0
  %1417 = vmatprep.mubr.bf16.mxu0 %v421
  %1418 = vmatmul.mubr.bf16.gmra.mrb[0].mxu0 %v420
  %v1419 = vpop.f32.mrb[0].mxu0
  %v1420 = vadd.f32 %v1371, %v1419
  %v1421 = vpop.f32.mrb[0].mxu0
  %v1422 = vpop.f32.mrb[0].mxu0
  %v1423 = vadd.f32 %v1374, %v1422
  %v1424 = vpop.f32.mrb[0].mxu0
  %1425 = vdwg.mxu0
  %1426 = vmatprep.subr.bf16.mxu0 0
  %1427 = vmatpush1.bf16.msra.mxu0 %v1038
  %1428 = vmatprep.subr.bf16.mxu0 0
  %1429 = vmatpush1.bf16.msra.mxu0 %v1039
  %1430 = vmatprep.subr.bf16.mxu0 0
  %1431 = vmatpush1.bf16.msra.mxu0 %v1040
  %1432 = vmatprep.subr.bf16.mxu0 0
  %1433 = vmatpush1.bf16.msra.mxu0 %v1041
  %1434 = vmatprep.subr.bf16.mxu0 0
  %1435 = vmatpush1.bf16.msra.mxu0 %v1042
  %1436 = vmatprep.subr.bf16.mxu0 0
  %1437 = vmatpush1.bf16.msra.mxu0 %v1043
  %1438 = vmatprep.subr.bf16.mxu0 0
  %1439 = vmatpush1.bf16.msra.mxu0 %v1044
  %1440 = vmatprep.subr.bf16.mxu0 0
  %1441 = vmatpush1.bf16.msra.mxu0 %v1045
  %1442 = vmatprep.subr.bf16.mxu0 0
  %1443 = vmatpush1.bf16.msra.mxu0 %v1046
  %1444 = vmatprep.subr.bf16.mxu0 0
  %1445 = vmatpush1.bf16.msra.mxu0 %v1047
  %1446 = vmatprep.subr.bf16.mxu0 0
  %1447 = vmatpush1.bf16.msra.mxu0 %v1048
  %1448 = vmatprep.subr.bf16.mxu0 0
  %1449 = vmatpush1.bf16.msra.mxu0 %v1049
  %1450 = vmatprep.subr.bf16.mxu0 0
  %1451 = vmatpush1.bf16.msra.mxu0 %v1050
  %1452 = vmatprep.subr.bf16.mxu0 0
  %1453 = vmatpush1.bf16.msra.mxu0 %v1051
  %1454 = vmatprep.subr.bf16.mxu0 0
  %1455 = vmatpush1.bf16.msra.mxu0 %v1052
  %1456 = vmatprep.subr.bf16.mxu0 0
  %1457 = vmatpush1.bf16.msra.mxu0 %v1053
  %1458 = vmatprep.mubr.bf16.mxu0 %v407
  %1459 = vmatmul.mubr.bf16.gmra.mrb[0].mxu0 %v406
  %v1460 = vpop.f32.mrb[0].mxu0
  %v1461 = vadd.f32 %v1412, %v1460
  %v1462 = vpop.f32.mrb[0].mxu0
  %v1463 = vpop.f32.mrb[0].mxu0
  %v1464 = vadd.f32 %v1415, %v1463
  %v1465 = vpop.f32.mrb[0].mxu0
  %1466 = vmatprep.mubr.bf16.mxu0 %v423
  %1467 = vmatmul.mubr.bf16.gmra.mrb[0].mxu0 %v422
  %v1468 = vpop.f32.mrb[0].mxu0
  %v1469 = vadd.f32 %v1420, %v1468
  %v1470 = vpop.f32.mrb[0].mxu0
  %v1471 = vpop.f32.mrb[0].mxu0
  %v1472 = vadd.f32 %v1423, %v1471
  %v1473 = vpop.f32.mrb[0].mxu0
  %1474 = vdwg.mxu0
  %1475 = vmatprep.subr.bf16.mxu0 0
  %1476 = vmatpush1.bf16.msra.mxu0 %v1054
  %1477 = vmatprep.subr.bf16.mxu0 0
  %1478 = vmatpush1.bf16.msra.mxu0 %v1055
  %1479 = vmatprep.subr.bf16.mxu0 0
  %1480 = vmatpush1.bf16.msra.mxu0 %v1056
  %1481 = vmatprep.subr.bf16.mxu0 0
  %1482 = vmatpush1.bf16.msra.mxu0 %v1057
  %1483 = vmatprep.subr.bf16.mxu0 0
  %1484 = vmatpush1.bf16.msra.mxu0 %v1058
  %1485 = vmatprep.subr.bf16.mxu0 0
  %1486 = vmatpush1.bf16.msra.mxu0 %v1059
  %1487 = vmatprep.subr.bf16.mxu0 0
  %1488 = vmatpush1.bf16.msra.mxu0 %v1060
  %1489 = vmatprep.subr.bf16.mxu0 0
  %1490 = vmatpush1.bf16.msra.mxu0 %v1061
  %1491 = vmatprep.subr.bf16.mxu0 0
  %1492 = vmatpush1.bf16.msra.mxu0 %v1062
  %1493 = vmatprep.subr.bf16.mxu0 0
  %1494 = vmatpush1.bf16.msra.mxu0 %v1063
  %1495 = vmatprep.subr.bf16.mxu0 0
  %1496 = vmatpush1.bf16.msra.mxu0 %v1064
  %1497 = vmatprep.subr.bf16.mxu0 0
  %1498 = vmatpush1.bf16.msra.mxu0 %v1065
  %1499 = vmatprep.subr.bf16.mxu0 0
  %1500 = vmatpush1.bf16.msra.mxu0 %v1066
  %1501 = vmatprep.subr.bf16.mxu0 0
  %1502 = vmatpush1.bf16.msra.mxu0 %v1067
  %1503 = vmatprep.subr.bf16.mxu0 0
  %1504 = vmatpush1.bf16.msra.mxu0 %v1068
  %1505 = vmatprep.subr.bf16.mxu0 0
  %1506 = vmatpush1.bf16.msra.mxu0 %v1069
  %1507 = vmatprep.mubr.bf16.mxu0 %v409
  %1508 = vmatmul.mubr.bf16.gmra.mrb[0].mxu0 %v408
  %v1509 = vpop.f32.mrb[0].mxu0
  %v1510 = vadd.f32 %v1461, %v1509
  %v1511 = vpop.f32.mrb[0].mxu0
  %v1512 = vpop.f32.mrb[0].mxu0
  %v1513 = vadd.f32 %v1464, %v1512
  %v1514 = vpop.f32.mrb[0].mxu0
  %1515 = vmatprep.mubr.bf16.mxu0 %v425
  %1516 = vmatmul.mubr.bf16.gmra.mrb[0].mxu0 %v424
  %v1517 = vpop.f32.mrb[0].mxu0
  %v1518 = vadd.f32 %v1469, %v1517
  %v1519 = vpop.f32.mrb[0].mxu0
  %v1520 = vpop.f32.mrb[0].mxu0
  %v1521 = vadd.f32 %v1472, %v1520
  %v1522 = vpop.f32.mrb[0].mxu0
  %1523 = vdwg.mxu0
  %1524 = vmatprep.subr.bf16.mxu0 0
  %1525 = vmatpush1.bf16.msra.mxu0 %v1070
  %1526 = vmatprep.subr.bf16.mxu0 0
  %1527 = vmatpush1.bf16.msra.mxu0 %v1071
  %1528 = vmatprep.subr.bf16.mxu0 0
  %1529 = vmatpush1.bf16.msra.mxu0 %v1072
  %1530 = vmatprep.subr.bf16.mxu0 0
  %1531 = vmatpush1.bf16.msra.mxu0 %v1073
  %1532 = vmatprep.subr.bf16.mxu0 0
  %1533 = vmatpush1.bf16.msra.mxu0 %v1074
  %1534 = vmatprep.subr.bf16.mxu0 0
  %1535 = vmatpush1.bf16.msra.mxu0 %v1075
  %1536 = vmatprep.subr.bf16.mxu0 0
  %1537 = vmatpush1.bf16.msra.mxu0 %v1076
  %1538 = vmatprep.subr.bf16.mxu0 0
  %1539 = vmatpush1.bf16.msra.mxu0 %v1077
  %1540 = vmatprep.subr.bf16.mxu0 0
  %1541 = vmatpush1.bf16.msra.mxu0 %v1078
  %1542 = vmatprep.subr.bf16.mxu0 0
  %1543 = vmatpush1.bf16.msra.mxu0 %v1079
  %1544 = vmatprep.subr.bf16.mxu0 0
  %1545 = vmatpush1.bf16.msra.mxu0 %v1080
  %1546 = vmatprep.subr.bf16.mxu0 0
  %1547 = vmatpush1.bf16.msra.mxu0 %v1081
  %1548 = vmatprep.subr.bf16.mxu0 0
  %1549 = vmatpush1.bf16.msra.mxu0 %v1082
  %1550 = vmatprep.subr.bf16.mxu0 0
  %1551 = vmatpush1.bf16.msra.mxu0 %v1083
  %1552 = vmatprep.subr.bf16.mxu0 0
  %1553 = vmatpush1.bf16.msra.mxu0 %v1084
  %1554 = vmatprep.subr.bf16.mxu0 0
  %1555 = vmatpush1.bf16.msra.mxu0 %v1085
  %1556 = vmatprep.mubr.bf16.mxu0 %v411
  %1557 = vmatmul.mubr.bf16.gmra.mrb[0].mxu0 %v410
  %v1558 = vpop.f32.mrb[0].mxu0
  %v1559 = vadd.f32 %v1510, %v1558
  %v1560 = vpop.f32.mrb[0].mxu0
  %v1561 = vpop.f32.mrb[0].mxu0
  %v1562 = vadd.f32 %v1513, %v1561
  %v1563 = vpop.f32.mrb[0].mxu0
  %1564 = vmatprep.mubr.bf16.mxu0 %v427
  %1565 = vmatmul.mubr.bf16.gmra.mrb[0].mxu0 %v426
  %v1566 = vpop.f32.mrb[0].mxu0
  %v1567 = vadd.f32 %v1518, %v1566
  %v1568 = vpop.f32.mrb[0].mxu0
  %v1569 = vpop.f32.mrb[0].mxu0
  %v1570 = vadd.f32 %v1521, %v1569
  %v1571 = vpop.f32.mrb[0].mxu0
  %1572 = vdwg.mxu0
  %1573 = vmatprep.subr.bf16.mxu0 0
  %1574 = vmatpush1.bf16.msra.mxu0 %v1086
  %1575 = vmatprep.subr.bf16.mxu0 0
  %1576 = vmatpush1.bf16.msra.mxu0 %v1087
  %1577 = vmatprep.subr.bf16.mxu0 0
  %1578 = vmatpush1.bf16.msra.mxu0 %v1088
  %1579 = vmatprep.subr.bf16.mxu0 0
  %1580 = vmatpush1.bf16.msra.mxu0 %v1089
  %1581 = vmatprep.subr.bf16.mxu0 0
  %1582 = vmatpush1.bf16.msra.mxu0 %v1090
  %1583 = vmatprep.subr.bf16.mxu0 0
  %1584 = vmatpush1.bf16.msra.mxu0 %v1091
  %1585 = vmatprep.subr.bf16.mxu0 0
  %1586 = vmatpush1.bf16.msra.mxu0 %v1092
  %1587 = vmatprep.subr.bf16.mxu0 0
  %1588 = vmatpush1.bf16.msra.mxu0 %v1093
  %1589 = vmatprep.subr.bf16.mxu0 0
  %1590 = vmatpush1.bf16.msra.mxu0 %v1094
  %1591 = vmatprep.subr.bf16.mxu0 0
  %1592 = vmatpush1.bf16.msra.mxu0 %v1095
  %1593 = vmatprep.subr.bf16.mxu0 0
  %1594 = vmatpush1.bf16.msra.mxu0 %v1096
  %1595 = vmatprep.subr.bf16.mxu0 0
  %1596 = vmatpush1.bf16.msra.mxu0 %v1097
  %1597 = vmatprep.subr.bf16.mxu0 0
  %1598 = vmatpush1.bf16.msra.mxu0 %v1098
  %1599 = vmatprep.subr.bf16.mxu0 0
  %1600 = vmatpush1.bf16.msra.mxu0 %v1099
  %1601 = vmatprep.subr.bf16.mxu0 0
  %1602 = vmatpush1.bf16.msra.mxu0 %v1100
  %1603 = vmatprep.subr.bf16.mxu0 0
  %1604 = vmatpush1.bf16.msra.mxu0 %v1101
  %1605 = vmatprep.mubr.bf16.mxu0 %v413
  %1606 = vmatmul.mubr.bf16.gmra.mrb[0].mxu0 %v412
  %v1607 = vpop.f32.mrb[0].mxu0
  %v1608 = vadd.f32 %v1559, %v1607
  %v1609 = vpop.f32.mrb[0].mxu0
  %v1610 = vpop.f32.mrb[0].mxu0
  %v1611 = vadd.f32 %v1562, %v1610
  %v1612 = vpop.f32.mrb[0].mxu0
  %1613 = vmatprep.mubr.bf16.mxu0 %v429
  %1614 = vmatmul.mubr.bf16.gmra.mrb[0].mxu0 %v428
  %v1615 = vpop.f32.mrb[0].mxu0
  %v1616 = vadd.f32 %v1567, %v1615
  %v1617 = vpop.f32.mrb[0].mxu0
  %v1618 = vpop.f32.mrb[0].mxu0
  %v1619 = vadd.f32 %v1570, %v1618
  %v1620 = vpop.f32.mrb[0].mxu0
  %1621 = vdwg.mxu0
  %v1622 = vpack.c.bf16 %v1611, %v1608
  %v1623 = vpack.c.bf16 %v1619, %v1616
  %v1626 = vunpack.c.l.b16 %v1622
  %v1627 = vunpack.c.h.b16 %v1622
  %v1628 = vunpack.c.l.b16 %v1623
  %v1629 = vunpack.c.h.b16 %v1623
  %v1630 = vpack.c.b16 %v1626, %v1626
  %v1631 = vpack.c.b16 %v1627, %v1627
  %v1632 = vpack.c.b16 %v1628, %v1628
  %v1633 = vpack.c.b16 %v1629, %v1629
  %1638 = vst [vmem:[%s2] sm:$0xf] %v1630
  %1639 = vst [vmem:[%s2 + $0x4] sm:$0xf] %v1631
  %1640 = vst [vmem:[%s2 + $0x8] sm:$0xf] %v1632
  %1641 = vst [vmem:[%s2 + $0xc] sm:$0xf] %v1633
  %s1642 = smul.u32 0, 32
  %v1643 = vlaneseq
  %v1644 = vshrl.u32 %v1643, 7
  %v1645 = vadd.s32 %v1644, 8
  %v1646 = vadd.s32 %v1644, 16
  %v1647 = vadd.s32 %v1644, 24
  %v1648 = vstv %s1642
  %v1649 = vadd.s32 %v1648, %v1644
  %v1650 = vadd.s32 %v1648, %v1645
  %v1651 = vadd.s32 %v1648, %v1646
  %v1652 = vadd.s32 %v1648, %v1647
  %vm1653 = vcmp.lt.s32.totalorder %v1649, 32
  %vm1654 = vcmp.lt.s32.totalorder %v1650, 32
  %vm1655 = vcmp.lt.s32.totalorder %v1651, 32
  %vm1656 = vcmp.lt.s32.totalorder %v1652, 32
  %v1657 = vsel %vm1653, %v1608, 0.0
  %v1658 = vsel %vm1654, %v1611, 0.0
  %v1659 = vsel %vm1655, %v1616, 0.0
  %v1660 = vsel %vm1656, %v1619, 0.0
  %v1661 = vadd.f32 %v1657, %v1658
  %v1662 = vadd.f32 %v1661, %v1659
  %v1663 = vadd.f32 %v1662, %v1660
  %v1664 = vrot.slane %v1663, 4
  %v1665 = vadd.f32 %v1663, %v1664
  %v1666 = vrot.slane %v1665, 2
  %v1667 = vadd.f32 %v1665, %v1666
  %v1668 = vrot.slane %v1667, 1
  %v1669 = vadd.f32 %v1667, %v1668
  %v1670 = vmul.f32 %v1657, %v1657
  %v1671 = vmul.f32 %v1658, %v1658
  %v1672 = vmul.f32 %v1659, %v1659
  %v1673 = vmul.f32 %v1660, %v1660
  %v1674 = vadd.f32 %v1670, %v1671
  %v1675 = vadd.f32 %v1674, %v1672
  %v1676 = vadd.f32 %v1675, %v1673
  %v1677 = vrot.slane %v1676, 4
  %v1678 = vadd.f32 %v1676, %v1677
  %v1679 = vrot.slane %v1678, 2
  %v1680 = vadd.f32 %v1678, %v1679
  %v1681 = vrot.slane %v1680, 1
  %v1682 = vadd.f32 %v1680, %v1681
  %vm1683 = vcmp.eq.s32.totalorder %v1644, 0
  %vm1684 = vcmp.eq.s32.totalorder %v1644, 1
  %v1685 = vsel %vm1684, %v1682, 0.0
  %v1686 = vsel %vm1683, %v1669, %v1685
  %1687 = vst [vmem:[%s3] sm:$0xff] %v1686
  // Predicated region
  $region10: #{multi_discriminator_forward.20} parent=0 // pred_check
    _
  $region11: #{multi_discriminator_forward.20} parent=0 // pred_check_branch
    %1689 = sbr.rel (0) target = $region13
  $region12: #{multi_discriminator_forward.20} parent=0 // pred_region
    _
  $region13: #{multi_discriminator_forward.20} parent=0 // pred_fallthru
    _
  // Predicated region
  $region14: #{multi_discriminator_forward.20} parent=0 // pred_check
    _
  $region15: #{multi_discriminator_forward.20} parent=0 // pred_check_branch
    %1691 = sbr.rel (0) target = $region17
  $region16: #{multi_discriminator_forward.20} parent=0 // pred_region
    _
  $region17: #{multi_discriminator_forward.20} parent=0 // pred_fallthru
    _
  // Predicated region
  $region18: #{multi_discriminator_forward.20} parent=0 // pred_check
    _
  $region19: #{multi_discriminator_forward.20} parent=0 // pred_check_branch
    %1693 = sbr.rel (0) target = $region21
  $region20: #{multi_discriminator_forward.20} parent=0 // pred_region
    _
  $region21: #{multi_discriminator_forward.20} parent=0 // pred_fallthru
    _
  // Predicated region
  $region22: #{multi_discriminator_forward.20} parent=0 // pred_check
    _
  $region23: #{multi_discriminator_forward.20} parent=0 // pred_check_branch
    %1695 = sbr.rel (0) target = $region25
  $region24: #{multi_discriminator_forward.20} parent=0 // pred_region
    _
  $region25: #{multi_discriminator_forward.20} parent=0 // pred_fallthru
    _

// kernel: multi_discriminator_forward.22
$region0: #{multi_discriminator_forward.22}
  #allocation0 [shape = 'u32[]', space=smem, size = 0x4, offset = 0x4, fixed_abs, tag = 'smem constant byte address 0x4 - core index']
  #allocation1 [shape = 'u32[144,128]{1,0:T(1,128)}', space=vmem, size = 0x12000, scoped, tag = 'internal scratch']
  %s0 = inlined_call_operand.vmem [shape: bf16[56,2048], index: 0, kind: input, shape index: {}]
  %s1 = inlined_call_operand.vmem [shape: bf16[2048,128], index: 1, kind: input, shape index: {}]
  %s2 = inlined_call_operand.vmem [shape: f32[1,128], index: 2, kind: input, shape index: {}]
  %s3 = inlined_call_operand.vmem [shape: f32[56,128], index: 3, kind: output, shape index: {}]
  %s4 = sld [smem:[#allocation0]]
  $region22: #{multi_discriminator_forward.22} parent=0
    _
  %s6 = ssub.s32 1, %s4
  %s7 = scalar_select 0, %s6, %s4
  // Predicated region
  $region2: #{multi_discriminator_forward.22} parent=0 // pred_check
    _
  $region3: #{multi_discriminator_forward.22} parent=0 // pred_check_branch
    %9 = sbr.rel (0) target = $region5
  $region4: #{multi_discriminator_forward.22} parent=0 // pred_region
    _
  $region5: #{multi_discriminator_forward.22} parent=0 // pred_fallthru
    _
  // Predicated region
  $region6: #{multi_discriminator_forward.22} parent=0 // pred_check
    _
  $region7: #{multi_discriminator_forward.22} parent=0 // pred_check_branch
    %11 = sbr.rel (0) target = $region9
  $region8: #{multi_discriminator_forward.22} parent=0 // pred_region
    _
  $region9: #{multi_discriminator_forward.22} parent=0 // pred_fallthru
    _
  // Predicated region
  $region10: #{multi_discriminator_forward.22} parent=0 // pred_check
    _
  $region11: #{multi_discriminator_forward.22} parent=0 // pred_check_branch
    %13 = sbr.rel (0) target = $region13
  $region12: #{multi_discriminator_forward.22} parent=0 // pred_region
    _
  $region13: #{multi_discriminator_forward.22} parent=0 // pred_fallthru
    _
  %v15 = vld [vmem:[%s0] sm:$0xff]
  %v16 = vld [vmem:[%s0 + $0x8] sm:$0xff]
  %v17 = vld [vmem:[%s0 + $0x10] sm:$0xff]
  %v18 = vld [vmem:[%s0 + $0x18] sm:$0xff]
  %v19 = vld [vmem:[%s0 + $0x20] sm:$0xff]
  %v20 = vld [vmem:[%s0 + $0x28] sm:$0xff]
  %v21 = vld [vmem:[%s0 + $0x30] sm:$0xff]
  %v22 = vld [vmem:[%s0 + $0x38] sm:$0xff]
  %v23 = vld [vmem:[%s0 + $0x40] sm:$0xff]
  %v24 = vld [vmem:[%s0 + $0x48] sm:$0xff]
  %v25 = vld [vmem:[%s0 + $0x50] sm:$0xff]
  %v26 = vld [vmem:[%s0 + $0x58] sm:$0xff]
  %v27 = vld [vmem:[%s0 + $0x60] sm:$0xff]
  %v28 = vld [vmem:[%s0 + $0x68] sm:$0xff]
  %v29 = vld [vmem:[%s0 + $0x70] sm:$0xff]
  %v30 = vld [vmem:[%s0 + $0x78] sm:$0xff]
  %v31 = vld [vmem:[%s0 + $0x80] sm:$0xff]
  %v32 = vld [vmem:[%s0 + $0x88] sm:$0xff]
  %v33 = vld [vmem:[%s0 + $0x90] sm:$0xff]
  %v34 = vld [vmem:[%s0 + $0x98] sm:$0xff]
  %v35 = vld [vmem:[%s0 + $0xa0] sm:$0xff]
  %v36 = vld [vmem:[%s0 + $0xa8] sm:$0xff]
  %v37 = vld [vmem:[%s0 + $0xb0] sm:$0xff]
  %v38 = vld [vmem:[%s0 + $0xb8] sm:$0xff]
  %v39 = vld [vmem:[%s0 + $0xc0] sm:$0xff]
  %v40 = vld [vmem:[%s0 + $0xc8] sm:$0xff]
  %v41 = vld [vmem:[%s0 + $0xd0] sm:$0xff]
  %v42 = vld [vmem:[%s0 + $0xd8] sm:$0xff]
  %v43 = vld [vmem:[%s0 + $0xe0] sm:$0xff]
  %v44 = vld [vmem:[%s0 + $0xe8] sm:$0xff]
  %v45 = vld [vmem:[%s0 + $0xf0] sm:$0xff]
  %v46 = vld [vmem:[%s0 + $0xf8] sm:$0xff]
  %v47 = vld [vmem:[%s0 + $0x100] sm:$0xff]
  %v48 = vld [vmem:[%s0 + $0x108] sm:$0xff]
  %v49 = vld [vmem:[%s0 + $0x110] sm:$0xff]
  %v50 = vld [vmem:[%s0 + $0x118] sm:$0xff]
  %v51 = vld [vmem:[%s0 + $0x120] sm:$0xff]
  %v52 = vld [vmem:[%s0 + $0x128] sm:$0xff]
  %v53 = vld [vmem:[%s0 + $0x130] sm:$0xff]
  %v54 = vld [vmem:[%s0 + $0x138] sm:$0xff]
  %v55 = vld [vmem:[%s0 + $0x140] sm:$0xff]
  %v56 = vld [vmem:[%s0 + $0x148] sm:$0xff]
  %v57 = vld [vmem:[%s0 + $0x150] sm:$0xff]
  %v58 = vld [vmem:[%s0 + $0x158] sm:$0xff]
  %v59 = vld [vmem:[%s0 + $0x160] sm:$0xff]
  %v60 = vld [vmem:[%s0 + $0x168] sm:$0xff]
  %v61 = vld [vmem:[%s0 + $0x170] sm:$0xff]
  %v62 = vld [vmem:[%s0 + $0x178] sm:$0xff]
  %v63 = vld [vmem:[%s0 + $0x180] sm:$0xff]
  %v64 = vld [vmem:[%s0 + $0x188] sm:$0xff]
  %v65 = vld [vmem:[%s0 + $0x190] sm:$0xff]
  %v66 = vld [vmem:[%s0 + $0x198] sm:$0xff]
  %v67 = vld [vmem:[%s0 + $0x1a0] sm:$0xff]
  %v68 = vld [vmem:[%s0 + $0x1a8] sm:$0xff]
  %v69 = vld [vmem:[%s0 + $0x1b0] sm:$0xff]
  %v70 = vld [vmem:[%s0 + $0x1b8] sm:$0xff]
  %v71 = vld [vmem:[%s1] sm:$0xf]
  %v72 = vld [vmem:[%s1 + $0x4] sm:$0xf]
  %v73 = vld [vmem:[%s1 + $0x8] sm:$0xf]
  %v74 = vld [vmem:[%s1 + $0xc] sm:$0xf]
  %v75 = vld [vmem:[%s1 + $0x10] sm:$0xf]
  %v76 = vld [vmem:[%s1 + $0x14] sm:$0xf]
  %v77 = vld [vmem:[%s1 + $0x18] sm:$0xf]
  %v78 = vld [vmem:[%s1 + $0x1c] sm:$0xf]
  %v79 = vld [vmem:[%s1 + $0x20] sm:$0xf]
  %v80 = vld [vmem:[%s1 + $0x24] sm:$0xf]
  %v81 = vld [vmem:[%s1 + $0x28] sm:$0xf]
  %v82 = vld [vmem:[%s1 + $0x2c] sm:$0xf]
  %v83 = vld [vmem:[%s1 + $0x30] sm:$0xf]
  %v84 = vld [vmem:[%s1 + $0x34] sm:$0xf]
  %v85 = vld [vmem:[%s1 + $0x38] sm:$0xf]
  %v86 = vld [vmem:[%s1 + $0x3c] sm:$0xf]
  %v87 = vld [vmem:[%s1 + $0x40] sm:$0xf]
  %v88 = vld [vmem:[%s1 + $0x44] sm:$0xf]
  %v89 = vld [vmem:[%s1 + $0x48] sm:$0xf]
  %v90 = vld [vmem:[%s1 + $0x4c] sm:$0xf]
  %v91 = vld [vmem:[%s1 + $0x50] sm:$0xf]
  %v92 = vld [vmem:[%s1 + $0x54] sm:$0xf]
  %v93 = vld [vmem:[%s1 + $0x58] sm:$0xf]
  %v94 = vld [vmem:[%s1 + $0x5c] sm:$0xf]
  %v95 = vld [vmem:[%s1 + $0x60] sm:$0xf]
  %v96 = vld [vmem:[%s1 + $0x64] sm:$0xf]
  %v97 = vld [vmem:[%s1 + $0x68] sm:$0xf]
  %v98 = vld [vmem:[%s1 + $0x6c] sm:$0xf]
  %v99 = vld [vmem:[%s1 + $0x70] sm:$0xf]
  %v100 = vld [vmem:[%s1 + $0x74] sm:$0xf]
  %v101 = vld [vmem:[%s1 + $0x78] sm:$0xf]
  %v102 = vld [vmem:[%s1 + $0x7c] sm:$0xf]
  %v103 = vld [vmem:[%s1 + $0x80] sm:$0xf]
  %v104 = vld [vmem:[%s1 + $0x84] sm:$0xf]
  %v105 = vld [vmem:[%s1 + $0x88] sm:$0xf]
  %v106 = vld [vmem:[%s1 + $0x8c] sm:$0xf]
  %v107 = vld [vmem:[%s1 + $0x90] sm:$0xf]
  %v108 = vld [vmem:[%s1 + $0x94] sm:$0xf]
  %v109 = vld [vmem:[%s1 + $0x98] sm:$0xf]
  %v110 = vld [vmem:[%s1 + $0x9c] sm:$0xf]
  %v111 = vld [vmem:[%s1 + $0xa0] sm:$0xf]
  %v112 = vld [vmem:[%s1 + $0xa4] sm:$0xf]
  %v113 = vld [vmem:[%s1 + $0xa8] sm:$0xf]
  %v114 = vld [vmem:[%s1 + $0xac] sm:$0xf]
  %v115 = vld [vmem:[%s1 + $0xb0] sm:$0xf]
  %v116 = vld [vmem:[%s1 + $0xb4] sm:$0xf]
  %v117 = vld [vmem:[%s1 + $0xb8] sm:$0xf]
  %v118 = vld [vmem:[%s1 + $0xbc] sm:$0xf]
  %v119 = vld [vmem:[%s1 + $0xc0] sm:$0xf]
  %v120 = vld [vmem:[%s1 + $0xc4] sm:$0xf]
  %v121 = vld [vmem:[%s1 + $0xc8] sm:$0xf]
  %v122 = vld [vmem:[%s1 + $0xcc] sm:$0xf]
  %v123 = vld [vmem:[%s1 + $0xd0] sm:$0xf]
  %v124 = vld [vmem:[%s1 + $0xd4] sm:$0xf]
  %v125 = vld [vmem:[%s1 + $0xd8] sm:$0xf]
  %v126 = vld [vmem:[%s1 + $0xdc] sm:$0xf]
  %v127 = vld [vmem:[%s1 + $0xe0] sm:$0xf]
  %v128 = vld [vmem:[%s1 + $0xe4] sm:$0xf]
  %v129 = vld [vmem:[%s1 + $0xe8] sm:$0xf]
  %v130 = vld [vmem:[%s1 + $0xec] sm:$0xf]
  %v131 = vld [vmem:[%s1 + $0xf0] sm:$0xf]
  %v132 = vld [vmem:[%s1 + $0xf4] sm:$0xf]
  %v133 = vld [vmem:[%s1 + $0xf8] sm:$0xf]
  %v134 = vld [vmem:[%s1 + $0xfc] sm:$0xf]
  %v135 = vld [vmem:[%s1 + $0x100] sm:$0xf]
  %v136 = vld [vmem:[%s1 + $0x104] sm:$0xf]
  %v137 = vld [vmem:[%s1 + $0x108] sm:$0xf]
  %v138 = vld [vmem:[%s1 + $0x10c] sm:$0xf]
  %v139 = vld [vmem:[%s1 + $0x110] sm:$0xf]
  %v140 = vld [vmem:[%s1 + $0x114] sm:$0xf]
  %v141 = vld [vmem:[%s1 + $0x118] sm:$0xf]
  %v142 = vld [vmem:[%s1 + $0x11c] sm:$0xf]
  %v143 = vld [vmem:[%s1 + $0x120] sm:$0xf]
  %v144 = vld [vmem:[%s1 + $0x124] sm:$0xf]
  %v145 = vld [vmem:[%s1 + $0x128] sm:$0xf]
  %v146 = vld [vmem:[%s1 + $0x12c] sm:$0xf]
  %v147 = vld [vmem:[%s1 + $0x130] sm:$0xf]
  %v148 = vld [vmem:[%s1 + $0x134] sm:$0xf]
  %v149 = vld [vmem:[%s1 + $0x138] sm:$0xf]
  %v150 = vld [vmem:[%s1 + $0x13c] sm:$0xf]
  %v151 = vld [vmem:[%s1 + $0x140] sm:$0xf]
  %v152 = vld [vmem:[%s1 + $0x144] sm:$0xf]
  %v153 = vld [vmem:[%s1 + $0x148] sm:$0xf]
  %v154 = vld [vmem:[%s1 + $0x14c] sm:$0xf]
  %v155 = vld [vmem:[%s1 + $0x150] sm:$0xf]
  %v156 = vld [vmem:[%s1 + $0x154] sm:$0xf]
  %v157 = vld [vmem:[%s1 + $0x158] sm:$0xf]
  %v158 = vld [vmem:[%s1 + $0x15c] sm:$0xf]
  %v159 = vld [vmem:[%s1 + $0x160] sm:$0xf]
  %v160 = vld [vmem:[%s1 + $0x164] sm:$0xf]
  %v161 = vld [vmem:[%s1 + $0x168] sm:$0xf]
  %v162 = vld [vmem:[%s1 + $0x16c] sm:$0xf]
  %v163 = vld [vmem:[%s1 + $0x170] sm:$0xf]
  %v164 = vld [vmem:[%s1 + $0x174] sm:$0xf]
  %v165 = vld [vmem:[%s1 + $0x178] sm:$0xf]
  %v166 = vld [vmem:[%s1 + $0x17c] sm:$0xf]
  %v167 = vld [vmem:[%s1 + $0x180] sm:$0xf]
  %v168 = vld [vmem:[%s1 + $0x184] sm:$0xf]
  %v169 = vld [vmem:[%s1 + $0x188] sm:$0xf]
  %v170 = vld [vmem:[%s1 + $0x18c] sm:$0xf]
  %v171 = vld [vmem:[%s1 + $0x190] sm:$0xf]
  %v172 = vld [vmem:[%s1 + $0x194] sm:$0xf]
  %v173 = vld [vmem:[%s1 + $0x198] sm:$0xf]
  %v174 = vld [vmem:[%s1 + $0x19c] sm:$0xf]
  %v175 = vld [vmem:[%s1 + $0x1a0] sm:$0xf]
  %v176 = vld [vmem:[%s1 + $0x1a4] sm:$0xf]
  %v177 = vld [vmem:[%s1 + $0x1a8] sm:$0xf]
  %v178 = vld [vmem:[%s1 + $0x1ac] sm:$0xf]
  %v179 = vld [vmem:[%s1 + $0x1b0] sm:$0xf]
  %v180 = vld [vmem:[%s1 + $0x1b4] sm:$0xf]
  %v181 = vld [vmem:[%s1 + $0x1b8] sm:$0xf]
  %v182 = vld [vmem:[%s1 + $0x1bc] sm:$0xf]
  %v183 = vld [vmem:[%s1 + $0x1c0] sm:$0xf]
  %v184 = vld [vmem:[%s1 + $0x1c4] sm:$0xf]
  %v185 = vld [vmem:[%s1 + $0x1c8] sm:$0xf]
  %v186 = vld [vmem:[%s1 + $0x1cc] sm:$0xf]
  %v187 = vld [vmem:[%s1 + $0x1d0] sm:$0xf]
  %v188 = vld [vmem:[%s1 + $0x1d4] sm:$0xf]
  %v189 = vld [vmem:[%s1 + $0x1d8] sm:$0xf]
  %v190 = vld [vmem:[%s1 + $0x1dc] sm:$0xf]
  %v191 = vld [vmem:[%s1 + $0x1e0] sm:$0xf]
  %v192 = vld [vmem:[%s1 + $0x1e4] sm:$0xf]
  %v193 = vld [vmem:[%s1 + $0x1e8] sm:$0xf]
  %v194 = vld [vmem:[%s1 + $0x1ec] sm:$0xf]
  %v195 = vld [vmem:[%s1 + $0x1f0] sm:$0xf]
  %v196 = vld [vmem:[%s1 + $0x1f4] sm:$0xf]
  %v197 = vld [vmem:[%s1 + $0x1f8] sm:$0xf]
  %v198 = vld [vmem:[%s1 + $0x1fc] sm:$0xf]
  %v199 = vld [vmem:[%s1 + $0x200] sm:$0xf]
  %v200 = vld [vmem:[%s1 + $0x204] sm:$0xf]
  %v201 = vld [vmem:[%s1 + $0x208] sm:$0xf]
  %v202 = vld [vmem:[%s1 + $0x20c] sm:$0xf]
  %v203 = vld [vmem:[%s1 + $0x210] sm:$0xf]
  %v204 = vld [vmem:[%s1 + $0x214] sm:$0xf]
  %v205 = vld [vmem:[%s1 + $0x218] sm:$0xf]
  %v206 = vld [vmem:[%s1 + $0x21c] sm:$0xf]
  %v207 = vld [vmem:[%s1 + $0x220] sm:$0xf]
  %v208 = vld [vmem:[%s1 + $0x224] sm:$0xf]
  %v209 = vld [vmem:[%s1 + $0x228] sm:$0xf]
  %v210 = vld [vmem:[%s1 + $0x22c] sm:$0xf]
  %v211 = vld [vmem:[%s1 + $0x230] sm:$0xf]
  %v212 = vld [vmem:[%s1 + $0x234] sm:$0xf]
  %v213 = vld [vmem:[%s1 + $0x238] sm:$0xf]
  %v214 = vld [vmem:[%s1 + $0x23c] sm:$0xf]
  %v215 = vld [vmem:[%s1 + $0x240] sm:$0xf]
  %v216 = vld [vmem:[%s1 + $0x244] sm:$0xf]
  %v217 = vld [vmem:[%s1 + $0x248] sm:$0xf]
  %v218 = vld [vmem:[%s1 + $0x24c] sm:$0xf]
  %v219 = vld [vmem:[%s1 + $0x250] sm:$0xf]
  %v220 = vld [vmem:[%s1 + $0x254] sm:$0xf]
  %v221 = vld [vmem:[%s1 + $0x258] sm:$0xf]
  %v222 = vld [vmem:[%s1 + $0x25c] sm:$0xf]
  %v223 = vld [vmem:[%s1 + $0x260] sm:$0xf]
  %v224 = vld [vmem:[%s1 + $0x264] sm:$0xf]
  %v225 = vld [vmem:[%s1 + $0x268] sm:$0xf]
  %v226 = vld [vmem:[%s1 + $0x26c] sm:$0xf]
  %v227 = vld [vmem:[%s1 + $0x270] sm:$0xf]
  %v228 = vld [vmem:[%s1 + $0x274] sm:$0xf]
  %v229 = vld [vmem:[%s1 + $0x278] sm:$0xf]
  %v230 = vld [vmem:[%s1 + $0x27c] sm:$0xf]
  %v231 = vld [vmem:[%s1 + $0x280] sm:$0xf]
  %v232 = vld [vmem:[%s1 + $0x284] sm:$0xf]
  %v233 = vld [vmem:[%s1 + $0x288] sm:$0xf]
  %v234 = vld [vmem:[%s1 + $0x28c] sm:$0xf]
  %v235 = vld [vmem:[%s1 + $0x290] sm:$0xf]
  %v236 = vld [vmem:[%s1 + $0x294] sm:$0xf]
  %v237 = vld [vmem:[%s1 + $0x298] sm:$0xf]
  %v238 = vld [vmem:[%s1 + $0x29c] sm:$0xf]
  %v239 = vld [vmem:[%s1 + $0x2a0] sm:$0xf]
  %v240 = vld [vmem:[%s1 + $0x2a4] sm:$0xf]
  %v241 = vld [vmem:[%s1 + $0x2a8] sm:$0xf]
  %v242 = vld [vmem:[%s1 + $0x2ac] sm:$0xf]
  %v243 = vld [vmem:[%s1 + $0x2b0] sm:$0xf]
  %v244 = vld [vmem:[%s1 + $0x2b4] sm:$0xf]
  %v245 = vld [vmem:[%s1 + $0x2b8] sm:$0xf]
  %v246 = vld [vmem:[%s1 + $0x2bc] sm:$0xf]
  %v247 = vld [vmem:[%s1 + $0x2c0] sm:$0xf]
  %v248 = vld [vmem:[%s1 + $0x2c4] sm:$0xf]
  %v249 = vld [vmem:[%s1 + $0x2c8] sm:$0xf]
  %v250 = vld [vmem:[%s1 + $0x2cc] sm:$0xf]
  %v251 = vld [vmem:[%s1 + $0x2d0] sm:$0xf]
  %v252 = vld [vmem:[%s1 + $0x2d4] sm:$0xf]
  %v253 = vld [vmem:[%s1 + $0x2d8] sm:$0xf]
  %v254 = vld [vmem:[%s1 + $0x2dc] sm:$0xf]
  %v255 = vld [vmem:[%s1 + $0x2e0] sm:$0xf]
  %v256 = vld [vmem:[%s1 + $0x2e4] sm:$0xf]
  %v257 = vld [vmem:[%s1 + $0x2e8] sm:$0xf]
  %v258 = vld [vmem:[%s1 + $0x2ec] sm:$0xf]
  %v259 = vld [vmem:[%s1 + $0x2f0] sm:$0xf]
  %v260 = vld [vmem:[%s1 + $0x2f4] sm:$0xf]
  %v261 = vld [vmem:[%s1 + $0x2f8] sm:$0xf]
  %v262 = vld [vmem:[%s1 + $0x2fc] sm:$0xf]
  %v263 = vld [vmem:[%s1 + $0x300] sm:$0xf]
  %v264 = vld [vmem:[%s1 + $0x304] sm:$0xf]
  %v265 = vld [vmem:[%s1 + $0x308] sm:$0xf]
  %v266 = vld [vmem:[%s1 + $0x30c] sm:$0xf]
  %v267 = vld [vmem:[%s1 + $0x310] sm:$0xf]
  %v268 = vld [vmem:[%s1 + $0x314] sm:$0xf]
  %v269 = vld [vmem:[%s1 + $0x318] sm:$0xf]
  %v270 = vld [vmem:[%s1 + $0x31c] sm:$0xf]
  %v271 = vld [vmem:[%s1 + $0x320] sm:$0xf]
  %v272 = vld [vmem:[%s1 + $0x324] sm:$0xf]
  %v273 = vld [vmem:[%s1 + $0x328] sm:$0xf]
  %v274 = vld [vmem:[%s1 + $0x32c] sm:$0xf]
  %v275 = vld [vmem:[%s1 + $0x330] sm:$0xf]
  %v276 = vld [vmem:[%s1 + $0x334] sm:$0xf]
  %v277 = vld [vmem:[%s1 + $0x338] sm:$0xf]
  %v278 = vld [vmem:[%s1 + $0x33c] sm:$0xf]
  %v279 = vld [vmem:[%s1 + $0x340] sm:$0xf]
  %v280 = vld [vmem:[%s1 + $0x344] sm:$0xf]
  %v281 = vld [vmem:[%s1 + $0x348] sm:$0xf]
  %v282 = vld [vmem:[%s1 + $0x34c] sm:$0xf]
  %v283 = vld [vmem:[%s1 + $0x350] sm:$0xf]
  %v284 = vld [vmem:[%s1 + $0x354] sm:$0xf]
  %v285 = vld [vmem:[%s1 + $0x358] sm:$0xf]
  %v286 = vld [vmem:[%s1 + $0x35c] sm:$0xf]
  %v287 = vld [vmem:[%s1 + $0x360] sm:$0xf]
  %v288 = vld [vmem:[%s1 + $0x364] sm:$0xf]
  %v289 = vld [vmem:[%s1 + $0x368] sm:$0xf]
  %v290 = vld [vmem:[%s1 + $0x36c] sm:$0xf]
  %v291 = vld [vmem:[%s1 + $0x370] sm:$0xf]
  %v292 = vld [vmem:[%s1 + $0x374] sm:$0xf]
  %v293 = vld [vmem:[%s1 + $0x378] sm:$0xf]
  %v294 = vld [vmem:[%s1 + $0x37c] sm:$0xf]
  %v295 = vld [vmem:[%s1 + $0x380] sm:$0xf]
  %v296 = vld [vmem:[%s1 + $0x384] sm:$0xf]
  %v297 = vld [vmem:[%s1 + $0x388] sm:$0xf]
  %v298 = vld [vmem:[%s1 + $0x38c] sm:$0xf]
  %v299 = vld [vmem:[%s1 + $0x390] sm:$0xf]
  %v300 = vld [vmem:[%s1 + $0x394] sm:$0xf]
  %v301 = vld [vmem:[%s1 + $0x398] sm:$0xf]
  %v302 = vld [vmem:[%s1 + $0x39c] sm:$0xf]
  %v303 = vld [vmem:[%s1 + $0x3a0] sm:$0xf]
  %v304 = vld [vmem:[%s1 + $0x3a4] sm:$0xf]
  %v305 = vld [vmem:[%s1 + $0x3a8] sm:$0xf]
  %v306 = vld [vmem:[%s1 + $0x3ac] sm:$0xf]
  %v307 = vld [vmem:[%s1 + $0x3b0] sm:$0xf]
  %v308 = vld [vmem:[%s1 + $0x3b4] sm:$0xf]
  %v309 = vld [vmem:[%s1 + $0x3b8] sm:$0xf]
  %v310 = vld [vmem:[%s1 + $0x3bc] sm:$0xf]
  %v311 = vld [vmem:[%s1 + $0x3c0] sm:$0xf]
  %v312 = vld [vmem:[%s1 + $0x3c4] sm:$0xf]
  %v313 = vld [vmem:[%s1 + $0x3c8] sm:$0xf]
  %v314 = vld [vmem:[%s1 + $0x3cc] sm:$0xf]
  %v315 = vld [vmem:[%s1 + $0x3d0] sm:$0xf]
  %v316 = vld [vmem:[%s1 + $0x3d4] sm:$0xf]
  %v317 = vld [vmem:[%s1 + $0x3d8] sm:$0xf]
  %v318 = vld [vmem:[%s1 + $0x3dc] sm:$0xf]
  %v319 = vld [vmem:[%s1 + $0x3e0] sm:$0xf]
  %v320 = vld [vmem:[%s1 + $0x3e4] sm:$0xf]
  %v321 = vld [vmem:[%s1 + $0x3e8] sm:$0xf]
  %v322 = vld [vmem:[%s1 + $0x3ec] sm:$0xf]
  %v323 = vld [vmem:[%s1 + $0x3f0] sm:$0xf]
  %v324 = vld [vmem:[%s1 + $0x3f4] sm:$0xf]
  %v325 = vld [vmem:[%s1 + $0x3f8] sm:$0xf]
  %v326 = vld [vmem:[%s1 + $0x3fc] sm:$0xf]
  %v327 = vld [vmem:[%s2] sm:$0x1]
  %v329 = vlaneseq
  %v330 = vshrl.u32 %v329, 7
  %v331 = vsub.s32 0, %v330
  %v332 = vrot.slane %v327, %v331
  %v390 = vunpack.c.l.b16 %v15
  %v391 = vunpack.c.h.b16 %v15
  %v392 = vunpack.c.l.b16 %v16
  %v393 = vunpack.c.h.b16 %v16
  %v394 = vunpack.c.l.b16 %v17
  %v395 = vunpack.c.h.b16 %v17
  %v396 = vunpack.c.l.b16 %v18
  %v397 = vunpack.c.h.b16 %v18
  %v398 = vunpack.c.l.b16 %v19
  %v399 = vunpack.c.h.b16 %v19
  %v400 = vunpack.c.l.b16 %v20
  %v401 = vunpack.c.h.b16 %v20
  %v402 = vunpack.c.l.b16 %v21
  %v403 = vunpack.c.h.b16 %v21
  %v404 = vunpack.c.l.b16 %v22
  %v405 = vunpack.c.h.b16 %v22
  %v406 = vunpack.c.l.b16 %v23
  %v407 = vunpack.c.h.b16 %v23
  %v408 = vunpack.c.l.b16 %v24
  %v409 = vunpack.c.h.b16 %v24
  %v410 = vunpack.c.l.b16 %v25
  %v411 = vunpack.c.h.b16 %v25
  %v412 = vunpack.c.l.b16 %v26
  %v413 = vunpack.c.h.b16 %v26
  %v414 = vunpack.c.l.b16 %v27
  %v415 = vunpack.c.h.b16 %v27
  %v416 = vunpack.c.l.b16 %v28
  %v417 = vunpack.c.h.b16 %v28
  %v418 = vunpack.c.l.b16 %v29
  %v419 = vunpack.c.h.b16 %v29
  %v420 = vunpack.c.l.b16 %v30
  %v421 = vunpack.c.h.b16 %v30
  %v422 = vunpack.c.l.b16 %v31
  %v423 = vunpack.c.h.b16 %v31
  %v424 = vunpack.c.l.b16 %v32
  %v425 = vunpack.c.h.b16 %v32
  %v426 = vunpack.c.l.b16 %v33
  %v427 = vunpack.c.h.b16 %v33
  %v428 = vunpack.c.l.b16 %v34
  %v429 = vunpack.c.h.b16 %v34
  %v430 = vunpack.c.l.b16 %v35
  %v431 = vunpack.c.h.b16 %v35
  %v432 = vunpack.c.l.b16 %v36
  %v433 = vunpack.c.h.b16 %v36
  %v434 = vunpack.c.l.b16 %v37
  %v435 = vunpack.c.h.b16 %v37
  %v436 = vunpack.c.l.b16 %v38
  %v437 = vunpack.c.h.b16 %v38
  %v438 = vunpack.c.l.b16 %v39
  %v439 = vunpack.c.h.b16 %v39
  %v440 = vunpack.c.l.b16 %v40
  %v441 = vunpack.c.h.b16 %v40
  %v442 = vunpack.c.l.b16 %v41
  %v443 = vunpack.c.h.b16 %v41
  %v444 = vunpack.c.l.b16 %v42
  %v445 = vunpack.c.h.b16 %v42
  %v446 = vunpack.c.l.b16 %v43
  %v447 = vunpack.c.h.b16 %v43
  %v448 = vunpack.c.l.b16 %v44
  %v449 = vunpack.c.h.b16 %v44
  %v450 = vunpack.c.l.b16 %v45
  %v451 = vunpack.c.h.b16 %v45
  %v452 = vunpack.c.l.b16 %v46
  %v453 = vunpack.c.h.b16 %v46
  %v454 = vunpack.c.l.b16 %v47
  %v455 = vunpack.c.h.b16 %v47
  %v456 = vunpack.c.l.b16 %v48
  %v457 = vunpack.c.h.b16 %v48
  %v458 = vunpack.c.l.b16 %v49
  %v459 = vunpack.c.h.b16 %v49
  %v460 = vunpack.c.l.b16 %v50
  %v461 = vunpack.c.h.b16 %v50
  %v462 = vunpack.c.l.b16 %v51
  %v463 = vunpack.c.h.b16 %v51
  %v464 = vunpack.c.l.b16 %v52
  %v465 = vunpack.c.h.b16 %v52
  %v466 = vunpack.c.l.b16 %v53
  %v467 = vunpack.c.h.b16 %v53
  %v468 = vunpack.c.l.b16 %v54
  %v469 = vunpack.c.h.b16 %v54
  %v470 = vunpack.c.l.b16 %v55
  %v471 = vunpack.c.h.b16 %v55
  %v472 = vunpack.c.l.b16 %v56
  %v473 = vunpack.c.h.b16 %v56
  %v474 = vunpack.c.l.b16 %v57
  %v475 = vunpack.c.h.b16 %v57
  %v476 = vunpack.c.l.b16 %v58
  %v477 = vunpack.c.h.b16 %v58
  %v478 = vunpack.c.l.b16 %v59
  %v479 = vunpack.c.h.b16 %v59
  %v480 = vunpack.c.l.b16 %v60
  %v481 = vunpack.c.h.b16 %v60
  %v482 = vunpack.c.l.b16 %v61
  %v483 = vunpack.c.h.b16 %v61
  %v484 = vunpack.c.l.b16 %v62
  %v485 = vunpack.c.h.b16 %v62
  %v486 = vunpack.c.l.b16 %v63
  %v487 = vunpack.c.h.b16 %v63
  %v488 = vunpack.c.l.b16 %v64
  %v489 = vunpack.c.h.b16 %v64
  %v490 = vunpack.c.l.b16 %v65
  %v491 = vunpack.c.h.b16 %v65
  %v492 = vunpack.c.l.b16 %v66
  %v493 = vunpack.c.h.b16 %v66
  %v494 = vunpack.c.l.b16 %v67
  %v495 = vunpack.c.h.b16 %v67
  %v496 = vunpack.c.l.b16 %v68
  %v497 = vunpack.c.h.b16 %v68
  %v498 = vunpack.c.l.b16 %v69
  %v499 = vunpack.c.h.b16 %v69
  %v500 = vunpack.c.l.b16 %v70
  %v501 = vunpack.c.h.b16 %v70
  %v502 = vpack.c.b16 %v406, %v390
  %v503 = vpack.c.b16 %v407, %v391
  %v504 = vpack.c.b16 %v408, %v392
  %v505 = vpack.c.b16 %v409, %v393
  %v506 = vpack.c.b16 %v410, %v394
  %v507 = vpack.c.b16 %v411, %v395
  %v508 = vpack.c.b16 %v412, %v396
  %v509 = vpack.c.b16 %v413, %v397
  %v510 = vpack.c.b16 %v414, %v398
  %v511 = vpack.c.b16 %v415, %v399
  %v512 = vpack.c.b16 %v416, %v400
  %v513 = vpack.c.b16 %v417, %v401
  %v514 = vpack.c.b16 %v418, %v402
  %v515 = vpack.c.b16 %v419, %v403
  %v516 = vpack.c.b16 %v420, %v404
  %v517 = vpack.c.b16 %v421, %v405
  %v518 = vpack.c.b16 %v438, %v422
  %v519 = vpack.c.b16 %v439, %v423
  %v520 = vpack.c.b16 %v440, %v424
  %v521 = vpack.c.b16 %v441, %v425
  %v522 = vpack.c.b16 %v442, %v426
  %v523 = vpack.c.b16 %v443, %v427
  %v524 = vpack.c.b16 %v444, %v428
  %v525 = vpack.c.b16 %v445, %v429
  %v526 = vpack.c.b16 %v446, %v430
  %v527 = vpack.c.b16 %v447, %v431
  %v528 = vpack.c.b16 %v448, %v432
  %v529 = vpack.c.b16 %v449, %v433
  %v530 = vpack.c.b16 %v450, %v434
  %v531 = vpack.c.b16 %v451, %v435
  %v532 = vpack.c.b16 %v452, %v436
  %v533 = vpack.c.b16 %v453, %v437
  %v534 = vpack.c.b16 %v470, %v454
  %v535 = vpack.c.b16 %v471, %v455
  %v536 = vpack.c.b16 %v472, %v456
  %v537 = vpack.c.b16 %v473, %v457
  %v538 = vpack.c.b16 %v474, %v458
  %v539 = vpack.c.b16 %v475, %v459
  %v540 = vpack.c.b16 %v476, %v460
  %v541 = vpack.c.b16 %v477, %v461
  %v542 = vpack.c.b16 %v478, %v462
  %v543 = vpack.c.b16 %v479, %v463
  %v544 = vpack.c.b16 %v480, %v464
  %v545 = vpack.c.b16 %v481, %v465
  %v546 = vpack.c.b16 %v482, %v466
  %v547 = vpack.c.b16 %v483, %v467
  %v548 = vpack.c.b16 %v484, %v468
  %v549 = vpack.c.b16 %v485, %v469
  %v550 = vpack.c.b16 %v486, %v486
  %v551 = vpack.c.b16 %v487, %v487
  %v552 = vpack.c.b16 %v488, %v488
  %v553 = vpack.c.b16 %v489, %v489
  %v554 = vpack.c.b16 %v490, %v490
  %v555 = vpack.c.b16 %v491, %v491
  %v556 = vpack.c.b16 %v492, %v492
  %v557 = vpack.c.b16 %v493, %v493
  %v558 = vpack.c.b16 %v494, %v494
  %v559 = vpack.c.b16 %v495, %v495
  %v560 = vpack.c.b16 %v496, %v496
  %v561 = vpack.c.b16 %v497, %v497
  %v562 = vpack.c.b16 %v498, %v498
  %v563 = vpack.c.b16 %v499, %v499
  %v564 = vpack.c.b16 %v500, %v500
  %v565 = vpack.c.b16 %v501, %v501
  %v886 = vunpack.c.l.b16 %v71
  %v887 = vunpack.c.l.b16 %v72
  %v888 = vunpack.c.l.b16 %v73
  %v889 = vunpack.c.l.b16 %v74
  %v890 = vunpack.c.l.b16 %v75
  %v891 = vunpack.c.l.b16 %v76
  %v892 = vunpack.c.l.b16 %v77
  %v893 = vunpack.c.l.b16 %v78
  %v894 = vunpack.c.l.b16 %v79
  %v895 = vunpack.c.l.b16 %v80
  %v896 = vunpack.c.l.b16 %v81
  %v897 = vunpack.c.l.b16 %v82
  %v898 = vunpack.c.l.b16 %v83
  %v899 = vunpack.c.l.b16 %v84
  %v900 = vunpack.c.l.b16 %v85
  %v901 = vunpack.c.l.b16 %v86
  %v902 = vunpack.c.l.b16 %v87
  %v903 = vunpack.c.l.b16 %v88
  %v904 = vunpack.c.l.b16 %v89
  %v905 = vunpack.c.l.b16 %v90
  %v906 = vunpack.c.l.b16 %v91
  %v907 = vunpack.c.l.b16 %v92
  %v908 = vunpack.c.l.b16 %v93
  %v909 = vunpack.c.l.b16 %v94
  %v910 = vunpack.c.l.b16 %v95
  %v911 = vunpack.c.l.b16 %v96
  %v912 = vunpack.c.l.b16 %v97
  %v913 = vunpack.c.l.b16 %v98
  %v914 = vunpack.c.l.b16 %v99
  %v915 = vunpack.c.l.b16 %v100
  %v916 = vunpack.c.l.b16 %v101
  %v917 = vunpack.c.l.b16 %v102
  %v918 = vunpack.c.l.b16 %v103
  %v919 = vunpack.c.l.b16 %v104
  %v920 = vunpack.c.l.b16 %v105
  %v921 = vunpack.c.l.b16 %v106
  %v922 = vunpack.c.l.b16 %v107
  %v923 = vunpack.c.l.b16 %v108
  %v924 = vunpack.c.l.b16 %v109
  %v925 = vunpack.c.l.b16 %v110
  %v926 = vunpack.c.l.b16 %v111
  %v927 = vunpack.c.l.b16 %v112
  %v928 = vunpack.c.l.b16 %v113
  %v929 = vunpack.c.l.b16 %v114
  %v930 = vunpack.c.l.b16 %v115
  %v931 = vunpack.c.l.b16 %v116
  %v932 = vunpack.c.l.b16 %v117
  %v933 = vunpack.c.l.b16 %v118
  %v934 = vunpack.c.l.b16 %v119
  %v935 = vunpack.c.l.b16 %v120
  %v936 = vunpack.c.l.b16 %v121
  %v937 = vunpack.c.l.b16 %v122
  %v938 = vunpack.c.l.b16 %v123
  %v939 = vunpack.c.l.b16 %v124
  %v940 = vunpack.c.l.b16 %v125
  %v941 = vunpack.c.l.b16 %v126
  %v942 = vunpack.c.l.b16 %v127
  %v943 = vunpack.c.l.b16 %v128
  %v944 = vunpack.c.l.b16 %v129
  %v945 = vunpack.c.l.b16 %v130
  %v946 = vunpack.c.l.b16 %v131
  %v947 = vunpack.c.l.b16 %v132
  %v948 = vunpack.c.l.b16 %v133
  %v949 = vunpack.c.l.b16 %v134
  %v950 = vunpack.c.l.b16 %v135
  %v951 = vunpack.c.l.b16 %v136
  %v952 = vunpack.c.l.b16 %v137
  %v953 = vunpack.c.l.b16 %v138
  %v954 = vunpack.c.l.b16 %v139
  %v955 = vunpack.c.l.b16 %v140
  %v956 = vunpack.c.l.b16 %v141
  %v957 = vunpack.c.l.b16 %v142
  %v958 = vunpack.c.l.b16 %v143
  %v959 = vunpack.c.l.b16 %v144
  %v960 = vunpack.c.l.b16 %v145
  %v961 = vunpack.c.l.b16 %v146
  %v962 = vunpack.c.l.b16 %v147
  %v963 = vunpack.c.l.b16 %v148
  %v964 = vunpack.c.l.b16 %v149
  %v965 = vunpack.c.l.b16 %v150
  %v966 = vunpack.c.l.b16 %v151
  %v967 = vunpack.c.l.b16 %v152
  %v968 = vunpack.c.l.b16 %v153
  %v969 = vunpack.c.l.b16 %v154
  %v970 = vunpack.c.l.b16 %v155
  %v971 = vunpack.c.l.b16 %v156
  %v972 = vunpack.c.l.b16 %v157
  %v973 = vunpack.c.l.b16 %v158
  %v974 = vunpack.c.l.b16 %v159
  %v975 = vunpack.c.l.b16 %v160
  %v976 = vunpack.c.l.b16 %v161
  %v977 = vunpack.c.l.b16 %v162
  %v978 = vunpack.c.l.b16 %v163
  %v979 = vunpack.c.l.b16 %v164
  %v980 = vunpack.c.l.b16 %v165
  %v981 = vunpack.c.l.b16 %v166
  %v982 = vunpack.c.l.b16 %v167
  %v983 = vunpack.c.l.b16 %v168
  %v984 = vunpack.c.l.b16 %v169
  %v985 = vunpack.c.l.b16 %v170
  %v986 = vunpack.c.l.b16 %v171
  %v987 = vunpack.c.l.b16 %v172
  %v988 = vunpack.c.l.b16 %v173
  %v989 = vunpack.c.l.b16 %v174
  %v990 = vunpack.c.l.b16 %v175
  %v991 = vunpack.c.l.b16 %v176
  %v992 = vunpack.c.l.b16 %v177
  %v993 = vunpack.c.l.b16 %v178
  %v994 = vunpack.c.l.b16 %v179
  %v995 = vunpack.c.l.b16 %v180
  %v996 = vunpack.c.l.b16 %v181
  %v997 = vunpack.c.l.b16 %v182
  %v998 = vunpack.c.l.b16 %v183
  %v999 = vunpack.c.l.b16 %v184
  %v1000 = vunpack.c.l.b16 %v185
  %v1001 = vunpack.c.l.b16 %v186
  %v1002 = vunpack.c.l.b16 %v187
  %v1003 = vunpack.c.l.b16 %v188
  %v1004 = vunpack.c.l.b16 %v189
  %v1005 = vunpack.c.l.b16 %v190
  %v1006 = vunpack.c.l.b16 %v191
  %v1007 = vunpack.c.l.b16 %v192
  %v1008 = vunpack.c.l.b16 %v193
  %v1009 = vunpack.c.l.b16 %v194
  %v1010 = vunpack.c.l.b16 %v195
  %v1011 = vunpack.c.l.b16 %v196
  %v1012 = vunpack.c.l.b16 %v197
  %v1013 = vunpack.c.l.b16 %v198
  %v1014 = vunpack.c.l.b16 %v199
  %v1015 = vunpack.c.l.b16 %v200
  %v1016 = vunpack.c.l.b16 %v201
  %v1017 = vunpack.c.l.b16 %v202
  %v1018 = vunpack.c.l.b16 %v203
  %v1019 = vunpack.c.l.b16 %v204
  %v1020 = vunpack.c.l.b16 %v205
  %v1021 = vunpack.c.l.b16 %v206
  %v1022 = vunpack.c.l.b16 %v207
  %v1023 = vunpack.c.l.b16 %v208
  %v1024 = vunpack.c.l.b16 %v209
  %v1025 = vunpack.c.l.b16 %v210
  %v1026 = vunpack.c.l.b16 %v211
  %v1027 = vunpack.c.l.b16 %v212
  %v1028 = vunpack.c.l.b16 %v213
  %v1029 = vunpack.c.l.b16 %v214
  %v1030 = vunpack.c.l.b16 %v215
  %v1031 = vunpack.c.l.b16 %v216
  %v1032 = vunpack.c.l.b16 %v217
  %v1033 = vunpack.c.l.b16 %v218
  %v1034 = vunpack.c.l.b16 %v219
  %v1035 = vunpack.c.l.b16 %v220
  %v1036 = vunpack.c.l.b16 %v221
  %v1037 = vunpack.c.l.b16 %v222
  %v1038 = vunpack.c.l.b16 %v223
  %v1039 = vunpack.c.l.b16 %v224
  %v1040 = vunpack.c.l.b16 %v225
  %v1041 = vunpack.c.l.b16 %v226
  %v1042 = vunpack.c.l.b16 %v227
  %v1043 = vunpack.c.l.b16 %v228
  %v1044 = vunpack.c.l.b16 %v229
  %v1045 = vunpack.c.l.b16 %v230
  %v1046 = vunpack.c.l.b16 %v231
  %v1047 = vunpack.c.l.b16 %v232
  %v1048 = vunpack.c.l.b16 %v233
  %v1049 = vunpack.c.l.b16 %v234
  %v1050 = vunpack.c.l.b16 %v235
  %v1051 = vunpack.c.l.b16 %v236
  %v1052 = vunpack.c.l.b16 %v237
  %v1053 = vunpack.c.l.b16 %v238
  %v1054 = vunpack.c.l.b16 %v239
  %v1055 = vunpack.c.l.b16 %v240
  %v1056 = vunpack.c.l.b16 %v241
  %v1057 = vunpack.c.l.b16 %v242
  %v1058 = vunpack.c.l.b16 %v243
  %v1059 = vunpack.c.l.b16 %v244
  %v1060 = vunpack.c.l.b16 %v245
  %v1061 = vunpack.c.l.b16 %v246
  %v1062 = vunpack.c.l.b16 %v247
  %v1063 = vunpack.c.l.b16 %v248
  %v1064 = vunpack.c.l.b16 %v249
  %v1065 = vunpack.c.l.b16 %v250
  %v1066 = vunpack.c.l.b16 %v251
  %v1067 = vunpack.c.l.b16 %v252
  %v1068 = vunpack.c.l.b16 %v253
  %v1069 = vunpack.c.l.b16 %v254
  %v1070 = vunpack.c.l.b16 %v255
  %v1071 = vunpack.c.l.b16 %v256
  %v1072 = vunpack.c.l.b16 %v257
  %v1073 = vunpack.c.l.b16 %v258
  %v1074 = vunpack.c.l.b16 %v259
  %v1075 = vunpack.c.l.b16 %v260
  %v1076 = vunpack.c.l.b16 %v261
  %v1077 = vunpack.c.l.b16 %v262
  %v1078 = vunpack.c.l.b16 %v263
  %v1079 = vunpack.c.l.b16 %v264
  %v1080 = vunpack.c.l.b16 %v265
  %v1081 = vunpack.c.l.b16 %v266
  %v1082 = vunpack.c.l.b16 %v267
  %v1083 = vunpack.c.l.b16 %v268
  %v1084 = vunpack.c.l.b16 %v269
  %v1085 = vunpack.c.l.b16 %v270
  %v1086 = vunpack.c.l.b16 %v271
  %v1087 = vunpack.c.l.b16 %v272
  %v1088 = vunpack.c.l.b16 %v273
  %v1089 = vunpack.c.l.b16 %v274
  %v1090 = vunpack.c.l.b16 %v275
  %v1091 = vunpack.c.l.b16 %v276
  %v1092 = vunpack.c.l.b16 %v277
  %v1093 = vunpack.c.l.b16 %v278
  %v1094 = vunpack.c.l.b16 %v279
  %v1095 = vunpack.c.l.b16 %v280
  %v1096 = vunpack.c.l.b16 %v281
  %v1097 = vunpack.c.l.b16 %v282
  %v1098 = vunpack.c.l.b16 %v283
  %v1099 = vunpack.c.l.b16 %v284
  %v1100 = vunpack.c.l.b16 %v285
  %v1101 = vunpack.c.l.b16 %v286
  %v1102 = vunpack.c.l.b16 %v287
  %v1103 = vunpack.c.l.b16 %v288
  %v1104 = vunpack.c.l.b16 %v289
  %v1105 = vunpack.c.l.b16 %v290
  %v1106 = vunpack.c.l.b16 %v291
  %v1107 = vunpack.c.l.b16 %v292
  %v1108 = vunpack.c.l.b16 %v293
  %v1109 = vunpack.c.l.b16 %v294
  %v1110 = vunpack.c.l.b16 %v295
  %v1111 = vunpack.c.l.b16 %v296
  %v1112 = vunpack.c.l.b16 %v297
  %v1113 = vunpack.c.l.b16 %v298
  %v1114 = vunpack.c.l.b16 %v299
  %v1115 = vunpack.c.l.b16 %v300
  %v1116 = vunpack.c.l.b16 %v301
  %v1117 = vunpack.c.l.b16 %v302
  %v1118 = vunpack.c.l.b16 %v303
  %v1119 = vunpack.c.l.b16 %v304
  %v1120 = vunpack.c.l.b16 %v305
  %v1121 = vunpack.c.l.b16 %v306
  %v1122 = vunpack.c.l.b16 %v307
  %v1123 = vunpack.c.l.b16 %v308
  %v1124 = vunpack.c.l.b16 %v309
  %v1125 = vunpack.c.l.b16 %v310
  %v1126 = vunpack.c.l.b16 %v311
  %v1127 = vunpack.c.l.b16 %v312
  %v1128 = vunpack.c.l.b16 %v313
  %v1129 = vunpack.c.l.b16 %v314
  %v1130 = vunpack.c.l.b16 %v315
  %v1131 = vunpack.c.l.b16 %v316
  %v1132 = vunpack.c.l.b16 %v317
  %v1133 = vunpack.c.l.b16 %v318
  %v1134 = vunpack.c.l.b16 %v319
  %v1135 = vunpack.c.l.b16 %v320
  %v1136 = vunpack.c.l.b16 %v321
  %v1137 = vunpack.c.l.b16 %v322
  %v1138 = vunpack.c.l.b16 %v323
  %v1139 = vunpack.c.l.b16 %v324
  %v1140 = vunpack.c.l.b16 %v325
  %v1141 = vunpack.c.l.b16 %v326
  %v1142 = vpack.c.b16 %v887, %v886
  %v1143 = vpack.c.b16 %v889, %v888
  %v1144 = vpack.c.b16 %v891, %v890
  %v1145 = vpack.c.b16 %v893, %v892
  %v1146 = vpack.c.b16 %v895, %v894
  %v1147 = vpack.c.b16 %v897, %v896
  %v1148 = vpack.c.b16 %v899, %v898
  %v1149 = vpack.c.b16 %v901, %v900
  %v1150 = vpack.c.b16 %v903, %v902
  %v1151 = vpack.c.b16 %v905, %v904
  %v1152 = vpack.c.b16 %v907, %v906
  %v1153 = vpack.c.b16 %v909, %v908
  %v1154 = vpack.c.b16 %v911, %v910
  %v1155 = vpack.c.b16 %v913, %v912
  %v1156 = vpack.c.b16 %v915, %v914
  %v1157 = vpack.c.b16 %v917, %v916
  %v1158 = vpack.c.b16 %v919, %v918
  %v1159 = vpack.c.b16 %v921, %v920
  %v1160 = vpack.c.b16 %v923, %v922
  %v1161 = vpack.c.b16 %v925, %v924
  %v1162 = vpack.c.b16 %v927, %v926
  %v1163 = vpack.c.b16 %v929, %v928
  %v1164 = vpack.c.b16 %v931, %v930
  %v1165 = vpack.c.b16 %v933, %v932
  %v1166 = vpack.c.b16 %v935, %v934
  %v1167 = vpack.c.b16 %v937, %v936
  %v1168 = vpack.c.b16 %v939, %v938
  %v1169 = vpack.c.b16 %v941, %v940
  %v1170 = vpack.c.b16 %v943, %v942
  %v1171 = vpack.c.b16 %v945, %v944
  %v1172 = vpack.c.b16 %v947, %v946
  %v1173 = vpack.c.b16 %v949, %v948
  %v1174 = vpack.c.b16 %v951, %v950
  %v1175 = vpack.c.b16 %v953, %v952
  %v1176 = vpack.c.b16 %v955, %v954
  %v1177 = vpack.c.b16 %v957, %v956
  %v1178 = vpack.c.b16 %v959, %v958
  %v1179 = vpack.c.b16 %v961, %v960
  %v1180 = vpack.c.b16 %v963, %v962
  %v1181 = vpack.c.b16 %v965, %v964
  %v1182 = vpack.c.b16 %v967, %v966
  %v1183 = vpack.c.b16 %v969, %v968
  %v1184 = vpack.c.b16 %v971, %v970
  %v1185 = vpack.c.b16 %v973, %v972
  %v1186 = vpack.c.b16 %v975, %v974
  %v1187 = vpack.c.b16 %v977, %v976
  %v1188 = vpack.c.b16 %v979, %v978
  %v1189 = vpack.c.b16 %v981, %v980
  %v1190 = vpack.c.b16 %v983, %v982
  %v1191 = vpack.c.b16 %v985, %v984
  %v1192 = vpack.c.b16 %v987, %v986
  %v1193 = vpack.c.b16 %v989, %v988
  %v1194 = vpack.c.b16 %v991, %v990
  %v1195 = vpack.c.b16 %v993, %v992
  %v1196 = vpack.c.b16 %v995, %v994
  %v1197 = vpack.c.b16 %v997, %v996
  %v1198 = vpack.c.b16 %v999, %v998
  %v1199 = vpack.c.b16 %v1001, %v1000
  %v1200 = vpack.c.b16 %v1003, %v1002
  %v1201 = vpack.c.b16 %v1005, %v1004
  %v1202 = vpack.c.b16 %v1007, %v1006
  %v1203 = vpack.c.b16 %v1009, %v1008
  %v1204 = vpack.c.b16 %v1011, %v1010
  %v1205 = vpack.c.b16 %v1013, %v1012
  %v1206 = vpack.c.b16 %v1015, %v1014
  %v1207 = vpack.c.b16 %v1017, %v1016
  %v1208 = vpack.c.b16 %v1019, %v1018
  %v1209 = vpack.c.b16 %v1021, %v1020
  %v1210 = vpack.c.b16 %v1023, %v1022
  %v1211 = vpack.c.b16 %v1025, %v1024
  %v1212 = vpack.c.b16 %v1027, %v1026
  %v1213 = vpack.c.b16 %v1029, %v1028
  %v1214 = vpack.c.b16 %v1031, %v1030
  %v1215 = vpack.c.b16 %v1033, %v1032
  %v1216 = vpack.c.b16 %v1035, %v1034
  %v1217 = vpack.c.b16 %v1037, %v1036
  %v1218 = vpack.c.b16 %v1039, %v1038
  %v1219 = vpack.c.b16 %v1041, %v1040
  %v1220 = vpack.c.b16 %v1043, %v1042
  %v1221 = vpack.c.b16 %v1045, %v1044
  %v1222 = vpack.c.b16 %v1047, %v1046
  %v1223 = vpack.c.b16 %v1049, %v1048
  %v1224 = vpack.c.b16 %v1051, %v1050
  %v1225 = vpack.c.b16 %v1053, %v1052
  %v1226 = vpack.c.b16 %v1055, %v1054
  %v1227 = vpack.c.b16 %v1057, %v1056
  %v1228 = vpack.c.b16 %v1059, %v1058
  %v1229 = vpack.c.b16 %v1061, %v1060
  %v1230 = vpack.c.b16 %v1063, %v1062
  %v1231 = vpack.c.b16 %v1065, %v1064
  %v1232 = vpack.c.b16 %v1067, %v1066
  %v1233 = vpack.c.b16 %v1069, %v1068
  %v1234 = vpack.c.b16 %v1071, %v1070
  %v1235 = vpack.c.b16 %v1073, %v1072
  %v1236 = vpack.c.b16 %v1075, %v1074
  %v1237 = vpack.c.b16 %v1077, %v1076
  %v1238 = vpack.c.b16 %v1079, %v1078
  %v1239 = vpack.c.b16 %v1081, %v1080
  %v1240 = vpack.c.b16 %v1083, %v1082
  %v1241 = vpack.c.b16 %v1085, %v1084
  %v1242 = vpack.c.b16 %v1087, %v1086
  %v1243 = vpack.c.b16 %v1089, %v1088
  %v1244 = vpack.c.b16 %v1091, %v1090
  %v1245 = vpack.c.b16 %v1093, %v1092
  %v1246 = vpack.c.b16 %v1095, %v1094
  %v1247 = vpack.c.b16 %v1097, %v1096
  %v1248 = vpack.c.b16 %v1099, %v1098
  %v1249 = vpack.c.b16 %v1101, %v1100
  %v1250 = vpack.c.b16 %v1103, %v1102
  %v1251 = vpack.c.b16 %v1105, %v1104
  %v1252 = vpack.c.b16 %v1107, %v1106
  %v1253 = vpack.c.b16 %v1109, %v1108
  %v1254 = vpack.c.b16 %v1111, %v1110
  %v1255 = vpack.c.b16 %v1113, %v1112
  %v1256 = vpack.c.b16 %v1115, %v1114
  %v1257 = vpack.c.b16 %v1117, %v1116
  %v1258 = vpack.c.b16 %v1119, %v1118
  %v1259 = vpack.c.b16 %v1121, %v1120
  %v1260 = vpack.c.b16 %v1123, %v1122
  %v1261 = vpack.c.b16 %v1125, %v1124
  %v1262 = vpack.c.b16 %v1127, %v1126
  %v1263 = vpack.c.b16 %v1129, %v1128
  %v1264 = vpack.c.b16 %v1131, %v1130
  %v1265 = vpack.c.b16 %v1133, %v1132
  %v1266 = vpack.c.b16 %v1135, %v1134
  %v1267 = vpack.c.b16 %v1137, %v1136
  %v1268 = vpack.c.b16 %v1139, %v1138
  %v1269 = vpack.c.b16 %v1141, %v1140
  %1398 = vmatprep.subr.bf16.mxu0 0
  %1399 = vmatpush1.bf16.msra.mxu0 %v1142
  %1400 = vmatprep.subr.bf16.mxu0 0
  %1401 = vmatpush1.bf16.msra.mxu0 %v1143
  %1402 = vmatprep.subr.bf16.mxu0 0
  %1403 = vmatpush1.bf16.msra.mxu0 %v1144
  %1404 = vmatprep.subr.bf16.mxu0 0
  %1405 = vmatpush1.bf16.msra.mxu0 %v1145
  %1406 = vmatprep.subr.bf16.mxu0 0
  %1407 = vmatpush1.bf16.msra.mxu0 %v1146
  %1408 = vmatprep.subr.bf16.mxu0 0
  %1409 = vmatpush1.bf16.msra.mxu0 %v1147
  %1410 = vmatprep.subr.bf16.mxu0 0
  %1411 = vmatpush1.bf16.msra.mxu0 %v1148
  %1412 = vmatprep.subr.bf16.mxu0 0
  %1413 = vmatpush1.bf16.msra.mxu0 %v1149
  %1414 = vmatprep.subr.bf16.mxu0 0
  %1415 = vmatpush1.bf16.msra.mxu0 %v1150
  %1416 = vmatprep.subr.bf16.mxu0 0
  %1417 = vmatpush1.bf16.msra.mxu0 %v1151
  %1418 = vmatprep.subr.bf16.mxu0 0
  %1419 = vmatpush1.bf16.msra.mxu0 %v1152
  %1420 = vmatprep.subr.bf16.mxu0 0
  %1421 = vmatpush1.bf16.msra.mxu0 %v1153
  %1422 = vmatprep.subr.bf16.mxu0 0
  %1423 = vmatpush1.bf16.msra.mxu0 %v1154
  %1424 = vmatprep.subr.bf16.mxu0 0
  %1425 = vmatpush1.bf16.msra.mxu0 %v1155
  %1426 = vmatprep.subr.bf16.mxu0 0
  %1427 = vmatpush1.bf16.msra.mxu0 %v1156
  %1428 = vmatprep.subr.bf16.mxu0 0
  %1429 = vmatpush1.bf16.msra.mxu0 %v1157
  %1430 = vmatprep.mubr.bf16.mxu0 %v503
  %1431 = vmatmul.mubr.bf16.gmra.mrb[0].mxu0 %v502
  %v1432 = vpop.f32.mrb[0].mxu0
  %v1433 = vadd.f32 %v332, %v1432
  %v1434 = vpop.f32.mrb[0].mxu0
  %v1435 = vpop.f32.mrb[0].mxu0
  %v1436 = vadd.f32 %v332, %v1435
  %v1437 = vpop.f32.mrb[0].mxu0
  %1438 = vmatprep.mubr.bf16.mxu0 %v519
  %1439 = vmatmul.mubr.bf16.gmra.mrb[0].mxu0 %v518
  %v1440 = vpop.f32.mrb[0].mxu0
  %v1441 = vadd.f32 %v332, %v1440
  %v1442 = vpop.f32.mrb[0].mxu0
  %v1443 = vpop.f32.mrb[0].mxu0
  %v1444 = vadd.f32 %v332, %v1443
  %v1445 = vpop.f32.mrb[0].mxu0
  %1446 = vmatprep.mubr.bf16.mxu0 %v535
  %1447 = vmatmul.mubr.bf16.gmra.mrb[0].mxu0 %v534
  %v1448 = vpop.f32.mrb[0].mxu0
  %v1449 = vadd.f32 %v332, %v1448
  %v1450 = vpop.f32.mrb[0].mxu0
  %v1451 = vpop.f32.mrb[0].mxu0
  %v1452 = vadd.f32 %v332, %v1451
  %v1453 = vpop.f32.mrb[0].mxu0
  %1454 = vmatprep.mubr.bf16.mxu0 %v551
  %1455 = vmatmul.mubr.bf16.gmra.mrb[0].mxu0 %v550
  %v1456 = vpop.f32.mrb[0].mxu0
  %v1457 = vadd.f32 %v332, %v1456
  %v1458 = vpop.f32.mrb[0].mxu0
  %v1459 = vpop.f32.mrb[0].mxu0
  %v1460 = vpop.f32.mrb[0].mxu0
  %1461 = vdwg.mxu0
  %1462 = vmatprep.subr.bf16.mxu0 0
  %1463 = vmatpush1.bf16.msra.mxu0 %v1158
  %1464 = vmatprep.subr.bf16.mxu0 0
  %1465 = vmatpush1.bf16.msra.mxu0 %v1159
  %1466 = vmatprep.subr.bf16.mxu0 0
  %1467 = vmatpush1.bf16.msra.mxu0 %v1160
  %1468 = vmatprep.subr.bf16.mxu0 0
  %1469 = vmatpush1.bf16.msra.mxu0 %v1161
  %1470 = vmatprep.subr.bf16.mxu0 0
  %1471 = vmatpush1.bf16.msra.mxu0 %v1162
  %1472 = vmatprep.subr.bf16.mxu0 0
  %1473 = vmatpush1.bf16.msra.mxu0 %v1163
  %1474 = vmatprep.subr.bf16.mxu0 0
  %1475 = vmatpush1.bf16.msra.mxu0 %v1164
  %1476 = vmatprep.subr.bf16.mxu0 0
  %1477 = vmatpush1.bf16.msra.mxu0 %v1165
  %1478 = vmatprep.subr.bf16.mxu0 0
  %1479 = vmatpush1.bf16.msra.mxu0 %v1166
  %1480 = vmatprep.subr.bf16.mxu0 0
  %1481 = vmatpush1.bf16.msra.mxu0 %v1167
  %1482 = vmatprep.subr.bf16.mxu0 0
  %1483 = vmatpush1.bf16.msra.mxu0 %v1168
  %1484 = vmatprep.subr.bf16.mxu0 0
  %1485 = vmatpush1.bf16.msra.mxu0 %v1169
  %1486 = vmatprep.subr.bf16.mxu0 0
  %1487 = vmatpush1.bf16.msra.mxu0 %v1170
  %1488 = vmatprep.subr.bf16.mxu0 0
  %1489 = vmatpush1.bf16.msra.mxu0 %v1171
  %1490 = vmatprep.subr.bf16.mxu0 0
  %1491 = vmatpush1.bf16.msra.mxu0 %v1172
  %1492 = vmatprep.subr.bf16.mxu0 0
  %1493 = vmatpush1.bf16.msra.mxu0 %v1173
  %1494 = vmatprep.mubr.bf16.mxu0 %v505
  %1495 = vmatmul.mubr.bf16.gmra.mrb[0].mxu0 %v504
  %v1496 = vpop.f32.mrb[0].mxu0
  %v1497 = vadd.f32 %v1433, %v1496
  %v1498 = vpop.f32.mrb[0].mxu0
  %v1499 = vpop.f32.mrb[0].mxu0
  %v1500 = vadd.f32 %v1436, %v1499
  %v1501 = vpop.f32.mrb[0].mxu0
  %1502 = vmatprep.mubr.bf16.mxu0 %v521
  %1503 = vmatmul.mubr.bf16.gmra.mrb[0].mxu0 %v520
  %v1504 = vpop.f32.mrb[0].mxu0
  %v1505 = vadd.f32 %v1441, %v1504
  %v1506 = vpop.f32.mrb[0].mxu0
  %v1507 = vpop.f32.mrb[0].mxu0
  %v1508 = vadd.f32 %v1444, %v1507
  %v1509 = vpop.f32.mrb[0].mxu0
  %1510 = vmatprep.mubr.bf16.mxu0 %v537
  %1511 = vmatmul.mubr.bf16.gmra.mrb[0].mxu0 %v536
  %v1512 = vpop.f32.mrb[0].mxu0
  %v1513 = vadd.f32 %v1449, %v1512
  %v1514 = vpop.f32.mrb[0].mxu0
  %v1515 = vpop.f32.mrb[0].mxu0
  %v1516 = vadd.f32 %v1452, %v1515
  %v1517 = vpop.f32.mrb[0].mxu0
  %1518 = vmatprep.mubr.bf16.mxu0 %v553
  %1519 = vmatmul.mubr.bf16.gmra.mrb[0].mxu0 %v552
  %v1520 = vpop.f32.mrb[0].mxu0
  %v1521 = vadd.f32 %v1457, %v1520
  %v1522 = vpop.f32.mrb[0].mxu0
  %v1523 = vpop.f32.mrb[0].mxu0
  %v1524 = vpop.f32.mrb[0].mxu0
  %1525 = vdwg.mxu0
  %1526 = vmatprep.subr.bf16.mxu0 0
  %1527 = vmatpush1.bf16.msra.mxu0 %v1174
  %1528 = vmatprep.subr.bf16.mxu0 0
  %1529 = vmatpush1.bf16.msra.mxu0 %v1175
  %1530 = vmatprep.subr.bf16.mxu0 0
  %1531 = vmatpush1.bf16.msra.mxu0 %v1176
  %1532 = vmatprep.subr.bf16.mxu0 0
  %1533 = vmatpush1.bf16.msra.mxu0 %v1177
  %1534 = vmatprep.subr.bf16.mxu0 0
  %1535 = vmatpush1.bf16.msra.mxu0 %v1178
  %1536 = vmatprep.subr.bf16.mxu0 0
  %1537 = vmatpush1.bf16.msra.mxu0 %v1179
  %1538 = vmatprep.subr.bf16.mxu0 0
  %1539 = vmatpush1.bf16.msra.mxu0 %v1180
  %1540 = vmatprep.subr.bf16.mxu0 0
  %1541 = vmatpush1.bf16.msra.mxu0 %v1181
  %1542 = vmatprep.subr.bf16.mxu0 0
  %1543 = vmatpush1.bf16.msra.mxu0 %v1182
  %1544 = vmatprep.subr.bf16.mxu0 0
  %1545 = vmatpush1.bf16.msra.mxu0 %v1183
  %1546 = vmatprep.subr.bf16.mxu0 0
  %1547 = vmatpush1.bf16.msra.mxu0 %v1184
  %1548 = vmatprep.subr.bf16.mxu0 0
  %1549 = vmatpush1.bf16.msra.mxu0 %v1185
  %1550 = vmatprep.subr.bf16.mxu0 0
  %1551 = vmatpush1.bf16.msra.mxu0 %v1186
  %1552 = vmatprep.subr.bf16.mxu0 0
  %1553 = vmatpush1.bf16.msra.mxu0 %v1187
  %1554 = vmatprep.subr.bf16.mxu0 0
  %1555 = vmatpush1.bf16.msra.mxu0 %v1188
  %1556 = vmatprep.subr.bf16.mxu0 0
  %1557 = vmatpush1.bf16.msra.mxu0 %v1189
  %1558 = vmatprep.mubr.bf16.mxu0 %v507
  %1559 = vmatmul.mubr.bf16.gmra.mrb[0].mxu0 %v506
  %v1560 = vpop.f32.mrb[0].mxu0
  %v1561 = vadd.f32 %v1497, %v1560
  %v1562 = vpop.f32.mrb[0].mxu0
  %v1563 = vpop.f32.mrb[0].mxu0
  %v1564 = vadd.f32 %v1500, %v1563
  %v1565 = vpop.f32.mrb[0].mxu0
  %1566 = vmatprep.mubr.bf16.mxu0 %v523
  %1567 = vmatmul.mubr.bf16.gmra.mrb[0].mxu0 %v522
  %v1568 = vpop.f32.mrb[0].mxu0
  %v1569 = vadd.f32 %v1505, %v1568
  %v1570 = vpop.f32.mrb[0].mxu0
  %v1571 = vpop.f32.mrb[0].mxu0
  %v1572 = vadd.f32 %v1508, %v1571
  %v1573 = vpop.f32.mrb[0].mxu0
  %1574 = vmatprep.mubr.bf16.mxu0 %v539
  %1575 = vmatmul.mubr.bf16.gmra.mrb[0].mxu0 %v538
  %v1576 = vpop.f32.mrb[0].mxu0
  %v1577 = vadd.f32 %v1513, %v1576
  %v1578 = vpop.f32.mrb[0].mxu0
  %v1579 = vpop.f32.mrb[0].mxu0
  %v1580 = vadd.f32 %v1516, %v1579
  %v1581 = vpop.f32.mrb[0].mxu0
  %1582 = vmatprep.mubr.bf16.mxu0 %v555
  %1583 = vmatmul.mubr.bf16.gmra.mrb[0].mxu0 %v554
  %v1584 = vpop.f32.mrb[0].mxu0
  %v1585 = vadd.f32 %v1521, %v1584
  %v1586 = vpop.f32.mrb[0].mxu0
  %v1587 = vpop.f32.mrb[0].mxu0
  %v1588 = vpop.f32.mrb[0].mxu0
  %1589 = vdwg.mxu0
  %1590 = vmatprep.subr.bf16.mxu0 0
  %1591 = vmatpush1.bf16.msra.mxu0 %v1190
  %1592 = vmatprep.subr.bf16.mxu0 0
  %1593 = vmatpush1.bf16.msra.mxu0 %v1191
  %1594 = vmatprep.subr.bf16.mxu0 0
  %1595 = vmatpush1.bf16.msra.mxu0 %v1192
  %1596 = vmatprep.subr.bf16.mxu0 0
  %1597 = vmatpush1.bf16.msra.mxu0 %v1193
  %1598 = vmatprep.subr.bf16.mxu0 0
  %1599 = vmatpush1.bf16.msra.mxu0 %v1194
  %1600 = vmatprep.subr.bf16.mxu0 0
  %1601 = vmatpush1.bf16.msra.mxu0 %v1195
  %1602 = vmatprep.subr.bf16.mxu0 0
  %1603 = vmatpush1.bf16.msra.mxu0 %v1196
  %1604 = vmatprep.subr.bf16.mxu0 0
  %1605 = vmatpush1.bf16.msra.mxu0 %v1197
  %1606 = vmatprep.subr.bf16.mxu0 0
  %1607 = vmatpush1.bf16.msra.mxu0 %v1198
  %1608 = vmatprep.subr.bf16.mxu0 0
  %1609 = vmatpush1.bf16.msra.mxu0 %v1199
  %1610 = vmatprep.subr.bf16.mxu0 0
  %1611 = vmatpush1.bf16.msra.mxu0 %v1200
  %1612 = vmatprep.subr.bf16.mxu0 0
  %1613 = vmatpush1.bf16.msra.mxu0 %v1201
  %1614 = vmatprep.subr.bf16.mxu0 0
  %1615 = vmatpush1.bf16.msra.mxu0 %v1202
  %1616 = vmatprep.subr.bf16.mxu0 0
  %1617 = vmatpush1.bf16.msra.mxu0 %v1203
  %1618 = vmatprep.subr.bf16.mxu0 0
  %1619 = vmatpush1.bf16.msra.mxu0 %v1204
  %1620 = vmatprep.subr.bf16.mxu0 0
  %1621 = vmatpush1.bf16.msra.mxu0 %v1205
  %1622 = vmatprep.mubr.bf16.mxu0 %v509
  %1623 = vmatmul.mubr.bf16.gmra.mrb[0].mxu0 %v508
  %v1624 = vpop.f32.mrb[0].mxu0
  %v1625 = vadd.f32 %v1561, %v1624
  %v1626 = vpop.f32.mrb[0].mxu0
  %v1627 = vpop.f32.mrb[0].mxu0
  %v1628 = vadd.f32 %v1564, %v1627
  %v1629 = vpop.f32.mrb[0].mxu0
  %1630 = vmatprep.mubr.bf16.mxu0 %v525
  %1631 = vmatmul.mubr.bf16.gmra.mrb[0].mxu0 %v524
  %v1632 = vpop.f32.mrb[0].mxu0
  %v1633 = vadd.f32 %v1569, %v1632
  %v1634 = vpop.f32.mrb[0].mxu0
  %v1635 = vpop.f32.mrb[0].mxu0
  %v1636 = vadd.f32 %v1572, %v1635
  %v1637 = vpop.f32.mrb[0].mxu0
  %1638 = vmatprep.mubr.bf16.mxu0 %v541
  %1639 = vmatmul.mubr.bf16.gmra.mrb[0].mxu0 %v540
  %v1640 = vpop.f32.mrb[0].mxu0
  %v1641 = vadd.f32 %v1577, %v1640
  %v1642 = vpop.f32.mrb[0].mxu0
  %v1643 = vpop.f32.mrb[0].mxu0
  %v1644 = vadd.f32 %v1580, %v1643
  %v1645 = vpop.f32.mrb[0].mxu0
  %1646 = vmatprep.mubr.bf16.mxu0 %v557
  %1647 = vmatmul.mubr.bf16.gmra.mrb[0].mxu0 %v556
  %v1648 = vpop.f32.mrb[0].mxu0
  %v1649 = vadd.f32 %v1585, %v1648
  %v1650 = vpop.f32.mrb[0].mxu0
  %v1651 = vpop.f32.mrb[0].mxu0
  %v1652 = vpop.f32.mrb[0].mxu0
  %1653 = vdwg.mxu0
  %1654 = vmatprep.subr.bf16.mxu0 0
  %1655 = vmatpush1.bf16.msra.mxu0 %v1206
  %1656 = vmatprep.subr.bf16.mxu0 0
  %1657 = vmatpush1.bf16.msra.mxu0 %v1207
  %1658 = vmatprep.subr.bf16.mxu0 0
  %1659 = vmatpush1.bf16.msra.mxu0 %v1208
  %1660 = vmatprep.subr.bf16.mxu0 0
  %1661 = vmatpush1.bf16.msra.mxu0 %v1209
  %1662 = vmatprep.subr.bf16.mxu0 0
  %1663 = vmatpush1.bf16.msra.mxu0 %v1210
  %1664 = vmatprep.subr.bf16.mxu0 0
  %1665 = vmatpush1.bf16.msra.mxu0 %v1211
  %1666 = vmatprep.subr.bf16.mxu0 0
  %1667 = vmatpush1.bf16.msra.mxu0 %v1212
  %1668 = vmatprep.subr.bf16.mxu0 0
  %1669 = vmatpush1.bf16.msra.mxu0 %v1213
  %1670 = vmatprep.subr.bf16.mxu0 0
  %1671 = vmatpush1.bf16.msra.mxu0 %v1214
  %1672 = vmatprep.subr.bf16.mxu0 0
  %1673 = vmatpush1.bf16.msra.mxu0 %v1215
  %1674 = vmatprep.subr.bf16.mxu0 0
  %1675 = vmatpush1.bf16.msra.mxu0 %v1216
  %1676 = vmatprep.subr.bf16.mxu0 0
  %1677 = vmatpush1.bf16.msra.mxu0 %v1217
  %1678 = vmatprep.subr.bf16.mxu0 0
  %1679 = vmatpush1.bf16.msra.mxu0 %v1218
  %1680 = vmatprep.subr.bf16.mxu0 0
  %1681 = vmatpush1.bf16.msra.mxu0 %v1219
  %1682 = vmatprep.subr.bf16.mxu0 0
  %1683 = vmatpush1.bf16.msra.mxu0 %v1220
  %1684 = vmatprep.subr.bf16.mxu0 0
  %1685 = vmatpush1.bf16.msra.mxu0 %v1221
  %1686 = vmatprep.mubr.bf16.mxu0 %v511
  %1687 = vmatmul.mubr.bf16.gmra.mrb[0].mxu0 %v510
  %v1688 = vpop.f32.mrb[0].mxu0
  %v1689 = vadd.f32 %v1625, %v1688
  %v1690 = vpop.f32.mrb[0].mxu0
  %v1691 = vpop.f32.mrb[0].mxu0
  %v1692 = vadd.f32 %v1628, %v1691
  %v1693 = vpop.f32.mrb[0].mxu0
  %1694 = vmatprep.mubr.bf16.mxu0 %v527
  %1695 = vmatmul.mubr.bf16.gmra.mrb[0].mxu0 %v526
  %v1696 = vpop.f32.mrb[0].mxu0
  %v1697 = vadd.f32 %v1633, %v1696
  %v1698 = vpop.f32.mrb[0].mxu0
  %v1699 = vpop.f32.mrb[0].mxu0
  %v1700 = vadd.f32 %v1636, %v1699
  %v1701 = vpop.f32.mrb[0].mxu0
  %1702 = vmatprep.mubr.bf16.mxu0 %v543
  %1703 = vmatmul.mubr.bf16.gmra.mrb[0].mxu0 %v542
  %v1704 = vpop.f32.mrb[0].mxu0
  %v1705 = vadd.f32 %v1641, %v1704
  %v1706 = vpop.f32.mrb[0].mxu0
  %v1707 = vpop.f32.mrb[0].mxu0
  %v1708 = vadd.f32 %v1644, %v1707
  %v1709 = vpop.f32.mrb[0].mxu0
  %1710 = vmatprep.mubr.bf16.mxu0 %v559
  %1711 = vmatmul.mubr.bf16.gmra.mrb[0].mxu0 %v558
  %v1712 = vpop.f32.mrb[0].mxu0
  %v1713 = vadd.f32 %v1649, %v1712
  %v1714 = vpop.f32.mrb[0].mxu0
  %v1715 = vpop.f32.mrb[0].mxu0
  %v1716 = vpop.f32.mrb[0].mxu0
  %1717 = vdwg.mxu0
  %1718 = vmatprep.subr.bf16.mxu0 0
  %1719 = vmatpush1.bf16.msra.mxu0 %v1222
  %1720 = vmatprep.subr.bf16.mxu0 0
  %1721 = vmatpush1.bf16.msra.mxu0 %v1223
  %1722 = vmatprep.subr.bf16.mxu0 0
  %1723 = vmatpush1.bf16.msra.mxu0 %v1224
  %1724 = vmatprep.subr.bf16.mxu0 0
  %1725 = vmatpush1.bf16.msra.mxu0 %v1225
  %1726 = vmatprep.subr.bf16.mxu0 0
  %1727 = vmatpush1.bf16.msra.mxu0 %v1226
  %1728 = vmatprep.subr.bf16.mxu0 0
  %1729 = vmatpush1.bf16.msra.mxu0 %v1227
  %1730 = vmatprep.subr.bf16.mxu0 0
  %1731 = vmatpush1.bf16.msra.mxu0 %v1228
  %1732 = vmatprep.subr.bf16.mxu0 0
  %1733 = vmatpush1.bf16.msra.mxu0 %v1229
  %1734 = vmatprep.subr.bf16.mxu0 0
  %1735 = vmatpush1.bf16.msra.mxu0 %v1230
  %1736 = vmatprep.subr.bf16.mxu0 0
  %1737 = vmatpush1.bf16.msra.mxu0 %v1231
  %1738 = vmatprep.subr.bf16.mxu0 0
  %1739 = vmatpush1.bf16.msra.mxu0 %v1232
  %1740 = vmatprep.subr.bf16.mxu0 0
  %1741 = vmatpush1.bf16.msra.mxu0 %v1233
  %1742 = vmatprep.subr.bf16.mxu0 0
  %1743 = vmatpush1.bf16.msra.mxu0 %v1234
  %1744 = vmatprep.subr.bf16.mxu0 0
  %1745 = vmatpush1.bf16.msra.mxu0 %v1235
  %1746 = vmatprep.subr.bf16.mxu0 0
  %1747 = vmatpush1.bf16.msra.mxu0 %v1236
  %1748 = vmatprep.subr.bf16.mxu0 0
  %1749 = vmatpush1.bf16.msra.mxu0 %v1237
  %1750 = vmatprep.mubr.bf16.mxu0 %v513
  %1751 = vmatmul.mubr.bf16.gmra.mrb[0].mxu0 %v512
  %v1752 = vpop.f32.mrb[0].mxu0
  %v1753 = vadd.f32 %v1689, %v1752
  %v1754 = vpop.f32.mrb[0].mxu0
  %v1755 = vpop.f32.mrb[0].mxu0
  %v1756 = vadd.f32 %v1692, %v1755
  %v1757 = vpop.f32.mrb[0].mxu0
  %1758 = vmatprep.mubr.bf16.mxu0 %v529
  %1759 = vmatmul.mubr.bf16.gmra.mrb[0].mxu0 %v528
  %v1760 = vpop.f32.mrb[0].mxu0
  %v1761 = vadd.f32 %v1697, %v1760
  %v1762 = vpop.f32.mrb[0].mxu0
  %v1763 = vpop.f32.mrb[0].mxu0
  %v1764 = vadd.f32 %v1700, %v1763
  %v1765 = vpop.f32.mrb[0].mxu0
  %1766 = vmatprep.mubr.bf16.mxu0 %v545
  %1767 = vmatmul.mubr.bf16.gmra.mrb[0].mxu0 %v544
  %v1768 = vpop.f32.mrb[0].mxu0
  %v1769 = vadd.f32 %v1705, %v1768
  %v1770 = vpop.f32.mrb[0].mxu0
  %v1771 = vpop.f32.mrb[0].mxu0
  %v1772 = vadd.f32 %v1708, %v1771
  %v1773 = vpop.f32.mrb[0].mxu0
  %1774 = vmatprep.mubr.bf16.mxu0 %v561
  %1775 = vmatmul.mubr.bf16.gmra.mrb[0].mxu0 %v560
  %v1776 = vpop.f32.mrb[0].mxu0
  %v1777 = vadd.f32 %v1713, %v1776
  %v1778 = vpop.f32.mrb[0].mxu0
  %v1779 = vpop.f32.mrb[0].mxu0
  %v1780 = vpop.f32.mrb[0].mxu0
  %1781 = vdwg.mxu0
  %1782 = vmatprep.subr.bf16.mxu0 0
  %1783 = vmatpush1.bf16.msra.mxu0 %v1238
  %1784 = vmatprep.subr.bf16.mxu0 0
  %1785 = vmatpush1.bf16.msra.mxu0 %v1239
  %1786 = vmatprep.subr.bf16.mxu0 0
  %1787 = vmatpush1.bf16.msra.mxu0 %v1240
  %1788 = vmatprep.subr.bf16.mxu0 0
  %1789 = vmatpush1.bf16.msra.mxu0 %v1241
  %1790 = vmatprep.subr.bf16.mxu0 0
  %1791 = vmatpush1.bf16.msra.mxu0 %v1242
  %1792 = vmatprep.subr.bf16.mxu0 0
  %1793 = vmatpush1.bf16.msra.mxu0 %v1243
  %1794 = vmatprep.subr.bf16.mxu0 0
  %1795 = vmatpush1.bf16.msra.mxu0 %v1244
  %1796 = vmatprep.subr.bf16.mxu0 0
  %1797 = vmatpush1.bf16.msra.mxu0 %v1245
  %1798 = vmatprep.subr.bf16.mxu0 0
  %1799 = vmatpush1.bf16.msra.mxu0 %v1246
  %1800 = vmatprep.subr.bf16.mxu0 0
  %1801 = vmatpush1.bf16.msra.mxu0 %v1247
  %1802 = vmatprep.subr.bf16.mxu0 0
  %1803 = vmatpush1.bf16.msra.mxu0 %v1248
  %1804 = vmatprep.subr.bf16.mxu0 0
  %1805 = vmatpush1.bf16.msra.mxu0 %v1249
  %1806 = vmatprep.subr.bf16.mxu0 0
  %1807 = vmatpush1.bf16.msra.mxu0 %v1250
  %1808 = vmatprep.subr.bf16.mxu0 0
  %1809 = vmatpush1.bf16.msra.mxu0 %v1251
  %1810 = vmatprep.subr.bf16.mxu0 0
  %1811 = vmatpush1.bf16.msra.mxu0 %v1252
  %1812 = vmatprep.subr.bf16.mxu0 0
  %1813 = vmatpush1.bf16.msra.mxu0 %v1253
  %1814 = vmatprep.mubr.bf16.mxu0 %v515
  %1815 = vmatmul.mubr.bf16.gmra.mrb[0].mxu0 %v514
  %v1816 = vpop.f32.mrb[0].mxu0
  %v1817 = vadd.f32 %v1753, %v1816
  %v1818 = vpop.f32.mrb[0].mxu0
  %v1819 = vpop.f32.mrb[0].mxu0
  %v1820 = vadd.f32 %v1756, %v1819
  %v1821 = vpop.f32.mrb[0].mxu0
  %1822 = vmatprep.mubr.bf16.mxu0 %v531
  %1823 = vmatmul.mubr.bf16.gmra.mrb[0].mxu0 %v530
  %v1824 = vpop.f32.mrb[0].mxu0
  %v1825 = vadd.f32 %v1761, %v1824
  %v1826 = vpop.f32.mrb[0].mxu0
  %v1827 = vpop.f32.mrb[0].mxu0
  %v1828 = vadd.f32 %v1764, %v1827
  %v1829 = vpop.f32.mrb[0].mxu0
  %1830 = vmatprep.mubr.bf16.mxu0 %v547
  %1831 = vmatmul.mubr.bf16.gmra.mrb[0].mxu0 %v546
  %v1832 = vpop.f32.mrb[0].mxu0
  %v1833 = vadd.f32 %v1769, %v1832
  %v1834 = vpop.f32.mrb[0].mxu0
  %v1835 = vpop.f32.mrb[0].mxu0
  %v1836 = vadd.f32 %v1772, %v1835
  %v1837 = vpop.f32.mrb[0].mxu0
  %1838 = vmatprep.mubr.bf16.mxu0 %v563
  %1839 = vmatmul.mubr.bf16.gmra.mrb[0].mxu0 %v562
  %v1840 = vpop.f32.mrb[0].mxu0
  %v1841 = vadd.f32 %v1777, %v1840
  %v1842 = vpop.f32.mrb[0].mxu0
  %v1843 = vpop.f32.mrb[0].mxu0
  %v1844 = vpop.f32.mrb[0].mxu0
  %1845 = vdwg.mxu0
  %1846 = vmatprep.subr.bf16.mxu0 0
  %1847 = vmatpush1.bf16.msra.mxu0 %v1254
  %1848 = vmatprep.subr.bf16.mxu0 0
  %1849 = vmatpush1.bf16.msra.mxu0 %v1255
  %1850 = vmatprep.subr.bf16.mxu0 0
  %1851 = vmatpush1.bf16.msra.mxu0 %v1256
  %1852 = vmatprep.subr.bf16.mxu0 0
  %1853 = vmatpush1.bf16.msra.mxu0 %v1257
  %1854 = vmatprep.subr.bf16.mxu0 0
  %1855 = vmatpush1.bf16.msra.mxu0 %v1258
  %1856 = vmatprep.subr.bf16.mxu0 0
  %1857 = vmatpush1.bf16.msra.mxu0 %v1259
  %1858 = vmatprep.subr.bf16.mxu0 0
  %1859 = vmatpush1.bf16.msra.mxu0 %v1260
  %1860 = vmatprep.subr.bf16.mxu0 0
  %1861 = vmatpush1.bf16.msra.mxu0 %v1261
  %1862 = vmatprep.subr.bf16.mxu0 0
  %1863 = vmatpush1.bf16.msra.mxu0 %v1262
  %1864 = vmatprep.subr.bf16.mxu0 0
  %1865 = vmatpush1.bf16.msra.mxu0 %v1263
  %1866 = vmatprep.subr.bf16.mxu0 0
  %1867 = vmatpush1.bf16.msra.mxu0 %v1264
  %1868 = vmatprep.subr.bf16.mxu0 0
  %1869 = vmatpush1.bf16.msra.mxu0 %v1265
  %1870 = vmatprep.subr.bf16.mxu0 0
  %1871 = vmatpush1.bf16.msra.mxu0 %v1266
  %1872 = vmatprep.subr.bf16.mxu0 0
  %1873 = vmatpush1.bf16.msra.mxu0 %v1267
  %1874 = vmatprep.subr.bf16.mxu0 0
  %1875 = vmatpush1.bf16.msra.mxu0 %v1268
  %1876 = vmatprep.subr.bf16.mxu0 0
  %1877 = vmatpush1.bf16.msra.mxu0 %v1269
  %1878 = vmatprep.mubr.bf16.mxu0 %v517
  %1879 = vmatmul.mubr.bf16.gmra.mrb[0].mxu0 %v516
  %v1880 = vpop.f32.mrb[0].mxu0
  %v1881 = vadd.f32 %v1817, %v1880
  %v1882 = vpop.f32.mrb[0].mxu0
  %v1883 = vpop.f32.mrb[0].mxu0
  %v1884 = vadd.f32 %v1820, %v1883
  %v1885 = vpop.f32.mrb[0].mxu0
  %1886 = vmatprep.mubr.bf16.mxu0 %v533
  %1887 = vmatmul.mubr.bf16.gmra.mrb[0].mxu0 %v532
  %v1888 = vpop.f32.mrb[0].mxu0
  %v1889 = vadd.f32 %v1825, %v1888
  %v1890 = vpop.f32.mrb[0].mxu0
  %v1891 = vpop.f32.mrb[0].mxu0
  %v1892 = vadd.f32 %v1828, %v1891
  %v1893 = vpop.f32.mrb[0].mxu0
  %1894 = vmatprep.mubr.bf16.mxu0 %v549
  %1895 = vmatmul.mubr.bf16.gmra.mrb[0].mxu0 %v548
  %v1896 = vpop.f32.mrb[0].mxu0
  %v1897 = vadd.f32 %v1833, %v1896
  %v1898 = vpop.f32.mrb[0].mxu0
  %v1899 = vpop.f32.mrb[0].mxu0
  %v1900 = vadd.f32 %v1836, %v1899
  %v1901 = vpop.f32.mrb[0].mxu0
  %1902 = vmatprep.mubr.bf16.mxu0 %v565
  %1903 = vmatmul.mubr.bf16.gmra.mrb[0].mxu0 %v564
  %v1904 = vpop.f32.mrb[0].mxu0
  %v1905 = vadd.f32 %v1841, %v1904
  %v1906 = vpop.f32.mrb[0].mxu0
  %v1907 = vpop.f32.mrb[0].mxu0
  %v1908 = vpop.f32.mrb[0].mxu0
  %1909 = vdwg.mxu0
  %1910 = vst [vmem:[%s3] sm:$0xff] %v1881
  %1911 = vst [vmem:[%s3 + $0x8] sm:$0xff] %v1884
  %1912 = vst [vmem:[%s3 + $0x10] sm:$0xff] %v1889
  %1913 = vst [vmem:[%s3 + $0x18] sm:$0xff] %v1892
  %1914 = vst [vmem:[%s3 + $0x20] sm:$0xff] %v1897
  %1915 = vst [vmem:[%s3 + $0x28] sm:$0xff] %v1900
  %1916 = vst [vmem:[%s3 + $0x30] sm:$0xff] %v1905
  // Predicated region
  $region14: #{multi_discriminator_forward.22} parent=0 // pred_check
    _
  $region15: #{multi_discriminator_forward.22} parent=0 // pred_check_branch
    %1918 = sbr.rel (0) target = $region17
  $region16: #{multi_discriminator_forward.22} parent=0 // pred_region
    _
  $region17: #{multi_discriminator_forward.22} parent=0 // pred_fallthru
    _
  // Predicated region
  $region18: #{multi_discriminator_forward.22} parent=0 // pred_check
    _
  $region19: #{multi_discriminator_forward.22} parent=0 // pred_check_branch
    %1920 = sbr.rel (0) target = $region21
  $region20: #{multi_discriminator_forward.22} parent=0 // pred_region
    _
  $region21: #{multi_discriminator_forward.22} parent=0 // pred_fallthru
    _

</llo_original>
